<compile_context>
chip_gen: v7x
topology: tpu7x:2x2x1
jax: 0.10.0
libtpu: 0.0.40
codegen_flags: <defaults>
</compile_context>

<pallas_src>
import functools
import math

import numpy as np
import jax
import jax.numpy as jnp
from jax.experimental import pallas as pl
from jax.experimental.pallas import tpu as pltpu


# --------------------------- host-side constants ---------------------------- #

def _avg_matrix(seq_len, stride):
    """A[i, j] = 1/window for j in [max(0, i-stride), i]  (FSMN causal mean)."""
    i = np.arange(seq_len)[:, None]
    j = np.arange(seq_len)[None, :]
    start = np.maximum(0, i - stride)
    mask = (j >= start) & (j <= i)
    counts = mask.sum(axis=1, keepdims=True)
    return mask.astype(np.float32) / counts


# ------------------------------ fused kernel -------------------------------- #

def _layernorm(z, g, b, eps):
    mu = jnp.mean(z, axis=-1, keepdims=True)
    var = jnp.mean(jnp.square(z - mu), axis=-1, keepdims=True)
    return (z - mu) * jax.lax.rsqrt(var + eps) * g + b


def _send_kernel(x_ref, spk_ref, a_sp_ref, a_po_ref,
                 w_sp0_ref, b_sp0_ref, w_sp_ref, b_sp_ref,
                 sw0_ref, sb0_ref, sw1_ref, sb1_ref, sw2_ref, sb2_ref,
                 in_w_ref, in_b_ref, out_w_ref, out_b_ref,
                 ff1_w_ref, ff1_b_ref, ff2_w_ref, ff2_b_ref,
                 ln1_g_ref, ln1_b_ref, ln2_g_ref, ln2_b_ref,
                 w_po_ref, b_po_ref,
                 aw_ci_ref, aw_cd_ref, ab_ref,
                 cw0_ref, cb0_ref, cw1_ref, cb1_ref,
                 o_ref,
                 *, nheads, hidden_dim, n_speech, n_post, n_cd, ln_eps):
    f32 = jnp.float32
    H = hidden_dim
    hd = H // nheads
    scale = 1.0 / math.sqrt(hd)

    def dot(a, b):
        return jnp.dot(a, b, preferred_element_type=f32)

    # ---- speech encoder: n_speech FSMN layers (fused [x | A@x] matmul) ----
    h = x_ref[0]                                             # (T, Din)
    for i in range(n_speech):
        a = a_sp_ref[i]                                      # (T, T)
        hm = dot(a, h)                                       # causal mean
        hx = jnp.concatenate([h, hm], axis=-1)               # (T, 2*Din)
        if i == 0:
            h = dot(hx, w_sp0_ref[...]) + b_sp0_ref[...]
        else:
            h = dot(hx, w_sp_ref[i - 1]) + b_sp_ref[i - 1]   # (T, H)

    # ---- speaker encoder: Linear-ReLU-Linear-ReLU-Linear ----
    s = spk_ref[0]                                           # (S_pad, 192)
    s = jnp.maximum(dot(s, sw0_ref[...]) + sb0_ref[...], 0.0)
    s = jnp.maximum(dot(s, sw1_ref[...]) + sb1_ref[...], 0.0)
    s = dot(s, sw2_ref[...]) + sb2_ref[...]                  # (S_pad, H)

    # ---- cd scorer: 4 post-norm transformer encoder layers ----
    cd = h
    for l in range(n_cd):
        qkv = dot(cd, in_w_ref[l]) + in_b_ref[l]             # (T, 3H)
        q = qkv[:, :H]
        k = qkv[:, H:2 * H]
        v = qkv[:, 2 * H:]
        head_outs = []
        for hh in range(nheads):                              # static lane slices
            lo, hi = hh * hd, (hh + 1) * hd
            qh, kh, vh = q[:, lo:hi], k[:, lo:hi], v[:, lo:hi]
            sc = dot(qh, kh.T) * scale                        # (T, T)
            sc = sc - jnp.max(sc, axis=-1, keepdims=True)
            p = jnp.exp(sc)
            p = p * pl.reciprocal(jnp.sum(p, axis=-1, keepdims=True), approx=True)
            head_outs.append(dot(p, vh))                      # (T, hd)
        attn = jnp.concatenate(head_outs, axis=-1)            # (T, H)
        attn = dot(attn, out_w_ref[l]) + out_b_ref[l]
        cd = _layernorm(cd + attn, ln1_g_ref[l], ln1_b_ref[l], ln_eps)
        ff = jnp.maximum(dot(cd, ff1_w_ref[l]) + ff1_b_ref[l], 0.0)
        ff = dot(ff, ff2_w_ref[l]) + ff2_b_ref[l]
        cd = _layernorm(cd + ff, ln2_g_ref[l], ln2_b_ref[l], ln_eps)

    # ---- combine: concat([ci, cd]) @ W  ==  h @ (sᵀ @ W_ci) + cd @ W_cd + b ----
    m_ci = dot(s.T, aw_ci_ref[...])                           # (H, H); padded spk
    comb = dot(h, m_ci) + dot(cd, aw_cd_ref[...]) + ab_ref[...]   # rows hit zero W

    # ---- post net: n_post FSMN layers ----
    for i in range(n_post):
        a = a_po_ref[i]
        cm = dot(a, comb)
        comb = dot(jnp.concatenate([comb, cm], axis=-1), w_po_ref[i]) + b_po_ref[i]

    # ---- classifier (final weight lane-padded to 128; slice in wrapper) ----
    out = jnp.maximum(dot(comb, cw0_ref[...]) + cb0_ref[...], 0.0)
    out = dot(out, cw1_ref[...]) + cb1_ref[...]               # (T, C_pad)
    o_ref[0] = out.astype(o_ref.dtype)


# ------------------------------ param init ---------------------------------- #

def init_params(key, input_dim, hidden_dim, num_classes, spk_dim, num_speakers):
    keys = iter(jax.random.split(key, 256))

    def lin(din, dout):
        k1, k2 = jax.random.split(next(keys))
        bound = 1.0 / math.sqrt(din)
        w = jax.random.uniform(k1, (din, dout), jnp.float32, -bound, bound)
        b = jax.random.uniform(k2, (dout,), jnp.float32, -bound, bound)
        return w, b

    params = {"hidden_dim": hidden_dim, "nheads": 4}

    speech = []
    for i in range(8):
        din = input_dim if i == 0 else hidden_dim
        wl, bl = lin(din, hidden_dim)
        wm, bm = lin(din, hidden_dim)
        speech.append({"wl": wl, "wm": wm, "bias": bl + bm, "stride": 2 ** i})
    params["speech_encoder"] = speech

    params["speaker_encoder"] = [lin(spk_dim, hidden_dim),
                                 lin(hidden_dim, hidden_dim),
                                 lin(hidden_dim, hidden_dim)]

    cd = []
    for _ in range(4):
        in_w, in_b = lin(hidden_dim, 3 * hidden_dim)
        out_w, out_b = lin(hidden_dim, hidden_dim)
        ff1_w, ff1_b = lin(hidden_dim, 4 * hidden_dim)
        ff2_w, ff2_b = lin(4 * hidden_dim, hidden_dim)
        cd.append({
            "in_w": in_w, "in_b": in_b, "out_w": out_w, "out_b": out_b,
            "ff1_w": ff1_w, "ff1_b": ff1_b, "ff2_w": ff2_w, "ff2_b": ff2_b,
            "ln1_g": jnp.ones((hidden_dim,), jnp.float32),
            "ln1_b": jnp.zeros((hidden_dim,), jnp.float32),
            "ln2_g": jnp.ones((hidden_dim,), jnp.float32),
            "ln2_b": jnp.zeros((hidden_dim,), jnp.float32),
        })
    params["cd_scorer"] = cd

    post = []
    for i in range(6):
        wl, bl = lin(hidden_dim, hidden_dim)
        wm, bm = lin(hidden_dim, hidden_dim)
        post.append({"wl": wl, "wm": wm, "bias": bl + bm, "stride": 2 ** i})
    params["post_net"] = post

    params["combine_adapter"] = lin(num_speakers + hidden_dim, hidden_dim)
    params["classifier"] = [lin(hidden_dim, hidden_dim),
                            lin(hidden_dim, num_classes)]
    return params


# ------------------------------ wrapper -------------------------------------- #

def _pack_inputs(params, x, spk_emb, num_classes):
    B, T, _ = x.shape
    H = params["hidden_dim"]
    S = spk_emb.shape[1]
    spk_dim = spk_emb.shape[2]

    # Pad speaker axis up to a sublane multiple (8); padded rows multiply
    # zero-padded rows of aw_ci, so they contribute nothing.
    S_pad = ((S + 7) // 8) * 8
    spk_p = jnp.zeros((B, S_pad, spk_dim), jnp.float32).at[:, :S, :].set(spk_emb)

    a_sp = jnp.asarray(np.stack([_avg_matrix(T, lp["stride"])
                                 for lp in params["speech_encoder"]]))
    a_po = jnp.asarray(np.stack([_avg_matrix(T, lp["stride"])
                                 for lp in params["post_net"]]))

    sp = params["speech_encoder"]
    w_sp0 = jnp.concatenate([sp[0]["wl"], sp[0]["wm"]], axis=0)       # (2*Din, H)
    b_sp0 = sp[0]["bias"].reshape(1, H)
    w_sp = jnp.stack([jnp.concatenate([lp["wl"], lp["wm"]], axis=0) for lp in sp[1:]])
    b_sp = jnp.stack([lp["bias"].reshape(1, H) for lp in sp[1:]])

    (sw0, sb0), (sw1, sb1), (sw2, sb2) = params["speaker_encoder"]
    sb0, sb1, sb2 = sb0.reshape(1, -1), sb1.reshape(1, -1), sb2.reshape(1, -1)

    cd = params["cd_scorer"]
    in_w = jnp.stack([l["in_w"] for l in cd])
    in_b = jnp.stack([l["in_b"].reshape(1, -1) for l in cd])
    out_w = jnp.stack([l["out_w"] for l in cd])
    out_b = jnp.stack([l["out_b"].reshape(1, -1) for l in cd])
    ff1_w = jnp.stack([l["ff1_w"] for l in cd])
    ff1_b = jnp.stack([l["ff1_b"].reshape(1, -1) for l in cd])
    ff2_w = jnp.stack([l["ff2_w"] for l in cd])
    ff2_b = jnp.stack([l["ff2_b"].reshape(1, -1) for l in cd])
    ln1_g = jnp.stack([l["ln1_g"].reshape(1, -1) for l in cd])
    ln1_b = jnp.stack([l["ln1_b"].reshape(1, -1) for l in cd])
    ln2_g = jnp.stack([l["ln2_g"].reshape(1, -1) for l in cd])
    ln2_b = jnp.stack([l["ln2_b"].reshape(1, -1) for l in cd])

    po = params["post_net"]
    w_po = jnp.stack([jnp.concatenate([lp["wl"], lp["wm"]], axis=0) for lp in po])
    b_po = jnp.stack([lp["bias"].reshape(1, H) for lp in po])

    aw, ab = params["combine_adapter"]
    aw_ci = jnp.zeros((S_pad, H), jnp.float32).at[:S].set(aw[:S])     # zero-pad rows
    aw_cd = aw[S:]
    ab = ab.reshape(1, H)

    (cw0, cb0), (cw1, cb1) = params["classifier"]
    cb0 = cb0.reshape(1, -1)
    c_pad = max(128, pl.cdiv(num_classes, 128) * 128)
    cw1p = jnp.zeros((H, c_pad), jnp.float32).at[:, :num_classes].set(cw1)
    cb1p = jnp.zeros((1, c_pad), jnp.float32).at[:, :num_classes].set(cb1.reshape(1, -1))

    args = [x, spk_p, a_sp, a_po,
            w_sp0, b_sp0, w_sp, b_sp,
            sw0, sb0, sw1, sb1, sw2, sb2,
            in_w, in_b, out_w, out_b, ff1_w, ff1_b, ff2_w, ff2_b,
            ln1_g, ln1_b, ln2_g, ln2_b,
            w_po, b_po,
            aw_ci, aw_cd, ab,
            cw0, cb0, cw1p, cb1p]
    return args, c_pad


def send_forward(params, x, spk_emb, num_classes):
    B, T, _ = x.shape
    H = params["hidden_dim"]
    args, c_pad = _pack_inputs(params, x, spk_emb, num_classes)

    in_specs = []
    for idx, a in enumerate(args):
        nd = a.ndim
        if idx in (0, 1):   # x, speaker embeddings: tiled over batch
            in_specs.append(
                pl.BlockSpec((1,) + a.shape[1:],
                             lambda b, _nd=nd: (b,) + (0,) * (_nd - 1)))
        else:               # weights / constants: same block every grid step
            in_specs.append(
                pl.BlockSpec(a.shape, lambda b, _nd=nd: (0,) * _nd))

    kernel = functools.partial(
        _send_kernel,
        nheads=params["nheads"], hidden_dim=H,
        n_speech=len(params["speech_encoder"]),
        n_post=len(params["post_net"]),
        n_cd=len(params["cd_scorer"]),
        ln_eps=1e-5)

    out = pl.pallas_call(
        kernel,
        out_shape=jax.ShapeDtypeStruct((B, T, c_pad), jnp.float32),
        grid=(B,),
        in_specs=in_specs,
        out_specs=pl.BlockSpec((1, T, c_pad), lambda b: (b, 0, 0)),
        compiler_params=pltpu.CompilerParams(
            dimension_semantics=("parallel",),
            vmem_limit_bytes=32 * 1024 * 1024),
    )(*args)
    return out[:, :, :num_classes]


# ---------------------------------- main ------------------------------------- #

if __name__ == "__main__":
    B, T, INPUT_DIM = 2, 8, 16
    HIDDEN = 32            # divisible by nhead=4
    NUM_CLASSES = 16
    SPK_DIM = 192          # hardcoded in the PyTorch module's speaker_encoder
    NUM_SPEAKERS = 3

    key = jax.random.PRNGKey(0)
    kx, ks, kp = jax.random.split(key, 3)
    x = jax.random.normal(kx, (B, T, INPUT_DIM), jnp.float32)
    speaker_embeddings = jax.random.normal(ks, (B, NUM_SPEAKERS, SPK_DIM), jnp.float32)
    params = init_params(kp, INPUT_DIM, HIDDEN, NUM_CLASSES, SPK_DIM, NUM_SPEAKERS)

    out = send_forward(params, x, speaker_embeddings, NUM_CLASSES)
    jax.block_until_ready(out)
    assert out.shape == (B, T, NUM_CLASSES), out.shape
    assert bool(jnp.all(jnp.isfinite(out)))
    print("KERNEL_OK")
</pallas_src>

<mosaic_0001>
module attributes {stable_mosaic.version = 11 : i64} {
  func.func @_send_kernel(%arg0: i32, %arg1: memref<1x8x16xf32, #tpu.memory_space<vmem>>, %arg2: memref<1x8x192xf32, #tpu.memory_space<vmem>>, %arg3: memref<8x8x8xf32, #tpu.memory_space<vmem>>, %arg4: memref<6x8x8xf32, #tpu.memory_space<vmem>>, %arg5: memref<32x32xf32, #tpu.memory_space<vmem>>, %arg6: memref<1x32xf32, #tpu.memory_space<vmem>>, %arg7: memref<7x64x32xf32, #tpu.memory_space<vmem>>, %arg8: memref<7x1x32xf32, #tpu.memory_space<vmem>>, %arg9: memref<192x32xf32, #tpu.memory_space<vmem>>, %arg10: memref<1x32xf32, #tpu.memory_space<vmem>>, %arg11: memref<32x32xf32, #tpu.memory_space<vmem>>, %arg12: memref<1x32xf32, #tpu.memory_space<vmem>>, %arg13: memref<32x32xf32, #tpu.memory_space<vmem>>, %arg14: memref<1x32xf32, #tpu.memory_space<vmem>>, %arg15: memref<4x32x96xf32, #tpu.memory_space<vmem>>, %arg16: memref<4x1x96xf32, #tpu.memory_space<vmem>>, %arg17: memref<4x32x32xf32, #tpu.memory_space<vmem>>, %arg18: memref<4x1x32xf32, #tpu.memory_space<vmem>>, %arg19: memref<4x32x128xf32, #tpu.memory_space<vmem>>, %arg20: memref<4x1x128xf32, #tpu.memory_space<vmem>>, %arg21: memref<4x128x32xf32, #tpu.memory_space<vmem>>, %arg22: memref<4x1x32xf32, #tpu.memory_space<vmem>>, %arg23: memref<4x1x32xf32, #tpu.memory_space<vmem>>, %arg24: memref<4x1x32xf32, #tpu.memory_space<vmem>>, %arg25: memref<4x1x32xf32, #tpu.memory_space<vmem>>, %arg26: memref<4x1x32xf32, #tpu.memory_space<vmem>>, %arg27: memref<6x64x32xf32, #tpu.memory_space<vmem>>, %arg28: memref<6x1x32xf32, #tpu.memory_space<vmem>>, %arg29: memref<8x32xf32, #tpu.memory_space<vmem>>, %arg30: memref<32x32xf32, #tpu.memory_space<vmem>>, %arg31: memref<1x32xf32, #tpu.memory_space<vmem>>, %arg32: memref<32x32xf32, #tpu.memory_space<vmem>>, %arg33: memref<1x32xf32, #tpu.memory_space<vmem>>, %arg34: memref<32x128xf32, #tpu.memory_space<vmem>>, %arg35: memref<1x128xf32, #tpu.memory_space<vmem>>, %arg36: memref<1x8x128xf32, #tpu.memory_space<vmem>>) attributes {dimension_semantics = [#tpu.dimension_semantics<parallel>], iteration_bounds = array<i64: 2>, scalar_prefetch = 0 : i64, scratch_operands = 0 : i64, tpu.core_type = #tpu.core_type<tc>, window_params = [{transform_indices = @transform_0, window_bounds = array<i64: 1, 8, 16>}, {transform_indices = @transform_1, window_bounds = array<i64: 1, 8, 192>}, {pipeline_mode = #tpu.pipeline_mode<synchronous>, transform_indices = @transform_2, window_bounds = array<i64: 8, 8, 8>}, {pipeline_mode = #tpu.pipeline_mode<synchronous>, transform_indices = @transform_3, window_bounds = array<i64: 6, 8, 8>}, {pipeline_mode = #tpu.pipeline_mode<synchronous>, transform_indices = @transform_4, window_bounds = array<i64: 32, 32>}, {pipeline_mode = #tpu.pipeline_mode<synchronous>, transform_indices = @transform_5, window_bounds = array<i64: 1, 32>}, {pipeline_mode = #tpu.pipeline_mode<synchronous>, transform_indices = @transform_6, window_bounds = array<i64: 7, 64, 32>}, {pipeline_mode = #tpu.pipeline_mode<synchronous>, transform_indices = @transform_7, window_bounds = array<i64: 7, 1, 32>}, {pipeline_mode = #tpu.pipeline_mode<synchronous>, transform_indices = @transform_8, window_bounds = array<i64: 192, 32>}, {pipeline_mode = #tpu.pipeline_mode<synchronous>, transform_indices = @transform_9, window_bounds = array<i64: 1, 32>}, {pipeline_mode = #tpu.pipeline_mode<synchronous>, transform_indices = @transform_10, window_bounds = array<i64: 32, 32>}, {pipeline_mode = #tpu.pipeline_mode<synchronous>, transform_indices = @transform_11, window_bounds = array<i64: 1, 32>}, {pipeline_mode = #tpu.pipeline_mode<synchronous>, transform_indices = @transform_12, window_bounds = array<i64: 32, 32>}, {pipeline_mode = #tpu.pipeline_mode<synchronous>, transform_indices = @transform_13, window_bounds = array<i64: 1, 32>}, {pipeline_mode = #tpu.pipeline_mode<synchronous>, transform_indices = @transform_14, window_bounds = array<i64: 4, 32, 96>}, {pipeline_mode = #tpu.pipeline_mode<synchronous>, transform_indices = @transform_15, window_bounds = array<i64: 4, 1, 96>}, {pipeline_mode = #tpu.pipeline_mode<synchronous>, transform_indices = @transform_16, window_bounds = array<i64: 4, 32, 32>}, {pipeline_mode = #tpu.pipeline_mode<synchronous>, transform_indices = @transform_17, window_bounds = array<i64: 4, 1, 32>}, {pipeline_mode = #tpu.pipeline_mode<synchronous>, transform_indices = @transform_18, window_bounds = array<i64: 4, 32, 128>}, {pipeline_mode = #tpu.pipeline_mode<synchronous>, transform_indices = @transform_19, window_bounds = array<i64: 4, 1, 128>}, {pipeline_mode = #tpu.pipeline_mode<synchronous>, transform_indices = @transform_20, window_bounds = array<i64: 4, 128, 32>}, {pipeline_mode = #tpu.pipeline_mode<synchronous>, transform_indices = @transform_21, window_bounds = array<i64: 4, 1, 32>}, {pipeline_mode = #tpu.pipeline_mode<synchronous>, transform_indices = @transform_22, window_bounds = array<i64: 4, 1, 32>}, {pipeline_mode = #tpu.pipeline_mode<synchronous>, transform_indices = @transform_23, window_bounds = array<i64: 4, 1, 32>}, {pipeline_mode = #tpu.pipeline_mode<synchronous>, transform_indices = @transform_24, window_bounds = array<i64: 4, 1, 32>}, {pipeline_mode = #tpu.pipeline_mode<synchronous>, transform_indices = @transform_25, window_bounds = array<i64: 4, 1, 32>}, {pipeline_mode = #tpu.pipeline_mode<synchronous>, transform_indices = @transform_26, window_bounds = array<i64: 6, 64, 32>}, {pipeline_mode = #tpu.pipeline_mode<synchronous>, transform_indices = @transform_27, window_bounds = array<i64: 6, 1, 32>}, {pipeline_mode = #tpu.pipeline_mode<synchronous>, transform_indices = @transform_28, window_bounds = array<i64: 8, 32>}, {pipeline_mode = #tpu.pipeline_mode<synchronous>, transform_indices = @transform_29, window_bounds = array<i64: 32, 32>}, {pipeline_mode = #tpu.pipeline_mode<synchronous>, transform_indices = @transform_30, window_bounds = array<i64: 1, 32>}, {pipeline_mode = #tpu.pipeline_mode<synchronous>, transform_indices = @transform_31, window_bounds = array<i64: 32, 32>}, {pipeline_mode = #tpu.pipeline_mode<synchronous>, transform_indices = @transform_32, window_bounds = array<i64: 1, 32>}, {pipeline_mode = #tpu.pipeline_mode<synchronous>, transform_indices = @transform_33, window_bounds = array<i64: 32, 128>}, {pipeline_mode = #tpu.pipeline_mode<synchronous>, transform_indices = @transform_34, window_bounds = array<i64: 1, 128>}, {transform_indices = @transform_35, window_bounds = array<i64: 1, 8, 128>}]} {
    %c0 = arith.constant 0 : index
    %c0_0 = arith.constant 0 : index
    %c0_1 = arith.constant 0 : index
    %0 = vector.load %arg1[%c0, %c0_0, %c0_1] : memref<1x8x16xf32, #tpu.memory_space<vmem>>, vector<1x8x16xf32>
    %1 = vector.shape_cast %0 : vector<1x8x16xf32> to vector<8x16xf32>
    %c0_2 = arith.constant 0 : index
    %c0_3 = arith.constant 0 : index
    %c0_4 = arith.constant 0 : index
    %2 = vector.load %arg3[%c0_2, %c0_3, %c0_4] : memref<8x8x8xf32, #tpu.memory_space<vmem>>, vector<1x8x8xf32>
    %3 = vector.shape_cast %2 : vector<1x8x8xf32> to vector<8x8xf32>
    %cst = arith.constant dense<0.000000e+00> : vector<8x16xf32>
    %4 = tpu.matmul %3, %1, %cst {dimension_numbers = #tpu.dot_dimension_numbers<[1], [0], [0], [1], [0, 0, 1, 1], [], []>} : vector<8x8xf32>, vector<8x16xf32>, vector<8x16xf32> -> vector<8x16xf32>
    %5 = tpu.concatenate %1, %4 in 1 : vector<8x16xf32>, vector<8x16xf32> -> vector<8x32xf32>
    %c0_5 = arith.constant 0 : index
    %c0_6 = arith.constant 0 : index
    %6 = vector.load %arg5[%c0_5, %c0_6] : memref<32x32xf32, #tpu.memory_space<vmem>>, vector<32x32xf32>
    %cst_7 = arith.constant dense<0.000000e+00> : vector<8x32xf32>
    %7 = tpu.matmul %5, %6, %cst_7 {dimension_numbers = #tpu.dot_dimension_numbers<[1], [0], [0], [1], [0, 0, 1, 1], [], []>} : vector<8x32xf32>, vector<32x32xf32>, vector<8x32xf32> -> vector<8x32xf32>
    %c0_8 = arith.constant 0 : index
    %c0_9 = arith.constant 0 : index
    %8 = vector.load %arg6[%c0_8, %c0_9] : memref<1x32xf32, #tpu.memory_space<vmem>>, vector<1x32xf32>
    %9 = vector.broadcast %8 : vector<1x32xf32> to vector<8x32xf32>
    %10 = arith.addf %7, %9 : vector<8x32xf32>
    %c1 = arith.constant 1 : index
    %c0_10 = arith.constant 0 : index
    %c0_11 = arith.constant 0 : index
    %11 = vector.load %arg3[%c1, %c0_10, %c0_11] : memref<8x8x8xf32, #tpu.memory_space<vmem>>, vector<1x8x8xf32>
    %12 = vector.shape_cast %11 : vector<1x8x8xf32> to vector<8x8xf32>
    %cst_12 = arith.constant dense<0.000000e+00> : vector<8x32xf32>
    %13 = tpu.matmul %12, %10, %cst_12 {dimension_numbers = #tpu.dot_dimension_numbers<[1], [0], [0], [1], [0, 0, 1, 1], [], []>} : vector<8x8xf32>, vector<8x32xf32>, vector<8x32xf32> -> vector<8x32xf32>
    %14 = tpu.concatenate %10, %13 in 1 : vector<8x32xf32>, vector<8x32xf32> -> vector<8x64xf32>
    %c0_13 = arith.constant 0 : index
    %c0_14 = arith.constant 0 : index
    %c0_15 = arith.constant 0 : index
    %15 = vector.load %arg7[%c0_13, %c0_14, %c0_15] : memref<7x64x32xf32, #tpu.memory_space<vmem>>, vector<1x64x32xf32>
    %16 = vector.shape_cast %15 : vector<1x64x32xf32> to vector<64x32xf32>
    %cst_16 = arith.constant dense<0.000000e+00> : vector<8x32xf32>
    %17 = tpu.matmul %14, %16, %cst_16 {dimension_numbers = #tpu.dot_dimension_numbers<[1], [0], [0], [1], [0, 0, 1, 1], [], []>} : vector<8x64xf32>, vector<64x32xf32>, vector<8x32xf32> -> vector<8x32xf32>
    %c0_17 = arith.constant 0 : index
    %c0_18 = arith.constant 0 : index
    %c0_19 = arith.constant 0 : index
    %18 = vector.load %arg8[%c0_17, %c0_18, %c0_19] : memref<7x1x32xf32, #tpu.memory_space<vmem>>, vector<1x1x32xf32>
    %19 = vector.shape_cast %18 : vector<1x1x32xf32> to vector<1x32xf32>
    %20 = vector.broadcast %19 : vector<1x32xf32> to vector<8x32xf32>
    %21 = arith.addf %17, %20 : vector<8x32xf32>
    %c2 = arith.constant 2 : index
    %c0_20 = arith.constant 0 : index
    %c0_21 = arith.constant 0 : index
    %22 = vector.load %arg3[%c2, %c0_20, %c0_21] : memref<8x8x8xf32, #tpu.memory_space<vmem>>, vector<1x8x8xf32>
    %23 = vector.shape_cast %22 : vector<1x8x8xf32> to vector<8x8xf32>
    %cst_22 = arith.constant dense<0.000000e+00> : vector<8x32xf32>
    %24 = tpu.matmul %23, %21, %cst_22 {dimension_numbers = #tpu.dot_dimension_numbers<[1], [0], [0], [1], [0, 0, 1, 1], [], []>} : vector<8x8xf32>, vector<8x32xf32>, vector<8x32xf32> -> vector<8x32xf32>
    %25 = tpu.concatenate %21, %24 in 1 : vector<8x32xf32>, vector<8x32xf32> -> vector<8x64xf32>
    %c1_23 = arith.constant 1 : index
    %c0_24 = arith.constant 0 : index
    %c0_25 = arith.constant 0 : index
    %26 = vector.load %arg7[%c1_23, %c0_24, %c0_25] : memref<7x64x32xf32, #tpu.memory_space<vmem>>, vector<1x64x32xf32>
    %27 = vector.shape_cast %26 : vector<1x64x32xf32> to vector<64x32xf32>
    %cst_26 = arith.constant dense<0.000000e+00> : vector<8x32xf32>
    %28 = tpu.matmul %25, %27, %cst_26 {dimension_numbers = #tpu.dot_dimension_numbers<[1], [0], [0], [1], [0, 0, 1, 1], [], []>} : vector<8x64xf32>, vector<64x32xf32>, vector<8x32xf32> -> vector<8x32xf32>
    %c1_27 = arith.constant 1 : index
    %c0_28 = arith.constant 0 : index
    %c0_29 = arith.constant 0 : index
    %29 = vector.load %arg8[%c1_27, %c0_28, %c0_29] : memref<7x1x32xf32, #tpu.memory_space<vmem>>, vector<1x1x32xf32>
    %30 = vector.shape_cast %29 : vector<1x1x32xf32> to vector<1x32xf32>
    %31 = vector.broadcast %30 : vector<1x32xf32> to vector<8x32xf32>
    %32 = arith.addf %28, %31 : vector<8x32xf32>
    %c3 = arith.constant 3 : index
    %c0_30 = arith.constant 0 : index
    %c0_31 = arith.constant 0 : index
    %33 = vector.load %arg3[%c3, %c0_30, %c0_31] : memref<8x8x8xf32, #tpu.memory_space<vmem>>, vector<1x8x8xf32>
    %34 = vector.shape_cast %33 : vector<1x8x8xf32> to vector<8x8xf32>
    %cst_32 = arith.constant dense<0.000000e+00> : vector<8x32xf32>
    %35 = tpu.matmul %34, %32, %cst_32 {dimension_numbers = #tpu.dot_dimension_numbers<[1], [0], [0], [1], [0, 0, 1, 1], [], []>} : vector<8x8xf32>, vector<8x32xf32>, vector<8x32xf32> -> vector<8x32xf32>
    %36 = tpu.concatenate %32, %35 in 1 : vector<8x32xf32>, vector<8x32xf32> -> vector<8x64xf32>
    %c2_33 = arith.constant 2 : index
    %c0_34 = arith.constant 0 : index
    %c0_35 = arith.constant 0 : index
    %37 = vector.load %arg7[%c2_33, %c0_34, %c0_35] : memref<7x64x32xf32, #tpu.memory_space<vmem>>, vector<1x64x32xf32>
    %38 = vector.shape_cast %37 : vector<1x64x32xf32> to vector<64x32xf32>
    %cst_36 = arith.constant dense<0.000000e+00> : vector<8x32xf32>
    %39 = tpu.matmul %36, %38, %cst_36 {dimension_numbers = #tpu.dot_dimension_numbers<[1], [0], [0], [1], [0, 0, 1, 1], [], []>} : vector<8x64xf32>, vector<64x32xf32>, vector<8x32xf32> -> vector<8x32xf32>
    %c2_37 = arith.constant 2 : index
    %c0_38 = arith.constant 0 : index
    %c0_39 = arith.constant 0 : index
    %40 = vector.load %arg8[%c2_37, %c0_38, %c0_39] : memref<7x1x32xf32, #tpu.memory_space<vmem>>, vector<1x1x32xf32>
    %41 = vector.shape_cast %40 : vector<1x1x32xf32> to vector<1x32xf32>
    %42 = vector.broadcast %41 : vector<1x32xf32> to vector<8x32xf32>
    %43 = arith.addf %39, %42 : vector<8x32xf32>
    %c4 = arith.constant 4 : index
    %c0_40 = arith.constant 0 : index
    %c0_41 = arith.constant 0 : index
    %44 = vector.load %arg3[%c4, %c0_40, %c0_41] : memref<8x8x8xf32, #tpu.memory_space<vmem>>, vector<1x8x8xf32>
    %45 = vector.shape_cast %44 : vector<1x8x8xf32> to vector<8x8xf32>
    %cst_42 = arith.constant dense<0.000000e+00> : vector<8x32xf32>
    %46 = tpu.matmul %45, %43, %cst_42 {dimension_numbers = #tpu.dot_dimension_numbers<[1], [0], [0], [1], [0, 0, 1, 1], [], []>} : vector<8x8xf32>, vector<8x32xf32>, vector<8x32xf32> -> vector<8x32xf32>
    %47 = tpu.concatenate %43, %46 in 1 : vector<8x32xf32>, vector<8x32xf32> -> vector<8x64xf32>
    %c3_43 = arith.constant 3 : index
    %c0_44 = arith.constant 0 : index
    %c0_45 = arith.constant 0 : index
    %48 = vector.load %arg7[%c3_43, %c0_44, %c0_45] : memref<7x64x32xf32, #tpu.memory_space<vmem>>, vector<1x64x32xf32>
    %49 = vector.shape_cast %48 : vector<1x64x32xf32> to vector<64x32xf32>
    %cst_46 = arith.constant dense<0.000000e+00> : vector<8x32xf32>
    %50 = tpu.matmul %47, %49, %cst_46 {dimension_numbers = #tpu.dot_dimension_numbers<[1], [0], [0], [1], [0, 0, 1, 1], [], []>} : vector<8x64xf32>, vector<64x32xf32>, vector<8x32xf32> -> vector<8x32xf32>
    %c3_47 = arith.constant 3 : index
    %c0_48 = arith.constant 0 : index
    %c0_49 = arith.constant 0 : index
    %51 = vector.load %arg8[%c3_47, %c0_48, %c0_49] : memref<7x1x32xf32, #tpu.memory_space<vmem>>, vector<1x1x32xf32>
    %52 = vector.shape_cast %51 : vector<1x1x32xf32> to vector<1x32xf32>
    %53 = vector.broadcast %52 : vector<1x32xf32> to vector<8x32xf32>
    %54 = arith.addf %50, %53 : vector<8x32xf32>
    %c5 = arith.constant 5 : index
    %c0_50 = arith.constant 0 : index
    %c0_51 = arith.constant 0 : index
    %55 = vector.load %arg3[%c5, %c0_50, %c0_51] : memref<8x8x8xf32, #tpu.memory_space<vmem>>, vector<1x8x8xf32>
    %56 = vector.shape_cast %55 : vector<1x8x8xf32> to vector<8x8xf32>
    %cst_52 = arith.constant dense<0.000000e+00> : vector<8x32xf32>
    %57 = tpu.matmul %56, %54, %cst_52 {dimension_numbers = #tpu.dot_dimension_numbers<[1], [0], [0], [1], [0, 0, 1, 1], [], []>} : vector<8x8xf32>, vector<8x32xf32>, vector<8x32xf32> -> vector<8x32xf32>
    %58 = tpu.concatenate %54, %57 in 1 : vector<8x32xf32>, vector<8x32xf32> -> vector<8x64xf32>
    %c4_53 = arith.constant 4 : index
    %c0_54 = arith.constant 0 : index
    %c0_55 = arith.constant 0 : index
    %59 = vector.load %arg7[%c4_53, %c0_54, %c0_55] : memref<7x64x32xf32, #tpu.memory_space<vmem>>, vector<1x64x32xf32>
    %60 = vector.shape_cast %59 : vector<1x64x32xf32> to vector<64x32xf32>
    %cst_56 = arith.constant dense<0.000000e+00> : vector<8x32xf32>
    %61 = tpu.matmul %58, %60, %cst_56 {dimension_numbers = #tpu.dot_dimension_numbers<[1], [0], [0], [1], [0, 0, 1, 1], [], []>} : vector<8x64xf32>, vector<64x32xf32>, vector<8x32xf32> -> vector<8x32xf32>
    %c4_57 = arith.constant 4 : index
    %c0_58 = arith.constant 0 : index
    %c0_59 = arith.constant 0 : index
    %62 = vector.load %arg8[%c4_57, %c0_58, %c0_59] : memref<7x1x32xf32, #tpu.memory_space<vmem>>, vector<1x1x32xf32>
    %63 = vector.shape_cast %62 : vector<1x1x32xf32> to vector<1x32xf32>
    %64 = vector.broadcast %63 : vector<1x32xf32> to vector<8x32xf32>
    %65 = arith.addf %61, %64 : vector<8x32xf32>
    %c6 = arith.constant 6 : index
    %c0_60 = arith.constant 0 : index
    %c0_61 = arith.constant 0 : index
    %66 = vector.load %arg3[%c6, %c0_60, %c0_61] : memref<8x8x8xf32, #tpu.memory_space<vmem>>, vector<1x8x8xf32>
    %67 = vector.shape_cast %66 : vector<1x8x8xf32> to vector<8x8xf32>
    %cst_62 = arith.constant dense<0.000000e+00> : vector<8x32xf32>
    %68 = tpu.matmul %67, %65, %cst_62 {dimension_numbers = #tpu.dot_dimension_numbers<[1], [0], [0], [1], [0, 0, 1, 1], [], []>} : vector<8x8xf32>, vector<8x32xf32>, vector<8x32xf32> -> vector<8x32xf32>
    %69 = tpu.concatenate %65, %68 in 1 : vector<8x32xf32>, vector<8x32xf32> -> vector<8x64xf32>
    %c5_63 = arith.constant 5 : index
    %c0_64 = arith.constant 0 : index
    %c0_65 = arith.constant 0 : index
    %70 = vector.load %arg7[%c5_63, %c0_64, %c0_65] : memref<7x64x32xf32, #tpu.memory_space<vmem>>, vector<1x64x32xf32>
    %71 = vector.shape_cast %70 : vector<1x64x32xf32> to vector<64x32xf32>
    %cst_66 = arith.constant dense<0.000000e+00> : vector<8x32xf32>
    %72 = tpu.matmul %69, %71, %cst_66 {dimension_numbers = #tpu.dot_dimension_numbers<[1], [0], [0], [1], [0, 0, 1, 1], [], []>} : vector<8x64xf32>, vector<64x32xf32>, vector<8x32xf32> -> vector<8x32xf32>
    %c5_67 = arith.constant 5 : index
    %c0_68 = arith.constant 0 : index
    %c0_69 = arith.constant 0 : index
    %73 = vector.load %arg8[%c5_67, %c0_68, %c0_69] : memref<7x1x32xf32, #tpu.memory_space<vmem>>, vector<1x1x32xf32>
    %74 = vector.shape_cast %73 : vector<1x1x32xf32> to vector<1x32xf32>
    %75 = vector.broadcast %74 : vector<1x32xf32> to vector<8x32xf32>
    %76 = arith.addf %72, %75 : vector<8x32xf32>
    %c7 = arith.constant 7 : index
    %c0_70 = arith.constant 0 : index
    %c0_71 = arith.constant 0 : index
    %77 = vector.load %arg3[%c7, %c0_70, %c0_71] : memref<8x8x8xf32, #tpu.memory_space<vmem>>, vector<1x8x8xf32>
    %78 = vector.shape_cast %77 : vector<1x8x8xf32> to vector<8x8xf32>
    %cst_72 = arith.constant dense<0.000000e+00> : vector<8x32xf32>
    %79 = tpu.matmul %78, %76, %cst_72 {dimension_numbers = #tpu.dot_dimension_numbers<[1], [0], [0], [1], [0, 0, 1, 1], [], []>} : vector<8x8xf32>, vector<8x32xf32>, vector<8x32xf32> -> vector<8x32xf32>
    %80 = tpu.concatenate %76, %79 in 1 : vector<8x32xf32>, vector<8x32xf32> -> vector<8x64xf32>
    %c6_73 = arith.constant 6 : index
    %c0_74 = arith.constant 0 : index
    %c0_75 = arith.constant 0 : index
    %81 = vector.load %arg7[%c6_73, %c0_74, %c0_75] : memref<7x64x32xf32, #tpu.memory_space<vmem>>, vector<1x64x32xf32>
    %82 = vector.shape_cast %81 : vector<1x64x32xf32> to vector<64x32xf32>
    %cst_76 = arith.constant dense<0.000000e+00> : vector<8x32xf32>
    %83 = tpu.matmul %80, %82, %cst_76 {dimension_numbers = #tpu.dot_dimension_numbers<[1], [0], [0], [1], [0, 0, 1, 1], [], []>} : vector<8x64xf32>, vector<64x32xf32>, vector<8x32xf32> -> vector<8x32xf32>
    %c6_77 = arith.constant 6 : index
    %c0_78 = arith.constant 0 : index
    %c0_79 = arith.constant 0 : index
    %84 = vector.load %arg8[%c6_77, %c0_78, %c0_79] : memref<7x1x32xf32, #tpu.memory_space<vmem>>, vector<1x1x32xf32>
    %85 = vector.shape_cast %84 : vector<1x1x32xf32> to vector<1x32xf32>
    %86 = vector.broadcast %85 : vector<1x32xf32> to vector<8x32xf32>
    %87 = arith.addf %83, %86 : vector<8x32xf32>
    %c0_80 = arith.constant 0 : index
    %c0_81 = arith.constant 0 : index
    %c0_82 = arith.constant 0 : index
    %88 = vector.load %arg2[%c0_80, %c0_81, %c0_82] : memref<1x8x192xf32, #tpu.memory_space<vmem>>, vector<1x8x192xf32>
    %89 = vector.shape_cast %88 : vector<1x8x192xf32> to vector<8x192xf32>
    %c0_83 = arith.constant 0 : index
    %c0_84 = arith.constant 0 : index
    %90 = vector.load %arg9[%c0_83, %c0_84] : memref<192x32xf32, #tpu.memory_space<vmem>>, vector<192x32xf32>
    %cst_85 = arith.constant dense<0.000000e+00> : vector<8x32xf32>
    %91 = tpu.matmul %89, %90, %cst_85 {dimension_numbers = #tpu.dot_dimension_numbers<[1], [0], [0], [1], [0, 0, 1, 1], [], []>} : vector<8x192xf32>, vector<192x32xf32>, vector<8x32xf32> -> vector<8x32xf32>
    %c0_86 = arith.constant 0 : index
    %c0_87 = arith.constant 0 : index
    %92 = vector.load %arg10[%c0_86, %c0_87] : memref<1x32xf32, #tpu.memory_space<vmem>>, vector<1x32xf32>
    %93 = vector.broadcast %92 : vector<1x32xf32> to vector<8x32xf32>
    %94 = arith.addf %91, %93 : vector<8x32xf32>
    %cst_88 = arith.constant 0.000000e+00 : f32
    %95 = vector.broadcast %cst_88 : f32 to vector<8x32xf32>
    %96 = arith.maximumf %94, %95 : vector<8x32xf32>
    %c0_89 = arith.constant 0 : index
    %c0_90 = arith.constant 0 : index
    %97 = vector.load %arg11[%c0_89, %c0_90] : memref<32x32xf32, #tpu.memory_space<vmem>>, vector<32x32xf32>
    %cst_91 = arith.constant dense<0.000000e+00> : vector<8x32xf32>
    %98 = tpu.matmul %96, %97, %cst_91 {dimension_numbers = #tpu.dot_dimension_numbers<[1], [0], [0], [1], [0, 0, 1, 1], [], []>} : vector<8x32xf32>, vector<32x32xf32>, vector<8x32xf32> -> vector<8x32xf32>
    %c0_92 = arith.constant 0 : index
    %c0_93 = arith.constant 0 : index
    %99 = vector.load %arg12[%c0_92, %c0_93] : memref<1x32xf32, #tpu.memory_space<vmem>>, vector<1x32xf32>
    %100 = vector.broadcast %99 : vector<1x32xf32> to vector<8x32xf32>
    %101 = arith.addf %98, %100 : vector<8x32xf32>
    %cst_94 = arith.constant 0.000000e+00 : f32
    %102 = vector.broadcast %cst_94 : f32 to vector<8x32xf32>
    %103 = arith.maximumf %101, %102 : vector<8x32xf32>
    %c0_95 = arith.constant 0 : index
    %c0_96 = arith.constant 0 : index
    %104 = vector.load %arg13[%c0_95, %c0_96] : memref<32x32xf32, #tpu.memory_space<vmem>>, vector<32x32xf32>
    %cst_97 = arith.constant dense<0.000000e+00> : vector<8x32xf32>
    %105 = tpu.matmul %103, %104, %cst_97 {dimension_numbers = #tpu.dot_dimension_numbers<[1], [0], [0], [1], [0, 0, 1, 1], [], []>} : vector<8x32xf32>, vector<32x32xf32>, vector<8x32xf32> -> vector<8x32xf32>
    %c0_98 = arith.constant 0 : index
    %c0_99 = arith.constant 0 : index
    %106 = vector.load %arg14[%c0_98, %c0_99] : memref<1x32xf32, #tpu.memory_space<vmem>>, vector<1x32xf32>
    %107 = vector.broadcast %106 : vector<1x32xf32> to vector<8x32xf32>
    %108 = arith.addf %105, %107 : vector<8x32xf32>
    %c0_100 = arith.constant 0 : index
    %c0_101 = arith.constant 0 : index
    %c0_102 = arith.constant 0 : index
    %109 = vector.load %arg15[%c0_100, %c0_101, %c0_102] : memref<4x32x96xf32, #tpu.memory_space<vmem>>, vector<1x32x96xf32>
    %110 = vector.shape_cast %109 : vector<1x32x96xf32> to vector<32x96xf32>
    %cst_103 = arith.constant dense<0.000000e+00> : vector<8x96xf32>
    %111 = tpu.matmul %87, %110, %cst_103 {dimension_numbers = #tpu.dot_dimension_numbers<[1], [0], [0], [1], [0, 0, 1, 1], [], []>} : vector<8x32xf32>, vector<32x96xf32>, vector<8x96xf32> -> vector<8x96xf32>
    %c0_104 = arith.constant 0 : index
    %c0_105 = arith.constant 0 : index
    %c0_106 = arith.constant 0 : index
    %112 = vector.load %arg16[%c0_104, %c0_105, %c0_106] : memref<4x1x96xf32, #tpu.memory_space<vmem>>, vector<1x1x96xf32>
    %113 = vector.shape_cast %112 : vector<1x1x96xf32> to vector<1x96xf32>
    %114 = vector.broadcast %113 : vector<1x96xf32> to vector<8x96xf32>
    %115 = arith.addf %111, %114 : vector<8x96xf32>
    %116 = vector.extract_strided_slice %115 {offsets = [0, 0], sizes = [8, 32], strides = [1, 1]} : vector<8x96xf32> to vector<8x32xf32>
    %117 = vector.extract_strided_slice %115 {offsets = [0, 32], sizes = [8, 32], strides = [1, 1]} : vector<8x96xf32> to vector<8x32xf32>
    %118 = vector.extract_strided_slice %115 {offsets = [0, 64], sizes = [8, 32], strides = [1, 1]} : vector<8x96xf32> to vector<8x32xf32>
    %119 = vector.extract_strided_slice %116 {offsets = [0, 0], sizes = [8, 8], strides = [1, 1]} : vector<8x32xf32> to vector<8x8xf32>
    %120 = vector.extract_strided_slice %117 {offsets = [0, 0], sizes = [8, 8], strides = [1, 1]} : vector<8x32xf32> to vector<8x8xf32>
    %121 = vector.extract_strided_slice %118 {offsets = [0, 0], sizes = [8, 8], strides = [1, 1]} : vector<8x32xf32> to vector<8x8xf32>
    %122 = tpu.transpose %120, [1, 0] : vector<8x8xf32> -> vector<8x8xf32>
    %cst_107 = arith.constant dense<0.000000e+00> : vector<8x8xf32>
    %123 = tpu.matmul %119, %122, %cst_107 {dimension_numbers = #tpu.dot_dimension_numbers<[1], [0], [0], [1], [0, 0, 1, 1], [], []>} : vector<8x8xf32>, vector<8x8xf32>, vector<8x8xf32> -> vector<8x8xf32>
    %cst_108 = arith.constant 0.353553385 : f32
    %124 = vector.broadcast %cst_108 : f32 to vector<8x8xf32>
    %125 = arith.mulf %123, %124 : vector<8x8xf32>
    %cst_109 = arith.constant dense<0xFF800000> : vector<8xf32>
    %126 = vector.multi_reduction <maximumf>, %125, %cst_109 [1] : vector<8x8xf32> to vector<8xf32>
    %127 = vector.shape_cast %126 : vector<8xf32> to vector<8x1xf32>
    %128 = vector.broadcast %127 : vector<8x1xf32> to vector<8x8xf32>
    %129 = arith.subf %125, %128 : vector<8x8xf32>
    %130 = math.exp %129 : vector<8x8xf32>
    %cst_110 = arith.constant dense<0.000000e+00> : vector<8xf32>
    %131 = vector.multi_reduction <add>, %130, %cst_110 [1] : vector<8x8xf32> to vector<8xf32>
    %132 = vector.shape_cast %131 : vector<8xf32> to vector<8x1xf32>
    %133 = tpu.reciprocal %132 {approx = true} : vector<8x1xf32> -> vector<8x1xf32>
    %134 = vector.broadcast %133 : vector<8x1xf32> to vector<8x8xf32>
    %135 = arith.mulf %130, %134 : vector<8x8xf32>
    %cst_111 = arith.constant dense<0.000000e+00> : vector<8x8xf32>
    %136 = tpu.matmul %135, %121, %cst_111 {dimension_numbers = #tpu.dot_dimension_numbers<[1], [0], [0], [1], [0, 0, 1, 1], [], []>} : vector<8x8xf32>, vector<8x8xf32>, vector<8x8xf32> -> vector<8x8xf32>
    %137 = vector.extract_strided_slice %116 {offsets = [0, 8], sizes = [8, 8], strides = [1, 1]} : vector<8x32xf32> to vector<8x8xf32>
    %138 = vector.extract_strided_slice %117 {offsets = [0, 8], sizes = [8, 8], strides = [1, 1]} : vector<8x32xf32> to vector<8x8xf32>
    %139 = vector.extract_strided_slice %118 {offsets = [0, 8], sizes = [8, 8], strides = [1, 1]} : vector<8x32xf32> to vector<8x8xf32>
    %140 = tpu.transpose %138, [1, 0] : vector<8x8xf32> -> vector<8x8xf32>
    %cst_112 = arith.constant dense<0.000000e+00> : vector<8x8xf32>
    %141 = tpu.matmul %137, %140, %cst_112 {dimension_numbers = #tpu.dot_dimension_numbers<[1], [0], [0], [1], [0, 0, 1, 1], [], []>} : vector<8x8xf32>, vector<8x8xf32>, vector<8x8xf32> -> vector<8x8xf32>
    %cst_113 = arith.constant 0.353553385 : f32
    %142 = vector.broadcast %cst_113 : f32 to vector<8x8xf32>
    %143 = arith.mulf %141, %142 : vector<8x8xf32>
    %cst_114 = arith.constant dense<0xFF800000> : vector<8xf32>
    %144 = vector.multi_reduction <maximumf>, %143, %cst_114 [1] : vector<8x8xf32> to vector<8xf32>
    %145 = vector.shape_cast %144 : vector<8xf32> to vector<8x1xf32>
    %146 = vector.broadcast %145 : vector<8x1xf32> to vector<8x8xf32>
    %147 = arith.subf %143, %146 : vector<8x8xf32>
    %148 = math.exp %147 : vector<8x8xf32>
    %cst_115 = arith.constant dense<0.000000e+00> : vector<8xf32>
    %149 = vector.multi_reduction <add>, %148, %cst_115 [1] : vector<8x8xf32> to vector<8xf32>
    %150 = vector.shape_cast %149 : vector<8xf32> to vector<8x1xf32>
    %151 = tpu.reciprocal %150 {approx = true} : vector<8x1xf32> -> vector<8x1xf32>
    %152 = vector.broadcast %151 : vector<8x1xf32> to vector<8x8xf32>
    %153 = arith.mulf %148, %152 : vector<8x8xf32>
    %cst_116 = arith.constant dense<0.000000e+00> : vector<8x8xf32>
    %154 = tpu.matmul %153, %139, %cst_116 {dimension_numbers = #tpu.dot_dimension_numbers<[1], [0], [0], [1], [0, 0, 1, 1], [], []>} : vector<8x8xf32>, vector<8x8xf32>, vector<8x8xf32> -> vector<8x8xf32>
    %155 = vector.extract_strided_slice %116 {offsets = [0, 16], sizes = [8, 8], strides = [1, 1]} : vector<8x32xf32> to vector<8x8xf32>
    %156 = vector.extract_strided_slice %117 {offsets = [0, 16], sizes = [8, 8], strides = [1, 1]} : vector<8x32xf32> to vector<8x8xf32>
    %157 = vector.extract_strided_slice %118 {offsets = [0, 16], sizes = [8, 8], strides = [1, 1]} : vector<8x32xf32> to vector<8x8xf32>
    %158 = tpu.transpose %156, [1, 0] : vector<8x8xf32> -> vector<8x8xf32>
    %cst_117 = arith.constant dense<0.000000e+00> : vector<8x8xf32>
    %159 = tpu.matmul %155, %158, %cst_117 {dimension_numbers = #tpu.dot_dimension_numbers<[1], [0], [0], [1], [0, 0, 1, 1], [], []>} : vector<8x8xf32>, vector<8x8xf32>, vector<8x8xf32> -> vector<8x8xf32>
    %cst_118 = arith.constant 0.353553385 : f32
    %160 = vector.broadcast %cst_118 : f32 to vector<8x8xf32>
    %161 = arith.mulf %159, %160 : vector<8x8xf32>
    %cst_119 = arith.constant dense<0xFF800000> : vector<8xf32>
    %162 = vector.multi_reduction <maximumf>, %161, %cst_119 [1] : vector<8x8xf32> to vector<8xf32>
    %163 = vector.shape_cast %162 : vector<8xf32> to vector<8x1xf32>
    %164 = vector.broadcast %163 : vector<8x1xf32> to vector<8x8xf32>
    %165 = arith.subf %161, %164 : vector<8x8xf32>
    %166 = math.exp %165 : vector<8x8xf32>
    %cst_120 = arith.constant dense<0.000000e+00> : vector<8xf32>
    %167 = vector.multi_reduction <add>, %166, %cst_120 [1] : vector<8x8xf32> to vector<8xf32>
    %168 = vector.shape_cast %167 : vector<8xf32> to vector<8x1xf32>
    %169 = tpu.reciprocal %168 {approx = true} : vector<8x1xf32> -> vector<8x1xf32>
    %170 = vector.broadcast %169 : vector<8x1xf32> to vector<8x8xf32>
    %171 = arith.mulf %166, %170 : vector<8x8xf32>
    %cst_121 = arith.constant dense<0.000000e+00> : vector<8x8xf32>
    %172 = tpu.matmul %171, %157, %cst_121 {dimension_numbers = #tpu.dot_dimension_numbers<[1], [0], [0], [1], [0, 0, 1, 1], [], []>} : vector<8x8xf32>, vector<8x8xf32>, vector<8x8xf32> -> vector<8x8xf32>
    %173 = vector.extract_strided_slice %116 {offsets = [0, 24], sizes = [8, 8], strides = [1, 1]} : vector<8x32xf32> to vector<8x8xf32>
    %174 = vector.extract_strided_slice %117 {offsets = [0, 24], sizes = [8, 8], strides = [1, 1]} : vector<8x32xf32> to vector<8x8xf32>
    %175 = vector.extract_strided_slice %118 {offsets = [0, 24], sizes = [8, 8], strides = [1, 1]} : vector<8x32xf32> to vector<8x8xf32>
    %176 = tpu.transpose %174, [1, 0] : vector<8x8xf32> -> vector<8x8xf32>
    %cst_122 = arith.constant dense<0.000000e+00> : vector<8x8xf32>
    %177 = tpu.matmul %173, %176, %cst_122 {dimension_numbers = #tpu.dot_dimension_numbers<[1], [0], [0], [1], [0, 0, 1, 1], [], []>} : vector<8x8xf32>, vector<8x8xf32>, vector<8x8xf32> -> vector<8x8xf32>
    %cst_123 = arith.constant 0.353553385 : f32
    %178 = vector.broadcast %cst_123 : f32 to vector<8x8xf32>
    %179 = arith.mulf %177, %178 : vector<8x8xf32>
    %cst_124 = arith.constant dense<0xFF800000> : vector<8xf32>
    %180 = vector.multi_reduction <maximumf>, %179, %cst_124 [1] : vector<8x8xf32> to vector<8xf32>
    %181 = vector.shape_cast %180 : vector<8xf32> to vector<8x1xf32>
    %182 = vector.broadcast %181 : vector<8x1xf32> to vector<8x8xf32>
    %183 = arith.subf %179, %182 : vector<8x8xf32>
    %184 = math.exp %183 : vector<8x8xf32>
    %cst_125 = arith.constant dense<0.000000e+00> : vector<8xf32>
    %185 = vector.multi_reduction <add>, %184, %cst_125 [1] : vector<8x8xf32> to vector<8xf32>
    %186 = vector.shape_cast %185 : vector<8xf32> to vector<8x1xf32>
    %187 = tpu.reciprocal %186 {approx = true} : vector<8x1xf32> -> vector<8x1xf32>
    %188 = vector.broadcast %187 : vector<8x1xf32> to vector<8x8xf32>
    %189 = arith.mulf %184, %188 : vector<8x8xf32>
    %cst_126 = arith.constant dense<0.000000e+00> : vector<8x8xf32>
    %190 = tpu.matmul %189, %175, %cst_126 {dimension_numbers = #tpu.dot_dimension_numbers<[1], [0], [0], [1], [0, 0, 1, 1], [], []>} : vector<8x8xf32>, vector<8x8xf32>, vector<8x8xf32> -> vector<8x8xf32>
    %191 = tpu.concatenate %136, %154, %172, %190 in 1 : vector<8x8xf32>, vector<8x8xf32>, vector<8x8xf32>, vector<8x8xf32> -> vector<8x32xf32>
    %c0_127 = arith.constant 0 : index
    %c0_128 = arith.constant 0 : index
    %c0_129 = arith.constant 0 : index
    %192 = vector.load %arg17[%c0_127, %c0_128, %c0_129] : memref<4x32x32xf32, #tpu.memory_space<vmem>>, vector<1x32x32xf32>
    %193 = vector.shape_cast %192 : vector<1x32x32xf32> to vector<32x32xf32>
    %cst_130 = arith.constant dense<0.000000e+00> : vector<8x32xf32>
    %194 = tpu.matmul %191, %193, %cst_130 {dimension_numbers = #tpu.dot_dimension_numbers<[1], [0], [0], [1], [0, 0, 1, 1], [], []>} : vector<8x32xf32>, vector<32x32xf32>, vector<8x32xf32> -> vector<8x32xf32>
    %c0_131 = arith.constant 0 : index
    %c0_132 = arith.constant 0 : index
    %c0_133 = arith.constant 0 : index
    %195 = vector.load %arg18[%c0_131, %c0_132, %c0_133] : memref<4x1x32xf32, #tpu.memory_space<vmem>>, vector<1x1x32xf32>
    %196 = vector.shape_cast %195 : vector<1x1x32xf32> to vector<1x32xf32>
    %197 = vector.broadcast %196 : vector<1x32xf32> to vector<8x32xf32>
    %198 = arith.addf %194, %197 : vector<8x32xf32>
    %199 = arith.addf %87, %198 : vector<8x32xf32>
    %c0_134 = arith.constant 0 : index
    %c0_135 = arith.constant 0 : index
    %c0_136 = arith.constant 0 : index
    %200 = vector.load %arg23[%c0_134, %c0_135, %c0_136] : memref<4x1x32xf32, #tpu.memory_space<vmem>>, vector<1x1x32xf32>
    %201 = vector.shape_cast %200 : vector<1x1x32xf32> to vector<1x32xf32>
    %c0_137 = arith.constant 0 : index
    %c0_138 = arith.constant 0 : index
    %c0_139 = arith.constant 0 : index
    %202 = vector.load %arg24[%c0_137, %c0_138, %c0_139] : memref<4x1x32xf32, #tpu.memory_space<vmem>>, vector<1x1x32xf32>
    %203 = vector.shape_cast %202 : vector<1x1x32xf32> to vector<1x32xf32>
    %cst_140 = arith.constant dense<0.000000e+00> : vector<8xf32>
    %204 = vector.multi_reduction <add>, %199, %cst_140 [1] : vector<8x32xf32> to vector<8xf32>
    %205 = vector.shape_cast %204 : vector<8xf32> to vector<8x1xf32>
    %cst_141 = arith.constant 3.200000e+01 : f32
    %206 = vector.broadcast %cst_141 : f32 to vector<8x1xf32>
    %207 = arith.divf %205, %206 : vector<8x1xf32>
    %208 = vector.broadcast %207 : vector<8x1xf32> to vector<8x32xf32>
    %209 = arith.subf %199, %208 : vector<8x32xf32>
    %210 = arith.mulf %209, %209 : vector<8x32xf32>
    %cst_142 = arith.constant dense<0.000000e+00> : vector<8xf32>
    %211 = vector.multi_reduction <add>, %210, %cst_142 [1] : vector<8x32xf32> to vector<8xf32>
    %212 = vector.shape_cast %211 : vector<8xf32> to vector<8x1xf32>
    %cst_143 = arith.constant 3.200000e+01 : f32
    %213 = vector.broadcast %cst_143 : f32 to vector<8x1xf32>
    %214 = arith.divf %212, %213 : vector<8x1xf32>
    %215 = vector.broadcast %207 : vector<8x1xf32> to vector<8x32xf32>
    %216 = arith.subf %199, %215 : vector<8x32xf32>
    %cst_144 = arith.constant 9.99999974E-6 : f32
    %217 = vector.broadcast %cst_144 : f32 to vector<8x1xf32>
    %218 = arith.addf %214, %217 : vector<8x1xf32>
    %219 = math.rsqrt %218 : vector<8x1xf32>
    %220 = vector.broadcast %219 : vector<8x1xf32> to vector<8x32xf32>
    %221 = arith.mulf %216, %220 : vector<8x32xf32>
    %222 = vector.broadcast %201 : vector<1x32xf32> to vector<8x32xf32>
    %223 = arith.mulf %221, %222 : vector<8x32xf32>
    %224 = vector.broadcast %203 : vector<1x32xf32> to vector<8x32xf32>
    %225 = arith.addf %223, %224 : vector<8x32xf32>
    %c0_145 = arith.constant 0 : index
    %c0_146 = arith.constant 0 : index
    %c0_147 = arith.constant 0 : index
    %226 = vector.load %arg19[%c0_145, %c0_146, %c0_147] : memref<4x32x128xf32, #tpu.memory_space<vmem>>, vector<1x32x128xf32>
    %227 = vector.shape_cast %226 : vector<1x32x128xf32> to vector<32x128xf32>
    %cst_148 = arith.constant dense<0.000000e+00> : vector<8x128xf32>
    %228 = tpu.matmul %225, %227, %cst_148 {dimension_numbers = #tpu.dot_dimension_numbers<[1], [0], [0], [1], [0, 0, 1, 1], [], []>} : vector<8x32xf32>, vector<32x128xf32>, vector<8x128xf32> -> vector<8x128xf32>
    %c0_149 = arith.constant 0 : index
    %c0_150 = arith.constant 0 : index
    %c0_151 = arith.constant 0 : index
    %229 = vector.load %arg20[%c0_149, %c0_150, %c0_151] : memref<4x1x128xf32, #tpu.memory_space<vmem>>, vector<1x1x128xf32>
    %230 = vector.shape_cast %229 : vector<1x1x128xf32> to vector<1x128xf32>
    %231 = vector.broadcast %230 : vector<1x128xf32> to vector<8x128xf32>
    %232 = arith.addf %228, %231 : vector<8x128xf32>
    %cst_152 = arith.constant 0.000000e+00 : f32
    %233 = vector.broadcast %cst_152 : f32 to vector<8x128xf32>
    %234 = arith.maximumf %232, %233 : vector<8x128xf32>
    %c0_153 = arith.constant 0 : index
    %c0_154 = arith.constant 0 : index
    %c0_155 = arith.constant 0 : index
    %235 = vector.load %arg21[%c0_153, %c0_154, %c0_155] : memref<4x128x32xf32, #tpu.memory_space<vmem>>, vector<1x128x32xf32>
    %236 = vector.shape_cast %235 : vector<1x128x32xf32> to vector<128x32xf32>
    %cst_156 = arith.constant dense<0.000000e+00> : vector<8x32xf32>
    %237 = tpu.matmul %234, %236, %cst_156 {dimension_numbers = #tpu.dot_dimension_numbers<[1], [0], [0], [1], [0, 0, 1, 1], [], []>} : vector<8x128xf32>, vector<128x32xf32>, vector<8x32xf32> -> vector<8x32xf32>
    %c0_157 = arith.constant 0 : index
    %c0_158 = arith.constant 0 : index
    %c0_159 = arith.constant 0 : index
    %238 = vector.load %arg22[%c0_157, %c0_158, %c0_159] : memref<4x1x32xf32, #tpu.memory_space<vmem>>, vector<1x1x32xf32>
    %239 = vector.shape_cast %238 : vector<1x1x32xf32> to vector<1x32xf32>
    %240 = vector.broadcast %239 : vector<1x32xf32> to vector<8x32xf32>
    %241 = arith.addf %237, %240 : vector<8x32xf32>
    %242 = arith.addf %225, %241 : vector<8x32xf32>
    %c0_160 = arith.constant 0 : index
    %c0_161 = arith.constant 0 : index
    %c0_162 = arith.constant 0 : index
    %243 = vector.load %arg25[%c0_160, %c0_161, %c0_162] : memref<4x1x32xf32, #tpu.memory_space<vmem>>, vector<1x1x32xf32>
    %244 = vector.shape_cast %243 : vector<1x1x32xf32> to vector<1x32xf32>
    %c0_163 = arith.constant 0 : index
    %c0_164 = arith.constant 0 : index
    %c0_165 = arith.constant 0 : index
    %245 = vector.load %arg26[%c0_163, %c0_164, %c0_165] : memref<4x1x32xf32, #tpu.memory_space<vmem>>, vector<1x1x32xf32>
    %246 = vector.shape_cast %245 : vector<1x1x32xf32> to vector<1x32xf32>
    %cst_166 = arith.constant dense<0.000000e+00> : vector<8xf32>
    %247 = vector.multi_reduction <add>, %242, %cst_166 [1] : vector<8x32xf32> to vector<8xf32>
    %248 = vector.shape_cast %247 : vector<8xf32> to vector<8x1xf32>
    %cst_167 = arith.constant 3.200000e+01 : f32
    %249 = vector.broadcast %cst_167 : f32 to vector<8x1xf32>
    %250 = arith.divf %248, %249 : vector<8x1xf32>
    %251 = vector.broadcast %250 : vector<8x1xf32> to vector<8x32xf32>
    %252 = arith.subf %242, %251 : vector<8x32xf32>
    %253 = arith.mulf %252, %252 : vector<8x32xf32>
    %cst_168 = arith.constant dense<0.000000e+00> : vector<8xf32>
    %254 = vector.multi_reduction <add>, %253, %cst_168 [1] : vector<8x32xf32> to vector<8xf32>
    %255 = vector.shape_cast %254 : vector<8xf32> to vector<8x1xf32>
    %cst_169 = arith.constant 3.200000e+01 : f32
    %256 = vector.broadcast %cst_169 : f32 to vector<8x1xf32>
    %257 = arith.divf %255, %256 : vector<8x1xf32>
    %258 = vector.broadcast %250 : vector<8x1xf32> to vector<8x32xf32>
    %259 = arith.subf %242, %258 : vector<8x32xf32>
    %cst_170 = arith.constant 9.99999974E-6 : f32
    %260 = vector.broadcast %cst_170 : f32 to vector<8x1xf32>
    %261 = arith.addf %257, %260 : vector<8x1xf32>
    %262 = math.rsqrt %261 : vector<8x1xf32>
    %263 = vector.broadcast %262 : vector<8x1xf32> to vector<8x32xf32>
    %264 = arith.mulf %259, %263 : vector<8x32xf32>
    %265 = vector.broadcast %244 : vector<1x32xf32> to vector<8x32xf32>
    %266 = arith.mulf %264, %265 : vector<8x32xf32>
    %267 = vector.broadcast %246 : vector<1x32xf32> to vector<8x32xf32>
    %268 = arith.addf %266, %267 : vector<8x32xf32>
    %c1_171 = arith.constant 1 : index
    %c0_172 = arith.constant 0 : index
    %c0_173 = arith.constant 0 : index
    %269 = vector.load %arg15[%c1_171, %c0_172, %c0_173] : memref<4x32x96xf32, #tpu.memory_space<vmem>>, vector<1x32x96xf32>
    %270 = vector.shape_cast %269 : vector<1x32x96xf32> to vector<32x96xf32>
    %cst_174 = arith.constant dense<0.000000e+00> : vector<8x96xf32>
    %271 = tpu.matmul %268, %270, %cst_174 {dimension_numbers = #tpu.dot_dimension_numbers<[1], [0], [0], [1], [0, 0, 1, 1], [], []>} : vector<8x32xf32>, vector<32x96xf32>, vector<8x96xf32> -> vector<8x96xf32>
    %c1_175 = arith.constant 1 : index
    %c0_176 = arith.constant 0 : index
    %c0_177 = arith.constant 0 : index
    %272 = vector.load %arg16[%c1_175, %c0_176, %c0_177] : memref<4x1x96xf32, #tpu.memory_space<vmem>>, vector<1x1x96xf32>
    %273 = vector.shape_cast %272 : vector<1x1x96xf32> to vector<1x96xf32>
    %274 = vector.broadcast %273 : vector<1x96xf32> to vector<8x96xf32>
    %275 = arith.addf %271, %274 : vector<8x96xf32>
    %276 = vector.extract_strided_slice %275 {offsets = [0, 0], sizes = [8, 32], strides = [1, 1]} : vector<8x96xf32> to vector<8x32xf32>
    %277 = vector.extract_strided_slice %275 {offsets = [0, 32], sizes = [8, 32], strides = [1, 1]} : vector<8x96xf32> to vector<8x32xf32>
    %278 = vector.extract_strided_slice %275 {offsets = [0, 64], sizes = [8, 32], strides = [1, 1]} : vector<8x96xf32> to vector<8x32xf32>
    %279 = vector.extract_strided_slice %276 {offsets = [0, 0], sizes = [8, 8], strides = [1, 1]} : vector<8x32xf32> to vector<8x8xf32>
    %280 = vector.extract_strided_slice %277 {offsets = [0, 0], sizes = [8, 8], strides = [1, 1]} : vector<8x32xf32> to vector<8x8xf32>
    %281 = vector.extract_strided_slice %278 {offsets = [0, 0], sizes = [8, 8], strides = [1, 1]} : vector<8x32xf32> to vector<8x8xf32>
    %282 = tpu.transpose %280, [1, 0] : vector<8x8xf32> -> vector<8x8xf32>
    %cst_178 = arith.constant dense<0.000000e+00> : vector<8x8xf32>
    %283 = tpu.matmul %279, %282, %cst_178 {dimension_numbers = #tpu.dot_dimension_numbers<[1], [0], [0], [1], [0, 0, 1, 1], [], []>} : vector<8x8xf32>, vector<8x8xf32>, vector<8x8xf32> -> vector<8x8xf32>
    %cst_179 = arith.constant 0.353553385 : f32
    %284 = vector.broadcast %cst_179 : f32 to vector<8x8xf32>
    %285 = arith.mulf %283, %284 : vector<8x8xf32>
    %cst_180 = arith.constant dense<0xFF800000> : vector<8xf32>
    %286 = vector.multi_reduction <maximumf>, %285, %cst_180 [1] : vector<8x8xf32> to vector<8xf32>
    %287 = vector.shape_cast %286 : vector<8xf32> to vector<8x1xf32>
    %288 = vector.broadcast %287 : vector<8x1xf32> to vector<8x8xf32>
    %289 = arith.subf %285, %288 : vector<8x8xf32>
    %290 = math.exp %289 : vector<8x8xf32>
    %cst_181 = arith.constant dense<0.000000e+00> : vector<8xf32>
    %291 = vector.multi_reduction <add>, %290, %cst_181 [1] : vector<8x8xf32> to vector<8xf32>
    %292 = vector.shape_cast %291 : vector<8xf32> to vector<8x1xf32>
    %293 = tpu.reciprocal %292 {approx = true} : vector<8x1xf32> -> vector<8x1xf32>
    %294 = vector.broadcast %293 : vector<8x1xf32> to vector<8x8xf32>
    %295 = arith.mulf %290, %294 : vector<8x8xf32>
    %cst_182 = arith.constant dense<0.000000e+00> : vector<8x8xf32>
    %296 = tpu.matmul %295, %281, %cst_182 {dimension_numbers = #tpu.dot_dimension_numbers<[1], [0], [0], [1], [0, 0, 1, 1], [], []>} : vector<8x8xf32>, vector<8x8xf32>, vector<8x8xf32> -> vector<8x8xf32>
    %297 = vector.extract_strided_slice %276 {offsets = [0, 8], sizes = [8, 8], strides = [1, 1]} : vector<8x32xf32> to vector<8x8xf32>
    %298 = vector.extract_strided_slice %277 {offsets = [0, 8], sizes = [8, 8], strides = [1, 1]} : vector<8x32xf32> to vector<8x8xf32>
    %299 = vector.extract_strided_slice %278 {offsets = [0, 8], sizes = [8, 8], strides = [1, 1]} : vector<8x32xf32> to vector<8x8xf32>
    %300 = tpu.transpose %298, [1, 0] : vector<8x8xf32> -> vector<8x8xf32>
    %cst_183 = arith.constant dense<0.000000e+00> : vector<8x8xf32>
    %301 = tpu.matmul %297, %300, %cst_183 {dimension_numbers = #tpu.dot_dimension_numbers<[1], [0], [0], [1], [0, 0, 1, 1], [], []>} : vector<8x8xf32>, vector<8x8xf32>, vector<8x8xf32> -> vector<8x8xf32>
    %cst_184 = arith.constant 0.353553385 : f32
    %302 = vector.broadcast %cst_184 : f32 to vector<8x8xf32>
    %303 = arith.mulf %301, %302 : vector<8x8xf32>
    %cst_185 = arith.constant dense<0xFF800000> : vector<8xf32>
    %304 = vector.multi_reduction <maximumf>, %303, %cst_185 [1] : vector<8x8xf32> to vector<8xf32>
    %305 = vector.shape_cast %304 : vector<8xf32> to vector<8x1xf32>
    %306 = vector.broadcast %305 : vector<8x1xf32> to vector<8x8xf32>
    %307 = arith.subf %303, %306 : vector<8x8xf32>
    %308 = math.exp %307 : vector<8x8xf32>
    %cst_186 = arith.constant dense<0.000000e+00> : vector<8xf32>
    %309 = vector.multi_reduction <add>, %308, %cst_186 [1] : vector<8x8xf32> to vector<8xf32>
    %310 = vector.shape_cast %309 : vector<8xf32> to vector<8x1xf32>
    %311 = tpu.reciprocal %310 {approx = true} : vector<8x1xf32> -> vector<8x1xf32>
    %312 = vector.broadcast %311 : vector<8x1xf32> to vector<8x8xf32>
    %313 = arith.mulf %308, %312 : vector<8x8xf32>
    %cst_187 = arith.constant dense<0.000000e+00> : vector<8x8xf32>
    %314 = tpu.matmul %313, %299, %cst_187 {dimension_numbers = #tpu.dot_dimension_numbers<[1], [0], [0], [1], [0, 0, 1, 1], [], []>} : vector<8x8xf32>, vector<8x8xf32>, vector<8x8xf32> -> vector<8x8xf32>
    %315 = vector.extract_strided_slice %276 {offsets = [0, 16], sizes = [8, 8], strides = [1, 1]} : vector<8x32xf32> to vector<8x8xf32>
    %316 = vector.extract_strided_slice %277 {offsets = [0, 16], sizes = [8, 8], strides = [1, 1]} : vector<8x32xf32> to vector<8x8xf32>
    %317 = vector.extract_strided_slice %278 {offsets = [0, 16], sizes = [8, 8], strides = [1, 1]} : vector<8x32xf32> to vector<8x8xf32>
    %318 = tpu.transpose %316, [1, 0] : vector<8x8xf32> -> vector<8x8xf32>
    %cst_188 = arith.constant dense<0.000000e+00> : vector<8x8xf32>
    %319 = tpu.matmul %315, %318, %cst_188 {dimension_numbers = #tpu.dot_dimension_numbers<[1], [0], [0], [1], [0, 0, 1, 1], [], []>} : vector<8x8xf32>, vector<8x8xf32>, vector<8x8xf32> -> vector<8x8xf32>
    %cst_189 = arith.constant 0.353553385 : f32
    %320 = vector.broadcast %cst_189 : f32 to vector<8x8xf32>
    %321 = arith.mulf %319, %320 : vector<8x8xf32>
    %cst_190 = arith.constant dense<0xFF800000> : vector<8xf32>
    %322 = vector.multi_reduction <maximumf>, %321, %cst_190 [1] : vector<8x8xf32> to vector<8xf32>
    %323 = vector.shape_cast %322 : vector<8xf32> to vector<8x1xf32>
    %324 = vector.broadcast %323 : vector<8x1xf32> to vector<8x8xf32>
    %325 = arith.subf %321, %324 : vector<8x8xf32>
    %326 = math.exp %325 : vector<8x8xf32>
    %cst_191 = arith.constant dense<0.000000e+00> : vector<8xf32>
    %327 = vector.multi_reduction <add>, %326, %cst_191 [1] : vector<8x8xf32> to vector<8xf32>
    %328 = vector.shape_cast %327 : vector<8xf32> to vector<8x1xf32>
    %329 = tpu.reciprocal %328 {approx = true} : vector<8x1xf32> -> vector<8x1xf32>
    %330 = vector.broadcast %329 : vector<8x1xf32> to vector<8x8xf32>
    %331 = arith.mulf %326, %330 : vector<8x8xf32>
    %cst_192 = arith.constant dense<0.000000e+00> : vector<8x8xf32>
    %332 = tpu.matmul %331, %317, %cst_192 {dimension_numbers = #tpu.dot_dimension_numbers<[1], [0], [0], [1], [0, 0, 1, 1], [], []>} : vector<8x8xf32>, vector<8x8xf32>, vector<8x8xf32> -> vector<8x8xf32>
    %333 = vector.extract_strided_slice %276 {offsets = [0, 24], sizes = [8, 8], strides = [1, 1]} : vector<8x32xf32> to vector<8x8xf32>
    %334 = vector.extract_strided_slice %277 {offsets = [0, 24], sizes = [8, 8], strides = [1, 1]} : vector<8x32xf32> to vector<8x8xf32>
    %335 = vector.extract_strided_slice %278 {offsets = [0, 24], sizes = [8, 8], strides = [1, 1]} : vector<8x32xf32> to vector<8x8xf32>
    %336 = tpu.transpose %334, [1, 0] : vector<8x8xf32> -> vector<8x8xf32>
    %cst_193 = arith.constant dense<0.000000e+00> : vector<8x8xf32>
    %337 = tpu.matmul %333, %336, %cst_193 {dimension_numbers = #tpu.dot_dimension_numbers<[1], [0], [0], [1], [0, 0, 1, 1], [], []>} : vector<8x8xf32>, vector<8x8xf32>, vector<8x8xf32> -> vector<8x8xf32>
    %cst_194 = arith.constant 0.353553385 : f32
    %338 = vector.broadcast %cst_194 : f32 to vector<8x8xf32>
    %339 = arith.mulf %337, %338 : vector<8x8xf32>
    %cst_195 = arith.constant dense<0xFF800000> : vector<8xf32>
    %340 = vector.multi_reduction <maximumf>, %339, %cst_195 [1] : vector<8x8xf32> to vector<8xf32>
    %341 = vector.shape_cast %340 : vector<8xf32> to vector<8x1xf32>
    %342 = vector.broadcast %341 : vector<8x1xf32> to vector<8x8xf32>
    %343 = arith.subf %339, %342 : vector<8x8xf32>
    %344 = math.exp %343 : vector<8x8xf32>
    %cst_196 = arith.constant dense<0.000000e+00> : vector<8xf32>
    %345 = vector.multi_reduction <add>, %344, %cst_196 [1] : vector<8x8xf32> to vector<8xf32>
    %346 = vector.shape_cast %345 : vector<8xf32> to vector<8x1xf32>
    %347 = tpu.reciprocal %346 {approx = true} : vector<8x1xf32> -> vector<8x1xf32>
    %348 = vector.broadcast %347 : vector<8x1xf32> to vector<8x8xf32>
    %349 = arith.mulf %344, %348 : vector<8x8xf32>
    %cst_197 = arith.constant dense<0.000000e+00> : vector<8x8xf32>
    %350 = tpu.matmul %349, %335, %cst_197 {dimension_numbers = #tpu.dot_dimension_numbers<[1], [0], [0], [1], [0, 0, 1, 1], [], []>} : vector<8x8xf32>, vector<8x8xf32>, vector<8x8xf32> -> vector<8x8xf32>
    %351 = tpu.concatenate %296, %314, %332, %350 in 1 : vector<8x8xf32>, vector<8x8xf32>, vector<8x8xf32>, vector<8x8xf32> -> vector<8x32xf32>
    %c1_198 = arith.constant 1 : index
    %c0_199 = arith.constant 0 : index
    %c0_200 = arith.constant 0 : index
    %352 = vector.load %arg17[%c1_198, %c0_199, %c0_200] : memref<4x32x32xf32, #tpu.memory_space<vmem>>, vector<1x32x32xf32>
    %353 = vector.shape_cast %352 : vector<1x32x32xf32> to vector<32x32xf32>
    %cst_201 = arith.constant dense<0.000000e+00> : vector<8x32xf32>
    %354 = tpu.matmul %351, %353, %cst_201 {dimension_numbers = #tpu.dot_dimension_numbers<[1], [0], [0], [1], [0, 0, 1, 1], [], []>} : vector<8x32xf32>, vector<32x32xf32>, vector<8x32xf32> -> vector<8x32xf32>
    %c1_202 = arith.constant 1 : index
    %c0_203 = arith.constant 0 : index
    %c0_204 = arith.constant 0 : index
    %355 = vector.load %arg18[%c1_202, %c0_203, %c0_204] : memref<4x1x32xf32, #tpu.memory_space<vmem>>, vector<1x1x32xf32>
    %356 = vector.shape_cast %355 : vector<1x1x32xf32> to vector<1x32xf32>
    %357 = vector.broadcast %356 : vector<1x32xf32> to vector<8x32xf32>
    %358 = arith.addf %354, %357 : vector<8x32xf32>
    %359 = arith.addf %268, %358 : vector<8x32xf32>
    %c1_205 = arith.constant 1 : index
    %c0_206 = arith.constant 0 : index
    %c0_207 = arith.constant 0 : index
    %360 = vector.load %arg23[%c1_205, %c0_206, %c0_207] : memref<4x1x32xf32, #tpu.memory_space<vmem>>, vector<1x1x32xf32>
    %361 = vector.shape_cast %360 : vector<1x1x32xf32> to vector<1x32xf32>
    %c1_208 = arith.constant 1 : index
    %c0_209 = arith.constant 0 : index
    %c0_210 = arith.constant 0 : index
    %362 = vector.load %arg24[%c1_208, %c0_209, %c0_210] : memref<4x1x32xf32, #tpu.memory_space<vmem>>, vector<1x1x32xf32>
    %363 = vector.shape_cast %362 : vector<1x1x32xf32> to vector<1x32xf32>
    %cst_211 = arith.constant dense<0.000000e+00> : vector<8xf32>
    %364 = vector.multi_reduction <add>, %359, %cst_211 [1] : vector<8x32xf32> to vector<8xf32>
    %365 = vector.shape_cast %364 : vector<8xf32> to vector<8x1xf32>
    %cst_212 = arith.constant 3.200000e+01 : f32
    %366 = vector.broadcast %cst_212 : f32 to vector<8x1xf32>
    %367 = arith.divf %365, %366 : vector<8x1xf32>
    %368 = vector.broadcast %367 : vector<8x1xf32> to vector<8x32xf32>
    %369 = arith.subf %359, %368 : vector<8x32xf32>
    %370 = arith.mulf %369, %369 : vector<8x32xf32>
    %cst_213 = arith.constant dense<0.000000e+00> : vector<8xf32>
    %371 = vector.multi_reduction <add>, %370, %cst_213 [1] : vector<8x32xf32> to vector<8xf32>
    %372 = vector.shape_cast %371 : vector<8xf32> to vector<8x1xf32>
    %cst_214 = arith.constant 3.200000e+01 : f32
    %373 = vector.broadcast %cst_214 : f32 to vector<8x1xf32>
    %374 = arith.divf %372, %373 : vector<8x1xf32>
    %375 = vector.broadcast %367 : vector<8x1xf32> to vector<8x32xf32>
    %376 = arith.subf %359, %375 : vector<8x32xf32>
    %cst_215 = arith.constant 9.99999974E-6 : f32
    %377 = vector.broadcast %cst_215 : f32 to vector<8x1xf32>
    %378 = arith.addf %374, %377 : vector<8x1xf32>
    %379 = math.rsqrt %378 : vector<8x1xf32>
    %380 = vector.broadcast %379 : vector<8x1xf32> to vector<8x32xf32>
    %381 = arith.mulf %376, %380 : vector<8x32xf32>
    %382 = vector.broadcast %361 : vector<1x32xf32> to vector<8x32xf32>
    %383 = arith.mulf %381, %382 : vector<8x32xf32>
    %384 = vector.broadcast %363 : vector<1x32xf32> to vector<8x32xf32>
    %385 = arith.addf %383, %384 : vector<8x32xf32>
    %c1_216 = arith.constant 1 : index
    %c0_217 = arith.constant 0 : index
    %c0_218 = arith.constant 0 : index
    %386 = vector.load %arg19[%c1_216, %c0_217, %c0_218] : memref<4x32x128xf32, #tpu.memory_space<vmem>>, vector<1x32x128xf32>
    %387 = vector.shape_cast %386 : vector<1x32x128xf32> to vector<32x128xf32>
    %cst_219 = arith.constant dense<0.000000e+00> : vector<8x128xf32>
    %388 = tpu.matmul %385, %387, %cst_219 {dimension_numbers = #tpu.dot_dimension_numbers<[1], [0], [0], [1], [0, 0, 1, 1], [], []>} : vector<8x32xf32>, vector<32x128xf32>, vector<8x128xf32> -> vector<8x128xf32>
    %c1_220 = arith.constant 1 : index
    %c0_221 = arith.constant 0 : index
    %c0_222 = arith.constant 0 : index
    %389 = vector.load %arg20[%c1_220, %c0_221, %c0_222] : memref<4x1x128xf32, #tpu.memory_space<vmem>>, vector<1x1x128xf32>
    %390 = vector.shape_cast %389 : vector<1x1x128xf32> to vector<1x128xf32>
    %391 = vector.broadcast %390 : vector<1x128xf32> to vector<8x128xf32>
    %392 = arith.addf %388, %391 : vector<8x128xf32>
    %cst_223 = arith.constant 0.000000e+00 : f32
    %393 = vector.broadcast %cst_223 : f32 to vector<8x128xf32>
    %394 = arith.maximumf %392, %393 : vector<8x128xf32>
    %c1_224 = arith.constant 1 : index
    %c0_225 = arith.constant 0 : index
    %c0_226 = arith.constant 0 : index
    %395 = vector.load %arg21[%c1_224, %c0_225, %c0_226] : memref<4x128x32xf32, #tpu.memory_space<vmem>>, vector<1x128x32xf32>
    %396 = vector.shape_cast %395 : vector<1x128x32xf32> to vector<128x32xf32>
    %cst_227 = arith.constant dense<0.000000e+00> : vector<8x32xf32>
    %397 = tpu.matmul %394, %396, %cst_227 {dimension_numbers = #tpu.dot_dimension_numbers<[1], [0], [0], [1], [0, 0, 1, 1], [], []>} : vector<8x128xf32>, vector<128x32xf32>, vector<8x32xf32> -> vector<8x32xf32>
    %c1_228 = arith.constant 1 : index
    %c0_229 = arith.constant 0 : index
    %c0_230 = arith.constant 0 : index
    %398 = vector.load %arg22[%c1_228, %c0_229, %c0_230] : memref<4x1x32xf32, #tpu.memory_space<vmem>>, vector<1x1x32xf32>
    %399 = vector.shape_cast %398 : vector<1x1x32xf32> to vector<1x32xf32>
    %400 = vector.broadcast %399 : vector<1x32xf32> to vector<8x32xf32>
    %401 = arith.addf %397, %400 : vector<8x32xf32>
    %402 = arith.addf %385, %401 : vector<8x32xf32>
    %c1_231 = arith.constant 1 : index
    %c0_232 = arith.constant 0 : index
    %c0_233 = arith.constant 0 : index
    %403 = vector.load %arg25[%c1_231, %c0_232, %c0_233] : memref<4x1x32xf32, #tpu.memory_space<vmem>>, vector<1x1x32xf32>
    %404 = vector.shape_cast %403 : vector<1x1x32xf32> to vector<1x32xf32>
    %c1_234 = arith.constant 1 : index
    %c0_235 = arith.constant 0 : index
    %c0_236 = arith.constant 0 : index
    %405 = vector.load %arg26[%c1_234, %c0_235, %c0_236] : memref<4x1x32xf32, #tpu.memory_space<vmem>>, vector<1x1x32xf32>
    %406 = vector.shape_cast %405 : vector<1x1x32xf32> to vector<1x32xf32>
    %cst_237 = arith.constant dense<0.000000e+00> : vector<8xf32>
    %407 = vector.multi_reduction <add>, %402, %cst_237 [1] : vector<8x32xf32> to vector<8xf32>
    %408 = vector.shape_cast %407 : vector<8xf32> to vector<8x1xf32>
    %cst_238 = arith.constant 3.200000e+01 : f32
    %409 = vector.broadcast %cst_238 : f32 to vector<8x1xf32>
    %410 = arith.divf %408, %409 : vector<8x1xf32>
    %411 = vector.broadcast %410 : vector<8x1xf32> to vector<8x32xf32>
    %412 = arith.subf %402, %411 : vector<8x32xf32>
    %413 = arith.mulf %412, %412 : vector<8x32xf32>
    %cst_239 = arith.constant dense<0.000000e+00> : vector<8xf32>
    %414 = vector.multi_reduction <add>, %413, %cst_239 [1] : vector<8x32xf32> to vector<8xf32>
    %415 = vector.shape_cast %414 : vector<8xf32> to vector<8x1xf32>
    %cst_240 = arith.constant 3.200000e+01 : f32
    %416 = vector.broadcast %cst_240 : f32 to vector<8x1xf32>
    %417 = arith.divf %415, %416 : vector<8x1xf32>
    %418 = vector.broadcast %410 : vector<8x1xf32> to vector<8x32xf32>
    %419 = arith.subf %402, %418 : vector<8x32xf32>
    %cst_241 = arith.constant 9.99999974E-6 : f32
    %420 = vector.broadcast %cst_241 : f32 to vector<8x1xf32>
    %421 = arith.addf %417, %420 : vector<8x1xf32>
    %422 = math.rsqrt %421 : vector<8x1xf32>
    %423 = vector.broadcast %422 : vector<8x1xf32> to vector<8x32xf32>
    %424 = arith.mulf %419, %423 : vector<8x32xf32>
    %425 = vector.broadcast %404 : vector<1x32xf32> to vector<8x32xf32>
    %426 = arith.mulf %424, %425 : vector<8x32xf32>
    %427 = vector.broadcast %406 : vector<1x32xf32> to vector<8x32xf32>
    %428 = arith.addf %426, %427 : vector<8x32xf32>
    %c2_242 = arith.constant 2 : index
    %c0_243 = arith.constant 0 : index
    %c0_244 = arith.constant 0 : index
    %429 = vector.load %arg15[%c2_242, %c0_243, %c0_244] : memref<4x32x96xf32, #tpu.memory_space<vmem>>, vector<1x32x96xf32>
    %430 = vector.shape_cast %429 : vector<1x32x96xf32> to vector<32x96xf32>
    %cst_245 = arith.constant dense<0.000000e+00> : vector<8x96xf32>
    %431 = tpu.matmul %428, %430, %cst_245 {dimension_numbers = #tpu.dot_dimension_numbers<[1], [0], [0], [1], [0, 0, 1, 1], [], []>} : vector<8x32xf32>, vector<32x96xf32>, vector<8x96xf32> -> vector<8x96xf32>
    %c2_246 = arith.constant 2 : index
    %c0_247 = arith.constant 0 : index
    %c0_248 = arith.constant 0 : index
    %432 = vector.load %arg16[%c2_246, %c0_247, %c0_248] : memref<4x1x96xf32, #tpu.memory_space<vmem>>, vector<1x1x96xf32>
    %433 = vector.shape_cast %432 : vector<1x1x96xf32> to vector<1x96xf32>
    %434 = vector.broadcast %433 : vector<1x96xf32> to vector<8x96xf32>
    %435 = arith.addf %431, %434 : vector<8x96xf32>
    %436 = vector.extract_strided_slice %435 {offsets = [0, 0], sizes = [8, 32], strides = [1, 1]} : vector<8x96xf32> to vector<8x32xf32>
    %437 = vector.extract_strided_slice %435 {offsets = [0, 32], sizes = [8, 32], strides = [1, 1]} : vector<8x96xf32> to vector<8x32xf32>
    %438 = vector.extract_strided_slice %435 {offsets = [0, 64], sizes = [8, 32], strides = [1, 1]} : vector<8x96xf32> to vector<8x32xf32>
    %439 = vector.extract_strided_slice %436 {offsets = [0, 0], sizes = [8, 8], strides = [1, 1]} : vector<8x32xf32> to vector<8x8xf32>
    %440 = vector.extract_strided_slice %437 {offsets = [0, 0], sizes = [8, 8], strides = [1, 1]} : vector<8x32xf32> to vector<8x8xf32>
    %441 = vector.extract_strided_slice %438 {offsets = [0, 0], sizes = [8, 8], strides = [1, 1]} : vector<8x32xf32> to vector<8x8xf32>
    %442 = tpu.transpose %440, [1, 0] : vector<8x8xf32> -> vector<8x8xf32>
    %cst_249 = arith.constant dense<0.000000e+00> : vector<8x8xf32>
    %443 = tpu.matmul %439, %442, %cst_249 {dimension_numbers = #tpu.dot_dimension_numbers<[1], [0], [0], [1], [0, 0, 1, 1], [], []>} : vector<8x8xf32>, vector<8x8xf32>, vector<8x8xf32> -> vector<8x8xf32>
    %cst_250 = arith.constant 0.353553385 : f32
    %444 = vector.broadcast %cst_250 : f32 to vector<8x8xf32>
    %445 = arith.mulf %443, %444 : vector<8x8xf32>
    %cst_251 = arith.constant dense<0xFF800000> : vector<8xf32>
    %446 = vector.multi_reduction <maximumf>, %445, %cst_251 [1] : vector<8x8xf32> to vector<8xf32>
    %447 = vector.shape_cast %446 : vector<8xf32> to vector<8x1xf32>
    %448 = vector.broadcast %447 : vector<8x1xf32> to vector<8x8xf32>
    %449 = arith.subf %445, %448 : vector<8x8xf32>
    %450 = math.exp %449 : vector<8x8xf32>
    %cst_252 = arith.constant dense<0.000000e+00> : vector<8xf32>
    %451 = vector.multi_reduction <add>, %450, %cst_252 [1] : vector<8x8xf32> to vector<8xf32>
    %452 = vector.shape_cast %451 : vector<8xf32> to vector<8x1xf32>
    %453 = tpu.reciprocal %452 {approx = true} : vector<8x1xf32> -> vector<8x1xf32>
    %454 = vector.broadcast %453 : vector<8x1xf32> to vector<8x8xf32>
    %455 = arith.mulf %450, %454 : vector<8x8xf32>
    %cst_253 = arith.constant dense<0.000000e+00> : vector<8x8xf32>
    %456 = tpu.matmul %455, %441, %cst_253 {dimension_numbers = #tpu.dot_dimension_numbers<[1], [0], [0], [1], [0, 0, 1, 1], [], []>} : vector<8x8xf32>, vector<8x8xf32>, vector<8x8xf32> -> vector<8x8xf32>
    %457 = vector.extract_strided_slice %436 {offsets = [0, 8], sizes = [8, 8], strides = [1, 1]} : vector<8x32xf32> to vector<8x8xf32>
    %458 = vector.extract_strided_slice %437 {offsets = [0, 8], sizes = [8, 8], strides = [1, 1]} : vector<8x32xf32> to vector<8x8xf32>
    %459 = vector.extract_strided_slice %438 {offsets = [0, 8], sizes = [8, 8], strides = [1, 1]} : vector<8x32xf32> to vector<8x8xf32>
    %460 = tpu.transpose %458, [1, 0] : vector<8x8xf32> -> vector<8x8xf32>
    %cst_254 = arith.constant dense<0.000000e+00> : vector<8x8xf32>
    %461 = tpu.matmul %457, %460, %cst_254 {dimension_numbers = #tpu.dot_dimension_numbers<[1], [0], [0], [1], [0, 0, 1, 1], [], []>} : vector<8x8xf32>, vector<8x8xf32>, vector<8x8xf32> -> vector<8x8xf32>
    %cst_255 = arith.constant 0.353553385 : f32
    %462 = vector.broadcast %cst_255 : f32 to vector<8x8xf32>
    %463 = arith.mulf %461, %462 : vector<8x8xf32>
    %cst_256 = arith.constant dense<0xFF800000> : vector<8xf32>
    %464 = vector.multi_reduction <maximumf>, %463, %cst_256 [1] : vector<8x8xf32> to vector<8xf32>
    %465 = vector.shape_cast %464 : vector<8xf32> to vector<8x1xf32>
    %466 = vector.broadcast %465 : vector<8x1xf32> to vector<8x8xf32>
    %467 = arith.subf %463, %466 : vector<8x8xf32>
    %468 = math.exp %467 : vector<8x8xf32>
    %cst_257 = arith.constant dense<0.000000e+00> : vector<8xf32>
    %469 = vector.multi_reduction <add>, %468, %cst_257 [1] : vector<8x8xf32> to vector<8xf32>
    %470 = vector.shape_cast %469 : vector<8xf32> to vector<8x1xf32>
    %471 = tpu.reciprocal %470 {approx = true} : vector<8x1xf32> -> vector<8x1xf32>
    %472 = vector.broadcast %471 : vector<8x1xf32> to vector<8x8xf32>
    %473 = arith.mulf %468, %472 : vector<8x8xf32>
    %cst_258 = arith.constant dense<0.000000e+00> : vector<8x8xf32>
    %474 = tpu.matmul %473, %459, %cst_258 {dimension_numbers = #tpu.dot_dimension_numbers<[1], [0], [0], [1], [0, 0, 1, 1], [], []>} : vector<8x8xf32>, vector<8x8xf32>, vector<8x8xf32> -> vector<8x8xf32>
    %475 = vector.extract_strided_slice %436 {offsets = [0, 16], sizes = [8, 8], strides = [1, 1]} : vector<8x32xf32> to vector<8x8xf32>
    %476 = vector.extract_strided_slice %437 {offsets = [0, 16], sizes = [8, 8], strides = [1, 1]} : vector<8x32xf32> to vector<8x8xf32>
    %477 = vector.extract_strided_slice %438 {offsets = [0, 16], sizes = [8, 8], strides = [1, 1]} : vector<8x32xf32> to vector<8x8xf32>
    %478 = tpu.transpose %476, [1, 0] : vector<8x8xf32> -> vector<8x8xf32>
    %cst_259 = arith.constant dense<0.000000e+00> : vector<8x8xf32>
    %479 = tpu.matmul %475, %478, %cst_259 {dimension_numbers = #tpu.dot_dimension_numbers<[1], [0], [0], [1], [0, 0, 1, 1], [], []>} : vector<8x8xf32>, vector<8x8xf32>, vector<8x8xf32> -> vector<8x8xf32>
    %cst_260 = arith.constant 0.353553385 : f32
    %480 = vector.broadcast %cst_260 : f32 to vector<8x8xf32>
    %481 = arith.mulf %479, %480 : vector<8x8xf32>
    %cst_261 = arith.constant dense<0xFF800000> : vector<8xf32>
    %482 = vector.multi_reduction <maximumf>, %481, %cst_261 [1] : vector<8x8xf32> to vector<8xf32>
    %483 = vector.shape_cast %482 : vector<8xf32> to vector<8x1xf32>
    %484 = vector.broadcast %483 : vector<8x1xf32> to vector<8x8xf32>
    %485 = arith.subf %481, %484 : vector<8x8xf32>
    %486 = math.exp %485 : vector<8x8xf32>
    %cst_262 = arith.constant dense<0.000000e+00> : vector<8xf32>
    %487 = vector.multi_reduction <add>, %486, %cst_262 [1] : vector<8x8xf32> to vector<8xf32>
    %488 = vector.shape_cast %487 : vector<8xf32> to vector<8x1xf32>
    %489 = tpu.reciprocal %488 {approx = true} : vector<8x1xf32> -> vector<8x1xf32>
    %490 = vector.broadcast %489 : vector<8x1xf32> to vector<8x8xf32>
    %491 = arith.mulf %486, %490 : vector<8x8xf32>
    %cst_263 = arith.constant dense<0.000000e+00> : vector<8x8xf32>
    %492 = tpu.matmul %491, %477, %cst_263 {dimension_numbers = #tpu.dot_dimension_numbers<[1], [0], [0], [1], [0, 0, 1, 1], [], []>} : vector<8x8xf32>, vector<8x8xf32>, vector<8x8xf32> -> vector<8x8xf32>
    %493 = vector.extract_strided_slice %436 {offsets = [0, 24], sizes = [8, 8], strides = [1, 1]} : vector<8x32xf32> to vector<8x8xf32>
    %494 = vector.extract_strided_slice %437 {offsets = [0, 24], sizes = [8, 8], strides = [1, 1]} : vector<8x32xf32> to vector<8x8xf32>
    %495 = vector.extract_strided_slice %438 {offsets = [0, 24], sizes = [8, 8], strides = [1, 1]} : vector<8x32xf32> to vector<8x8xf32>
    %496 = tpu.transpose %494, [1, 0] : vector<8x8xf32> -> vector<8x8xf32>
    %cst_264 = arith.constant dense<0.000000e+00> : vector<8x8xf32>
    %497 = tpu.matmul %493, %496, %cst_264 {dimension_numbers = #tpu.dot_dimension_numbers<[1], [0], [0], [1], [0, 0, 1, 1], [], []>} : vector<8x8xf32>, vector<8x8xf32>, vector<8x8xf32> -> vector<8x8xf32>
    %cst_265 = arith.constant 0.353553385 : f32
    %498 = vector.broadcast %cst_265 : f32 to vector<8x8xf32>
    %499 = arith.mulf %497, %498 : vector<8x8xf32>
    %cst_266 = arith.constant dense<0xFF800000> : vector<8xf32>
    %500 = vector.multi_reduction <maximumf>, %499, %cst_266 [1] : vector<8x8xf32> to vector<8xf32>
    %501 = vector.shape_cast %500 : vector<8xf32> to vector<8x1xf32>
    %502 = vector.broadcast %501 : vector<8x1xf32> to vector<8x8xf32>
    %503 = arith.subf %499, %502 : vector<8x8xf32>
    %504 = math.exp %503 : vector<8x8xf32>
    %cst_267 = arith.constant dense<0.000000e+00> : vector<8xf32>
    %505 = vector.multi_reduction <add>, %504, %cst_267 [1] : vector<8x8xf32> to vector<8xf32>
    %506 = vector.shape_cast %505 : vector<8xf32> to vector<8x1xf32>
    %507 = tpu.reciprocal %506 {approx = true} : vector<8x1xf32> -> vector<8x1xf32>
    %508 = vector.broadcast %507 : vector<8x1xf32> to vector<8x8xf32>
    %509 = arith.mulf %504, %508 : vector<8x8xf32>
    %cst_268 = arith.constant dense<0.000000e+00> : vector<8x8xf32>
    %510 = tpu.matmul %509, %495, %cst_268 {dimension_numbers = #tpu.dot_dimension_numbers<[1], [0], [0], [1], [0, 0, 1, 1], [], []>} : vector<8x8xf32>, vector<8x8xf32>, vector<8x8xf32> -> vector<8x8xf32>
    %511 = tpu.concatenate %456, %474, %492, %510 in 1 : vector<8x8xf32>, vector<8x8xf32>, vector<8x8xf32>, vector<8x8xf32> -> vector<8x32xf32>
    %c2_269 = arith.constant 2 : index
    %c0_270 = arith.constant 0 : index
    %c0_271 = arith.constant 0 : index
    %512 = vector.load %arg17[%c2_269, %c0_270, %c0_271] : memref<4x32x32xf32, #tpu.memory_space<vmem>>, vector<1x32x32xf32>
    %513 = vector.shape_cast %512 : vector<1x32x32xf32> to vector<32x32xf32>
    %cst_272 = arith.constant dense<0.000000e+00> : vector<8x32xf32>
    %514 = tpu.matmul %511, %513, %cst_272 {dimension_numbers = #tpu.dot_dimension_numbers<[1], [0], [0], [1], [0, 0, 1, 1], [], []>} : vector<8x32xf32>, vector<32x32xf32>, vector<8x32xf32> -> vector<8x32xf32>
    %c2_273 = arith.constant 2 : index
    %c0_274 = arith.constant 0 : index
    %c0_275 = arith.constant 0 : index
    %515 = vector.load %arg18[%c2_273, %c0_274, %c0_275] : memref<4x1x32xf32, #tpu.memory_space<vmem>>, vector<1x1x32xf32>
    %516 = vector.shape_cast %515 : vector<1x1x32xf32> to vector<1x32xf32>
    %517 = vector.broadcast %516 : vector<1x32xf32> to vector<8x32xf32>
    %518 = arith.addf %514, %517 : vector<8x32xf32>
    %519 = arith.addf %428, %518 : vector<8x32xf32>
    %c2_276 = arith.constant 2 : index
    %c0_277 = arith.constant 0 : index
    %c0_278 = arith.constant 0 : index
    %520 = vector.load %arg23[%c2_276, %c0_277, %c0_278] : memref<4x1x32xf32, #tpu.memory_space<vmem>>, vector<1x1x32xf32>
    %521 = vector.shape_cast %520 : vector<1x1x32xf32> to vector<1x32xf32>
    %c2_279 = arith.constant 2 : index
    %c0_280 = arith.constant 0 : index
    %c0_281 = arith.constant 0 : index
    %522 = vector.load %arg24[%c2_279, %c0_280, %c0_281] : memref<4x1x32xf32, #tpu.memory_space<vmem>>, vector<1x1x32xf32>
    %523 = vector.shape_cast %522 : vector<1x1x32xf32> to vector<1x32xf32>
    %cst_282 = arith.constant dense<0.000000e+00> : vector<8xf32>
    %524 = vector.multi_reduction <add>, %519, %cst_282 [1] : vector<8x32xf32> to vector<8xf32>
    %525 = vector.shape_cast %524 : vector<8xf32> to vector<8x1xf32>
    %cst_283 = arith.constant 3.200000e+01 : f32
    %526 = vector.broadcast %cst_283 : f32 to vector<8x1xf32>
    %527 = arith.divf %525, %526 : vector<8x1xf32>
    %528 = vector.broadcast %527 : vector<8x1xf32> to vector<8x32xf32>
    %529 = arith.subf %519, %528 : vector<8x32xf32>
    %530 = arith.mulf %529, %529 : vector<8x32xf32>
    %cst_284 = arith.constant dense<0.000000e+00> : vector<8xf32>
    %531 = vector.multi_reduction <add>, %530, %cst_284 [1] : vector<8x32xf32> to vector<8xf32>
    %532 = vector.shape_cast %531 : vector<8xf32> to vector<8x1xf32>
    %cst_285 = arith.constant 3.200000e+01 : f32
    %533 = vector.broadcast %cst_285 : f32 to vector<8x1xf32>
    %534 = arith.divf %532, %533 : vector<8x1xf32>
    %535 = vector.broadcast %527 : vector<8x1xf32> to vector<8x32xf32>
    %536 = arith.subf %519, %535 : vector<8x32xf32>
    %cst_286 = arith.constant 9.99999974E-6 : f32
    %537 = vector.broadcast %cst_286 : f32 to vector<8x1xf32>
    %538 = arith.addf %534, %537 : vector<8x1xf32>
    %539 = math.rsqrt %538 : vector<8x1xf32>
    %540 = vector.broadcast %539 : vector<8x1xf32> to vector<8x32xf32>
    %541 = arith.mulf %536, %540 : vector<8x32xf32>
    %542 = vector.broadcast %521 : vector<1x32xf32> to vector<8x32xf32>
    %543 = arith.mulf %541, %542 : vector<8x32xf32>
    %544 = vector.broadcast %523 : vector<1x32xf32> to vector<8x32xf32>
    %545 = arith.addf %543, %544 : vector<8x32xf32>
    %c2_287 = arith.constant 2 : index
    %c0_288 = arith.constant 0 : index
    %c0_289 = arith.constant 0 : index
    %546 = vector.load %arg19[%c2_287, %c0_288, %c0_289] : memref<4x32x128xf32, #tpu.memory_space<vmem>>, vector<1x32x128xf32>
    %547 = vector.shape_cast %546 : vector<1x32x128xf32> to vector<32x128xf32>
    %cst_290 = arith.constant dense<0.000000e+00> : vector<8x128xf32>
    %548 = tpu.matmul %545, %547, %cst_290 {dimension_numbers = #tpu.dot_dimension_numbers<[1], [0], [0], [1], [0, 0, 1, 1], [], []>} : vector<8x32xf32>, vector<32x128xf32>, vector<8x128xf32> -> vector<8x128xf32>
    %c2_291 = arith.constant 2 : index
    %c0_292 = arith.constant 0 : index
    %c0_293 = arith.constant 0 : index
    %549 = vector.load %arg20[%c2_291, %c0_292, %c0_293] : memref<4x1x128xf32, #tpu.memory_space<vmem>>, vector<1x1x128xf32>
    %550 = vector.shape_cast %549 : vector<1x1x128xf32> to vector<1x128xf32>
    %551 = vector.broadcast %550 : vector<1x128xf32> to vector<8x128xf32>
    %552 = arith.addf %548, %551 : vector<8x128xf32>
    %cst_294 = arith.constant 0.000000e+00 : f32
    %553 = vector.broadcast %cst_294 : f32 to vector<8x128xf32>
    %554 = arith.maximumf %552, %553 : vector<8x128xf32>
    %c2_295 = arith.constant 2 : index
    %c0_296 = arith.constant 0 : index
    %c0_297 = arith.constant 0 : index
    %555 = vector.load %arg21[%c2_295, %c0_296, %c0_297] : memref<4x128x32xf32, #tpu.memory_space<vmem>>, vector<1x128x32xf32>
    %556 = vector.shape_cast %555 : vector<1x128x32xf32> to vector<128x32xf32>
    %cst_298 = arith.constant dense<0.000000e+00> : vector<8x32xf32>
    %557 = tpu.matmul %554, %556, %cst_298 {dimension_numbers = #tpu.dot_dimension_numbers<[1], [0], [0], [1], [0, 0, 1, 1], [], []>} : vector<8x128xf32>, vector<128x32xf32>, vector<8x32xf32> -> vector<8x32xf32>
    %c2_299 = arith.constant 2 : index
    %c0_300 = arith.constant 0 : index
    %c0_301 = arith.constant 0 : index
    %558 = vector.load %arg22[%c2_299, %c0_300, %c0_301] : memref<4x1x32xf32, #tpu.memory_space<vmem>>, vector<1x1x32xf32>
    %559 = vector.shape_cast %558 : vector<1x1x32xf32> to vector<1x32xf32>
    %560 = vector.broadcast %559 : vector<1x32xf32> to vector<8x32xf32>
    %561 = arith.addf %557, %560 : vector<8x32xf32>
    %562 = arith.addf %545, %561 : vector<8x32xf32>
    %c2_302 = arith.constant 2 : index
    %c0_303 = arith.constant 0 : index
    %c0_304 = arith.constant 0 : index
    %563 = vector.load %arg25[%c2_302, %c0_303, %c0_304] : memref<4x1x32xf32, #tpu.memory_space<vmem>>, vector<1x1x32xf32>
    %564 = vector.shape_cast %563 : vector<1x1x32xf32> to vector<1x32xf32>
    %c2_305 = arith.constant 2 : index
    %c0_306 = arith.constant 0 : index
    %c0_307 = arith.constant 0 : index
    %565 = vector.load %arg26[%c2_305, %c0_306, %c0_307] : memref<4x1x32xf32, #tpu.memory_space<vmem>>, vector<1x1x32xf32>
    %566 = vector.shape_cast %565 : vector<1x1x32xf32> to vector<1x32xf32>
    %cst_308 = arith.constant dense<0.000000e+00> : vector<8xf32>
    %567 = vector.multi_reduction <add>, %562, %cst_308 [1] : vector<8x32xf32> to vector<8xf32>
    %568 = vector.shape_cast %567 : vector<8xf32> to vector<8x1xf32>
    %cst_309 = arith.constant 3.200000e+01 : f32
    %569 = vector.broadcast %cst_309 : f32 to vector<8x1xf32>
    %570 = arith.divf %568, %569 : vector<8x1xf32>
    %571 = vector.broadcast %570 : vector<8x1xf32> to vector<8x32xf32>
    %572 = arith.subf %562, %571 : vector<8x32xf32>
    %573 = arith.mulf %572, %572 : vector<8x32xf32>
    %cst_310 = arith.constant dense<0.000000e+00> : vector<8xf32>
    %574 = vector.multi_reduction <add>, %573, %cst_310 [1] : vector<8x32xf32> to vector<8xf32>
    %575 = vector.shape_cast %574 : vector<8xf32> to vector<8x1xf32>
    %cst_311 = arith.constant 3.200000e+01 : f32
    %576 = vector.broadcast %cst_311 : f32 to vector<8x1xf32>
    %577 = arith.divf %575, %576 : vector<8x1xf32>
    %578 = vector.broadcast %570 : vector<8x1xf32> to vector<8x32xf32>
    %579 = arith.subf %562, %578 : vector<8x32xf32>
    %cst_312 = arith.constant 9.99999974E-6 : f32
    %580 = vector.broadcast %cst_312 : f32 to vector<8x1xf32>
    %581 = arith.addf %577, %580 : vector<8x1xf32>
    %582 = math.rsqrt %581 : vector<8x1xf32>
    %583 = vector.broadcast %582 : vector<8x1xf32> to vector<8x32xf32>
    %584 = arith.mulf %579, %583 : vector<8x32xf32>
    %585 = vector.broadcast %564 : vector<1x32xf32> to vector<8x32xf32>
    %586 = arith.mulf %584, %585 : vector<8x32xf32>
    %587 = vector.broadcast %566 : vector<1x32xf32> to vector<8x32xf32>
    %588 = arith.addf %586, %587 : vector<8x32xf32>
    %c3_313 = arith.constant 3 : index
    %c0_314 = arith.constant 0 : index
    %c0_315 = arith.constant 0 : index
    %589 = vector.load %arg15[%c3_313, %c0_314, %c0_315] : memref<4x32x96xf32, #tpu.memory_space<vmem>>, vector<1x32x96xf32>
    %590 = vector.shape_cast %589 : vector<1x32x96xf32> to vector<32x96xf32>
    %cst_316 = arith.constant dense<0.000000e+00> : vector<8x96xf32>
    %591 = tpu.matmul %588, %590, %cst_316 {dimension_numbers = #tpu.dot_dimension_numbers<[1], [0], [0], [1], [0, 0, 1, 1], [], []>} : vector<8x32xf32>, vector<32x96xf32>, vector<8x96xf32> -> vector<8x96xf32>
    %c3_317 = arith.constant 3 : index
    %c0_318 = arith.constant 0 : index
    %c0_319 = arith.constant 0 : index
    %592 = vector.load %arg16[%c3_317, %c0_318, %c0_319] : memref<4x1x96xf32, #tpu.memory_space<vmem>>, vector<1x1x96xf32>
    %593 = vector.shape_cast %592 : vector<1x1x96xf32> to vector<1x96xf32>
    %594 = vector.broadcast %593 : vector<1x96xf32> to vector<8x96xf32>
    %595 = arith.addf %591, %594 : vector<8x96xf32>
    %596 = vector.extract_strided_slice %595 {offsets = [0, 0], sizes = [8, 32], strides = [1, 1]} : vector<8x96xf32> to vector<8x32xf32>
    %597 = vector.extract_strided_slice %595 {offsets = [0, 32], sizes = [8, 32], strides = [1, 1]} : vector<8x96xf32> to vector<8x32xf32>
    %598 = vector.extract_strided_slice %595 {offsets = [0, 64], sizes = [8, 32], strides = [1, 1]} : vector<8x96xf32> to vector<8x32xf32>
    %599 = vector.extract_strided_slice %596 {offsets = [0, 0], sizes = [8, 8], strides = [1, 1]} : vector<8x32xf32> to vector<8x8xf32>
    %600 = vector.extract_strided_slice %597 {offsets = [0, 0], sizes = [8, 8], strides = [1, 1]} : vector<8x32xf32> to vector<8x8xf32>
    %601 = vector.extract_strided_slice %598 {offsets = [0, 0], sizes = [8, 8], strides = [1, 1]} : vector<8x32xf32> to vector<8x8xf32>
    %602 = tpu.transpose %600, [1, 0] : vector<8x8xf32> -> vector<8x8xf32>
    %cst_320 = arith.constant dense<0.000000e+00> : vector<8x8xf32>
    %603 = tpu.matmul %599, %602, %cst_320 {dimension_numbers = #tpu.dot_dimension_numbers<[1], [0], [0], [1], [0, 0, 1, 1], [], []>} : vector<8x8xf32>, vector<8x8xf32>, vector<8x8xf32> -> vector<8x8xf32>
    %cst_321 = arith.constant 0.353553385 : f32
    %604 = vector.broadcast %cst_321 : f32 to vector<8x8xf32>
    %605 = arith.mulf %603, %604 : vector<8x8xf32>
    %cst_322 = arith.constant dense<0xFF800000> : vector<8xf32>
    %606 = vector.multi_reduction <maximumf>, %605, %cst_322 [1] : vector<8x8xf32> to vector<8xf32>
    %607 = vector.shape_cast %606 : vector<8xf32> to vector<8x1xf32>
    %608 = vector.broadcast %607 : vector<8x1xf32> to vector<8x8xf32>
    %609 = arith.subf %605, %608 : vector<8x8xf32>
    %610 = math.exp %609 : vector<8x8xf32>
    %cst_323 = arith.constant dense<0.000000e+00> : vector<8xf32>
    %611 = vector.multi_reduction <add>, %610, %cst_323 [1] : vector<8x8xf32> to vector<8xf32>
    %612 = vector.shape_cast %611 : vector<8xf32> to vector<8x1xf32>
    %613 = tpu.reciprocal %612 {approx = true} : vector<8x1xf32> -> vector<8x1xf32>
    %614 = vector.broadcast %613 : vector<8x1xf32> to vector<8x8xf32>
    %615 = arith.mulf %610, %614 : vector<8x8xf32>
    %cst_324 = arith.constant dense<0.000000e+00> : vector<8x8xf32>
    %616 = tpu.matmul %615, %601, %cst_324 {dimension_numbers = #tpu.dot_dimension_numbers<[1], [0], [0], [1], [0, 0, 1, 1], [], []>} : vector<8x8xf32>, vector<8x8xf32>, vector<8x8xf32> -> vector<8x8xf32>
    %617 = vector.extract_strided_slice %596 {offsets = [0, 8], sizes = [8, 8], strides = [1, 1]} : vector<8x32xf32> to vector<8x8xf32>
    %618 = vector.extract_strided_slice %597 {offsets = [0, 8], sizes = [8, 8], strides = [1, 1]} : vector<8x32xf32> to vector<8x8xf32>
    %619 = vector.extract_strided_slice %598 {offsets = [0, 8], sizes = [8, 8], strides = [1, 1]} : vector<8x32xf32> to vector<8x8xf32>
    %620 = tpu.transpose %618, [1, 0] : vector<8x8xf32> -> vector<8x8xf32>
    %cst_325 = arith.constant dense<0.000000e+00> : vector<8x8xf32>
    %621 = tpu.matmul %617, %620, %cst_325 {dimension_numbers = #tpu.dot_dimension_numbers<[1], [0], [0], [1], [0, 0, 1, 1], [], []>} : vector<8x8xf32>, vector<8x8xf32>, vector<8x8xf32> -> vector<8x8xf32>
    %cst_326 = arith.constant 0.353553385 : f32
    %622 = vector.broadcast %cst_326 : f32 to vector<8x8xf32>
    %623 = arith.mulf %621, %622 : vector<8x8xf32>
    %cst_327 = arith.constant dense<0xFF800000> : vector<8xf32>
    %624 = vector.multi_reduction <maximumf>, %623, %cst_327 [1] : vector<8x8xf32> to vector<8xf32>
    %625 = vector.shape_cast %624 : vector<8xf32> to vector<8x1xf32>
    %626 = vector.broadcast %625 : vector<8x1xf32> to vector<8x8xf32>
    %627 = arith.subf %623, %626 : vector<8x8xf32>
    %628 = math.exp %627 : vector<8x8xf32>
    %cst_328 = arith.constant dense<0.000000e+00> : vector<8xf32>
    %629 = vector.multi_reduction <add>, %628, %cst_328 [1] : vector<8x8xf32> to vector<8xf32>
    %630 = vector.shape_cast %629 : vector<8xf32> to vector<8x1xf32>
    %631 = tpu.reciprocal %630 {approx = true} : vector<8x1xf32> -> vector<8x1xf32>
    %632 = vector.broadcast %631 : vector<8x1xf32> to vector<8x8xf32>
    %633 = arith.mulf %628, %632 : vector<8x8xf32>
    %cst_329 = arith.constant dense<0.000000e+00> : vector<8x8xf32>
    %634 = tpu.matmul %633, %619, %cst_329 {dimension_numbers = #tpu.dot_dimension_numbers<[1], [0], [0], [1], [0, 0, 1, 1], [], []>} : vector<8x8xf32>, vector<8x8xf32>, vector<8x8xf32> -> vector<8x8xf32>
    %635 = vector.extract_strided_slice %596 {offsets = [0, 16], sizes = [8, 8], strides = [1, 1]} : vector<8x32xf32> to vector<8x8xf32>
    %636 = vector.extract_strided_slice %597 {offsets = [0, 16], sizes = [8, 8], strides = [1, 1]} : vector<8x32xf32> to vector<8x8xf32>
    %637 = vector.extract_strided_slice %598 {offsets = [0, 16], sizes = [8, 8], strides = [1, 1]} : vector<8x32xf32> to vector<8x8xf32>
    %638 = tpu.transpose %636, [1, 0] : vector<8x8xf32> -> vector<8x8xf32>
    %cst_330 = arith.constant dense<0.000000e+00> : vector<8x8xf32>
    %639 = tpu.matmul %635, %638, %cst_330 {dimension_numbers = #tpu.dot_dimension_numbers<[1], [0], [0], [1], [0, 0, 1, 1], [], []>} : vector<8x8xf32>, vector<8x8xf32>, vector<8x8xf32> -> vector<8x8xf32>
    %cst_331 = arith.constant 0.353553385 : f32
    %640 = vector.broadcast %cst_331 : f32 to vector<8x8xf32>
    %641 = arith.mulf %639, %640 : vector<8x8xf32>
    %cst_332 = arith.constant dense<0xFF800000> : vector<8xf32>
    %642 = vector.multi_reduction <maximumf>, %641, %cst_332 [1] : vector<8x8xf32> to vector<8xf32>
    %643 = vector.shape_cast %642 : vector<8xf32> to vector<8x1xf32>
    %644 = vector.broadcast %643 : vector<8x1xf32> to vector<8x8xf32>
    %645 = arith.subf %641, %644 : vector<8x8xf32>
    %646 = math.exp %645 : vector<8x8xf32>
    %cst_333 = arith.constant dense<0.000000e+00> : vector<8xf32>
    %647 = vector.multi_reduction <add>, %646, %cst_333 [1] : vector<8x8xf32> to vector<8xf32>
    %648 = vector.shape_cast %647 : vector<8xf32> to vector<8x1xf32>
    %649 = tpu.reciprocal %648 {approx = true} : vector<8x1xf32> -> vector<8x1xf32>
    %650 = vector.broadcast %649 : vector<8x1xf32> to vector<8x8xf32>
    %651 = arith.mulf %646, %650 : vector<8x8xf32>
    %cst_334 = arith.constant dense<0.000000e+00> : vector<8x8xf32>
    %652 = tpu.matmul %651, %637, %cst_334 {dimension_numbers = #tpu.dot_dimension_numbers<[1], [0], [0], [1], [0, 0, 1, 1], [], []>} : vector<8x8xf32>, vector<8x8xf32>, vector<8x8xf32> -> vector<8x8xf32>
    %653 = vector.extract_strided_slice %596 {offsets = [0, 24], sizes = [8, 8], strides = [1, 1]} : vector<8x32xf32> to vector<8x8xf32>
    %654 = vector.extract_strided_slice %597 {offsets = [0, 24], sizes = [8, 8], strides = [1, 1]} : vector<8x32xf32> to vector<8x8xf32>
    %655 = vector.extract_strided_slice %598 {offsets = [0, 24], sizes = [8, 8], strides = [1, 1]} : vector<8x32xf32> to vector<8x8xf32>
    %656 = tpu.transpose %654, [1, 0] : vector<8x8xf32> -> vector<8x8xf32>
    %cst_335 = arith.constant dense<0.000000e+00> : vector<8x8xf32>
    %657 = tpu.matmul %653, %656, %cst_335 {dimension_numbers = #tpu.dot_dimension_numbers<[1], [0], [0], [1], [0, 0, 1, 1], [], []>} : vector<8x8xf32>, vector<8x8xf32>, vector<8x8xf32> -> vector<8x8xf32>
    %cst_336 = arith.constant 0.353553385 : f32
    %658 = vector.broadcast %cst_336 : f32 to vector<8x8xf32>
    %659 = arith.mulf %657, %658 : vector<8x8xf32>
    %cst_337 = arith.constant dense<0xFF800000> : vector<8xf32>
    %660 = vector.multi_reduction <maximumf>, %659, %cst_337 [1] : vector<8x8xf32> to vector<8xf32>
    %661 = vector.shape_cast %660 : vector<8xf32> to vector<8x1xf32>
    %662 = vector.broadcast %661 : vector<8x1xf32> to vector<8x8xf32>
    %663 = arith.subf %659, %662 : vector<8x8xf32>
    %664 = math.exp %663 : vector<8x8xf32>
    %cst_338 = arith.constant dense<0.000000e+00> : vector<8xf32>
    %665 = vector.multi_reduction <add>, %664, %cst_338 [1] : vector<8x8xf32> to vector<8xf32>
    %666 = vector.shape_cast %665 : vector<8xf32> to vector<8x1xf32>
    %667 = tpu.reciprocal %666 {approx = true} : vector<8x1xf32> -> vector<8x1xf32>
    %668 = vector.broadcast %667 : vector<8x1xf32> to vector<8x8xf32>
    %669 = arith.mulf %664, %668 : vector<8x8xf32>
    %cst_339 = arith.constant dense<0.000000e+00> : vector<8x8xf32>
    %670 = tpu.matmul %669, %655, %cst_339 {dimension_numbers = #tpu.dot_dimension_numbers<[1], [0], [0], [1], [0, 0, 1, 1], [], []>} : vector<8x8xf32>, vector<8x8xf32>, vector<8x8xf32> -> vector<8x8xf32>
    %671 = tpu.concatenate %616, %634, %652, %670 in 1 : vector<8x8xf32>, vector<8x8xf32>, vector<8x8xf32>, vector<8x8xf32> -> vector<8x32xf32>
    %c3_340 = arith.constant 3 : index
    %c0_341 = arith.constant 0 : index
    %c0_342 = arith.constant 0 : index
    %672 = vector.load %arg17[%c3_340, %c0_341, %c0_342] : memref<4x32x32xf32, #tpu.memory_space<vmem>>, vector<1x32x32xf32>
    %673 = vector.shape_cast %672 : vector<1x32x32xf32> to vector<32x32xf32>
    %cst_343 = arith.constant dense<0.000000e+00> : vector<8x32xf32>
    %674 = tpu.matmul %671, %673, %cst_343 {dimension_numbers = #tpu.dot_dimension_numbers<[1], [0], [0], [1], [0, 0, 1, 1], [], []>} : vector<8x32xf32>, vector<32x32xf32>, vector<8x32xf32> -> vector<8x32xf32>
    %c3_344 = arith.constant 3 : index
    %c0_345 = arith.constant 0 : index
    %c0_346 = arith.constant 0 : index
    %675 = vector.load %arg18[%c3_344, %c0_345, %c0_346] : memref<4x1x32xf32, #tpu.memory_space<vmem>>, vector<1x1x32xf32>
    %676 = vector.shape_cast %675 : vector<1x1x32xf32> to vector<1x32xf32>
    %677 = vector.broadcast %676 : vector<1x32xf32> to vector<8x32xf32>
    %678 = arith.addf %674, %677 : vector<8x32xf32>
    %679 = arith.addf %588, %678 : vector<8x32xf32>
    %c3_347 = arith.constant 3 : index
    %c0_348 = arith.constant 0 : index
    %c0_349 = arith.constant 0 : index
    %680 = vector.load %arg23[%c3_347, %c0_348, %c0_349] : memref<4x1x32xf32, #tpu.memory_space<vmem>>, vector<1x1x32xf32>
    %681 = vector.shape_cast %680 : vector<1x1x32xf32> to vector<1x32xf32>
    %c3_350 = arith.constant 3 : index
    %c0_351 = arith.constant 0 : index
    %c0_352 = arith.constant 0 : index
    %682 = vector.load %arg24[%c3_350, %c0_351, %c0_352] : memref<4x1x32xf32, #tpu.memory_space<vmem>>, vector<1x1x32xf32>
    %683 = vector.shape_cast %682 : vector<1x1x32xf32> to vector<1x32xf32>
    %cst_353 = arith.constant dense<0.000000e+00> : vector<8xf32>
    %684 = vector.multi_reduction <add>, %679, %cst_353 [1] : vector<8x32xf32> to vector<8xf32>
    %685 = vector.shape_cast %684 : vector<8xf32> to vector<8x1xf32>
    %cst_354 = arith.constant 3.200000e+01 : f32
    %686 = vector.broadcast %cst_354 : f32 to vector<8x1xf32>
    %687 = arith.divf %685, %686 : vector<8x1xf32>
    %688 = vector.broadcast %687 : vector<8x1xf32> to vector<8x32xf32>
    %689 = arith.subf %679, %688 : vector<8x32xf32>
    %690 = arith.mulf %689, %689 : vector<8x32xf32>
    %cst_355 = arith.constant dense<0.000000e+00> : vector<8xf32>
    %691 = vector.multi_reduction <add>, %690, %cst_355 [1] : vector<8x32xf32> to vector<8xf32>
    %692 = vector.shape_cast %691 : vector<8xf32> to vector<8x1xf32>
    %cst_356 = arith.constant 3.200000e+01 : f32
    %693 = vector.broadcast %cst_356 : f32 to vector<8x1xf32>
    %694 = arith.divf %692, %693 : vector<8x1xf32>
    %695 = vector.broadcast %687 : vector<8x1xf32> to vector<8x32xf32>
    %696 = arith.subf %679, %695 : vector<8x32xf32>
    %cst_357 = arith.constant 9.99999974E-6 : f32
    %697 = vector.broadcast %cst_357 : f32 to vector<8x1xf32>
    %698 = arith.addf %694, %697 : vector<8x1xf32>
    %699 = math.rsqrt %698 : vector<8x1xf32>
    %700 = vector.broadcast %699 : vector<8x1xf32> to vector<8x32xf32>
    %701 = arith.mulf %696, %700 : vector<8x32xf32>
    %702 = vector.broadcast %681 : vector<1x32xf32> to vector<8x32xf32>
    %703 = arith.mulf %701, %702 : vector<8x32xf32>
    %704 = vector.broadcast %683 : vector<1x32xf32> to vector<8x32xf32>
    %705 = arith.addf %703, %704 : vector<8x32xf32>
    %c3_358 = arith.constant 3 : index
    %c0_359 = arith.constant 0 : index
    %c0_360 = arith.constant 0 : index
    %706 = vector.load %arg19[%c3_358, %c0_359, %c0_360] : memref<4x32x128xf32, #tpu.memory_space<vmem>>, vector<1x32x128xf32>
    %707 = vector.shape_cast %706 : vector<1x32x128xf32> to vector<32x128xf32>
    %cst_361 = arith.constant dense<0.000000e+00> : vector<8x128xf32>
    %708 = tpu.matmul %705, %707, %cst_361 {dimension_numbers = #tpu.dot_dimension_numbers<[1], [0], [0], [1], [0, 0, 1, 1], [], []>} : vector<8x32xf32>, vector<32x128xf32>, vector<8x128xf32> -> vector<8x128xf32>
    %c3_362 = arith.constant 3 : index
    %c0_363 = arith.constant 0 : index
    %c0_364 = arith.constant 0 : index
    %709 = vector.load %arg20[%c3_362, %c0_363, %c0_364] : memref<4x1x128xf32, #tpu.memory_space<vmem>>, vector<1x1x128xf32>
    %710 = vector.shape_cast %709 : vector<1x1x128xf32> to vector<1x128xf32>
    %711 = vector.broadcast %710 : vector<1x128xf32> to vector<8x128xf32>
    %712 = arith.addf %708, %711 : vector<8x128xf32>
    %cst_365 = arith.constant 0.000000e+00 : f32
    %713 = vector.broadcast %cst_365 : f32 to vector<8x128xf32>
    %714 = arith.maximumf %712, %713 : vector<8x128xf32>
    %c3_366 = arith.constant 3 : index
    %c0_367 = arith.constant 0 : index
    %c0_368 = arith.constant 0 : index
    %715 = vector.load %arg21[%c3_366, %c0_367, %c0_368] : memref<4x128x32xf32, #tpu.memory_space<vmem>>, vector<1x128x32xf32>
    %716 = vector.shape_cast %715 : vector<1x128x32xf32> to vector<128x32xf32>
    %cst_369 = arith.constant dense<0.000000e+00> : vector<8x32xf32>
    %717 = tpu.matmul %714, %716, %cst_369 {dimension_numbers = #tpu.dot_dimension_numbers<[1], [0], [0], [1], [0, 0, 1, 1], [], []>} : vector<8x128xf32>, vector<128x32xf32>, vector<8x32xf32> -> vector<8x32xf32>
    %c3_370 = arith.constant 3 : index
    %c0_371 = arith.constant 0 : index
    %c0_372 = arith.constant 0 : index
    %718 = vector.load %arg22[%c3_370, %c0_371, %c0_372] : memref<4x1x32xf32, #tpu.memory_space<vmem>>, vector<1x1x32xf32>
    %719 = vector.shape_cast %718 : vector<1x1x32xf32> to vector<1x32xf32>
    %720 = vector.broadcast %719 : vector<1x32xf32> to vector<8x32xf32>
    %721 = arith.addf %717, %720 : vector<8x32xf32>
    %722 = arith.addf %705, %721 : vector<8x32xf32>
    %c3_373 = arith.constant 3 : index
    %c0_374 = arith.constant 0 : index
    %c0_375 = arith.constant 0 : index
    %723 = vector.load %arg25[%c3_373, %c0_374, %c0_375] : memref<4x1x32xf32, #tpu.memory_space<vmem>>, vector<1x1x32xf32>
    %724 = vector.shape_cast %723 : vector<1x1x32xf32> to vector<1x32xf32>
    %c3_376 = arith.constant 3 : index
    %c0_377 = arith.constant 0 : index
    %c0_378 = arith.constant 0 : index
    %725 = vector.load %arg26[%c3_376, %c0_377, %c0_378] : memref<4x1x32xf32, #tpu.memory_space<vmem>>, vector<1x1x32xf32>
    %726 = vector.shape_cast %725 : vector<1x1x32xf32> to vector<1x32xf32>
    %cst_379 = arith.constant dense<0.000000e+00> : vector<8xf32>
    %727 = vector.multi_reduction <add>, %722, %cst_379 [1] : vector<8x32xf32> to vector<8xf32>
    %728 = vector.shape_cast %727 : vector<8xf32> to vector<8x1xf32>
    %cst_380 = arith.constant 3.200000e+01 : f32
    %729 = vector.broadcast %cst_380 : f32 to vector<8x1xf32>
    %730 = arith.divf %728, %729 : vector<8x1xf32>
    %731 = vector.broadcast %730 : vector<8x1xf32> to vector<8x32xf32>
    %732 = arith.subf %722, %731 : vector<8x32xf32>
    %733 = arith.mulf %732, %732 : vector<8x32xf32>
    %cst_381 = arith.constant dense<0.000000e+00> : vector<8xf32>
    %734 = vector.multi_reduction <add>, %733, %cst_381 [1] : vector<8x32xf32> to vector<8xf32>
    %735 = vector.shape_cast %734 : vector<8xf32> to vector<8x1xf32>
    %cst_382 = arith.constant 3.200000e+01 : f32
    %736 = vector.broadcast %cst_382 : f32 to vector<8x1xf32>
    %737 = arith.divf %735, %736 : vector<8x1xf32>
    %738 = vector.broadcast %730 : vector<8x1xf32> to vector<8x32xf32>
    %739 = arith.subf %722, %738 : vector<8x32xf32>
    %cst_383 = arith.constant 9.99999974E-6 : f32
    %740 = vector.broadcast %cst_383 : f32 to vector<8x1xf32>
    %741 = arith.addf %737, %740 : vector<8x1xf32>
    %742 = math.rsqrt %741 : vector<8x1xf32>
    %743 = vector.broadcast %742 : vector<8x1xf32> to vector<8x32xf32>
    %744 = arith.mulf %739, %743 : vector<8x32xf32>
    %745 = vector.broadcast %724 : vector<1x32xf32> to vector<8x32xf32>
    %746 = arith.mulf %744, %745 : vector<8x32xf32>
    %747 = vector.broadcast %726 : vector<1x32xf32> to vector<8x32xf32>
    %748 = arith.addf %746, %747 : vector<8x32xf32>
    %749 = tpu.transpose %108, [1, 0] : vector<8x32xf32> -> vector<32x8xf32>
    %c0_384 = arith.constant 0 : index
    %c0_385 = arith.constant 0 : index
    %750 = vector.load %arg29[%c0_384, %c0_385] : memref<8x32xf32, #tpu.memory_space<vmem>>, vector<8x32xf32>
    %cst_386 = arith.constant dense<0.000000e+00> : vector<32x32xf32>
    %751 = tpu.matmul %749, %750, %cst_386 {dimension_numbers = #tpu.dot_dimension_numbers<[1], [0], [0], [1], [0, 0, 1, 1], [], []>} : vector<32x8xf32>, vector<8x32xf32>, vector<32x32xf32> -> vector<32x32xf32>
    %cst_387 = arith.constant dense<0.000000e+00> : vector<8x32xf32>
    %752 = tpu.matmul %87, %751, %cst_387 {dimension_numbers = #tpu.dot_dimension_numbers<[1], [0], [0], [1], [0, 0, 1, 1], [], []>} : vector<8x32xf32>, vector<32x32xf32>, vector<8x32xf32> -> vector<8x32xf32>
    %c0_388 = arith.constant 0 : index
    %c0_389 = arith.constant 0 : index
    %753 = vector.load %arg30[%c0_388, %c0_389] : memref<32x32xf32, #tpu.memory_space<vmem>>, vector<32x32xf32>
    %cst_390 = arith.constant dense<0.000000e+00> : vector<8x32xf32>
    %754 = tpu.matmul %748, %753, %cst_390 {dimension_numbers = #tpu.dot_dimension_numbers<[1], [0], [0], [1], [0, 0, 1, 1], [], []>} : vector<8x32xf32>, vector<32x32xf32>, vector<8x32xf32> -> vector<8x32xf32>
    %755 = arith.addf %752, %754 : vector<8x32xf32>
    %c0_391 = arith.constant 0 : index
    %c0_392 = arith.constant 0 : index
    %756 = vector.load %arg31[%c0_391, %c0_392] : memref<1x32xf32, #tpu.memory_space<vmem>>, vector<1x32xf32>
    %757 = vector.broadcast %756 : vector<1x32xf32> to vector<8x32xf32>
    %758 = arith.addf %755, %757 : vector<8x32xf32>
    %c0_393 = arith.constant 0 : index
    %c0_394 = arith.constant 0 : index
    %c0_395 = arith.constant 0 : index
    %759 = vector.load %arg4[%c0_393, %c0_394, %c0_395] : memref<6x8x8xf32, #tpu.memory_space<vmem>>, vector<1x8x8xf32>
    %760 = vector.shape_cast %759 : vector<1x8x8xf32> to vector<8x8xf32>
    %cst_396 = arith.constant dense<0.000000e+00> : vector<8x32xf32>
    %761 = tpu.matmul %760, %758, %cst_396 {dimension_numbers = #tpu.dot_dimension_numbers<[1], [0], [0], [1], [0, 0, 1, 1], [], []>} : vector<8x8xf32>, vector<8x32xf32>, vector<8x32xf32> -> vector<8x32xf32>
    %762 = tpu.concatenate %758, %761 in 1 : vector<8x32xf32>, vector<8x32xf32> -> vector<8x64xf32>
    %c0_397 = arith.constant 0 : index
    %c0_398 = arith.constant 0 : index
    %c0_399 = arith.constant 0 : index
    %763 = vector.load %arg27[%c0_397, %c0_398, %c0_399] : memref<6x64x32xf32, #tpu.memory_space<vmem>>, vector<1x64x32xf32>
    %764 = vector.shape_cast %763 : vector<1x64x32xf32> to vector<64x32xf32>
    %cst_400 = arith.constant dense<0.000000e+00> : vector<8x32xf32>
    %765 = tpu.matmul %762, %764, %cst_400 {dimension_numbers = #tpu.dot_dimension_numbers<[1], [0], [0], [1], [0, 0, 1, 1], [], []>} : vector<8x64xf32>, vector<64x32xf32>, vector<8x32xf32> -> vector<8x32xf32>
    %c0_401 = arith.constant 0 : index
    %c0_402 = arith.constant 0 : index
    %c0_403 = arith.constant 0 : index
    %766 = vector.load %arg28[%c0_401, %c0_402, %c0_403] : memref<6x1x32xf32, #tpu.memory_space<vmem>>, vector<1x1x32xf32>
    %767 = vector.shape_cast %766 : vector<1x1x32xf32> to vector<1x32xf32>
    %768 = vector.broadcast %767 : vector<1x32xf32> to vector<8x32xf32>
    %769 = arith.addf %765, %768 : vector<8x32xf32>
    %c1_404 = arith.constant 1 : index
    %c0_405 = arith.constant 0 : index
    %c0_406 = arith.constant 0 : index
    %770 = vector.load %arg4[%c1_404, %c0_405, %c0_406] : memref<6x8x8xf32, #tpu.memory_space<vmem>>, vector<1x8x8xf32>
    %771 = vector.shape_cast %770 : vector<1x8x8xf32> to vector<8x8xf32>
    %cst_407 = arith.constant dense<0.000000e+00> : vector<8x32xf32>
    %772 = tpu.matmul %771, %769, %cst_407 {dimension_numbers = #tpu.dot_dimension_numbers<[1], [0], [0], [1], [0, 0, 1, 1], [], []>} : vector<8x8xf32>, vector<8x32xf32>, vector<8x32xf32> -> vector<8x32xf32>
    %773 = tpu.concatenate %769, %772 in 1 : vector<8x32xf32>, vector<8x32xf32> -> vector<8x64xf32>
    %c1_408 = arith.constant 1 : index
    %c0_409 = arith.constant 0 : index
    %c0_410 = arith.constant 0 : index
    %774 = vector.load %arg27[%c1_408, %c0_409, %c0_410] : memref<6x64x32xf32, #tpu.memory_space<vmem>>, vector<1x64x32xf32>
    %775 = vector.shape_cast %774 : vector<1x64x32xf32> to vector<64x32xf32>
    %cst_411 = arith.constant dense<0.000000e+00> : vector<8x32xf32>
    %776 = tpu.matmul %773, %775, %cst_411 {dimension_numbers = #tpu.dot_dimension_numbers<[1], [0], [0], [1], [0, 0, 1, 1], [], []>} : vector<8x64xf32>, vector<64x32xf32>, vector<8x32xf32> -> vector<8x32xf32>
    %c1_412 = arith.constant 1 : index
    %c0_413 = arith.constant 0 : index
    %c0_414 = arith.constant 0 : index
    %777 = vector.load %arg28[%c1_412, %c0_413, %c0_414] : memref<6x1x32xf32, #tpu.memory_space<vmem>>, vector<1x1x32xf32>
    %778 = vector.shape_cast %777 : vector<1x1x32xf32> to vector<1x32xf32>
    %779 = vector.broadcast %778 : vector<1x32xf32> to vector<8x32xf32>
    %780 = arith.addf %776, %779 : vector<8x32xf32>
    %c2_415 = arith.constant 2 : index
    %c0_416 = arith.constant 0 : index
    %c0_417 = arith.constant 0 : index
    %781 = vector.load %arg4[%c2_415, %c0_416, %c0_417] : memref<6x8x8xf32, #tpu.memory_space<vmem>>, vector<1x8x8xf32>
    %782 = vector.shape_cast %781 : vector<1x8x8xf32> to vector<8x8xf32>
    %cst_418 = arith.constant dense<0.000000e+00> : vector<8x32xf32>
    %783 = tpu.matmul %782, %780, %cst_418 {dimension_numbers = #tpu.dot_dimension_numbers<[1], [0], [0], [1], [0, 0, 1, 1], [], []>} : vector<8x8xf32>, vector<8x32xf32>, vector<8x32xf32> -> vector<8x32xf32>
    %784 = tpu.concatenate %780, %783 in 1 : vector<8x32xf32>, vector<8x32xf32> -> vector<8x64xf32>
    %c2_419 = arith.constant 2 : index
    %c0_420 = arith.constant 0 : index
    %c0_421 = arith.constant 0 : index
    %785 = vector.load %arg27[%c2_419, %c0_420, %c0_421] : memref<6x64x32xf32, #tpu.memory_space<vmem>>, vector<1x64x32xf32>
    %786 = vector.shape_cast %785 : vector<1x64x32xf32> to vector<64x32xf32>
    %cst_422 = arith.constant dense<0.000000e+00> : vector<8x32xf32>
    %787 = tpu.matmul %784, %786, %cst_422 {dimension_numbers = #tpu.dot_dimension_numbers<[1], [0], [0], [1], [0, 0, 1, 1], [], []>} : vector<8x64xf32>, vector<64x32xf32>, vector<8x32xf32> -> vector<8x32xf32>
    %c2_423 = arith.constant 2 : index
    %c0_424 = arith.constant 0 : index
    %c0_425 = arith.constant 0 : index
    %788 = vector.load %arg28[%c2_423, %c0_424, %c0_425] : memref<6x1x32xf32, #tpu.memory_space<vmem>>, vector<1x1x32xf32>
    %789 = vector.shape_cast %788 : vector<1x1x32xf32> to vector<1x32xf32>
    %790 = vector.broadcast %789 : vector<1x32xf32> to vector<8x32xf32>
    %791 = arith.addf %787, %790 : vector<8x32xf32>
    %c3_426 = arith.constant 3 : index
    %c0_427 = arith.constant 0 : index
    %c0_428 = arith.constant 0 : index
    %792 = vector.load %arg4[%c3_426, %c0_427, %c0_428] : memref<6x8x8xf32, #tpu.memory_space<vmem>>, vector<1x8x8xf32>
    %793 = vector.shape_cast %792 : vector<1x8x8xf32> to vector<8x8xf32>
    %cst_429 = arith.constant dense<0.000000e+00> : vector<8x32xf32>
    %794 = tpu.matmul %793, %791, %cst_429 {dimension_numbers = #tpu.dot_dimension_numbers<[1], [0], [0], [1], [0, 0, 1, 1], [], []>} : vector<8x8xf32>, vector<8x32xf32>, vector<8x32xf32> -> vector<8x32xf32>
    %795 = tpu.concatenate %791, %794 in 1 : vector<8x32xf32>, vector<8x32xf32> -> vector<8x64xf32>
    %c3_430 = arith.constant 3 : index
    %c0_431 = arith.constant 0 : index
    %c0_432 = arith.constant 0 : index
    %796 = vector.load %arg27[%c3_430, %c0_431, %c0_432] : memref<6x64x32xf32, #tpu.memory_space<vmem>>, vector<1x64x32xf32>
    %797 = vector.shape_cast %796 : vector<1x64x32xf32> to vector<64x32xf32>
    %cst_433 = arith.constant dense<0.000000e+00> : vector<8x32xf32>
    %798 = tpu.matmul %795, %797, %cst_433 {dimension_numbers = #tpu.dot_dimension_numbers<[1], [0], [0], [1], [0, 0, 1, 1], [], []>} : vector<8x64xf32>, vector<64x32xf32>, vector<8x32xf32> -> vector<8x32xf32>
    %c3_434 = arith.constant 3 : index
    %c0_435 = arith.constant 0 : index
    %c0_436 = arith.constant 0 : index
    %799 = vector.load %arg28[%c3_434, %c0_435, %c0_436] : memref<6x1x32xf32, #tpu.memory_space<vmem>>, vector<1x1x32xf32>
    %800 = vector.shape_cast %799 : vector<1x1x32xf32> to vector<1x32xf32>
    %801 = vector.broadcast %800 : vector<1x32xf32> to vector<8x32xf32>
    %802 = arith.addf %798, %801 : vector<8x32xf32>
    %c4_437 = arith.constant 4 : index
    %c0_438 = arith.constant 0 : index
    %c0_439 = arith.constant 0 : index
    %803 = vector.load %arg4[%c4_437, %c0_438, %c0_439] : memref<6x8x8xf32, #tpu.memory_space<vmem>>, vector<1x8x8xf32>
    %804 = vector.shape_cast %803 : vector<1x8x8xf32> to vector<8x8xf32>
    %cst_440 = arith.constant dense<0.000000e+00> : vector<8x32xf32>
    %805 = tpu.matmul %804, %802, %cst_440 {dimension_numbers = #tpu.dot_dimension_numbers<[1], [0], [0], [1], [0, 0, 1, 1], [], []>} : vector<8x8xf32>, vector<8x32xf32>, vector<8x32xf32> -> vector<8x32xf32>
    %806 = tpu.concatenate %802, %805 in 1 : vector<8x32xf32>, vector<8x32xf32> -> vector<8x64xf32>
    %c4_441 = arith.constant 4 : index
    %c0_442 = arith.constant 0 : index
    %c0_443 = arith.constant 0 : index
    %807 = vector.load %arg27[%c4_441, %c0_442, %c0_443] : memref<6x64x32xf32, #tpu.memory_space<vmem>>, vector<1x64x32xf32>
    %808 = vector.shape_cast %807 : vector<1x64x32xf32> to vector<64x32xf32>
    %cst_444 = arith.constant dense<0.000000e+00> : vector<8x32xf32>
    %809 = tpu.matmul %806, %808, %cst_444 {dimension_numbers = #tpu.dot_dimension_numbers<[1], [0], [0], [1], [0, 0, 1, 1], [], []>} : vector<8x64xf32>, vector<64x32xf32>, vector<8x32xf32> -> vector<8x32xf32>
    %c4_445 = arith.constant 4 : index
    %c0_446 = arith.constant 0 : index
    %c0_447 = arith.constant 0 : index
    %810 = vector.load %arg28[%c4_445, %c0_446, %c0_447] : memref<6x1x32xf32, #tpu.memory_space<vmem>>, vector<1x1x32xf32>
    %811 = vector.shape_cast %810 : vector<1x1x32xf32> to vector<1x32xf32>
    %812 = vector.broadcast %811 : vector<1x32xf32> to vector<8x32xf32>
    %813 = arith.addf %809, %812 : vector<8x32xf32>
    %c5_448 = arith.constant 5 : index
    %c0_449 = arith.constant 0 : index
    %c0_450 = arith.constant 0 : index
    %814 = vector.load %arg4[%c5_448, %c0_449, %c0_450] : memref<6x8x8xf32, #tpu.memory_space<vmem>>, vector<1x8x8xf32>
    %815 = vector.shape_cast %814 : vector<1x8x8xf32> to vector<8x8xf32>
    %cst_451 = arith.constant dense<0.000000e+00> : vector<8x32xf32>
    %816 = tpu.matmul %815, %813, %cst_451 {dimension_numbers = #tpu.dot_dimension_numbers<[1], [0], [0], [1], [0, 0, 1, 1], [], []>} : vector<8x8xf32>, vector<8x32xf32>, vector<8x32xf32> -> vector<8x32xf32>
    %817 = tpu.concatenate %813, %816 in 1 : vector<8x32xf32>, vector<8x32xf32> -> vector<8x64xf32>
    %c5_452 = arith.constant 5 : index
    %c0_453 = arith.constant 0 : index
    %c0_454 = arith.constant 0 : index
    %818 = vector.load %arg27[%c5_452, %c0_453, %c0_454] : memref<6x64x32xf32, #tpu.memory_space<vmem>>, vector<1x64x32xf32>
    %819 = vector.shape_cast %818 : vector<1x64x32xf32> to vector<64x32xf32>
    %cst_455 = arith.constant dense<0.000000e+00> : vector<8x32xf32>
    %820 = tpu.matmul %817, %819, %cst_455 {dimension_numbers = #tpu.dot_dimension_numbers<[1], [0], [0], [1], [0, 0, 1, 1], [], []>} : vector<8x64xf32>, vector<64x32xf32>, vector<8x32xf32> -> vector<8x32xf32>
    %c5_456 = arith.constant 5 : index
    %c0_457 = arith.constant 0 : index
    %c0_458 = arith.constant 0 : index
    %821 = vector.load %arg28[%c5_456, %c0_457, %c0_458] : memref<6x1x32xf32, #tpu.memory_space<vmem>>, vector<1x1x32xf32>
    %822 = vector.shape_cast %821 : vector<1x1x32xf32> to vector<1x32xf32>
    %823 = vector.broadcast %822 : vector<1x32xf32> to vector<8x32xf32>
    %824 = arith.addf %820, %823 : vector<8x32xf32>
    %c0_459 = arith.constant 0 : index
    %c0_460 = arith.constant 0 : index
    %825 = vector.load %arg32[%c0_459, %c0_460] : memref<32x32xf32, #tpu.memory_space<vmem>>, vector<32x32xf32>
    %cst_461 = arith.constant dense<0.000000e+00> : vector<8x32xf32>
    %826 = tpu.matmul %824, %825, %cst_461 {dimension_numbers = #tpu.dot_dimension_numbers<[1], [0], [0], [1], [0, 0, 1, 1], [], []>} : vector<8x32xf32>, vector<32x32xf32>, vector<8x32xf32> -> vector<8x32xf32>
    %c0_462 = arith.constant 0 : index
    %c0_463 = arith.constant 0 : index
    %827 = vector.load %arg33[%c0_462, %c0_463] : memref<1x32xf32, #tpu.memory_space<vmem>>, vector<1x32xf32>
    %828 = vector.broadcast %827 : vector<1x32xf32> to vector<8x32xf32>
    %829 = arith.addf %826, %828 : vector<8x32xf32>
    %cst_464 = arith.constant 0.000000e+00 : f32
    %830 = vector.broadcast %cst_464 : f32 to vector<8x32xf32>
    %831 = arith.maximumf %829, %830 : vector<8x32xf32>
    %c0_465 = arith.constant 0 : index
    %c0_466 = arith.constant 0 : index
    %832 = vector.load %arg34[%c0_465, %c0_466] : memref<32x128xf32, #tpu.memory_space<vmem>>, vector<32x128xf32>
    %cst_467 = arith.constant dense<0.000000e+00> : vector<8x128xf32>
    %833 = tpu.matmul %831, %832, %cst_467 {dimension_numbers = #tpu.dot_dimension_numbers<[1], [0], [0], [1], [0, 0, 1, 1], [], []>} : vector<8x32xf32>, vector<32x128xf32>, vector<8x128xf32> -> vector<8x128xf32>
    %c0_468 = arith.constant 0 : index
    %c0_469 = arith.constant 0 : index
    %834 = vector.load %arg35[%c0_468, %c0_469] : memref<1x128xf32, #tpu.memory_space<vmem>>, vector<1x128xf32>
    %835 = vector.broadcast %834 : vector<1x128xf32> to vector<8x128xf32>
    %836 = arith.addf %833, %835 : vector<8x128xf32>
    %c0_470 = arith.constant 0 : index
    %c0_471 = arith.constant 0 : index
    %c0_472 = arith.constant 0 : index
    %837 = vector.load %arg36[%c0_470, %c0_471, %c0_472] : memref<1x8x128xf32, #tpu.memory_space<vmem>>, vector<1x8x128xf32>
    %838 = vector.shape_cast %837 : vector<1x8x128xf32> to vector<8x128xf32>
    %839 = vector.shape_cast %836 : vector<8x128xf32> to vector<1x8x128xf32>
    tpu.vector_store %arg36[%c0_470, %c0_471, %c0_472], %839 {strides = array<i32>} : memref<1x8x128xf32, #tpu.memory_space<vmem>>, vector<1x8x128xf32>,
    return
  }
  func.func @transform_0(%arg0: i32) -> (i32, i32, i32) {
    %c0_i32 = arith.constant 0 : i32
    %c0_i32_0 = arith.constant 0 : i32
    %c0_i32_1 = arith.constant 0 : i32
    return %arg0, %c0_i32, %c0_i32_0 : i32, i32, i32
  }
  func.func @transform_1(%arg0: i32) -> (i32, i32, i32) {
    %c0_i32 = arith.constant 0 : i32
    %c0_i32_0 = arith.constant 0 : i32
    %c0_i32_1 = arith.constant 0 : i32
    return %arg0, %c0_i32, %c0_i32_0 : i32, i32, i32
  }
  func.func @transform_2(%arg0: i32) -> (i32, i32, i32) {
    %c0_i32 = arith.constant 0 : i32
    %c0_i32_0 = arith.constant 0 : i32
    %c0_i32_1 = arith.constant 0 : i32
    %c0_i32_2 = arith.constant 0 : i32
    return %c0_i32, %c0_i32_0, %c0_i32_1 : i32, i32, i32
  }
  func.func @transform_3(%arg0: i32) -> (i32, i32, i32) {
    %c0_i32 = arith.constant 0 : i32
    %c0_i32_0 = arith.constant 0 : i32
    %c0_i32_1 = arith.constant 0 : i32
    %c0_i32_2 = arith.constant 0 : i32
    return %c0_i32, %c0_i32_0, %c0_i32_1 : i32, i32, i32
  }
  func.func @transform_4(%arg0: i32) -> (i32, i32) {
    %c0_i32 = arith.constant 0 : i32
    %c0_i32_0 = arith.constant 0 : i32
    %c0_i32_1 = arith.constant 0 : i32
    return %c0_i32, %c0_i32_0 : i32, i32
  }
  func.func @transform_5(%arg0: i32) -> (i32, i32) {
    %c0_i32 = arith.constant 0 : i32
    %c0_i32_0 = arith.constant 0 : i32
    %c0_i32_1 = arith.constant 0 : i32
    return %c0_i32, %c0_i32_0 : i32, i32
  }
  func.func @transform_6(%arg0: i32) -> (i32, i32, i32) {
    %c0_i32 = arith.constant 0 : i32
    %c0_i32_0 = arith.constant 0 : i32
    %c0_i32_1 = arith.constant 0 : i32
    %c0_i32_2 = arith.constant 0 : i32
    return %c0_i32, %c0_i32_0, %c0_i32_1 : i32, i32, i32
  }
  func.func @transform_7(%arg0: i32) -> (i32, i32, i32) {
    %c0_i32 = arith.constant 0 : i32
    %c0_i32_0 = arith.constant 0 : i32
    %c0_i32_1 = arith.constant 0 : i32
    %c0_i32_2 = arith.constant 0 : i32
    return %c0_i32, %c0_i32_0, %c0_i32_1 : i32, i32, i32
  }
  func.func @transform_8(%arg0: i32) -> (i32, i32) {
    %c0_i32 = arith.constant 0 : i32
    %c0_i32_0 = arith.constant 0 : i32
    %c0_i32_1 = arith.constant 0 : i32
    return %c0_i32, %c0_i32_0 : i32, i32
  }
  func.func @transform_9(%arg0: i32) -> (i32, i32) {
    %c0_i32 = arith.constant 0 : i32
    %c0_i32_0 = arith.constant 0 : i32
    %c0_i32_1 = arith.constant 0 : i32
    return %c0_i32, %c0_i32_0 : i32, i32
  }
  func.func @transform_10(%arg0: i32) -> (i32, i32) {
    %c0_i32 = arith.constant 0 : i32
    %c0_i32_0 = arith.constant 0 : i32
    %c0_i32_1 = arith.constant 0 : i32
    return %c0_i32, %c0_i32_0 : i32, i32
  }
  func.func @transform_11(%arg0: i32) -> (i32, i32) {
    %c0_i32 = arith.constant 0 : i32
    %c0_i32_0 = arith.constant 0 : i32
    %c0_i32_1 = arith.constant 0 : i32
    return %c0_i32, %c0_i32_0 : i32, i32
  }
  func.func @transform_12(%arg0: i32) -> (i32, i32) {
    %c0_i32 = arith.constant 0 : i32
    %c0_i32_0 = arith.constant 0 : i32
    %c0_i32_1 = arith.constant 0 : i32
    return %c0_i32, %c0_i32_0 : i32, i32
  }
  func.func @transform_13(%arg0: i32) -> (i32, i32) {
    %c0_i32 = arith.constant 0 : i32
    %c0_i32_0 = arith.constant 0 : i32
    %c0_i32_1 = arith.constant 0 : i32
    return %c0_i32, %c0_i32_0 : i32, i32
  }
  func.func @transform_14(%arg0: i32) -> (i32, i32, i32) {
    %c0_i32 = arith.constant 0 : i32
    %c0_i32_0 = arith.constant 0 : i32
    %c0_i32_1 = arith.constant 0 : i32
    %c0_i32_2 = arith.constant 0 : i32
    return %c0_i32, %c0_i32_0, %c0_i32_1 : i32, i32, i32
  }
  func.func @transform_15(%arg0: i32) -> (i32, i32, i32) {
    %c0_i32 = arith.constant 0 : i32
    %c0_i32_0 = arith.constant 0 : i32
    %c0_i32_1 = arith.constant 0 : i32
    %c0_i32_2 = arith.constant 0 : i32
    return %c0_i32, %c0_i32_0, %c0_i32_1 : i32, i32, i32
  }
  func.func @transform_16(%arg0: i32) -> (i32, i32, i32) {
    %c0_i32 = arith.constant 0 : i32
    %c0_i32_0 = arith.constant 0 : i32
    %c0_i32_1 = arith.constant 0 : i32
    %c0_i32_2 = arith.constant 0 : i32
    return %c0_i32, %c0_i32_0, %c0_i32_1 : i32, i32, i32
  }
  func.func @transform_17(%arg0: i32) -> (i32, i32, i32) {
    %c0_i32 = arith.constant 0 : i32
    %c0_i32_0 = arith.constant 0 : i32
    %c0_i32_1 = arith.constant 0 : i32
    %c0_i32_2 = arith.constant 0 : i32
    return %c0_i32, %c0_i32_0, %c0_i32_1 : i32, i32, i32
  }
  func.func @transform_18(%arg0: i32) -> (i32, i32, i32) {
    %c0_i32 = arith.constant 0 : i32
    %c0_i32_0 = arith.constant 0 : i32
    %c0_i32_1 = arith.constant 0 : i32
    %c0_i32_2 = arith.constant 0 : i32
    return %c0_i32, %c0_i32_0, %c0_i32_1 : i32, i32, i32
  }
  func.func @transform_19(%arg0: i32) -> (i32, i32, i32) {
    %c0_i32 = arith.constant 0 : i32
    %c0_i32_0 = arith.constant 0 : i32
    %c0_i32_1 = arith.constant 0 : i32
    %c0_i32_2 = arith.constant 0 : i32
    return %c0_i32, %c0_i32_0, %c0_i32_1 : i32, i32, i32
  }
  func.func @transform_20(%arg0: i32) -> (i32, i32, i32) {
    %c0_i32 = arith.constant 0 : i32
    %c0_i32_0 = arith.constant 0 : i32
    %c0_i32_1 = arith.constant 0 : i32
    %c0_i32_2 = arith.constant 0 : i32
    return %c0_i32, %c0_i32_0, %c0_i32_1 : i32, i32, i32
  }
  func.func @transform_21(%arg0: i32) -> (i32, i32, i32) {
    %c0_i32 = arith.constant 0 : i32
    %c0_i32_0 = arith.constant 0 : i32
    %c0_i32_1 = arith.constant 0 : i32
    %c0_i32_2 = arith.constant 0 : i32
    return %c0_i32, %c0_i32_0, %c0_i32_1 : i32, i32, i32
  }
  func.func @transform_22(%arg0: i32) -> (i32, i32, i32) {
    %c0_i32 = arith.constant 0 : i32
    %c0_i32_0 = arith.constant 0 : i32
    %c0_i32_1 = arith.constant 0 : i32
    %c0_i32_2 = arith.constant 0 : i32
    return %c0_i32, %c0_i32_0, %c0_i32_1 : i32, i32, i32
  }
  func.func @transform_23(%arg0: i32) -> (i32, i32, i32) {
    %c0_i32 = arith.constant 0 : i32
    %c0_i32_0 = arith.constant 0 : i32
    %c0_i32_1 = arith.constant 0 : i32
    %c0_i32_2 = arith.constant 0 : i32
    return %c0_i32, %c0_i32_0, %c0_i32_1 : i32, i32, i32
  }
  func.func @transform_24(%arg0: i32) -> (i32, i32, i32) {
    %c0_i32 = arith.constant 0 : i32
    %c0_i32_0 = arith.constant 0 : i32
    %c0_i32_1 = arith.constant 0 : i32
    %c0_i32_2 = arith.constant 0 : i32
    return %c0_i32, %c0_i32_0, %c0_i32_1 : i32, i32, i32
  }
  func.func @transform_25(%arg0: i32) -> (i32, i32, i32) {
    %c0_i32 = arith.constant 0 : i32
    %c0_i32_0 = arith.constant 0 : i32
    %c0_i32_1 = arith.constant 0 : i32
    %c0_i32_2 = arith.constant 0 : i32
    return %c0_i32, %c0_i32_0, %c0_i32_1 : i32, i32, i32
  }
  func.func @transform_26(%arg0: i32) -> (i32, i32, i32) {
    %c0_i32 = arith.constant 0 : i32
    %c0_i32_0 = arith.constant 0 : i32
    %c0_i32_1 = arith.constant 0 : i32
    %c0_i32_2 = arith.constant 0 : i32
    return %c0_i32, %c0_i32_0, %c0_i32_1 : i32, i32, i32
  }
  func.func @transform_27(%arg0: i32) -> (i32, i32, i32) {
    %c0_i32 = arith.constant 0 : i32
    %c0_i32_0 = arith.constant 0 : i32
    %c0_i32_1 = arith.constant 0 : i32
    %c0_i32_2 = arith.constant 0 : i32
    return %c0_i32, %c0_i32_0, %c0_i32_1 : i32, i32, i32
  }
  func.func @transform_28(%arg0: i32) -> (i32, i32) {
    %c0_i32 = arith.constant 0 : i32
    %c0_i32_0 = arith.constant 0 : i32
    %c0_i32_1 = arith.constant 0 : i32
    return %c0_i32, %c0_i32_0 : i32, i32
  }
  func.func @transform_29(%arg0: i32) -> (i32, i32) {
    %c0_i32 = arith.constant 0 : i32
    %c0_i32_0 = arith.constant 0 : i32
    %c0_i32_1 = arith.constant 0 : i32
    return %c0_i32, %c0_i32_0 : i32, i32
  }
  func.func @transform_30(%arg0: i32) -> (i32, i32) {
    %c0_i32 = arith.constant 0 : i32
    %c0_i32_0 = arith.constant 0 : i32
    %c0_i32_1 = arith.constant 0 : i32
    return %c0_i32, %c0_i32_0 : i32, i32
  }
  func.func @transform_31(%arg0: i32) -> (i32, i32) {
    %c0_i32 = arith.constant 0 : i32
    %c0_i32_0 = arith.constant 0 : i32
    %c0_i32_1 = arith.constant 0 : i32
    return %c0_i32, %c0_i32_0 : i32, i32
  }
  func.func @transform_32(%arg0: i32) -> (i32, i32) {
    %c0_i32 = arith.constant 0 : i32
    %c0_i32_0 = arith.constant 0 : i32
    %c0_i32_1 = arith.constant 0 : i32
    return %c0_i32, %c0_i32_0 : i32, i32
  }
  func.func @transform_33(%arg0: i32) -> (i32, i32) {
    %c0_i32 = arith.constant 0 : i32
    %c0_i32_0 = arith.constant 0 : i32
    %c0_i32_1 = arith.constant 0 : i32
    return %c0_i32, %c0_i32_0 : i32, i32
  }
  func.func @transform_34(%arg0: i32) -> (i32, i32) {
    %c0_i32 = arith.constant 0 : i32
    %c0_i32_0 = arith.constant 0 : i32
    %c0_i32_1 = arith.constant 0 : i32
    return %c0_i32, %c0_i32_0 : i32, i32
  }
  func.func @transform_35(%arg0: i32) -> (i32, i32, i32) {
    %c0_i32 = arith.constant 0 : i32
    %c0_i32_0 = arith.constant 0 : i32
    %c0_i32_1 = arith.constant 0 : i32
    return %arg0, %c0_i32, %c0_i32_0 : i32, i32, i32
  }
}

</mosaic_0001>

<llo_original>
// kernel: tpu_custom_call.1
$region0: #{tpu_custom_call.1}
  #allocation0 [shape = 'u32[]', space=smem, size = 0x4, offset = 0x4, fixed_abs, tag = 'smem constant byte address 0x4 - core index']
  #allocation1 [shape = 'u32[144,128]{1,0:T(1,128)}', space=vmem, size = 0x12000, scoped, tag = 'internal scratch']
  %s0 = inlined_call_operand.smem [shape: u32[36], index: -1, kind: input, shape index: {}]
  %s1 = sld [smem:[%s0]]
  %s2 = scalar_lea.smem %s0, 1
  %s3 = sld [smem:[%s2]]
  %s4 = scalar_lea.smem %s0, 2
  %s5 = sld [smem:[%s4]]
  %s6 = scalar_lea.smem %s0, 3
  %s7 = sld [smem:[%s6]]
  %s8 = scalar_lea.smem %s0, 4
  %s9 = sld [smem:[%s8]]
  %s10 = scalar_lea.smem %s0, 5
  %s11 = sld [smem:[%s10]]
  %s12 = scalar_lea.smem %s0, 6
  %s13 = sld [smem:[%s12]]
  %s14 = scalar_lea.smem %s0, 7
  %s15 = sld [smem:[%s14]]
  %s16 = scalar_lea.smem %s0, 8
  %s17 = sld [smem:[%s16]]
  %s18 = scalar_lea.smem %s0, 9
  %s19 = sld [smem:[%s18]]
  %s20 = scalar_lea.smem %s0, 10
  %s21 = sld [smem:[%s20]]
  %s22 = scalar_lea.smem %s0, 11
  %s23 = sld [smem:[%s22]]
  %s24 = scalar_lea.smem %s0, 12
  %s25 = sld [smem:[%s24]]
  %s26 = scalar_lea.smem %s0, 13
  %s27 = sld [smem:[%s26]]
  %s28 = scalar_lea.smem %s0, 14
  %s29 = sld [smem:[%s28]]
  %s30 = scalar_lea.smem %s0, 15
  %s31 = sld [smem:[%s30]]
  %s32 = scalar_lea.smem %s0, 16
  %s33 = sld [smem:[%s32]]
  %s34 = scalar_lea.smem %s0, 17
  %s35 = sld [smem:[%s34]]
  %s36 = scalar_lea.smem %s0, 18
  %s37 = sld [smem:[%s36]]
  %s38 = scalar_lea.smem %s0, 19
  %s39 = sld [smem:[%s38]]
  %s40 = scalar_lea.smem %s0, 20
  %s41 = sld [smem:[%s40]]
  %s42 = scalar_lea.smem %s0, 21
  %s43 = sld [smem:[%s42]]
  %s44 = scalar_lea.smem %s0, 22
  %s45 = sld [smem:[%s44]]
  %s46 = scalar_lea.smem %s0, 23
  %s47 = sld [smem:[%s46]]
  %s48 = scalar_lea.smem %s0, 24
  %s49 = sld [smem:[%s48]]
  %s50 = scalar_lea.smem %s0, 25
  %s51 = sld [smem:[%s50]]
  %s52 = scalar_lea.smem %s0, 26
  %s53 = sld [smem:[%s52]]
  %s54 = scalar_lea.smem %s0, 27
  %s55 = sld [smem:[%s54]]
  %s56 = scalar_lea.smem %s0, 28
  %s57 = sld [smem:[%s56]]
  %s58 = scalar_lea.smem %s0, 29
  %s59 = sld [smem:[%s58]]
  %s60 = scalar_lea.smem %s0, 30
  %s61 = sld [smem:[%s60]]
  %s62 = scalar_lea.smem %s0, 31
  %s63 = sld [smem:[%s62]]
  %s64 = scalar_lea.smem %s0, 32
  %s65 = sld [smem:[%s64]]
  %s66 = scalar_lea.smem %s0, 33
  %s67 = sld [smem:[%s66]]
  %s68 = scalar_lea.smem %s0, 34
  %s69 = sld [smem:[%s68]]
  %s70 = scalar_lea.smem %s0, 35
  %s71 = sld [smem:[%s70]]
  %s72 = sld [smem:[#allocation0]]
  $region173: #{tpu_custom_call.1} parent=0
    _
  %s74 = ssub.s32 1, %s72
  %s75 = scalar_select 0, %s74, %s72
  $region1: #{tpu_custom_call.1} parent=0
    #allocation2 [shape = 'u8[8192]{0}', space=vmem, size = 0x2000, scoped, tag = 'output window, operand 0']
    #allocation3 [shape = 's32[2]{0}', space=sflag, size = 0x8, scoped, tag = 'scoped memory for tpu_custom_call.1']
    %76 = vsyncpa [#allocation3], 0
    %s77 = scalar_lea.sflag [#allocation3], 1
    %78 = vsyncpa %s77, 0
    loop: start=0, step=1, limit=4
    $region2: #{tpu_custom_call.1} parent=1 // loop_pre_header
      _
    $region3: #{tpu_custom_call.1} parent=1 // loop_header
      %s80 = sphi 0, %s84
      %p81 = scmp.ge.s32.totalorder %s80, 4
      %s90 = sphi 0, %s92
      %s93 = sphi 0, %s90
      %s94 = sphi 0, %s93
      %s110 = sphi 0, %s94
      %s116 = sphi 0, %s118
      %s119 = sphi 0, %s116
      %s120 = sphi 0, %s119
      %s136 = sphi 0, %s120
      %s140 = sphi 0, %s140
      %s142 = sphi 0, %s140
      %s143 = sphi 0, %s142
      %s157 = sphi 0, %s143
      %s161 = sphi 0, %s161
      %s163 = sphi 0, %s161
      %s164 = sphi 0, %s163
      %s178 = sphi 0, %s164
      %s182 = sphi 0, %s182
      %s184 = sphi 0, %s182
      %s185 = sphi 0, %s184
      %s199 = sphi 0, %s185
      %s203 = sphi 0, %s203
      %s205 = sphi 0, %s203
      %s206 = sphi 0, %s205
      %s220 = sphi 0, %s206
      %s224 = sphi 0, %s224
      %s226 = sphi 0, %s224
      %s227 = sphi 0, %s226
      %s241 = sphi 0, %s227
      %s245 = sphi 0, %s245
      %s247 = sphi 0, %s245
      %s248 = sphi 0, %s247
      %s262 = sphi 0, %s248
      %s266 = sphi 0, %s266
      %s268 = sphi 0, %s266
      %s269 = sphi 0, %s268
      %s283 = sphi 0, %s269
      %s287 = sphi 0, %s287
      %s289 = sphi 0, %s287
      %s290 = sphi 0, %s289
      %s304 = sphi 0, %s290
      %s308 = sphi 0, %s308
      %s310 = sphi 0, %s308
      %s311 = sphi 0, %s310
      %s325 = sphi 0, %s311
      %s329 = sphi 0, %s329
      %s331 = sphi 0, %s329
      %s332 = sphi 0, %s331
      %s346 = sphi 0, %s332
      %s350 = sphi 0, %s350
      %s352 = sphi 0, %s350
      %s353 = sphi 0, %s352
      %s367 = sphi 0, %s353
      %s371 = sphi 0, %s371
      %s373 = sphi 0, %s371
      %s374 = sphi 0, %s373
      %s388 = sphi 0, %s374
      %s392 = sphi 0, %s392
      %s394 = sphi 0, %s392
      %s395 = sphi 0, %s394
      %s409 = sphi 0, %s395
      %s413 = sphi 0, %s413
      %s415 = sphi 0, %s413
      %s416 = sphi 0, %s415
      %s430 = sphi 0, %s416
      %s434 = sphi 0, %s434
      %s436 = sphi 0, %s434
      %s437 = sphi 0, %s436
      %s451 = sphi 0, %s437
      %s455 = sphi 0, %s455
      %s457 = sphi 0, %s455
      %s458 = sphi 0, %s457
      %s472 = sphi 0, %s458
      %s476 = sphi 0, %s476
      %s478 = sphi 0, %s476
      %s479 = sphi 0, %s478
      %s493 = sphi 0, %s479
      %s497 = sphi 0, %s497
      %s499 = sphi 0, %s497
      %s500 = sphi 0, %s499
      %s514 = sphi 0, %s500
      %s518 = sphi 0, %s518
      %s520 = sphi 0, %s518
      %s521 = sphi 0, %s520
      %s535 = sphi 0, %s521
      %s539 = sphi 0, %s539
      %s541 = sphi 0, %s539
      %s542 = sphi 0, %s541
      %s556 = sphi 0, %s542
      %s560 = sphi 0, %s560
      %s562 = sphi 0, %s560
      %s563 = sphi 0, %s562
      %s577 = sphi 0, %s563
      %s581 = sphi 0, %s581
      %s583 = sphi 0, %s581
      %s584 = sphi 0, %s583
      %s598 = sphi 0, %s584
      %s602 = sphi 0, %s602
      %s604 = sphi 0, %s602
      %s605 = sphi 0, %s604
      %s619 = sphi 0, %s605
      %s623 = sphi 0, %s623
      %s625 = sphi 0, %s623
      %s626 = sphi 0, %s625
      %s640 = sphi 0, %s626
      %s644 = sphi 0, %s644
      %s646 = sphi 0, %s644
      %s647 = sphi 0, %s646
      %s661 = sphi 0, %s647
      %s665 = sphi 0, %s665
      %s667 = sphi 0, %s665
      %s668 = sphi 0, %s667
      %s682 = sphi 0, %s668
      %s686 = sphi 0, %s686
      %s688 = sphi 0, %s686
      %s689 = sphi 0, %s688
      %s703 = sphi 0, %s689
      %s707 = sphi 0, %s707
      %s709 = sphi 0, %s707
      %s710 = sphi 0, %s709
      %s724 = sphi 0, %s710
      %s728 = sphi 0, %s728
      %s730 = sphi 0, %s728
      %s731 = sphi 0, %s730
      %s745 = sphi 0, %s731
      %s749 = sphi 0, %s749
      %s751 = sphi 0, %s749
      %s752 = sphi 0, %s751
      %s766 = sphi 0, %s752
      %s770 = sphi 0, %s770
      %s772 = sphi 0, %s770
      %s773 = sphi 0, %s772
      %s787 = sphi 0, %s773
      %s791 = sphi 0, %s791
      %s793 = sphi 0, %s791
      %s794 = sphi 0, %s793
      %s808 = sphi 0, %s794
      %s812 = sphi 0, %s812
      %s814 = sphi 0, %s812
      %s815 = sphi 0, %s814
      %s829 = sphi 0, %s815
      %s835 = sphi 0, %s837
      %s838 = sphi 0, %s835
      %s839 = sphi 0, %s838
      %s855 = sphi 0, %s839
    $region4: #{tpu_custom_call.1} parent=1 // loop_header_branch
      %83 = sbr.rel (%p81) target = $region8
    $region5: #{tpu_custom_call.1} parent=1 // loop_body
      %s85 = ssub.s32 %s80, 1
      %s86 = ssub.s32 %s80, 2
      %s87 = sadd.s32 %s80, 1
      %s88 = ssub.s32 %s80, %s87
      %p89 = scmp.eq.s32.totalorder %s88, 0
      %s91 = sadd.s32 %s90, 1
      %s92 = scalar_select %p89, %s90, %s91
      %p95 = pneg %p89
      %p96 = scmp.eq.s32.totalorder %s80, 1
      %p97 = por %p95, %p96
      %p98 = scmp.ne.s32.totalorder %s90, %s93
      %p99 = scmp.eq.s32.totalorder %s80, 0
      %p100 = por %p98, %p99
      %p101 = scmp.ne.s32.totalorder %s90, %s93
      %p102 = scmp.eq.s32.totalorder %s85, 1
      %p103 = por %p101, %p102
      %p104 = scmp.ne.s32.totalorder %s93, %s94
      %p105 = scmp.eq.s32.totalorder %s85, 0
      %p106 = por %p104, %p105
      %p107 = scmp.ne.s32.totalorder %s93, %s94
      %p108 = scmp.eq.s32.totalorder %s86, 1
      %p109 = por %p107, %p108
      %p111 = scmp.ne.s32.totalorder %s94, %s110
      %p112 = scmp.eq.s32.totalorder %s86, 0
      %p113 = por %p111, %p112
      %s114 = ssub.s32 %s80, %s87
      %p115 = scmp.eq.s32.totalorder %s114, 0
      %s117 = sadd.s32 %s116, 1
      %s118 = scalar_select %p115, %s116, %s117
      %p121 = pneg %p115
      %p122 = scmp.eq.s32.totalorder %s80, 1
      %p123 = por %p121, %p122
      %p124 = scmp.ne.s32.totalorder %s116, %s119
      %p125 = scmp.eq.s32.totalorder %s80, 0
      %p126 = por %p124, %p125
      %p127 = scmp.ne.s32.totalorder %s116, %s119
      %p128 = scmp.eq.s32.totalorder %s85, 1
      %p129 = por %p127, %p128
      %p130 = scmp.ne.s32.totalorder %s119, %s120
      %p131 = scmp.eq.s32.totalorder %s85, 0
      %p132 = por %p130, %p131
      %p133 = scmp.ne.s32.totalorder %s119, %s120
      %p134 = scmp.eq.s32.totalorder %s86, 1
      %p135 = por %p133, %p134
      %p137 = scmp.ne.s32.totalorder %s120, %s136
      %p138 = scmp.eq.s32.totalorder %s86, 0
      %p139 = por %p137, %p138
      %s141 = sadd.s32 %s140, 1
      %p144 = scmp.eq.s32.totalorder %s80, 1
      %p145 = scmp.ne.s32.totalorder %s140, %s142
      %p146 = scmp.eq.s32.totalorder %s80, 0
      %p147 = por %p145, %p146
      %p148 = scmp.ne.s32.totalorder %s140, %s142
      %p149 = scmp.eq.s32.totalorder %s85, 1
      %p150 = por %p148, %p149
      %p151 = scmp.ne.s32.totalorder %s142, %s143
      %p152 = scmp.eq.s32.totalorder %s85, 0
      %p153 = por %p151, %p152
      %p154 = scmp.ne.s32.totalorder %s142, %s143
      %p155 = scmp.eq.s32.totalorder %s86, 1
      %p156 = por %p154, %p155
      %p158 = scmp.ne.s32.totalorder %s143, %s157
      %p159 = scmp.eq.s32.totalorder %s86, 0
      %p160 = por %p158, %p159
      %s162 = sadd.s32 %s161, 1
      %p165 = scmp.eq.s32.totalorder %s80, 1
      %p166 = scmp.ne.s32.totalorder %s161, %s163
      %p167 = scmp.eq.s32.totalorder %s80, 0
      %p168 = por %p166, %p167
      %p169 = scmp.ne.s32.totalorder %s161, %s163
      %p170 = scmp.eq.s32.totalorder %s85, 1
      %p171 = por %p169, %p170
      %p172 = scmp.ne.s32.totalorder %s163, %s164
      %p173 = scmp.eq.s32.totalorder %s85, 0
      %p174 = por %p172, %p173
      %p175 = scmp.ne.s32.totalorder %s163, %s164
      %p176 = scmp.eq.s32.totalorder %s86, 1
      %p177 = por %p175, %p176
      %p179 = scmp.ne.s32.totalorder %s164, %s178
      %p180 = scmp.eq.s32.totalorder %s86, 0
      %p181 = por %p179, %p180
      %s183 = sadd.s32 %s182, 1
      %p186 = scmp.eq.s32.totalorder %s80, 1
      %p187 = scmp.ne.s32.totalorder %s182, %s184
      %p188 = scmp.eq.s32.totalorder %s80, 0
      %p189 = por %p187, %p188
      %p190 = scmp.ne.s32.totalorder %s182, %s184
      %p191 = scmp.eq.s32.totalorder %s85, 1
      %p192 = por %p190, %p191
      %p193 = scmp.ne.s32.totalorder %s184, %s185
      %p194 = scmp.eq.s32.totalorder %s85, 0
      %p195 = por %p193, %p194
      %p196 = scmp.ne.s32.totalorder %s184, %s185
      %p197 = scmp.eq.s32.totalorder %s86, 1
      %p198 = por %p196, %p197
      %p200 = scmp.ne.s32.totalorder %s185, %s199
      %p201 = scmp.eq.s32.totalorder %s86, 0
      %p202 = por %p200, %p201
      %s204 = sadd.s32 %s203, 1
      %p207 = scmp.eq.s32.totalorder %s80, 1
      %p208 = scmp.ne.s32.totalorder %s203, %s205
      %p209 = scmp.eq.s32.totalorder %s80, 0
      %p210 = por %p208, %p209
      %p211 = scmp.ne.s32.totalorder %s203, %s205
      %p212 = scmp.eq.s32.totalorder %s85, 1
      %p213 = por %p211, %p212
      %p214 = scmp.ne.s32.totalorder %s205, %s206
      %p215 = scmp.eq.s32.totalorder %s85, 0
      %p216 = por %p214, %p215
      %p217 = scmp.ne.s32.totalorder %s205, %s206
      %p218 = scmp.eq.s32.totalorder %s86, 1
      %p219 = por %p217, %p218
      %p221 = scmp.ne.s32.totalorder %s206, %s220
      %p222 = scmp.eq.s32.totalorder %s86, 0
      %p223 = por %p221, %p222
      %s225 = sadd.s32 %s224, 1
      %p228 = scmp.eq.s32.totalorder %s80, 1
      %p229 = scmp.ne.s32.totalorder %s224, %s226
      %p230 = scmp.eq.s32.totalorder %s80, 0
      %p231 = por %p229, %p230
      %p232 = scmp.ne.s32.totalorder %s224, %s226
      %p233 = scmp.eq.s32.totalorder %s85, 1
      %p234 = por %p232, %p233
      %p235 = scmp.ne.s32.totalorder %s226, %s227
      %p236 = scmp.eq.s32.totalorder %s85, 0
      %p237 = por %p235, %p236
      %p238 = scmp.ne.s32.totalorder %s226, %s227
      %p239 = scmp.eq.s32.totalorder %s86, 1
      %p240 = por %p238, %p239
      %p242 = scmp.ne.s32.totalorder %s227, %s241
      %p243 = scmp.eq.s32.totalorder %s86, 0
      %p244 = por %p242, %p243
      %s246 = sadd.s32 %s245, 1
      %p249 = scmp.eq.s32.totalorder %s80, 1
      %p250 = scmp.ne.s32.totalorder %s245, %s247
      %p251 = scmp.eq.s32.totalorder %s80, 0
      %p252 = por %p250, %p251
      %p253 = scmp.ne.s32.totalorder %s245, %s247
      %p254 = scmp.eq.s32.totalorder %s85, 1
      %p255 = por %p253, %p254
      %p256 = scmp.ne.s32.totalorder %s247, %s248
      %p257 = scmp.eq.s32.totalorder %s85, 0
      %p258 = por %p256, %p257
      %p259 = scmp.ne.s32.totalorder %s247, %s248
      %p260 = scmp.eq.s32.totalorder %s86, 1
      %p261 = por %p259, %p260
      %p263 = scmp.ne.s32.totalorder %s248, %s262
      %p264 = scmp.eq.s32.totalorder %s86, 0
      %p265 = por %p263, %p264
      %s267 = sadd.s32 %s266, 1
      %p270 = scmp.eq.s32.totalorder %s80, 1
      %p271 = scmp.ne.s32.totalorder %s266, %s268
      %p272 = scmp.eq.s32.totalorder %s80, 0
      %p273 = por %p271, %p272
      %p274 = scmp.ne.s32.totalorder %s266, %s268
      %p275 = scmp.eq.s32.totalorder %s85, 1
      %p276 = por %p274, %p275
      %p277 = scmp.ne.s32.totalorder %s268, %s269
      %p278 = scmp.eq.s32.totalorder %s85, 0
      %p279 = por %p277, %p278
      %p280 = scmp.ne.s32.totalorder %s268, %s269
      %p281 = scmp.eq.s32.totalorder %s86, 1
      %p282 = por %p280, %p281
      %p284 = scmp.ne.s32.totalorder %s269, %s283
      %p285 = scmp.eq.s32.totalorder %s86, 0
      %p286 = por %p284, %p285
      %s288 = sadd.s32 %s287, 1
      %p291 = scmp.eq.s32.totalorder %s80, 1
      %p292 = scmp.ne.s32.totalorder %s287, %s289
      %p293 = scmp.eq.s32.totalorder %s80, 0
      %p294 = por %p292, %p293
      %p295 = scmp.ne.s32.totalorder %s287, %s289
      %p296 = scmp.eq.s32.totalorder %s85, 1
      %p297 = por %p295, %p296
      %p298 = scmp.ne.s32.totalorder %s289, %s290
      %p299 = scmp.eq.s32.totalorder %s85, 0
      %p300 = por %p298, %p299
      %p301 = scmp.ne.s32.totalorder %s289, %s290
      %p302 = scmp.eq.s32.totalorder %s86, 1
      %p303 = por %p301, %p302
      %p305 = scmp.ne.s32.totalorder %s290, %s304
      %p306 = scmp.eq.s32.totalorder %s86, 0
      %p307 = por %p305, %p306
      %s309 = sadd.s32 %s308, 1
      %p312 = scmp.eq.s32.totalorder %s80, 1
      %p313 = scmp.ne.s32.totalorder %s308, %s310
      %p314 = scmp.eq.s32.totalorder %s80, 0
      %p315 = por %p313, %p314
      %p316 = scmp.ne.s32.totalorder %s308, %s310
      %p317 = scmp.eq.s32.totalorder %s85, 1
      %p318 = por %p316, %p317
      %p319 = scmp.ne.s32.totalorder %s310, %s311
      %p320 = scmp.eq.s32.totalorder %s85, 0
      %p321 = por %p319, %p320
      %p322 = scmp.ne.s32.totalorder %s310, %s311
      %p323 = scmp.eq.s32.totalorder %s86, 1
      %p324 = por %p322, %p323
      %p326 = scmp.ne.s32.totalorder %s311, %s325
      %p327 = scmp.eq.s32.totalorder %s86, 0
      %p328 = por %p326, %p327
      %s330 = sadd.s32 %s329, 1
      %p333 = scmp.eq.s32.totalorder %s80, 1
      %p334 = scmp.ne.s32.totalorder %s329, %s331
      %p335 = scmp.eq.s32.totalorder %s80, 0
      %p336 = por %p334, %p335
      %p337 = scmp.ne.s32.totalorder %s329, %s331
      %p338 = scmp.eq.s32.totalorder %s85, 1
      %p339 = por %p337, %p338
      %p340 = scmp.ne.s32.totalorder %s331, %s332
      %p341 = scmp.eq.s32.totalorder %s85, 0
      %p342 = por %p340, %p341
      %p343 = scmp.ne.s32.totalorder %s331, %s332
      %p344 = scmp.eq.s32.totalorder %s86, 1
      %p345 = por %p343, %p344
      %p347 = scmp.ne.s32.totalorder %s332, %s346
      %p348 = scmp.eq.s32.totalorder %s86, 0
      %p349 = por %p347, %p348
      %s351 = sadd.s32 %s350, 1
      %p354 = scmp.eq.s32.totalorder %s80, 1
      %p355 = scmp.ne.s32.totalorder %s350, %s352
      %p356 = scmp.eq.s32.totalorder %s80, 0
      %p357 = por %p355, %p356
      %p358 = scmp.ne.s32.totalorder %s350, %s352
      %p359 = scmp.eq.s32.totalorder %s85, 1
      %p360 = por %p358, %p359
      %p361 = scmp.ne.s32.totalorder %s352, %s353
      %p362 = scmp.eq.s32.totalorder %s85, 0
      %p363 = por %p361, %p362
      %p364 = scmp.ne.s32.totalorder %s352, %s353
      %p365 = scmp.eq.s32.totalorder %s86, 1
      %p366 = por %p364, %p365
      %p368 = scmp.ne.s32.totalorder %s353, %s367
      %p369 = scmp.eq.s32.totalorder %s86, 0
      %p370 = por %p368, %p369
      %s372 = sadd.s32 %s371, 1
      %p375 = scmp.eq.s32.totalorder %s80, 1
      %p376 = scmp.ne.s32.totalorder %s371, %s373
      %p377 = scmp.eq.s32.totalorder %s80, 0
      %p378 = por %p376, %p377
      %p379 = scmp.ne.s32.totalorder %s371, %s373
      %p380 = scmp.eq.s32.totalorder %s85, 1
      %p381 = por %p379, %p380
      %p382 = scmp.ne.s32.totalorder %s373, %s374
      %p383 = scmp.eq.s32.totalorder %s85, 0
      %p384 = por %p382, %p383
      %p385 = scmp.ne.s32.totalorder %s373, %s374
      %p386 = scmp.eq.s32.totalorder %s86, 1
      %p387 = por %p385, %p386
      %p389 = scmp.ne.s32.totalorder %s374, %s388
      %p390 = scmp.eq.s32.totalorder %s86, 0
      %p391 = por %p389, %p390
      %s393 = sadd.s32 %s392, 1
      %p396 = scmp.eq.s32.totalorder %s80, 1
      %p397 = scmp.ne.s32.totalorder %s392, %s394
      %p398 = scmp.eq.s32.totalorder %s80, 0
      %p399 = por %p397, %p398
      %p400 = scmp.ne.s32.totalorder %s392, %s394
      %p401 = scmp.eq.s32.totalorder %s85, 1
      %p402 = por %p400, %p401
      %p403 = scmp.ne.s32.totalorder %s394, %s395
      %p404 = scmp.eq.s32.totalorder %s85, 0
      %p405 = por %p403, %p404
      %p406 = scmp.ne.s32.totalorder %s394, %s395
      %p407 = scmp.eq.s32.totalorder %s86, 1
      %p408 = por %p406, %p407
      %p410 = scmp.ne.s32.totalorder %s395, %s409
      %p411 = scmp.eq.s32.totalorder %s86, 0
      %p412 = por %p410, %p411
      %s414 = sadd.s32 %s413, 1
      %p417 = scmp.eq.s32.totalorder %s80, 1
      %p418 = scmp.ne.s32.totalorder %s413, %s415
      %p419 = scmp.eq.s32.totalorder %s80, 0
      %p420 = por %p418, %p419
      %p421 = scmp.ne.s32.totalorder %s413, %s415
      %p422 = scmp.eq.s32.totalorder %s85, 1
      %p423 = por %p421, %p422
      %p424 = scmp.ne.s32.totalorder %s415, %s416
      %p425 = scmp.eq.s32.totalorder %s85, 0
      %p426 = por %p424, %p425
      %p427 = scmp.ne.s32.totalorder %s415, %s416
      %p428 = scmp.eq.s32.totalorder %s86, 1
      %p429 = por %p427, %p428
      %p431 = scmp.ne.s32.totalorder %s416, %s430
      %p432 = scmp.eq.s32.totalorder %s86, 0
      %p433 = por %p431, %p432
      %s435 = sadd.s32 %s434, 1
      %p438 = scmp.eq.s32.totalorder %s80, 1
      %p439 = scmp.ne.s32.totalorder %s434, %s436
      %p440 = scmp.eq.s32.totalorder %s80, 0
      %p441 = por %p439, %p440
      %p442 = scmp.ne.s32.totalorder %s434, %s436
      %p443 = scmp.eq.s32.totalorder %s85, 1
      %p444 = por %p442, %p443
      %p445 = scmp.ne.s32.totalorder %s436, %s437
      %p446 = scmp.eq.s32.totalorder %s85, 0
      %p447 = por %p445, %p446
      %p448 = scmp.ne.s32.totalorder %s436, %s437
      %p449 = scmp.eq.s32.totalorder %s86, 1
      %p450 = por %p448, %p449
      %p452 = scmp.ne.s32.totalorder %s437, %s451
      %p453 = scmp.eq.s32.totalorder %s86, 0
      %p454 = por %p452, %p453
      %s456 = sadd.s32 %s455, 1
      %p459 = scmp.eq.s32.totalorder %s80, 1
      %p460 = scmp.ne.s32.totalorder %s455, %s457
      %p461 = scmp.eq.s32.totalorder %s80, 0
      %p462 = por %p460, %p461
      %p463 = scmp.ne.s32.totalorder %s455, %s457
      %p464 = scmp.eq.s32.totalorder %s85, 1
      %p465 = por %p463, %p464
      %p466 = scmp.ne.s32.totalorder %s457, %s458
      %p467 = scmp.eq.s32.totalorder %s85, 0
      %p468 = por %p466, %p467
      %p469 = scmp.ne.s32.totalorder %s457, %s458
      %p470 = scmp.eq.s32.totalorder %s86, 1
      %p471 = por %p469, %p470
      %p473 = scmp.ne.s32.totalorder %s458, %s472
      %p474 = scmp.eq.s32.totalorder %s86, 0
      %p475 = por %p473, %p474
      %s477 = sadd.s32 %s476, 1
      %p480 = scmp.eq.s32.totalorder %s80, 1
      %p481 = scmp.ne.s32.totalorder %s476, %s478
      %p482 = scmp.eq.s32.totalorder %s80, 0
      %p483 = por %p481, %p482
      %p484 = scmp.ne.s32.totalorder %s476, %s478
      %p485 = scmp.eq.s32.totalorder %s85, 1
      %p486 = por %p484, %p485
      %p487 = scmp.ne.s32.totalorder %s478, %s479
      %p488 = scmp.eq.s32.totalorder %s85, 0
      %p489 = por %p487, %p488
      %p490 = scmp.ne.s32.totalorder %s478, %s479
      %p491 = scmp.eq.s32.totalorder %s86, 1
      %p492 = por %p490, %p491
      %p494 = scmp.ne.s32.totalorder %s479, %s493
      %p495 = scmp.eq.s32.totalorder %s86, 0
      %p496 = por %p494, %p495
      %s498 = sadd.s32 %s497, 1
      %p501 = scmp.eq.s32.totalorder %s80, 1
      %p502 = scmp.ne.s32.totalorder %s497, %s499
      %p503 = scmp.eq.s32.totalorder %s80, 0
      %p504 = por %p502, %p503
      %p505 = scmp.ne.s32.totalorder %s497, %s499
      %p506 = scmp.eq.s32.totalorder %s85, 1
      %p507 = por %p505, %p506
      %p508 = scmp.ne.s32.totalorder %s499, %s500
      %p509 = scmp.eq.s32.totalorder %s85, 0
      %p510 = por %p508, %p509
      %p511 = scmp.ne.s32.totalorder %s499, %s500
      %p512 = scmp.eq.s32.totalorder %s86, 1
      %p513 = por %p511, %p512
      %p515 = scmp.ne.s32.totalorder %s500, %s514
      %p516 = scmp.eq.s32.totalorder %s86, 0
      %p517 = por %p515, %p516
      %s519 = sadd.s32 %s518, 1
      %p522 = scmp.eq.s32.totalorder %s80, 1
      %p523 = scmp.ne.s32.totalorder %s518, %s520
      %p524 = scmp.eq.s32.totalorder %s80, 0
      %p525 = por %p523, %p524
      %p526 = scmp.ne.s32.totalorder %s518, %s520
      %p527 = scmp.eq.s32.totalorder %s85, 1
      %p528 = por %p526, %p527
      %p529 = scmp.ne.s32.totalorder %s520, %s521
      %p530 = scmp.eq.s32.totalorder %s85, 0
      %p531 = por %p529, %p530
      %p532 = scmp.ne.s32.totalorder %s520, %s521
      %p533 = scmp.eq.s32.totalorder %s86, 1
      %p534 = por %p532, %p533
      %p536 = scmp.ne.s32.totalorder %s521, %s535
      %p537 = scmp.eq.s32.totalorder %s86, 0
      %p538 = por %p536, %p537
      %s540 = sadd.s32 %s539, 1
      %p543 = scmp.eq.s32.totalorder %s80, 1
      %p544 = scmp.ne.s32.totalorder %s539, %s541
      %p545 = scmp.eq.s32.totalorder %s80, 0
      %p546 = por %p544, %p545
      %p547 = scmp.ne.s32.totalorder %s539, %s541
      %p548 = scmp.eq.s32.totalorder %s85, 1
      %p549 = por %p547, %p548
      %p550 = scmp.ne.s32.totalorder %s541, %s542
      %p551 = scmp.eq.s32.totalorder %s85, 0
      %p552 = por %p550, %p551
      %p553 = scmp.ne.s32.totalorder %s541, %s542
      %p554 = scmp.eq.s32.totalorder %s86, 1
      %p555 = por %p553, %p554
      %p557 = scmp.ne.s32.totalorder %s542, %s556
      %p558 = scmp.eq.s32.totalorder %s86, 0
      %p559 = por %p557, %p558
      %s561 = sadd.s32 %s560, 1
      %p564 = scmp.eq.s32.totalorder %s80, 1
      %p565 = scmp.ne.s32.totalorder %s560, %s562
      %p566 = scmp.eq.s32.totalorder %s80, 0
      %p567 = por %p565, %p566
      %p568 = scmp.ne.s32.totalorder %s560, %s562
      %p569 = scmp.eq.s32.totalorder %s85, 1
      %p570 = por %p568, %p569
      %p571 = scmp.ne.s32.totalorder %s562, %s563
      %p572 = scmp.eq.s32.totalorder %s85, 0
      %p573 = por %p571, %p572
      %p574 = scmp.ne.s32.totalorder %s562, %s563
      %p575 = scmp.eq.s32.totalorder %s86, 1
      %p576 = por %p574, %p575
      %p578 = scmp.ne.s32.totalorder %s563, %s577
      %p579 = scmp.eq.s32.totalorder %s86, 0
      %p580 = por %p578, %p579
      %s582 = sadd.s32 %s581, 1
      %p585 = scmp.eq.s32.totalorder %s80, 1
      %p586 = scmp.ne.s32.totalorder %s581, %s583
      %p587 = scmp.eq.s32.totalorder %s80, 0
      %p588 = por %p586, %p587
      %p589 = scmp.ne.s32.totalorder %s581, %s583
      %p590 = scmp.eq.s32.totalorder %s85, 1
      %p591 = por %p589, %p590
      %p592 = scmp.ne.s32.totalorder %s583, %s584
      %p593 = scmp.eq.s32.totalorder %s85, 0
      %p594 = por %p592, %p593
      %p595 = scmp.ne.s32.totalorder %s583, %s584
      %p596 = scmp.eq.s32.totalorder %s86, 1
      %p597 = por %p595, %p596
      %p599 = scmp.ne.s32.totalorder %s584, %s598
      %p600 = scmp.eq.s32.totalorder %s86, 0
      %p601 = por %p599, %p600
      %s603 = sadd.s32 %s602, 1
      %p606 = scmp.eq.s32.totalorder %s80, 1
      %p607 = scmp.ne.s32.totalorder %s602, %s604
      %p608 = scmp.eq.s32.totalorder %s80, 0
      %p609 = por %p607, %p608
      %p610 = scmp.ne.s32.totalorder %s602, %s604
      %p611 = scmp.eq.s32.totalorder %s85, 1
      %p612 = por %p610, %p611
      %p613 = scmp.ne.s32.totalorder %s604, %s605
      %p614 = scmp.eq.s32.totalorder %s85, 0
      %p615 = por %p613, %p614
      %p616 = scmp.ne.s32.totalorder %s604, %s605
      %p617 = scmp.eq.s32.totalorder %s86, 1
      %p618 = por %p616, %p617
      %p620 = scmp.ne.s32.totalorder %s605, %s619
      %p621 = scmp.eq.s32.totalorder %s86, 0
      %p622 = por %p620, %p621
      %s624 = sadd.s32 %s623, 1
      %p627 = scmp.eq.s32.totalorder %s80, 1
      %p628 = scmp.ne.s32.totalorder %s623, %s625
      %p629 = scmp.eq.s32.totalorder %s80, 0
      %p630 = por %p628, %p629
      %p631 = scmp.ne.s32.totalorder %s623, %s625
      %p632 = scmp.eq.s32.totalorder %s85, 1
      %p633 = por %p631, %p632
      %p634 = scmp.ne.s32.totalorder %s625, %s626
      %p635 = scmp.eq.s32.totalorder %s85, 0
      %p636 = por %p634, %p635
      %p637 = scmp.ne.s32.totalorder %s625, %s626
      %p638 = scmp.eq.s32.totalorder %s86, 1
      %p639 = por %p637, %p638
      %p641 = scmp.ne.s32.totalorder %s626, %s640
      %p642 = scmp.eq.s32.totalorder %s86, 0
      %p643 = por %p641, %p642
      %s645 = sadd.s32 %s644, 1
      %p648 = scmp.eq.s32.totalorder %s80, 1
      %p649 = scmp.ne.s32.totalorder %s644, %s646
      %p650 = scmp.eq.s32.totalorder %s80, 0
      %p651 = por %p649, %p650
      %p652 = scmp.ne.s32.totalorder %s644, %s646
      %p653 = scmp.eq.s32.totalorder %s85, 1
      %p654 = por %p652, %p653
      %p655 = scmp.ne.s32.totalorder %s646, %s647
      %p656 = scmp.eq.s32.totalorder %s85, 0
      %p657 = por %p655, %p656
      %p658 = scmp.ne.s32.totalorder %s646, %s647
      %p659 = scmp.eq.s32.totalorder %s86, 1
      %p660 = por %p658, %p659
      %p662 = scmp.ne.s32.totalorder %s647, %s661
      %p663 = scmp.eq.s32.totalorder %s86, 0
      %p664 = por %p662, %p663
      %s666 = sadd.s32 %s665, 1
      %p669 = scmp.eq.s32.totalorder %s80, 1
      %p670 = scmp.ne.s32.totalorder %s665, %s667
      %p671 = scmp.eq.s32.totalorder %s80, 0
      %p672 = por %p670, %p671
      %p673 = scmp.ne.s32.totalorder %s665, %s667
      %p674 = scmp.eq.s32.totalorder %s85, 1
      %p675 = por %p673, %p674
      %p676 = scmp.ne.s32.totalorder %s667, %s668
      %p677 = scmp.eq.s32.totalorder %s85, 0
      %p678 = por %p676, %p677
      %p679 = scmp.ne.s32.totalorder %s667, %s668
      %p680 = scmp.eq.s32.totalorder %s86, 1
      %p681 = por %p679, %p680
      %p683 = scmp.ne.s32.totalorder %s668, %s682
      %p684 = scmp.eq.s32.totalorder %s86, 0
      %p685 = por %p683, %p684
      %s687 = sadd.s32 %s686, 1
      %p690 = scmp.eq.s32.totalorder %s80, 1
      %p691 = scmp.ne.s32.totalorder %s686, %s688
      %p692 = scmp.eq.s32.totalorder %s80, 0
      %p693 = por %p691, %p692
      %p694 = scmp.ne.s32.totalorder %s686, %s688
      %p695 = scmp.eq.s32.totalorder %s85, 1
      %p696 = por %p694, %p695
      %p697 = scmp.ne.s32.totalorder %s688, %s689
      %p698 = scmp.eq.s32.totalorder %s85, 0
      %p699 = por %p697, %p698
      %p700 = scmp.ne.s32.totalorder %s688, %s689
      %p701 = scmp.eq.s32.totalorder %s86, 1
      %p702 = por %p700, %p701
      %p704 = scmp.ne.s32.totalorder %s689, %s703
      %p705 = scmp.eq.s32.totalorder %s86, 0
      %p706 = por %p704, %p705
      %s708 = sadd.s32 %s707, 1
      %p711 = scmp.eq.s32.totalorder %s80, 1
      %p712 = scmp.ne.s32.totalorder %s707, %s709
      %p713 = scmp.eq.s32.totalorder %s80, 0
      %p714 = por %p712, %p713
      %p715 = scmp.ne.s32.totalorder %s707, %s709
      %p716 = scmp.eq.s32.totalorder %s85, 1
      %p717 = por %p715, %p716
      %p718 = scmp.ne.s32.totalorder %s709, %s710
      %p719 = scmp.eq.s32.totalorder %s85, 0
      %p720 = por %p718, %p719
      %p721 = scmp.ne.s32.totalorder %s709, %s710
      %p722 = scmp.eq.s32.totalorder %s86, 1
      %p723 = por %p721, %p722
      %p725 = scmp.ne.s32.totalorder %s710, %s724
      %p726 = scmp.eq.s32.totalorder %s86, 0
      %p727 = por %p725, %p726
      %s729 = sadd.s32 %s728, 1
      %p732 = scmp.eq.s32.totalorder %s80, 1
      %p733 = scmp.ne.s32.totalorder %s728, %s730
      %p734 = scmp.eq.s32.totalorder %s80, 0
      %p735 = por %p733, %p734
      %p736 = scmp.ne.s32.totalorder %s728, %s730
      %p737 = scmp.eq.s32.totalorder %s85, 1
      %p738 = por %p736, %p737
      %p739 = scmp.ne.s32.totalorder %s730, %s731
      %p740 = scmp.eq.s32.totalorder %s85, 0
      %p741 = por %p739, %p740
      %p742 = scmp.ne.s32.totalorder %s730, %s731
      %p743 = scmp.eq.s32.totalorder %s86, 1
      %p744 = por %p742, %p743
      %p746 = scmp.ne.s32.totalorder %s731, %s745
      %p747 = scmp.eq.s32.totalorder %s86, 0
      %p748 = por %p746, %p747
      %s750 = sadd.s32 %s749, 1
      %p753 = scmp.eq.s32.totalorder %s80, 1
      %p754 = scmp.ne.s32.totalorder %s749, %s751
      %p755 = scmp.eq.s32.totalorder %s80, 0
      %p756 = por %p754, %p755
      %p757 = scmp.ne.s32.totalorder %s749, %s751
      %p758 = scmp.eq.s32.totalorder %s85, 1
      %p759 = por %p757, %p758
      %p760 = scmp.ne.s32.totalorder %s751, %s752
      %p761 = scmp.eq.s32.totalorder %s85, 0
      %p762 = por %p760, %p761
      %p763 = scmp.ne.s32.totalorder %s751, %s752
      %p764 = scmp.eq.s32.totalorder %s86, 1
      %p765 = por %p763, %p764
      %p767 = scmp.ne.s32.totalorder %s752, %s766
      %p768 = scmp.eq.s32.totalorder %s86, 0
      %p769 = por %p767, %p768
      %s771 = sadd.s32 %s770, 1
      %p774 = scmp.eq.s32.totalorder %s80, 1
      %p775 = scmp.ne.s32.totalorder %s770, %s772
      %p776 = scmp.eq.s32.totalorder %s80, 0
      %p777 = por %p775, %p776
      %p778 = scmp.ne.s32.totalorder %s770, %s772
      %p779 = scmp.eq.s32.totalorder %s85, 1
      %p780 = por %p778, %p779
      %p781 = scmp.ne.s32.totalorder %s772, %s773
      %p782 = scmp.eq.s32.totalorder %s85, 0
      %p783 = por %p781, %p782
      %p784 = scmp.ne.s32.totalorder %s772, %s773
      %p785 = scmp.eq.s32.totalorder %s86, 1
      %p786 = por %p784, %p785
      %p788 = scmp.ne.s32.totalorder %s773, %s787
      %p789 = scmp.eq.s32.totalorder %s86, 0
      %p790 = por %p788, %p789
      %s792 = sadd.s32 %s791, 1
      %p795 = scmp.eq.s32.totalorder %s80, 1
      %p796 = scmp.ne.s32.totalorder %s791, %s793
      %p797 = scmp.eq.s32.totalorder %s80, 0
      %p798 = por %p796, %p797
      %p799 = scmp.ne.s32.totalorder %s791, %s793
      %p800 = scmp.eq.s32.totalorder %s85, 1
      %p801 = por %p799, %p800
      %p802 = scmp.ne.s32.totalorder %s793, %s794
      %p803 = scmp.eq.s32.totalorder %s85, 0
      %p804 = por %p802, %p803
      %p805 = scmp.ne.s32.totalorder %s793, %s794
      %p806 = scmp.eq.s32.totalorder %s86, 1
      %p807 = por %p805, %p806
      %p809 = scmp.ne.s32.totalorder %s794, %s808
      %p810 = scmp.eq.s32.totalorder %s86, 0
      %p811 = por %p809, %p810
      %s813 = sadd.s32 %s812, 1
      %p816 = scmp.eq.s32.totalorder %s80, 1
      %p817 = scmp.ne.s32.totalorder %s812, %s814
      %p818 = scmp.eq.s32.totalorder %s80, 0
      %p819 = por %p817, %p818
      %p820 = scmp.ne.s32.totalorder %s812, %s814
      %p821 = scmp.eq.s32.totalorder %s85, 1
      %p822 = por %p820, %p821
      %p823 = scmp.ne.s32.totalorder %s814, %s815
      %p824 = scmp.eq.s32.totalorder %s85, 0
      %p825 = por %p823, %p824
      %p826 = scmp.ne.s32.totalorder %s814, %s815
      %p827 = scmp.eq.s32.totalorder %s86, 1
      %p828 = por %p826, %p827
      %p830 = scmp.ne.s32.totalorder %s815, %s829
      %p831 = scmp.eq.s32.totalorder %s86, 0
      %p832 = por %p830, %p831
      %s833 = ssub.s32 %s80, %s87
      %p834 = scmp.eq.s32.totalorder %s833, 0
      %s836 = sadd.s32 %s835, 1
      %s837 = scalar_select %p834, %s835, %s836
      %p840 = pneg %p834
      %p841 = scmp.eq.s32.totalorder %s80, 1
      %p842 = por %p840, %p841
      %p843 = scmp.ne.s32.totalorder %s835, %s838
      %p844 = scmp.eq.s32.totalorder %s80, 0
      %p845 = por %p843, %p844
      %p846 = scmp.ne.s32.totalorder %s835, %s838
      %p847 = scmp.eq.s32.totalorder %s85, 1
      %p848 = por %p846, %p847
      %p849 = scmp.ne.s32.totalorder %s838, %s839
      %p850 = scmp.eq.s32.totalorder %s85, 0
      %p851 = por %p849, %p850
      %p852 = scmp.ne.s32.totalorder %s838, %s839
      %p853 = scmp.eq.s32.totalorder %s86, 1
      %p854 = por %p852, %p853
      %p856 = scmp.ne.s32.totalorder %s839, %s855
      %p857 = scmp.eq.s32.totalorder %s86, 0
      %p858 = por %p856, %p857
      %p859 = scmp.le.s32.totalorder 1, %s80
      %p860 = scmp.lt.s32.totalorder %s80, 3
      %p861 = pnand %p859, %p860
      %p862 = pneg %p861
      // Predicated region
      $region9: #{tpu_custom_call.1} parent=5 // pred_check
        _
      $region10: #{tpu_custom_call.1} parent=5 // pred_check_branch
        %864 = sbr.rel (%p861) target = $region12
      $region11: #{tpu_custom_call.1} parent=5 // pred_region
        %s865 = ssub.s32 %s80, 1
        // Predicated region
        $region13: #{tpu_custom_call.1} parent=11 // pred_check
          %p866 = pneg %p153
        $region14: #{tpu_custom_call.1} parent=11 // pred_check_branch
          %868 = sbr.rel (%p866) target = $region16
        $region15: #{tpu_custom_call.1} parent=11 // pred_region
          _
        $region16: #{tpu_custom_call.1} parent=11 // pred_fallthru
          _
        // Predicated region
        $region17: #{tpu_custom_call.1} parent=11 // pred_check
          %p869 = pneg %p174
        $region18: #{tpu_custom_call.1} parent=11 // pred_check_branch
          %871 = sbr.rel (%p869) target = $region20
        $region19: #{tpu_custom_call.1} parent=11 // pred_region
          _
        $region20: #{tpu_custom_call.1} parent=11 // pred_fallthru
          _
        // Predicated region
        $region21: #{tpu_custom_call.1} parent=11 // pred_check
          %p872 = pneg %p195
        $region22: #{tpu_custom_call.1} parent=11 // pred_check_branch
          %874 = sbr.rel (%p872) target = $region24
        $region23: #{tpu_custom_call.1} parent=11 // pred_region
          _
        $region24: #{tpu_custom_call.1} parent=11 // pred_fallthru
          _
        // Predicated region
        $region25: #{tpu_custom_call.1} parent=11 // pred_check
          %p875 = pneg %p216
        $region26: #{tpu_custom_call.1} parent=11 // pred_check_branch
          %877 = sbr.rel (%p875) target = $region28
        $region27: #{tpu_custom_call.1} parent=11 // pred_region
          _
        $region28: #{tpu_custom_call.1} parent=11 // pred_fallthru
          _
        // Predicated region
        $region29: #{tpu_custom_call.1} parent=11 // pred_check
          %p878 = pneg %p237
        $region30: #{tpu_custom_call.1} parent=11 // pred_check_branch
          %880 = sbr.rel (%p878) target = $region32
        $region31: #{tpu_custom_call.1} parent=11 // pred_region
          _
        $region32: #{tpu_custom_call.1} parent=11 // pred_fallthru
          _
        // Predicated region
        $region33: #{tpu_custom_call.1} parent=11 // pred_check
          %p881 = pneg %p258
        $region34: #{tpu_custom_call.1} parent=11 // pred_check_branch
          %883 = sbr.rel (%p881) target = $region36
        $region35: #{tpu_custom_call.1} parent=11 // pred_region
          _
        $region36: #{tpu_custom_call.1} parent=11 // pred_fallthru
          _
        // Predicated region
        $region37: #{tpu_custom_call.1} parent=11 // pred_check
          %p884 = pneg %p279
        $region38: #{tpu_custom_call.1} parent=11 // pred_check_branch
          %886 = sbr.rel (%p884) target = $region40
        $region39: #{tpu_custom_call.1} parent=11 // pred_region
          _
        $region40: #{tpu_custom_call.1} parent=11 // pred_fallthru
          _
        // Predicated region
        $region41: #{tpu_custom_call.1} parent=11 // pred_check
          %p887 = pneg %p300
        $region42: #{tpu_custom_call.1} parent=11 // pred_check_branch
          %889 = sbr.rel (%p887) target = $region44
        $region43: #{tpu_custom_call.1} parent=11 // pred_region
          _
        $region44: #{tpu_custom_call.1} parent=11 // pred_fallthru
          _
        // Predicated region
        $region45: #{tpu_custom_call.1} parent=11 // pred_check
          %p890 = pneg %p321
        $region46: #{tpu_custom_call.1} parent=11 // pred_check_branch
          %892 = sbr.rel (%p890) target = $region48
        $region47: #{tpu_custom_call.1} parent=11 // pred_region
          _
        $region48: #{tpu_custom_call.1} parent=11 // pred_fallthru
          _
        // Predicated region
        $region49: #{tpu_custom_call.1} parent=11 // pred_check
          %p893 = pneg %p342
        $region50: #{tpu_custom_call.1} parent=11 // pred_check_branch
          %895 = sbr.rel (%p893) target = $region52
        $region51: #{tpu_custom_call.1} parent=11 // pred_region
          _
        $region52: #{tpu_custom_call.1} parent=11 // pred_fallthru
          _
        // Predicated region
        $region53: #{tpu_custom_call.1} parent=11 // pred_check
          %p896 = pneg %p363
        $region54: #{tpu_custom_call.1} parent=11 // pred_check_branch
          %898 = sbr.rel (%p896) target = $region56
        $region55: #{tpu_custom_call.1} parent=11 // pred_region
          _
        $region56: #{tpu_custom_call.1} parent=11 // pred_fallthru
          _
        // Predicated region
        $region57: #{tpu_custom_call.1} parent=11 // pred_check
          %p899 = pneg %p384
        $region58: #{tpu_custom_call.1} parent=11 // pred_check_branch
          %901 = sbr.rel (%p899) target = $region60
        $region59: #{tpu_custom_call.1} parent=11 // pred_region
          _
        $region60: #{tpu_custom_call.1} parent=11 // pred_fallthru
          _
        // Predicated region
        $region61: #{tpu_custom_call.1} parent=11 // pred_check
          %p902 = pneg %p405
        $region62: #{tpu_custom_call.1} parent=11 // pred_check_branch
          %904 = sbr.rel (%p902) target = $region64
        $region63: #{tpu_custom_call.1} parent=11 // pred_region
          _
        $region64: #{tpu_custom_call.1} parent=11 // pred_fallthru
          _
        // Predicated region
        $region65: #{tpu_custom_call.1} parent=11 // pred_check
          %p905 = pneg %p426
        $region66: #{tpu_custom_call.1} parent=11 // pred_check_branch
          %907 = sbr.rel (%p905) target = $region68
        $region67: #{tpu_custom_call.1} parent=11 // pred_region
          _
        $region68: #{tpu_custom_call.1} parent=11 // pred_fallthru
          _
        // Predicated region
        $region69: #{tpu_custom_call.1} parent=11 // pred_check
          %p908 = pneg %p447
        $region70: #{tpu_custom_call.1} parent=11 // pred_check_branch
          %910 = sbr.rel (%p908) target = $region72
        $region71: #{tpu_custom_call.1} parent=11 // pred_region
          _
        $region72: #{tpu_custom_call.1} parent=11 // pred_fallthru
          _
        // Predicated region
        $region73: #{tpu_custom_call.1} parent=11 // pred_check
          %p911 = pneg %p468
        $region74: #{tpu_custom_call.1} parent=11 // pred_check_branch
          %913 = sbr.rel (%p911) target = $region76
        $region75: #{tpu_custom_call.1} parent=11 // pred_region
          _
        $region76: #{tpu_custom_call.1} parent=11 // pred_fallthru
          _
        // Predicated region
        $region77: #{tpu_custom_call.1} parent=11 // pred_check
          %p914 = pneg %p489
        $region78: #{tpu_custom_call.1} parent=11 // pred_check_branch
          %916 = sbr.rel (%p914) target = $region80
        $region79: #{tpu_custom_call.1} parent=11 // pred_region
          _
        $region80: #{tpu_custom_call.1} parent=11 // pred_fallthru
          _
        // Predicated region
        $region81: #{tpu_custom_call.1} parent=11 // pred_check
          %p917 = pneg %p510
        $region82: #{tpu_custom_call.1} parent=11 // pred_check_branch
          %919 = sbr.rel (%p917) target = $region84
        $region83: #{tpu_custom_call.1} parent=11 // pred_region
          _
        $region84: #{tpu_custom_call.1} parent=11 // pred_fallthru
          _
        // Predicated region
        $region85: #{tpu_custom_call.1} parent=11 // pred_check
          %p920 = pneg %p531
        $region86: #{tpu_custom_call.1} parent=11 // pred_check_branch
          %922 = sbr.rel (%p920) target = $region88
        $region87: #{tpu_custom_call.1} parent=11 // pred_region
          _
        $region88: #{tpu_custom_call.1} parent=11 // pred_fallthru
          _
        // Predicated region
        $region89: #{tpu_custom_call.1} parent=11 // pred_check
          %p923 = pneg %p552
        $region90: #{tpu_custom_call.1} parent=11 // pred_check_branch
          %925 = sbr.rel (%p923) target = $region92
        $region91: #{tpu_custom_call.1} parent=11 // pred_region
          _
        $region92: #{tpu_custom_call.1} parent=11 // pred_fallthru
          _
        // Predicated region
        $region93: #{tpu_custom_call.1} parent=11 // pred_check
          %p926 = pneg %p573
        $region94: #{tpu_custom_call.1} parent=11 // pred_check_branch
          %928 = sbr.rel (%p926) target = $region96
        $region95: #{tpu_custom_call.1} parent=11 // pred_region
          _
        $region96: #{tpu_custom_call.1} parent=11 // pred_fallthru
          _
        // Predicated region
        $region97: #{tpu_custom_call.1} parent=11 // pred_check
          %p929 = pneg %p594
        $region98: #{tpu_custom_call.1} parent=11 // pred_check_branch
          %931 = sbr.rel (%p929) target = $region100
        $region99: #{tpu_custom_call.1} parent=11 // pred_region
          _
        $region100: #{tpu_custom_call.1} parent=11 // pred_fallthru
          _
        // Predicated region
        $region101: #{tpu_custom_call.1} parent=11 // pred_check
          %p932 = pneg %p615
        $region102: #{tpu_custom_call.1} parent=11 // pred_check_branch
          %934 = sbr.rel (%p932) target = $region104
        $region103: #{tpu_custom_call.1} parent=11 // pred_region
          _
        $region104: #{tpu_custom_call.1} parent=11 // pred_fallthru
          _
        // Predicated region
        $region105: #{tpu_custom_call.1} parent=11 // pred_check
          %p935 = pneg %p636
        $region106: #{tpu_custom_call.1} parent=11 // pred_check_branch
          %937 = sbr.rel (%p935) target = $region108
        $region107: #{tpu_custom_call.1} parent=11 // pred_region
          _
        $region108: #{tpu_custom_call.1} parent=11 // pred_fallthru
          _
        // Predicated region
        $region109: #{tpu_custom_call.1} parent=11 // pred_check
          %p938 = pneg %p657
        $region110: #{tpu_custom_call.1} parent=11 // pred_check_branch
          %940 = sbr.rel (%p938) target = $region112
        $region111: #{tpu_custom_call.1} parent=11 // pred_region
          _
        $region112: #{tpu_custom_call.1} parent=11 // pred_fallthru
          _
        // Predicated region
        $region113: #{tpu_custom_call.1} parent=11 // pred_check
          %p941 = pneg %p678
        $region114: #{tpu_custom_call.1} parent=11 // pred_check_branch
          %943 = sbr.rel (%p941) target = $region116
        $region115: #{tpu_custom_call.1} parent=11 // pred_region
          _
        $region116: #{tpu_custom_call.1} parent=11 // pred_fallthru
          _
        // Predicated region
        $region117: #{tpu_custom_call.1} parent=11 // pred_check
          %p944 = pneg %p699
        $region118: #{tpu_custom_call.1} parent=11 // pred_check_branch
          %946 = sbr.rel (%p944) target = $region120
        $region119: #{tpu_custom_call.1} parent=11 // pred_region
          _
        $region120: #{tpu_custom_call.1} parent=11 // pred_fallthru
          _
        // Predicated region
        $region121: #{tpu_custom_call.1} parent=11 // pred_check
          %p947 = pneg %p720
        $region122: #{tpu_custom_call.1} parent=11 // pred_check_branch
          %949 = sbr.rel (%p947) target = $region124
        $region123: #{tpu_custom_call.1} parent=11 // pred_region
          _
        $region124: #{tpu_custom_call.1} parent=11 // pred_fallthru
          _
        // Predicated region
        $region125: #{tpu_custom_call.1} parent=11 // pred_check
          %p950 = pneg %p741
        $region126: #{tpu_custom_call.1} parent=11 // pred_check_branch
          %952 = sbr.rel (%p950) target = $region128
        $region127: #{tpu_custom_call.1} parent=11 // pred_region
          _
        $region128: #{tpu_custom_call.1} parent=11 // pred_fallthru
          _
        // Predicated region
        $region129: #{tpu_custom_call.1} parent=11 // pred_check
          %p953 = pneg %p762
        $region130: #{tpu_custom_call.1} parent=11 // pred_check_branch
          %955 = sbr.rel (%p953) target = $region132
        $region131: #{tpu_custom_call.1} parent=11 // pred_region
          _
        $region132: #{tpu_custom_call.1} parent=11 // pred_fallthru
          _
        // Predicated region
        $region133: #{tpu_custom_call.1} parent=11 // pred_check
          %p956 = pneg %p783
        $region134: #{tpu_custom_call.1} parent=11 // pred_check_branch
          %958 = sbr.rel (%p956) target = $region136
        $region135: #{tpu_custom_call.1} parent=11 // pred_region
          _
        $region136: #{tpu_custom_call.1} parent=11 // pred_fallthru
          _
        // Predicated region
        $region137: #{tpu_custom_call.1} parent=11 // pred_check
          %p959 = pneg %p804
        $region138: #{tpu_custom_call.1} parent=11 // pred_check_branch
          %961 = sbr.rel (%p959) target = $region140
        $region139: #{tpu_custom_call.1} parent=11 // pred_region
          _
        $region140: #{tpu_custom_call.1} parent=11 // pred_fallthru
          _
        // Predicated region
        $region141: #{tpu_custom_call.1} parent=11 // pred_check
          %p962 = pneg %p825
        $region142: #{tpu_custom_call.1} parent=11 // pred_check_branch
          %964 = sbr.rel (%p962) target = $region144
        $region143: #{tpu_custom_call.1} parent=11 // pred_region
          _
        $region144: #{tpu_custom_call.1} parent=11 // pred_fallthru
          _
      $region12: #{tpu_custom_call.1} parent=5 // pred_fallthru
        _
      %p965 = scmp.lt.s32.totalorder %s80, 2
      // Predicated region
      $region145: #{tpu_custom_call.1} parent=5 // pred_check
        %p966 = pneg %p965
      $region146: #{tpu_custom_call.1} parent=5 // pred_check_branch
        %968 = sbr.rel (%p966) target = $region148
      $region147: #{tpu_custom_call.1} parent=5 // pred_region
        // Predicated region
        $region149: #{tpu_custom_call.1} parent=147 // pred_check
          %p969 = pneg %p100
        $region150: #{tpu_custom_call.1} parent=147 // pred_check_branch
          %971 = sbr.rel (%p969) target = $region152
        $region151: #{tpu_custom_call.1} parent=147 // pred_region
          %p972 = scmp.lt.s32.totalorder %s80, 1
          %s973 = scalar_select %p972, %s80, 1
          %s974 = smul.addr %s973, 8
          %s975 = scalar_lea.vmem %s1, %s974
        $region152: #{tpu_custom_call.1} parent=147 // pred_fallthru
          _
        // Predicated region
        $region153: #{tpu_custom_call.1} parent=147 // pred_check
          %p976 = pneg %p126
        $region154: #{tpu_custom_call.1} parent=147 // pred_check_branch
          %978 = sbr.rel (%p976) target = $region156
        $region155: #{tpu_custom_call.1} parent=147 // pred_region
          %p979 = scmp.lt.s32.totalorder %s80, 1
          %s980 = scalar_select %p979, %s80, 1
          %s981 = smul.addr %s980, 2
          %s982 = smul.addr %s981, 8
          %s983 = scalar_lea.vmem %s3, %s982
        $region156: #{tpu_custom_call.1} parent=147 // pred_fallthru
          _
      $region148: #{tpu_custom_call.1} parent=5 // pred_fallthru
        _
      %p984 = scmp.le.s32.totalorder 1, %s80
      %p985 = scmp.lt.s32.totalorder %s80, 3
      %p986 = pnand %p984, %p985
      %p987 = pneg %p986
      // Predicated region
      $region157: #{tpu_custom_call.1} parent=5 // pred_check
        _
      $region158: #{tpu_custom_call.1} parent=5 // pred_check_branch
        %989 = sbr.rel (%p986) target = $region160
      $region159: #{tpu_custom_call.1} parent=5 // pred_region
        %s990 = ssub.s32 %s80, 1
        %p991 = scmp.lt.s32.totalorder %s85, 1
        %s992 = scalar_select %p991, %s85, 1
        %s993 = smul.addr %s992, 8
        %s994 = scalar_lea.vmem %s1, %s993
        %p995 = pneg %p106
        %p996 = pneg %p103
        %p997 = scmp.lt.s32.totalorder %s85, 1
        %s998 = scalar_select %p997, %s85, 1
        %s999 = smul.addr %s998, 2
        %s1000 = smul.addr %s999, 8
        %s1001 = scalar_lea.vmem %s3, %s1000
        %p1002 = pneg %p132
        %p1003 = pneg %p129
        %p1004 = pneg %p153
        %p1005 = pneg %p150
        %p1006 = pneg %p174
        %p1007 = pneg %p171
        %p1008 = pneg %p195
        %p1009 = pneg %p192
        %p1010 = pneg %p216
        %p1011 = pneg %p213
        %p1012 = pneg %p237
        %p1013 = pneg %p234
        %p1014 = pneg %p258
        %p1015 = pneg %p255
        %p1016 = pneg %p279
        %p1017 = pneg %p276
        %p1018 = pneg %p300
        %p1019 = pneg %p297
        %p1020 = pneg %p321
        %p1021 = pneg %p318
        %p1022 = pneg %p342
        %p1023 = pneg %p339
        %p1024 = pneg %p363
        %p1025 = pneg %p360
        %p1026 = pneg %p384
        %p1027 = pneg %p381
        %p1028 = pneg %p405
        %p1029 = pneg %p402
        %p1030 = pneg %p426
        %p1031 = pneg %p423
        %p1032 = pneg %p447
        %p1033 = pneg %p444
        %p1034 = pneg %p468
        %p1035 = pneg %p465
        %p1036 = pneg %p489
        %p1037 = pneg %p486
        %p1038 = pneg %p510
        %p1039 = pneg %p507
        %p1040 = pneg %p531
        %p1041 = pneg %p528
        %p1042 = pneg %p552
        %p1043 = pneg %p549
        %p1044 = pneg %p573
        %p1045 = pneg %p570
        %p1046 = pneg %p594
        %p1047 = pneg %p591
        %p1048 = pneg %p615
        %p1049 = pneg %p612
        %p1050 = pneg %p636
        %p1051 = pneg %p633
        %p1052 = pneg %p657
        %p1053 = pneg %p654
        %p1054 = pneg %p678
        %p1055 = pneg %p675
        %p1056 = pneg %p699
        %p1057 = pneg %p696
        %p1058 = pneg %p720
        %p1059 = pneg %p717
        %p1060 = pneg %p741
        %p1061 = pneg %p738
        %p1062 = pneg %p762
        %p1063 = pneg %p759
        %p1064 = pneg %p783
        %p1065 = pneg %p780
        %p1066 = pneg %p804
        %p1067 = pneg %p801
        %p1068 = pneg %p825
        %p1069 = pneg %p822
        %p1070 = pneg %p851
        %p1071 = pneg %p848
        %s1072 = sand.u32 %s838, 1
        %s1073 = scalar_lea.sflag [#allocation3], %s1072
        %s1074 = sand.u32 %s838, 1
        %s1075 = smul.addr %s1074, 8
        %s1076 = scalar_lea.vmem [#allocation2], %s1075
        %p1077 = scmp.lt.s32.totalorder %s85, 1
        %s1078 = scalar_select %p1077, %s85, 1
        %s1079 = smul.addr %s1078, 8
        %s1080 = scalar_lea.vmem %s1, %s1079
        %p1081 = scmp.lt.s32.totalorder %s85, 1
        %s1082 = scalar_select %p1081, %s85, 1
        %s1083 = smul.addr %s1082, 2
        %s1084 = smul.addr %s1083, 8
        %s1085 = scalar_lea.vmem %s3, %s1084
        %v1086 = vld [vmem:[%s1080] sm:$0xff]
        %v1087 = vld [vmem:[%s5] sm:$0xff]
        %vm1088 = vcmask 64512
        %v1090 = vsel %vm1088, %v1087, 0
        %1092 = vmatprep.subr.mxu0 0.0
        %1093 = vmatpush1.msra.mxu0 %v1086
        %1094 = vmatprep.subr.mxu0 0.0
        %1095 = vmatpush1.msra.mxu0 0.0
        %1096 = vmatprep.subr.mxu0 0.0
        %1097 = vmatpush1.msra.mxu0 0.0
        %1098 = vmatprep.subr.mxu0 0.0
        %1099 = vmatpush1.msra.mxu0 0.0
        %1100 = vmatprep.subr.mxu0 0.0
        %1101 = vmatpush1.msra.mxu0 0.0
        %1102 = vmatprep.subr.mxu0 0.0
        %1103 = vmatpush1.msra.mxu0 0.0
        %1104 = vmatprep.subr.mxu0 0.0
        %1105 = vmatpush1.msra.mxu0 0.0
        %1106 = vmatprep.subr.mxu0 0.0
        %1107 = vmatpush1.msra.mxu0 0.0
        %1108 = vmatprep.subr.mxu0 0.0
        %1109 = vmatpush1.msra.mxu0 0.0
        %1110 = vmatprep.subr.mxu0 0.0
        %1111 = vmatpush1.msra.mxu0 0.0
        %1112 = vmatprep.subr.mxu0 0.0
        %1113 = vmatpush1.msra.mxu0 0.0
        %1114 = vmatprep.subr.mxu0 0.0
        %1115 = vmatpush1.msra.mxu0 0.0
        %1116 = vmatprep.subr.mxu0 0.0
        %1117 = vmatpush1.msra.mxu0 0.0
        %1118 = vmatprep.subr.mxu0 0.0
        %1119 = vmatpush1.msra.mxu0 0.0
        %1120 = vmatprep.subr.mxu0 0.0
        %1121 = vmatpush1.msra.mxu0 0.0
        %1122 = vmatprep.subr.mxu0 0.0
        %1123 = vmatpush1.msra.mxu0 0.0
        %1124 = vmatprep.subr.mxu0 0.0
        %1125 = vmatpush1.msra.mxu0 0.0
        %1126 = vmatprep.subr.mxu0 0.0
        %1127 = vmatpush1.msra.mxu0 0.0
        %1128 = vmatprep.subr.mxu0 0.0
        %1129 = vmatpush1.msra.mxu0 0.0
        %1130 = vmatprep.subr.mxu0 0.0
        %1131 = vmatpush1.msra.mxu0 0.0
        %1132 = vmatprep.subr.mxu0 0.0
        %1133 = vmatpush1.msra.mxu0 0.0
        %1134 = vmatprep.subr.mxu0 0.0
        %1135 = vmatpush1.msra.mxu0 0.0
        %1136 = vmatprep.subr.mxu0 0.0
        %1137 = vmatpush1.msra.mxu0 0.0
        %1138 = vmatprep.subr.mxu0 0.0
        %1139 = vmatpush1.msra.mxu0 0.0
        %1140 = vmatprep.subr.mxu0 0.0
        %1141 = vmatpush1.msra.mxu0 0.0
        %1142 = vmatprep.subr.mxu0 0.0
        %1143 = vmatpush1.msra.mxu0 0.0
        %1144 = vmatprep.subr.mxu0 0.0
        %1145 = vmatpush1.msra.mxu0 0.0
        %1146 = vmatprep.subr.mxu0 0.0
        %1147 = vmatpush1.msra.mxu0 0.0
        %1148 = vmatprep.subr.mxu0 0.0
        %1149 = vmatpush1.msra.mxu0 0.0
        %1150 = vmatprep.subr.mxu0 0.0
        %1151 = vmatpush1.msra.mxu0 0.0
        %1152 = vmatprep.subr.mxu0 0.0
        %1153 = vmatpush1.msra.mxu0 0.0
        %1154 = vmatprep.subr.mxu0 0.0
        %1155 = vmatpush1.msra.mxu0 0.0
        %1156 = vmatprep.mubr.f32.mxu0 0.0
        %1157 = vmatmul.mubr.f32.gmra.mrb[0].mxu0 %v1090
        %v1158 = vpop.f32.mrb[0].mxu0
        %v1159 = vadd.f32 0.0, %v1158
        %v1160 = vpop.f32.mrb[0].mxu0
        %1161 = vdwg.mxu0
        %1163 = vrot.lane.b32.xlu0 %v1159, 16
        %v1164 = vpop.permute.xlu0 %1163
        %vm1166 = vcmask 130048
        %v1167 = vsel %vm1166, %v1086, %v1164
        %v1168 = vld [vmem:[%s9] sm:$0xff]
        %v1169 = vld [vmem:[%s9 + $0x8] sm:$0xff]
        %v1170 = vld [vmem:[%s9 + $0x10] sm:$0xff]
        %v1171 = vld [vmem:[%s9 + $0x18] sm:$0xff]
        %v1172 = vld [vmem:[%s11] sm:$0x1]
        %v1174 = vlaneseq
        %v1175 = vshrl.u32 %v1174, 7
        %v1176 = vsub.s32 0, %v1175
        %v1177 = vrot.slane %v1172, %v1176
        %vm1179 = vcmask 261120
        %v1181 = vsel %vm1179, %v1167, 0
        %1183 = vmatprep.subr.mxu0 0.0
        %1184 = vmatpush1.msra.mxu0 %v1168
        %1185 = vmatprep.subr.mxu0 0.0
        %1186 = vmatpush1.msra.mxu0 %v1169
        %1187 = vmatprep.subr.mxu0 0.0
        %1188 = vmatpush1.msra.mxu0 %v1170
        %1189 = vmatprep.subr.mxu0 0.0
        %1190 = vmatpush1.msra.mxu0 %v1171
        %1191 = vmatprep.subr.mxu0 0.0
        %1192 = vmatpush1.msra.mxu0 0.0
        %1193 = vmatprep.subr.mxu0 0.0
        %1194 = vmatpush1.msra.mxu0 0.0
        %1195 = vmatprep.subr.mxu0 0.0
        %1196 = vmatpush1.msra.mxu0 0.0
        %1197 = vmatprep.subr.mxu0 0.0
        %1198 = vmatpush1.msra.mxu0 0.0
        %1199 = vmatprep.subr.mxu0 0.0
        %1200 = vmatpush1.msra.mxu0 0.0
        %1201 = vmatprep.subr.mxu0 0.0
        %1202 = vmatpush1.msra.mxu0 0.0
        %1203 = vmatprep.subr.mxu0 0.0
        %1204 = vmatpush1.msra.mxu0 0.0
        %1205 = vmatprep.subr.mxu0 0.0
        %1206 = vmatpush1.msra.mxu0 0.0
        %1207 = vmatprep.subr.mxu0 0.0
        %1208 = vmatpush1.msra.mxu0 0.0
        %1209 = vmatprep.subr.mxu0 0.0
        %1210 = vmatpush1.msra.mxu0 0.0
        %1211 = vmatprep.subr.mxu0 0.0
        %1212 = vmatpush1.msra.mxu0 0.0
        %1213 = vmatprep.subr.mxu0 0.0
        %1214 = vmatpush1.msra.mxu0 0.0
        %1215 = vmatprep.subr.mxu0 0.0
        %1216 = vmatpush1.msra.mxu0 0.0
        %1217 = vmatprep.subr.mxu0 0.0
        %1218 = vmatpush1.msra.mxu0 0.0
        %1219 = vmatprep.subr.mxu0 0.0
        %1220 = vmatpush1.msra.mxu0 0.0
        %1221 = vmatprep.subr.mxu0 0.0
        %1222 = vmatpush1.msra.mxu0 0.0
        %1223 = vmatprep.subr.mxu0 0.0
        %1224 = vmatpush1.msra.mxu0 0.0
        %1225 = vmatprep.subr.mxu0 0.0
        %1226 = vmatpush1.msra.mxu0 0.0
        %1227 = vmatprep.subr.mxu0 0.0
        %1228 = vmatpush1.msra.mxu0 0.0
        %1229 = vmatprep.subr.mxu0 0.0
        %1230 = vmatpush1.msra.mxu0 0.0
        %1231 = vmatprep.subr.mxu0 0.0
        %1232 = vmatpush1.msra.mxu0 0.0
        %1233 = vmatprep.subr.mxu0 0.0
        %1234 = vmatpush1.msra.mxu0 0.0
        %1235 = vmatprep.subr.mxu0 0.0
        %1236 = vmatpush1.msra.mxu0 0.0
        %1237 = vmatprep.subr.mxu0 0.0
        %1238 = vmatpush1.msra.mxu0 0.0
        %1239 = vmatprep.subr.mxu0 0.0
        %1240 = vmatpush1.msra.mxu0 0.0
        %1241 = vmatprep.subr.mxu0 0.0
        %1242 = vmatpush1.msra.mxu0 0.0
        %1243 = vmatprep.subr.mxu0 0.0
        %1244 = vmatpush1.msra.mxu0 0.0
        %1245 = vmatprep.subr.mxu0 0.0
        %1246 = vmatpush1.msra.mxu0 0.0
        %1247 = vmatprep.mubr.f32.mxu0 0.0
        %1248 = vmatmul.mubr.f32.gmra.mrb[0].mxu0 %v1181
        %v1249 = vpop.f32.mrb[0].mxu0
        %v1250 = vadd.f32 %v1177, %v1249
        %v1251 = vpop.f32.mrb[0].mxu0
        %1252 = vdwg.mxu0
        %s1253 = scalar_lea.vmem %s5, 8
        %v1254 = vld [vmem:[%s1253] sm:$0xff]
        %v1256 = vsel %vm1088, %v1254, 0
        %1258 = vmatprep.subr.mxu0 0.0
        %1259 = vmatpush1.msra.mxu0 %v1250
        %1260 = vmatprep.subr.mxu0 0.0
        %1261 = vmatpush1.msra.mxu0 0.0
        %1262 = vmatprep.subr.mxu0 0.0
        %1263 = vmatpush1.msra.mxu0 0.0
        %1264 = vmatprep.subr.mxu0 0.0
        %1265 = vmatpush1.msra.mxu0 0.0
        %1266 = vmatprep.subr.mxu0 0.0
        %1267 = vmatpush1.msra.mxu0 0.0
        %1268 = vmatprep.subr.mxu0 0.0
        %1269 = vmatpush1.msra.mxu0 0.0
        %1270 = vmatprep.subr.mxu0 0.0
        %1271 = vmatpush1.msra.mxu0 0.0
        %1272 = vmatprep.subr.mxu0 0.0
        %1273 = vmatpush1.msra.mxu0 0.0
        %1274 = vmatprep.subr.mxu0 0.0
        %1275 = vmatpush1.msra.mxu0 0.0
        %1276 = vmatprep.subr.mxu0 0.0
        %1277 = vmatpush1.msra.mxu0 0.0
        %1278 = vmatprep.subr.mxu0 0.0
        %1279 = vmatpush1.msra.mxu0 0.0
        %1280 = vmatprep.subr.mxu0 0.0
        %1281 = vmatpush1.msra.mxu0 0.0
        %1282 = vmatprep.subr.mxu0 0.0
        %1283 = vmatpush1.msra.mxu0 0.0
        %1284 = vmatprep.subr.mxu0 0.0
        %1285 = vmatpush1.msra.mxu0 0.0
        %1286 = vmatprep.subr.mxu0 0.0
        %1287 = vmatpush1.msra.mxu0 0.0
        %1288 = vmatprep.subr.mxu0 0.0
        %1289 = vmatpush1.msra.mxu0 0.0
        %1290 = vmatprep.subr.mxu0 0.0
        %1291 = vmatpush1.msra.mxu0 0.0
        %1292 = vmatprep.subr.mxu0 0.0
        %1293 = vmatpush1.msra.mxu0 0.0
        %1294 = vmatprep.subr.mxu0 0.0
        %1295 = vmatpush1.msra.mxu0 0.0
        %1296 = vmatprep.subr.mxu0 0.0
        %1297 = vmatpush1.msra.mxu0 0.0
        %1298 = vmatprep.subr.mxu0 0.0
        %1299 = vmatpush1.msra.mxu0 0.0
        %1300 = vmatprep.subr.mxu0 0.0
        %1301 = vmatpush1.msra.mxu0 0.0
        %1302 = vmatprep.subr.mxu0 0.0
        %1303 = vmatpush1.msra.mxu0 0.0
        %1304 = vmatprep.subr.mxu0 0.0
        %1305 = vmatpush1.msra.mxu0 0.0
        %1306 = vmatprep.subr.mxu0 0.0
        %1307 = vmatpush1.msra.mxu0 0.0
        %1308 = vmatprep.subr.mxu0 0.0
        %1309 = vmatpush1.msra.mxu0 0.0
        %1310 = vmatprep.subr.mxu0 0.0
        %1311 = vmatpush1.msra.mxu0 0.0
        %1312 = vmatprep.subr.mxu0 0.0
        %1313 = vmatpush1.msra.mxu0 0.0
        %1314 = vmatprep.subr.mxu0 0.0
        %1315 = vmatpush1.msra.mxu0 0.0
        %1316 = vmatprep.subr.mxu0 0.0
        %1317 = vmatpush1.msra.mxu0 0.0
        %1318 = vmatprep.subr.mxu0 0.0
        %1319 = vmatpush1.msra.mxu0 0.0
        %1320 = vmatprep.subr.mxu0 0.0
        %1321 = vmatpush1.msra.mxu0 0.0
        %1322 = vmatprep.mubr.f32.mxu0 0.0
        %1323 = vmatmul.mubr.f32.gmra.mrb[0].mxu0 %v1256
        %v1324 = vpop.f32.mrb[0].mxu0
        %v1325 = vadd.f32 0.0, %v1324
        %v1326 = vpop.f32.mrb[0].mxu0
        %1327 = vdwg.mxu0
        %1329 = vrot.lane.b32.xlu0 %v1325, 32
        %v1330 = vpop.permute.xlu0 %1329
        %v1332 = vsel %vm1179, %v1250, %v1330
        %v1333 = vld [vmem:[%s13] sm:$0xff]
        %v1334 = vld [vmem:[%s13 + $0x8] sm:$0xff]
        %v1335 = vld [vmem:[%s13 + $0x10] sm:$0xff]
        %v1336 = vld [vmem:[%s13 + $0x18] sm:$0xff]
        %v1337 = vld [vmem:[%s13 + $0x20] sm:$0xff]
        %v1338 = vld [vmem:[%s13 + $0x28] sm:$0xff]
        %v1339 = vld [vmem:[%s13 + $0x30] sm:$0xff]
        %v1340 = vld [vmem:[%s13 + $0x38] sm:$0xff]
        %v1341 = vld [vmem:[%s15] sm:$0x1]
        %v1343 = vlaneseq
        %v1344 = vshrl.u32 %v1343, 7
        %v1345 = vsub.s32 0, %v1344
        %v1346 = vrot.slane %v1341, %v1345
        %vm1348 = vcmask 523264
        %v1350 = vsel %vm1348, %v1332, 0
        %1352 = vmatprep.subr.mxu0 0.0
        %1353 = vmatpush1.msra.mxu0 %v1333
        %1354 = vmatprep.subr.mxu0 0.0
        %1355 = vmatpush1.msra.mxu0 %v1334
        %1356 = vmatprep.subr.mxu0 0.0
        %1357 = vmatpush1.msra.mxu0 %v1335
        %1358 = vmatprep.subr.mxu0 0.0
        %1359 = vmatpush1.msra.mxu0 %v1336
        %1360 = vmatprep.subr.mxu0 0.0
        %1361 = vmatpush1.msra.mxu0 %v1337
        %1362 = vmatprep.subr.mxu0 0.0
        %1363 = vmatpush1.msra.mxu0 %v1338
        %1364 = vmatprep.subr.mxu0 0.0
        %1365 = vmatpush1.msra.mxu0 %v1339
        %1366 = vmatprep.subr.mxu0 0.0
        %1367 = vmatpush1.msra.mxu0 %v1340
        %1368 = vmatprep.subr.mxu0 0.0
        %1369 = vmatpush1.msra.mxu0 0.0
        %1370 = vmatprep.subr.mxu0 0.0
        %1371 = vmatpush1.msra.mxu0 0.0
        %1372 = vmatprep.subr.mxu0 0.0
        %1373 = vmatpush1.msra.mxu0 0.0
        %1374 = vmatprep.subr.mxu0 0.0
        %1375 = vmatpush1.msra.mxu0 0.0
        %1376 = vmatprep.subr.mxu0 0.0
        %1377 = vmatpush1.msra.mxu0 0.0
        %1378 = vmatprep.subr.mxu0 0.0
        %1379 = vmatpush1.msra.mxu0 0.0
        %1380 = vmatprep.subr.mxu0 0.0
        %1381 = vmatpush1.msra.mxu0 0.0
        %1382 = vmatprep.subr.mxu0 0.0
        %1383 = vmatpush1.msra.mxu0 0.0
        %1384 = vmatprep.subr.mxu0 0.0
        %1385 = vmatpush1.msra.mxu0 0.0
        %1386 = vmatprep.subr.mxu0 0.0
        %1387 = vmatpush1.msra.mxu0 0.0
        %1388 = vmatprep.subr.mxu0 0.0
        %1389 = vmatpush1.msra.mxu0 0.0
        %1390 = vmatprep.subr.mxu0 0.0
        %1391 = vmatpush1.msra.mxu0 0.0
        %1392 = vmatprep.subr.mxu0 0.0
        %1393 = vmatpush1.msra.mxu0 0.0
        %1394 = vmatprep.subr.mxu0 0.0
        %1395 = vmatpush1.msra.mxu0 0.0
        %1396 = vmatprep.subr.mxu0 0.0
        %1397 = vmatpush1.msra.mxu0 0.0
        %1398 = vmatprep.subr.mxu0 0.0
        %1399 = vmatpush1.msra.mxu0 0.0
        %1400 = vmatprep.subr.mxu0 0.0
        %1401 = vmatpush1.msra.mxu0 0.0
        %1402 = vmatprep.subr.mxu0 0.0
        %1403 = vmatpush1.msra.mxu0 0.0
        %1404 = vmatprep.subr.mxu0 0.0
        %1405 = vmatpush1.msra.mxu0 0.0
        %1406 = vmatprep.subr.mxu0 0.0
        %1407 = vmatpush1.msra.mxu0 0.0
        %1408 = vmatprep.subr.mxu0 0.0
        %1409 = vmatpush1.msra.mxu0 0.0
        %1410 = vmatprep.subr.mxu0 0.0
        %1411 = vmatpush1.msra.mxu0 0.0
        %1412 = vmatprep.subr.mxu0 0.0
        %1413 = vmatpush1.msra.mxu0 0.0
        %1414 = vmatprep.subr.mxu0 0.0
        %1415 = vmatpush1.msra.mxu0 0.0
        %1416 = vmatprep.mubr.f32.mxu0 0.0
        %1417 = vmatmul.mubr.f32.gmra.mrb[0].mxu0 %v1350
        %v1418 = vpop.f32.mrb[0].mxu0
        %v1419 = vadd.f32 %v1346, %v1418
        %v1420 = vpop.f32.mrb[0].mxu0
        %1421 = vdwg.mxu0
        %s1422 = scalar_lea.vmem %s5, 16
        %v1423 = vld [vmem:[%s1422] sm:$0xff]
        %v1425 = vsel %vm1088, %v1423, 0
        %1427 = vmatprep.subr.mxu0 0.0
        %1428 = vmatpush1.msra.mxu0 %v1419
        %1429 = vmatprep.subr.mxu0 0.0
        %1430 = vmatpush1.msra.mxu0 0.0
        %1431 = vmatprep.subr.mxu0 0.0
        %1432 = vmatpush1.msra.mxu0 0.0
        %1433 = vmatprep.subr.mxu0 0.0
        %1434 = vmatpush1.msra.mxu0 0.0
        %1435 = vmatprep.subr.mxu0 0.0
        %1436 = vmatpush1.msra.mxu0 0.0
        %1437 = vmatprep.subr.mxu0 0.0
        %1438 = vmatpush1.msra.mxu0 0.0
        %1439 = vmatprep.subr.mxu0 0.0
        %1440 = vmatpush1.msra.mxu0 0.0
        %1441 = vmatprep.subr.mxu0 0.0
        %1442 = vmatpush1.msra.mxu0 0.0
        %1443 = vmatprep.subr.mxu0 0.0
        %1444 = vmatpush1.msra.mxu0 0.0
        %1445 = vmatprep.subr.mxu0 0.0
        %1446 = vmatpush1.msra.mxu0 0.0
        %1447 = vmatprep.subr.mxu0 0.0
        %1448 = vmatpush1.msra.mxu0 0.0
        %1449 = vmatprep.subr.mxu0 0.0
        %1450 = vmatpush1.msra.mxu0 0.0
        %1451 = vmatprep.subr.mxu0 0.0
        %1452 = vmatpush1.msra.mxu0 0.0
        %1453 = vmatprep.subr.mxu0 0.0
        %1454 = vmatpush1.msra.mxu0 0.0
        %1455 = vmatprep.subr.mxu0 0.0
        %1456 = vmatpush1.msra.mxu0 0.0
        %1457 = vmatprep.subr.mxu0 0.0
        %1458 = vmatpush1.msra.mxu0 0.0
        %1459 = vmatprep.subr.mxu0 0.0
        %1460 = vmatpush1.msra.mxu0 0.0
        %1461 = vmatprep.subr.mxu0 0.0
        %1462 = vmatpush1.msra.mxu0 0.0
        %1463 = vmatprep.subr.mxu0 0.0
        %1464 = vmatpush1.msra.mxu0 0.0
        %1465 = vmatprep.subr.mxu0 0.0
        %1466 = vmatpush1.msra.mxu0 0.0
        %1467 = vmatprep.subr.mxu0 0.0
        %1468 = vmatpush1.msra.mxu0 0.0
        %1469 = vmatprep.subr.mxu0 0.0
        %1470 = vmatpush1.msra.mxu0 0.0
        %1471 = vmatprep.subr.mxu0 0.0
        %1472 = vmatpush1.msra.mxu0 0.0
        %1473 = vmatprep.subr.mxu0 0.0
        %1474 = vmatpush1.msra.mxu0 0.0
        %1475 = vmatprep.subr.mxu0 0.0
        %1476 = vmatpush1.msra.mxu0 0.0
        %1477 = vmatprep.subr.mxu0 0.0
        %1478 = vmatpush1.msra.mxu0 0.0
        %1479 = vmatprep.subr.mxu0 0.0
        %1480 = vmatpush1.msra.mxu0 0.0
        %1481 = vmatprep.subr.mxu0 0.0
        %1482 = vmatpush1.msra.mxu0 0.0
        %1483 = vmatprep.subr.mxu0 0.0
        %1484 = vmatpush1.msra.mxu0 0.0
        %1485 = vmatprep.subr.mxu0 0.0
        %1486 = vmatpush1.msra.mxu0 0.0
        %1487 = vmatprep.subr.mxu0 0.0
        %1488 = vmatpush1.msra.mxu0 0.0
        %1489 = vmatprep.subr.mxu0 0.0
        %1490 = vmatpush1.msra.mxu0 0.0
        %1491 = vmatprep.mubr.f32.mxu0 0.0
        %1492 = vmatmul.mubr.f32.gmra.mrb[0].mxu0 %v1425
        %v1493 = vpop.f32.mrb[0].mxu0
        %v1494 = vadd.f32 0.0, %v1493
        %v1495 = vpop.f32.mrb[0].mxu0
        %1496 = vdwg.mxu0
        %1498 = vrot.lane.b32.xlu0 %v1494, 32
        %v1499 = vpop.permute.xlu0 %1498
        %v1501 = vsel %vm1179, %v1419, %v1499
        %s1502 = scalar_lea.vmem %s13, 64
        %v1503 = vld [vmem:[%s1502] sm:$0xff]
        %v1504 = vld [vmem:[%s1502 + $0x8] sm:$0xff]
        %v1505 = vld [vmem:[%s1502 + $0x10] sm:$0xff]
        %v1506 = vld [vmem:[%s1502 + $0x18] sm:$0xff]
        %v1507 = vld [vmem:[%s1502 + $0x20] sm:$0xff]
        %v1508 = vld [vmem:[%s1502 + $0x28] sm:$0xff]
        %v1509 = vld [vmem:[%s1502 + $0x30] sm:$0xff]
        %v1510 = vld [vmem:[%s1502 + $0x38] sm:$0xff]
        %s1511 = scalar_lea.vmem %s15, 1
        %v1512 = vld [vmem:[%s1511] sm:$0x1]
        %v1514 = vlaneseq
        %v1515 = vshrl.u32 %v1514, 7
        %v1516 = vsub.s32 0, %v1515
        %v1517 = vrot.slane %v1512, %v1516
        %v1520 = vsel %vm1348, %v1501, 0
        %1522 = vmatprep.subr.mxu0 0.0
        %1523 = vmatpush1.msra.mxu0 %v1503
        %1524 = vmatprep.subr.mxu0 0.0
        %1525 = vmatpush1.msra.mxu0 %v1504
        %1526 = vmatprep.subr.mxu0 0.0
        %1527 = vmatpush1.msra.mxu0 %v1505
        %1528 = vmatprep.subr.mxu0 0.0
        %1529 = vmatpush1.msra.mxu0 %v1506
        %1530 = vmatprep.subr.mxu0 0.0
        %1531 = vmatpush1.msra.mxu0 %v1507
        %1532 = vmatprep.subr.mxu0 0.0
        %1533 = vmatpush1.msra.mxu0 %v1508
        %1534 = vmatprep.subr.mxu0 0.0
        %1535 = vmatpush1.msra.mxu0 %v1509
        %1536 = vmatprep.subr.mxu0 0.0
        %1537 = vmatpush1.msra.mxu0 %v1510
        %1538 = vmatprep.subr.mxu0 0.0
        %1539 = vmatpush1.msra.mxu0 0.0
        %1540 = vmatprep.subr.mxu0 0.0
        %1541 = vmatpush1.msra.mxu0 0.0
        %1542 = vmatprep.subr.mxu0 0.0
        %1543 = vmatpush1.msra.mxu0 0.0
        %1544 = vmatprep.subr.mxu0 0.0
        %1545 = vmatpush1.msra.mxu0 0.0
        %1546 = vmatprep.subr.mxu0 0.0
        %1547 = vmatpush1.msra.mxu0 0.0
        %1548 = vmatprep.subr.mxu0 0.0
        %1549 = vmatpush1.msra.mxu0 0.0
        %1550 = vmatprep.subr.mxu0 0.0
        %1551 = vmatpush1.msra.mxu0 0.0
        %1552 = vmatprep.subr.mxu0 0.0
        %1553 = vmatpush1.msra.mxu0 0.0
        %1554 = vmatprep.subr.mxu0 0.0
        %1555 = vmatpush1.msra.mxu0 0.0
        %1556 = vmatprep.subr.mxu0 0.0
        %1557 = vmatpush1.msra.mxu0 0.0
        %1558 = vmatprep.subr.mxu0 0.0
        %1559 = vmatpush1.msra.mxu0 0.0
        %1560 = vmatprep.subr.mxu0 0.0
        %1561 = vmatpush1.msra.mxu0 0.0
        %1562 = vmatprep.subr.mxu0 0.0
        %1563 = vmatpush1.msra.mxu0 0.0
        %1564 = vmatprep.subr.mxu0 0.0
        %1565 = vmatpush1.msra.mxu0 0.0
        %1566 = vmatprep.subr.mxu0 0.0
        %1567 = vmatpush1.msra.mxu0 0.0
        %1568 = vmatprep.subr.mxu0 0.0
        %1569 = vmatpush1.msra.mxu0 0.0
        %1570 = vmatprep.subr.mxu0 0.0
        %1571 = vmatpush1.msra.mxu0 0.0
        %1572 = vmatprep.subr.mxu0 0.0
        %1573 = vmatpush1.msra.mxu0 0.0
        %1574 = vmatprep.subr.mxu0 0.0
        %1575 = vmatpush1.msra.mxu0 0.0
        %1576 = vmatprep.subr.mxu0 0.0
        %1577 = vmatpush1.msra.mxu0 0.0
        %1578 = vmatprep.subr.mxu0 0.0
        %1579 = vmatpush1.msra.mxu0 0.0
        %1580 = vmatprep.subr.mxu0 0.0
        %1581 = vmatpush1.msra.mxu0 0.0
        %1582 = vmatprep.subr.mxu0 0.0
        %1583 = vmatpush1.msra.mxu0 0.0
        %1584 = vmatprep.subr.mxu0 0.0
        %1585 = vmatpush1.msra.mxu0 0.0
        %1586 = vmatprep.mubr.f32.mxu0 0.0
        %1587 = vmatmul.mubr.f32.gmra.mrb[0].mxu0 %v1520
        %v1588 = vpop.f32.mrb[0].mxu0
        %v1589 = vadd.f32 %v1517, %v1588
        %v1590 = vpop.f32.mrb[0].mxu0
        %1591 = vdwg.mxu0
        %s1592 = scalar_lea.vmem %s5, 24
        %v1593 = vld [vmem:[%s1592] sm:$0xff]
        %v1595 = vsel %vm1088, %v1593, 0
        %1597 = vmatprep.subr.mxu0 0.0
        %1598 = vmatpush1.msra.mxu0 %v1589
        %1599 = vmatprep.subr.mxu0 0.0
        %1600 = vmatpush1.msra.mxu0 0.0
        %1601 = vmatprep.subr.mxu0 0.0
        %1602 = vmatpush1.msra.mxu0 0.0
        %1603 = vmatprep.subr.mxu0 0.0
        %1604 = vmatpush1.msra.mxu0 0.0
        %1605 = vmatprep.subr.mxu0 0.0
        %1606 = vmatpush1.msra.mxu0 0.0
        %1607 = vmatprep.subr.mxu0 0.0
        %1608 = vmatpush1.msra.mxu0 0.0
        %1609 = vmatprep.subr.mxu0 0.0
        %1610 = vmatpush1.msra.mxu0 0.0
        %1611 = vmatprep.subr.mxu0 0.0
        %1612 = vmatpush1.msra.mxu0 0.0
        %1613 = vmatprep.subr.mxu0 0.0
        %1614 = vmatpush1.msra.mxu0 0.0
        %1615 = vmatprep.subr.mxu0 0.0
        %1616 = vmatpush1.msra.mxu0 0.0
        %1617 = vmatprep.subr.mxu0 0.0
        %1618 = vmatpush1.msra.mxu0 0.0
        %1619 = vmatprep.subr.mxu0 0.0
        %1620 = vmatpush1.msra.mxu0 0.0
        %1621 = vmatprep.subr.mxu0 0.0
        %1622 = vmatpush1.msra.mxu0 0.0
        %1623 = vmatprep.subr.mxu0 0.0
        %1624 = vmatpush1.msra.mxu0 0.0
        %1625 = vmatprep.subr.mxu0 0.0
        %1626 = vmatpush1.msra.mxu0 0.0
        %1627 = vmatprep.subr.mxu0 0.0
        %1628 = vmatpush1.msra.mxu0 0.0
        %1629 = vmatprep.subr.mxu0 0.0
        %1630 = vmatpush1.msra.mxu0 0.0
        %1631 = vmatprep.subr.mxu0 0.0
        %1632 = vmatpush1.msra.mxu0 0.0
        %1633 = vmatprep.subr.mxu0 0.0
        %1634 = vmatpush1.msra.mxu0 0.0
        %1635 = vmatprep.subr.mxu0 0.0
        %1636 = vmatpush1.msra.mxu0 0.0
        %1637 = vmatprep.subr.mxu0 0.0
        %1638 = vmatpush1.msra.mxu0 0.0
        %1639 = vmatprep.subr.mxu0 0.0
        %1640 = vmatpush1.msra.mxu0 0.0
        %1641 = vmatprep.subr.mxu0 0.0
        %1642 = vmatpush1.msra.mxu0 0.0
        %1643 = vmatprep.subr.mxu0 0.0
        %1644 = vmatpush1.msra.mxu0 0.0
        %1645 = vmatprep.subr.mxu0 0.0
        %1646 = vmatpush1.msra.mxu0 0.0
        %1647 = vmatprep.subr.mxu0 0.0
        %1648 = vmatpush1.msra.mxu0 0.0
        %1649 = vmatprep.subr.mxu0 0.0
        %1650 = vmatpush1.msra.mxu0 0.0
        %1651 = vmatprep.subr.mxu0 0.0
        %1652 = vmatpush1.msra.mxu0 0.0
        %1653 = vmatprep.subr.mxu0 0.0
        %1654 = vmatpush1.msra.mxu0 0.0
        %1655 = vmatprep.subr.mxu0 0.0
        %1656 = vmatpush1.msra.mxu0 0.0
        %1657 = vmatprep.subr.mxu0 0.0
        %1658 = vmatpush1.msra.mxu0 0.0
        %1659 = vmatprep.subr.mxu0 0.0
        %1660 = vmatpush1.msra.mxu0 0.0
        %1661 = vmatprep.mubr.f32.mxu0 0.0
        %1662 = vmatmul.mubr.f32.gmra.mrb[0].mxu0 %v1595
        %v1663 = vpop.f32.mrb[0].mxu0
        %v1664 = vadd.f32 0.0, %v1663
        %v1665 = vpop.f32.mrb[0].mxu0
        %1666 = vdwg.mxu0
        %1668 = vrot.lane.b32.xlu0 %v1664, 32
        %v1669 = vpop.permute.xlu0 %1668
        %v1671 = vsel %vm1179, %v1589, %v1669
        %s1672 = scalar_lea.vmem %s13, 128
        %v1673 = vld [vmem:[%s1672] sm:$0xff]
        %v1674 = vld [vmem:[%s1672 + $0x8] sm:$0xff]
        %v1675 = vld [vmem:[%s1672 + $0x10] sm:$0xff]
        %v1676 = vld [vmem:[%s1672 + $0x18] sm:$0xff]
        %v1677 = vld [vmem:[%s1672 + $0x20] sm:$0xff]
        %v1678 = vld [vmem:[%s1672 + $0x28] sm:$0xff]
        %v1679 = vld [vmem:[%s1672 + $0x30] sm:$0xff]
        %v1680 = vld [vmem:[%s1672 + $0x38] sm:$0xff]
        %s1681 = scalar_lea.vmem %s15, 2
        %v1682 = vld [vmem:[%s1681] sm:$0x1]
        %v1684 = vlaneseq
        %v1685 = vshrl.u32 %v1684, 7
        %v1686 = vsub.s32 0, %v1685
        %v1687 = vrot.slane %v1682, %v1686
        %v1690 = vsel %vm1348, %v1671, 0
        %1692 = vmatprep.subr.mxu0 0.0
        %1693 = vmatpush1.msra.mxu0 %v1673
        %1694 = vmatprep.subr.mxu0 0.0
        %1695 = vmatpush1.msra.mxu0 %v1674
        %1696 = vmatprep.subr.mxu0 0.0
        %1697 = vmatpush1.msra.mxu0 %v1675
        %1698 = vmatprep.subr.mxu0 0.0
        %1699 = vmatpush1.msra.mxu0 %v1676
        %1700 = vmatprep.subr.mxu0 0.0
        %1701 = vmatpush1.msra.mxu0 %v1677
        %1702 = vmatprep.subr.mxu0 0.0
        %1703 = vmatpush1.msra.mxu0 %v1678
        %1704 = vmatprep.subr.mxu0 0.0
        %1705 = vmatpush1.msra.mxu0 %v1679
        %1706 = vmatprep.subr.mxu0 0.0
        %1707 = vmatpush1.msra.mxu0 %v1680
        %1708 = vmatprep.subr.mxu0 0.0
        %1709 = vmatpush1.msra.mxu0 0.0
        %1710 = vmatprep.subr.mxu0 0.0
        %1711 = vmatpush1.msra.mxu0 0.0
        %1712 = vmatprep.subr.mxu0 0.0
        %1713 = vmatpush1.msra.mxu0 0.0
        %1714 = vmatprep.subr.mxu0 0.0
        %1715 = vmatpush1.msra.mxu0 0.0
        %1716 = vmatprep.subr.mxu0 0.0
        %1717 = vmatpush1.msra.mxu0 0.0
        %1718 = vmatprep.subr.mxu0 0.0
        %1719 = vmatpush1.msra.mxu0 0.0
        %1720 = vmatprep.subr.mxu0 0.0
        %1721 = vmatpush1.msra.mxu0 0.0
        %1722 = vmatprep.subr.mxu0 0.0
        %1723 = vmatpush1.msra.mxu0 0.0
        %1724 = vmatprep.subr.mxu0 0.0
        %1725 = vmatpush1.msra.mxu0 0.0
        %1726 = vmatprep.subr.mxu0 0.0
        %1727 = vmatpush1.msra.mxu0 0.0
        %1728 = vmatprep.subr.mxu0 0.0
        %1729 = vmatpush1.msra.mxu0 0.0
        %1730 = vmatprep.subr.mxu0 0.0
        %1731 = vmatpush1.msra.mxu0 0.0
        %1732 = vmatprep.subr.mxu0 0.0
        %1733 = vmatpush1.msra.mxu0 0.0
        %1734 = vmatprep.subr.mxu0 0.0
        %1735 = vmatpush1.msra.mxu0 0.0
        %1736 = vmatprep.subr.mxu0 0.0
        %1737 = vmatpush1.msra.mxu0 0.0
        %1738 = vmatprep.subr.mxu0 0.0
        %1739 = vmatpush1.msra.mxu0 0.0
        %1740 = vmatprep.subr.mxu0 0.0
        %1741 = vmatpush1.msra.mxu0 0.0
        %1742 = vmatprep.subr.mxu0 0.0
        %1743 = vmatpush1.msra.mxu0 0.0
        %1744 = vmatprep.subr.mxu0 0.0
        %1745 = vmatpush1.msra.mxu0 0.0
        %1746 = vmatprep.subr.mxu0 0.0
        %1747 = vmatpush1.msra.mxu0 0.0
        %1748 = vmatprep.subr.mxu0 0.0
        %1749 = vmatpush1.msra.mxu0 0.0
        %1750 = vmatprep.subr.mxu0 0.0
        %1751 = vmatpush1.msra.mxu0 0.0
        %1752 = vmatprep.subr.mxu0 0.0
        %1753 = vmatpush1.msra.mxu0 0.0
        %1754 = vmatprep.subr.mxu0 0.0
        %1755 = vmatpush1.msra.mxu0 0.0
        %1756 = vmatprep.mubr.f32.mxu0 0.0
        %1757 = vmatmul.mubr.f32.gmra.mrb[0].mxu0 %v1690
        %v1758 = vpop.f32.mrb[0].mxu0
        %v1759 = vadd.f32 %v1687, %v1758
        %v1760 = vpop.f32.mrb[0].mxu0
        %1761 = vdwg.mxu0
        %s1762 = scalar_lea.vmem %s5, 32
        %v1763 = vld [vmem:[%s1762] sm:$0xff]
        %v1765 = vsel %vm1088, %v1763, 0
        %1767 = vmatprep.subr.mxu0 0.0
        %1768 = vmatpush1.msra.mxu0 %v1759
        %1769 = vmatprep.subr.mxu0 0.0
        %1770 = vmatpush1.msra.mxu0 0.0
        %1771 = vmatprep.subr.mxu0 0.0
        %1772 = vmatpush1.msra.mxu0 0.0
        %1773 = vmatprep.subr.mxu0 0.0
        %1774 = vmatpush1.msra.mxu0 0.0
        %1775 = vmatprep.subr.mxu0 0.0
        %1776 = vmatpush1.msra.mxu0 0.0
        %1777 = vmatprep.subr.mxu0 0.0
        %1778 = vmatpush1.msra.mxu0 0.0
        %1779 = vmatprep.subr.mxu0 0.0
        %1780 = vmatpush1.msra.mxu0 0.0
        %1781 = vmatprep.subr.mxu0 0.0
        %1782 = vmatpush1.msra.mxu0 0.0
        %1783 = vmatprep.subr.mxu0 0.0
        %1784 = vmatpush1.msra.mxu0 0.0
        %1785 = vmatprep.subr.mxu0 0.0
        %1786 = vmatpush1.msra.mxu0 0.0
        %1787 = vmatprep.subr.mxu0 0.0
        %1788 = vmatpush1.msra.mxu0 0.0
        %1789 = vmatprep.subr.mxu0 0.0
        %1790 = vmatpush1.msra.mxu0 0.0
        %1791 = vmatprep.subr.mxu0 0.0
        %1792 = vmatpush1.msra.mxu0 0.0
        %1793 = vmatprep.subr.mxu0 0.0
        %1794 = vmatpush1.msra.mxu0 0.0
        %1795 = vmatprep.subr.mxu0 0.0
        %1796 = vmatpush1.msra.mxu0 0.0
        %1797 = vmatprep.subr.mxu0 0.0
        %1798 = vmatpush1.msra.mxu0 0.0
        %1799 = vmatprep.subr.mxu0 0.0
        %1800 = vmatpush1.msra.mxu0 0.0
        %1801 = vmatprep.subr.mxu0 0.0
        %1802 = vmatpush1.msra.mxu0 0.0
        %1803 = vmatprep.subr.mxu0 0.0
        %1804 = vmatpush1.msra.mxu0 0.0
        %1805 = vmatprep.subr.mxu0 0.0
        %1806 = vmatpush1.msra.mxu0 0.0
        %1807 = vmatprep.subr.mxu0 0.0
        %1808 = vmatpush1.msra.mxu0 0.0
        %1809 = vmatprep.subr.mxu0 0.0
        %1810 = vmatpush1.msra.mxu0 0.0
        %1811 = vmatprep.subr.mxu0 0.0
        %1812 = vmatpush1.msra.mxu0 0.0
        %1813 = vmatprep.subr.mxu0 0.0
        %1814 = vmatpush1.msra.mxu0 0.0
        %1815 = vmatprep.subr.mxu0 0.0
        %1816 = vmatpush1.msra.mxu0 0.0
        %1817 = vmatprep.subr.mxu0 0.0
        %1818 = vmatpush1.msra.mxu0 0.0
        %1819 = vmatprep.subr.mxu0 0.0
        %1820 = vmatpush1.msra.mxu0 0.0
        %1821 = vmatprep.subr.mxu0 0.0
        %1822 = vmatpush1.msra.mxu0 0.0
        %1823 = vmatprep.subr.mxu0 0.0
        %1824 = vmatpush1.msra.mxu0 0.0
        %1825 = vmatprep.subr.mxu0 0.0
        %1826 = vmatpush1.msra.mxu0 0.0
        %1827 = vmatprep.subr.mxu0 0.0
        %1828 = vmatpush1.msra.mxu0 0.0
        %1829 = vmatprep.subr.mxu0 0.0
        %1830 = vmatpush1.msra.mxu0 0.0
        %1831 = vmatprep.mubr.f32.mxu0 0.0
        %1832 = vmatmul.mubr.f32.gmra.mrb[0].mxu0 %v1765
        %v1833 = vpop.f32.mrb[0].mxu0
        %v1834 = vadd.f32 0.0, %v1833
        %v1835 = vpop.f32.mrb[0].mxu0
        %1836 = vdwg.mxu0
        %1838 = vrot.lane.b32.xlu0 %v1834, 32
        %v1839 = vpop.permute.xlu0 %1838
        %v1841 = vsel %vm1179, %v1759, %v1839
        %s1842 = scalar_lea.vmem %s13, 192
        %v1843 = vld [vmem:[%s1842] sm:$0xff]
        %v1844 = vld [vmem:[%s1842 + $0x8] sm:$0xff]
        %v1845 = vld [vmem:[%s1842 + $0x10] sm:$0xff]
        %v1846 = vld [vmem:[%s1842 + $0x18] sm:$0xff]
        %v1847 = vld [vmem:[%s1842 + $0x20] sm:$0xff]
        %v1848 = vld [vmem:[%s1842 + $0x28] sm:$0xff]
        %v1849 = vld [vmem:[%s1842 + $0x30] sm:$0xff]
        %v1850 = vld [vmem:[%s1842 + $0x38] sm:$0xff]
        %s1851 = scalar_lea.vmem %s15, 3
        %v1852 = vld [vmem:[%s1851] sm:$0x1]
        %v1854 = vlaneseq
        %v1855 = vshrl.u32 %v1854, 7
        %v1856 = vsub.s32 0, %v1855
        %v1857 = vrot.slane %v1852, %v1856
        %v1860 = vsel %vm1348, %v1841, 0
        %1862 = vmatprep.subr.mxu0 0.0
        %1863 = vmatpush1.msra.mxu0 %v1843
        %1864 = vmatprep.subr.mxu0 0.0
        %1865 = vmatpush1.msra.mxu0 %v1844
        %1866 = vmatprep.subr.mxu0 0.0
        %1867 = vmatpush1.msra.mxu0 %v1845
        %1868 = vmatprep.subr.mxu0 0.0
        %1869 = vmatpush1.msra.mxu0 %v1846
        %1870 = vmatprep.subr.mxu0 0.0
        %1871 = vmatpush1.msra.mxu0 %v1847
        %1872 = vmatprep.subr.mxu0 0.0
        %1873 = vmatpush1.msra.mxu0 %v1848
        %1874 = vmatprep.subr.mxu0 0.0
        %1875 = vmatpush1.msra.mxu0 %v1849
        %1876 = vmatprep.subr.mxu0 0.0
        %1877 = vmatpush1.msra.mxu0 %v1850
        %1878 = vmatprep.subr.mxu0 0.0
        %1879 = vmatpush1.msra.mxu0 0.0
        %1880 = vmatprep.subr.mxu0 0.0
        %1881 = vmatpush1.msra.mxu0 0.0
        %1882 = vmatprep.subr.mxu0 0.0
        %1883 = vmatpush1.msra.mxu0 0.0
        %1884 = vmatprep.subr.mxu0 0.0
        %1885 = vmatpush1.msra.mxu0 0.0
        %1886 = vmatprep.subr.mxu0 0.0
        %1887 = vmatpush1.msra.mxu0 0.0
        %1888 = vmatprep.subr.mxu0 0.0
        %1889 = vmatpush1.msra.mxu0 0.0
        %1890 = vmatprep.subr.mxu0 0.0
        %1891 = vmatpush1.msra.mxu0 0.0
        %1892 = vmatprep.subr.mxu0 0.0
        %1893 = vmatpush1.msra.mxu0 0.0
        %1894 = vmatprep.subr.mxu0 0.0
        %1895 = vmatpush1.msra.mxu0 0.0
        %1896 = vmatprep.subr.mxu0 0.0
        %1897 = vmatpush1.msra.mxu0 0.0
        %1898 = vmatprep.subr.mxu0 0.0
        %1899 = vmatpush1.msra.mxu0 0.0
        %1900 = vmatprep.subr.mxu0 0.0
        %1901 = vmatpush1.msra.mxu0 0.0
        %1902 = vmatprep.subr.mxu0 0.0
        %1903 = vmatpush1.msra.mxu0 0.0
        %1904 = vmatprep.subr.mxu0 0.0
        %1905 = vmatpush1.msra.mxu0 0.0
        %1906 = vmatprep.subr.mxu0 0.0
        %1907 = vmatpush1.msra.mxu0 0.0
        %1908 = vmatprep.subr.mxu0 0.0
        %1909 = vmatpush1.msra.mxu0 0.0
        %1910 = vmatprep.subr.mxu0 0.0
        %1911 = vmatpush1.msra.mxu0 0.0
        %1912 = vmatprep.subr.mxu0 0.0
        %1913 = vmatpush1.msra.mxu0 0.0
        %1914 = vmatprep.subr.mxu0 0.0
        %1915 = vmatpush1.msra.mxu0 0.0
        %1916 = vmatprep.subr.mxu0 0.0
        %1917 = vmatpush1.msra.mxu0 0.0
        %1918 = vmatprep.subr.mxu0 0.0
        %1919 = vmatpush1.msra.mxu0 0.0
        %1920 = vmatprep.subr.mxu0 0.0
        %1921 = vmatpush1.msra.mxu0 0.0
        %1922 = vmatprep.subr.mxu0 0.0
        %1923 = vmatpush1.msra.mxu0 0.0
        %1924 = vmatprep.subr.mxu0 0.0
        %1925 = vmatpush1.msra.mxu0 0.0
        %1926 = vmatprep.mubr.f32.mxu0 0.0
        %1927 = vmatmul.mubr.f32.gmra.mrb[0].mxu0 %v1860
        %v1928 = vpop.f32.mrb[0].mxu0
        %v1929 = vadd.f32 %v1857, %v1928
        %v1930 = vpop.f32.mrb[0].mxu0
        %1931 = vdwg.mxu0
        %s1932 = scalar_lea.vmem %s5, 40
        %v1933 = vld [vmem:[%s1932] sm:$0xff]
        %v1935 = vsel %vm1088, %v1933, 0
        %1937 = vmatprep.subr.mxu0 0.0
        %1938 = vmatpush1.msra.mxu0 %v1929
        %1939 = vmatprep.subr.mxu0 0.0
        %1940 = vmatpush1.msra.mxu0 0.0
        %1941 = vmatprep.subr.mxu0 0.0
        %1942 = vmatpush1.msra.mxu0 0.0
        %1943 = vmatprep.subr.mxu0 0.0
        %1944 = vmatpush1.msra.mxu0 0.0
        %1945 = vmatprep.subr.mxu0 0.0
        %1946 = vmatpush1.msra.mxu0 0.0
        %1947 = vmatprep.subr.mxu0 0.0
        %1948 = vmatpush1.msra.mxu0 0.0
        %1949 = vmatprep.subr.mxu0 0.0
        %1950 = vmatpush1.msra.mxu0 0.0
        %1951 = vmatprep.subr.mxu0 0.0
        %1952 = vmatpush1.msra.mxu0 0.0
        %1953 = vmatprep.subr.mxu0 0.0
        %1954 = vmatpush1.msra.mxu0 0.0
        %1955 = vmatprep.subr.mxu0 0.0
        %1956 = vmatpush1.msra.mxu0 0.0
        %1957 = vmatprep.subr.mxu0 0.0
        %1958 = vmatpush1.msra.mxu0 0.0
        %1959 = vmatprep.subr.mxu0 0.0
        %1960 = vmatpush1.msra.mxu0 0.0
        %1961 = vmatprep.subr.mxu0 0.0
        %1962 = vmatpush1.msra.mxu0 0.0
        %1963 = vmatprep.subr.mxu0 0.0
        %1964 = vmatpush1.msra.mxu0 0.0
        %1965 = vmatprep.subr.mxu0 0.0
        %1966 = vmatpush1.msra.mxu0 0.0
        %1967 = vmatprep.subr.mxu0 0.0
        %1968 = vmatpush1.msra.mxu0 0.0
        %1969 = vmatprep.subr.mxu0 0.0
        %1970 = vmatpush1.msra.mxu0 0.0
        %1971 = vmatprep.subr.mxu0 0.0
        %1972 = vmatpush1.msra.mxu0 0.0
        %1973 = vmatprep.subr.mxu0 0.0
        %1974 = vmatpush1.msra.mxu0 0.0
        %1975 = vmatprep.subr.mxu0 0.0
        %1976 = vmatpush1.msra.mxu0 0.0
        %1977 = vmatprep.subr.mxu0 0.0
        %1978 = vmatpush1.msra.mxu0 0.0
        %1979 = vmatprep.subr.mxu0 0.0
        %1980 = vmatpush1.msra.mxu0 0.0
        %1981 = vmatprep.subr.mxu0 0.0
        %1982 = vmatpush1.msra.mxu0 0.0
        %1983 = vmatprep.subr.mxu0 0.0
        %1984 = vmatpush1.msra.mxu0 0.0
        %1985 = vmatprep.subr.mxu0 0.0
        %1986 = vmatpush1.msra.mxu0 0.0
        %1987 = vmatprep.subr.mxu0 0.0
        %1988 = vmatpush1.msra.mxu0 0.0
        %1989 = vmatprep.subr.mxu0 0.0
        %1990 = vmatpush1.msra.mxu0 0.0
        %1991 = vmatprep.subr.mxu0 0.0
        %1992 = vmatpush1.msra.mxu0 0.0
        %1993 = vmatprep.subr.mxu0 0.0
        %1994 = vmatpush1.msra.mxu0 0.0
        %1995 = vmatprep.subr.mxu0 0.0
        %1996 = vmatpush1.msra.mxu0 0.0
        %1997 = vmatprep.subr.mxu0 0.0
        %1998 = vmatpush1.msra.mxu0 0.0
        %1999 = vmatprep.subr.mxu0 0.0
        %2000 = vmatpush1.msra.mxu0 0.0
        %2001 = vmatprep.mubr.f32.mxu0 0.0
        %2002 = vmatmul.mubr.f32.gmra.mrb[0].mxu0 %v1935
        %v2003 = vpop.f32.mrb[0].mxu0
        %v2004 = vadd.f32 0.0, %v2003
        %v2005 = vpop.f32.mrb[0].mxu0
        %2006 = vdwg.mxu0
        %2008 = vrot.lane.b32.xlu0 %v2004, 32
        %v2009 = vpop.permute.xlu0 %2008
        %v2011 = vsel %vm1179, %v1929, %v2009
        %s2012 = scalar_lea.vmem %s13, 256
        %v2013 = vld [vmem:[%s2012] sm:$0xff]
        %v2014 = vld [vmem:[%s2012 + $0x8] sm:$0xff]
        %v2015 = vld [vmem:[%s2012 + $0x10] sm:$0xff]
        %v2016 = vld [vmem:[%s2012 + $0x18] sm:$0xff]
        %v2017 = vld [vmem:[%s2012 + $0x20] sm:$0xff]
        %v2018 = vld [vmem:[%s2012 + $0x28] sm:$0xff]
        %v2019 = vld [vmem:[%s2012 + $0x30] sm:$0xff]
        %v2020 = vld [vmem:[%s2012 + $0x38] sm:$0xff]
        %s2021 = scalar_lea.vmem %s15, 4
        %v2022 = vld [vmem:[%s2021] sm:$0x1]
        %v2024 = vlaneseq
        %v2025 = vshrl.u32 %v2024, 7
        %v2026 = vsub.s32 0, %v2025
        %v2027 = vrot.slane %v2022, %v2026
        %v2030 = vsel %vm1348, %v2011, 0
        %2032 = vmatprep.subr.mxu0 0.0
        %2033 = vmatpush1.msra.mxu0 %v2013
        %2034 = vmatprep.subr.mxu0 0.0
        %2035 = vmatpush1.msra.mxu0 %v2014
        %2036 = vmatprep.subr.mxu0 0.0
        %2037 = vmatpush1.msra.mxu0 %v2015
        %2038 = vmatprep.subr.mxu0 0.0
        %2039 = vmatpush1.msra.mxu0 %v2016
        %2040 = vmatprep.subr.mxu0 0.0
        %2041 = vmatpush1.msra.mxu0 %v2017
        %2042 = vmatprep.subr.mxu0 0.0
        %2043 = vmatpush1.msra.mxu0 %v2018
        %2044 = vmatprep.subr.mxu0 0.0
        %2045 = vmatpush1.msra.mxu0 %v2019
        %2046 = vmatprep.subr.mxu0 0.0
        %2047 = vmatpush1.msra.mxu0 %v2020
        %2048 = vmatprep.subr.mxu0 0.0
        %2049 = vmatpush1.msra.mxu0 0.0
        %2050 = vmatprep.subr.mxu0 0.0
        %2051 = vmatpush1.msra.mxu0 0.0
        %2052 = vmatprep.subr.mxu0 0.0
        %2053 = vmatpush1.msra.mxu0 0.0
        %2054 = vmatprep.subr.mxu0 0.0
        %2055 = vmatpush1.msra.mxu0 0.0
        %2056 = vmatprep.subr.mxu0 0.0
        %2057 = vmatpush1.msra.mxu0 0.0
        %2058 = vmatprep.subr.mxu0 0.0
        %2059 = vmatpush1.msra.mxu0 0.0
        %2060 = vmatprep.subr.mxu0 0.0
        %2061 = vmatpush1.msra.mxu0 0.0
        %2062 = vmatprep.subr.mxu0 0.0
        %2063 = vmatpush1.msra.mxu0 0.0
        %2064 = vmatprep.subr.mxu0 0.0
        %2065 = vmatpush1.msra.mxu0 0.0
        %2066 = vmatprep.subr.mxu0 0.0
        %2067 = vmatpush1.msra.mxu0 0.0
        %2068 = vmatprep.subr.mxu0 0.0
        %2069 = vmatpush1.msra.mxu0 0.0
        %2070 = vmatprep.subr.mxu0 0.0
        %2071 = vmatpush1.msra.mxu0 0.0
        %2072 = vmatprep.subr.mxu0 0.0
        %2073 = vmatpush1.msra.mxu0 0.0
        %2074 = vmatprep.subr.mxu0 0.0
        %2075 = vmatpush1.msra.mxu0 0.0
        %2076 = vmatprep.subr.mxu0 0.0
        %2077 = vmatpush1.msra.mxu0 0.0
        %2078 = vmatprep.subr.mxu0 0.0
        %2079 = vmatpush1.msra.mxu0 0.0
        %2080 = vmatprep.subr.mxu0 0.0
        %2081 = vmatpush1.msra.mxu0 0.0
        %2082 = vmatprep.subr.mxu0 0.0
        %2083 = vmatpush1.msra.mxu0 0.0
        %2084 = vmatprep.subr.mxu0 0.0
        %2085 = vmatpush1.msra.mxu0 0.0
        %2086 = vmatprep.subr.mxu0 0.0
        %2087 = vmatpush1.msra.mxu0 0.0
        %2088 = vmatprep.subr.mxu0 0.0
        %2089 = vmatpush1.msra.mxu0 0.0
        %2090 = vmatprep.subr.mxu0 0.0
        %2091 = vmatpush1.msra.mxu0 0.0
        %2092 = vmatprep.subr.mxu0 0.0
        %2093 = vmatpush1.msra.mxu0 0.0
        %2094 = vmatprep.subr.mxu0 0.0
        %2095 = vmatpush1.msra.mxu0 0.0
        %2096 = vmatprep.mubr.f32.mxu0 0.0
        %2097 = vmatmul.mubr.f32.gmra.mrb[0].mxu0 %v2030
        %v2098 = vpop.f32.mrb[0].mxu0
        %v2099 = vadd.f32 %v2027, %v2098
        %v2100 = vpop.f32.mrb[0].mxu0
        %2101 = vdwg.mxu0
        %s2102 = scalar_lea.vmem %s5, 48
        %v2103 = vld [vmem:[%s2102] sm:$0xff]
        %v2105 = vsel %vm1088, %v2103, 0
        %2107 = vmatprep.subr.mxu0 0.0
        %2108 = vmatpush1.msra.mxu0 %v2099
        %2109 = vmatprep.subr.mxu0 0.0
        %2110 = vmatpush1.msra.mxu0 0.0
        %2111 = vmatprep.subr.mxu0 0.0
        %2112 = vmatpush1.msra.mxu0 0.0
        %2113 = vmatprep.subr.mxu0 0.0
        %2114 = vmatpush1.msra.mxu0 0.0
        %2115 = vmatprep.subr.mxu0 0.0
        %2116 = vmatpush1.msra.mxu0 0.0
        %2117 = vmatprep.subr.mxu0 0.0
        %2118 = vmatpush1.msra.mxu0 0.0
        %2119 = vmatprep.subr.mxu0 0.0
        %2120 = vmatpush1.msra.mxu0 0.0
        %2121 = vmatprep.subr.mxu0 0.0
        %2122 = vmatpush1.msra.mxu0 0.0
        %2123 = vmatprep.subr.mxu0 0.0
        %2124 = vmatpush1.msra.mxu0 0.0
        %2125 = vmatprep.subr.mxu0 0.0
        %2126 = vmatpush1.msra.mxu0 0.0
        %2127 = vmatprep.subr.mxu0 0.0
        %2128 = vmatpush1.msra.mxu0 0.0
        %2129 = vmatprep.subr.mxu0 0.0
        %2130 = vmatpush1.msra.mxu0 0.0
        %2131 = vmatprep.subr.mxu0 0.0
        %2132 = vmatpush1.msra.mxu0 0.0
        %2133 = vmatprep.subr.mxu0 0.0
        %2134 = vmatpush1.msra.mxu0 0.0
        %2135 = vmatprep.subr.mxu0 0.0
        %2136 = vmatpush1.msra.mxu0 0.0
        %2137 = vmatprep.subr.mxu0 0.0
        %2138 = vmatpush1.msra.mxu0 0.0
        %2139 = vmatprep.subr.mxu0 0.0
        %2140 = vmatpush1.msra.mxu0 0.0
        %2141 = vmatprep.subr.mxu0 0.0
        %2142 = vmatpush1.msra.mxu0 0.0
        %2143 = vmatprep.subr.mxu0 0.0
        %2144 = vmatpush1.msra.mxu0 0.0
        %2145 = vmatprep.subr.mxu0 0.0
        %2146 = vmatpush1.msra.mxu0 0.0
        %2147 = vmatprep.subr.mxu0 0.0
        %2148 = vmatpush1.msra.mxu0 0.0
        %2149 = vmatprep.subr.mxu0 0.0
        %2150 = vmatpush1.msra.mxu0 0.0
        %2151 = vmatprep.subr.mxu0 0.0
        %2152 = vmatpush1.msra.mxu0 0.0
        %2153 = vmatprep.subr.mxu0 0.0
        %2154 = vmatpush1.msra.mxu0 0.0
        %2155 = vmatprep.subr.mxu0 0.0
        %2156 = vmatpush1.msra.mxu0 0.0
        %2157 = vmatprep.subr.mxu0 0.0
        %2158 = vmatpush1.msra.mxu0 0.0
        %2159 = vmatprep.subr.mxu0 0.0
        %2160 = vmatpush1.msra.mxu0 0.0
        %2161 = vmatprep.subr.mxu0 0.0
        %2162 = vmatpush1.msra.mxu0 0.0
        %2163 = vmatprep.subr.mxu0 0.0
        %2164 = vmatpush1.msra.mxu0 0.0
        %2165 = vmatprep.subr.mxu0 0.0
        %2166 = vmatpush1.msra.mxu0 0.0
        %2167 = vmatprep.subr.mxu0 0.0
        %2168 = vmatpush1.msra.mxu0 0.0
        %2169 = vmatprep.subr.mxu0 0.0
        %2170 = vmatpush1.msra.mxu0 0.0
        %2171 = vmatprep.mubr.f32.mxu0 0.0
        %2172 = vmatmul.mubr.f32.gmra.mrb[0].mxu0 %v2105
        %v2173 = vpop.f32.mrb[0].mxu0
        %v2174 = vadd.f32 0.0, %v2173
        %v2175 = vpop.f32.mrb[0].mxu0
        %2176 = vdwg.mxu0
        %2178 = vrot.lane.b32.xlu0 %v2174, 32
        %v2179 = vpop.permute.xlu0 %2178
        %v2181 = vsel %vm1179, %v2099, %v2179
        %s2182 = scalar_lea.vmem %s13, 320
        %v2183 = vld [vmem:[%s2182] sm:$0xff]
        %v2184 = vld [vmem:[%s2182 + $0x8] sm:$0xff]
        %v2185 = vld [vmem:[%s2182 + $0x10] sm:$0xff]
        %v2186 = vld [vmem:[%s2182 + $0x18] sm:$0xff]
        %v2187 = vld [vmem:[%s2182 + $0x20] sm:$0xff]
        %v2188 = vld [vmem:[%s2182 + $0x28] sm:$0xff]
        %v2189 = vld [vmem:[%s2182 + $0x30] sm:$0xff]
        %v2190 = vld [vmem:[%s2182 + $0x38] sm:$0xff]
        %s2191 = scalar_lea.vmem %s15, 5
        %v2192 = vld [vmem:[%s2191] sm:$0x1]
        %v2194 = vlaneseq
        %v2195 = vshrl.u32 %v2194, 7
        %v2196 = vsub.s32 0, %v2195
        %v2197 = vrot.slane %v2192, %v2196
        %v2200 = vsel %vm1348, %v2181, 0
        %2202 = vmatprep.subr.mxu0 0.0
        %2203 = vmatpush1.msra.mxu0 %v2183
        %2204 = vmatprep.subr.mxu0 0.0
        %2205 = vmatpush1.msra.mxu0 %v2184
        %2206 = vmatprep.subr.mxu0 0.0
        %2207 = vmatpush1.msra.mxu0 %v2185
        %2208 = vmatprep.subr.mxu0 0.0
        %2209 = vmatpush1.msra.mxu0 %v2186
        %2210 = vmatprep.subr.mxu0 0.0
        %2211 = vmatpush1.msra.mxu0 %v2187
        %2212 = vmatprep.subr.mxu0 0.0
        %2213 = vmatpush1.msra.mxu0 %v2188
        %2214 = vmatprep.subr.mxu0 0.0
        %2215 = vmatpush1.msra.mxu0 %v2189
        %2216 = vmatprep.subr.mxu0 0.0
        %2217 = vmatpush1.msra.mxu0 %v2190
        %2218 = vmatprep.subr.mxu0 0.0
        %2219 = vmatpush1.msra.mxu0 0.0
        %2220 = vmatprep.subr.mxu0 0.0
        %2221 = vmatpush1.msra.mxu0 0.0
        %2222 = vmatprep.subr.mxu0 0.0
        %2223 = vmatpush1.msra.mxu0 0.0
        %2224 = vmatprep.subr.mxu0 0.0
        %2225 = vmatpush1.msra.mxu0 0.0
        %2226 = vmatprep.subr.mxu0 0.0
        %2227 = vmatpush1.msra.mxu0 0.0
        %2228 = vmatprep.subr.mxu0 0.0
        %2229 = vmatpush1.msra.mxu0 0.0
        %2230 = vmatprep.subr.mxu0 0.0
        %2231 = vmatpush1.msra.mxu0 0.0
        %2232 = vmatprep.subr.mxu0 0.0
        %2233 = vmatpush1.msra.mxu0 0.0
        %2234 = vmatprep.subr.mxu0 0.0
        %2235 = vmatpush1.msra.mxu0 0.0
        %2236 = vmatprep.subr.mxu0 0.0
        %2237 = vmatpush1.msra.mxu0 0.0
        %2238 = vmatprep.subr.mxu0 0.0
        %2239 = vmatpush1.msra.mxu0 0.0
        %2240 = vmatprep.subr.mxu0 0.0
        %2241 = vmatpush1.msra.mxu0 0.0
        %2242 = vmatprep.subr.mxu0 0.0
        %2243 = vmatpush1.msra.mxu0 0.0
        %2244 = vmatprep.subr.mxu0 0.0
        %2245 = vmatpush1.msra.mxu0 0.0
        %2246 = vmatprep.subr.mxu0 0.0
        %2247 = vmatpush1.msra.mxu0 0.0
        %2248 = vmatprep.subr.mxu0 0.0
        %2249 = vmatpush1.msra.mxu0 0.0
        %2250 = vmatprep.subr.mxu0 0.0
        %2251 = vmatpush1.msra.mxu0 0.0
        %2252 = vmatprep.subr.mxu0 0.0
        %2253 = vmatpush1.msra.mxu0 0.0
        %2254 = vmatprep.subr.mxu0 0.0
        %2255 = vmatpush1.msra.mxu0 0.0
        %2256 = vmatprep.subr.mxu0 0.0
        %2257 = vmatpush1.msra.mxu0 0.0
        %2258 = vmatprep.subr.mxu0 0.0
        %2259 = vmatpush1.msra.mxu0 0.0
        %2260 = vmatprep.subr.mxu0 0.0
        %2261 = vmatpush1.msra.mxu0 0.0
        %2262 = vmatprep.subr.mxu0 0.0
        %2263 = vmatpush1.msra.mxu0 0.0
        %2264 = vmatprep.subr.mxu0 0.0
        %2265 = vmatpush1.msra.mxu0 0.0
        %2266 = vmatprep.mubr.f32.mxu0 0.0
        %2267 = vmatmul.mubr.f32.gmra.mrb[0].mxu0 %v2200
        %v2268 = vpop.f32.mrb[0].mxu0
        %v2269 = vadd.f32 %v2197, %v2268
        %v2270 = vpop.f32.mrb[0].mxu0
        %2271 = vdwg.mxu0
        %s2272 = scalar_lea.vmem %s5, 56
        %v2273 = vld [vmem:[%s2272] sm:$0xff]
        %v2275 = vsel %vm1088, %v2273, 0
        %2277 = vmatprep.subr.mxu0 0.0
        %2278 = vmatpush1.msra.mxu0 %v2269
        %2279 = vmatprep.subr.mxu0 0.0
        %2280 = vmatpush1.msra.mxu0 0.0
        %2281 = vmatprep.subr.mxu0 0.0
        %2282 = vmatpush1.msra.mxu0 0.0
        %2283 = vmatprep.subr.mxu0 0.0
        %2284 = vmatpush1.msra.mxu0 0.0
        %2285 = vmatprep.subr.mxu0 0.0
        %2286 = vmatpush1.msra.mxu0 0.0
        %2287 = vmatprep.subr.mxu0 0.0
        %2288 = vmatpush1.msra.mxu0 0.0
        %2289 = vmatprep.subr.mxu0 0.0
        %2290 = vmatpush1.msra.mxu0 0.0
        %2291 = vmatprep.subr.mxu0 0.0
        %2292 = vmatpush1.msra.mxu0 0.0
        %2293 = vmatprep.subr.mxu0 0.0
        %2294 = vmatpush1.msra.mxu0 0.0
        %2295 = vmatprep.subr.mxu0 0.0
        %2296 = vmatpush1.msra.mxu0 0.0
        %2297 = vmatprep.subr.mxu0 0.0
        %2298 = vmatpush1.msra.mxu0 0.0
        %2299 = vmatprep.subr.mxu0 0.0
        %2300 = vmatpush1.msra.mxu0 0.0
        %2301 = vmatprep.subr.mxu0 0.0
        %2302 = vmatpush1.msra.mxu0 0.0
        %2303 = vmatprep.subr.mxu0 0.0
        %2304 = vmatpush1.msra.mxu0 0.0
        %2305 = vmatprep.subr.mxu0 0.0
        %2306 = vmatpush1.msra.mxu0 0.0
        %2307 = vmatprep.subr.mxu0 0.0
        %2308 = vmatpush1.msra.mxu0 0.0
        %2309 = vmatprep.subr.mxu0 0.0
        %2310 = vmatpush1.msra.mxu0 0.0
        %2311 = vmatprep.subr.mxu0 0.0
        %2312 = vmatpush1.msra.mxu0 0.0
        %2313 = vmatprep.subr.mxu0 0.0
        %2314 = vmatpush1.msra.mxu0 0.0
        %2315 = vmatprep.subr.mxu0 0.0
        %2316 = vmatpush1.msra.mxu0 0.0
        %2317 = vmatprep.subr.mxu0 0.0
        %2318 = vmatpush1.msra.mxu0 0.0
        %2319 = vmatprep.subr.mxu0 0.0
        %2320 = vmatpush1.msra.mxu0 0.0
        %2321 = vmatprep.subr.mxu0 0.0
        %2322 = vmatpush1.msra.mxu0 0.0
        %2323 = vmatprep.subr.mxu0 0.0
        %2324 = vmatpush1.msra.mxu0 0.0
        %2325 = vmatprep.subr.mxu0 0.0
        %2326 = vmatpush1.msra.mxu0 0.0
        %2327 = vmatprep.subr.mxu0 0.0
        %2328 = vmatpush1.msra.mxu0 0.0
        %2329 = vmatprep.subr.mxu0 0.0
        %2330 = vmatpush1.msra.mxu0 0.0
        %2331 = vmatprep.subr.mxu0 0.0
        %2332 = vmatpush1.msra.mxu0 0.0
        %2333 = vmatprep.subr.mxu0 0.0
        %2334 = vmatpush1.msra.mxu0 0.0
        %2335 = vmatprep.subr.mxu0 0.0
        %2336 = vmatpush1.msra.mxu0 0.0
        %2337 = vmatprep.subr.mxu0 0.0
        %2338 = vmatpush1.msra.mxu0 0.0
        %2339 = vmatprep.subr.mxu0 0.0
        %2340 = vmatpush1.msra.mxu0 0.0
        %2341 = vmatprep.mubr.f32.mxu0 0.0
        %2342 = vmatmul.mubr.f32.gmra.mrb[0].mxu0 %v2275
        %v2343 = vpop.f32.mrb[0].mxu0
        %v2344 = vadd.f32 0.0, %v2343
        %v2345 = vpop.f32.mrb[0].mxu0
        %2346 = vdwg.mxu0
        %2348 = vrot.lane.b32.xlu0 %v2344, 32
        %v2349 = vpop.permute.xlu0 %2348
        %v2351 = vsel %vm1179, %v2269, %v2349
        %s2352 = scalar_lea.vmem %s13, 384
        %v2353 = vld [vmem:[%s2352] sm:$0xff]
        %v2354 = vld [vmem:[%s2352 + $0x8] sm:$0xff]
        %v2355 = vld [vmem:[%s2352 + $0x10] sm:$0xff]
        %v2356 = vld [vmem:[%s2352 + $0x18] sm:$0xff]
        %v2357 = vld [vmem:[%s2352 + $0x20] sm:$0xff]
        %v2358 = vld [vmem:[%s2352 + $0x28] sm:$0xff]
        %v2359 = vld [vmem:[%s2352 + $0x30] sm:$0xff]
        %v2360 = vld [vmem:[%s2352 + $0x38] sm:$0xff]
        %s2361 = scalar_lea.vmem %s15, 6
        %v2362 = vld [vmem:[%s2361] sm:$0x1]
        %v2364 = vlaneseq
        %v2365 = vshrl.u32 %v2364, 7
        %v2366 = vsub.s32 0, %v2365
        %v2367 = vrot.slane %v2362, %v2366
        %v2370 = vsel %vm1348, %v2351, 0
        %2372 = vmatprep.subr.mxu0 0.0
        %2373 = vmatpush1.msra.mxu0 %v2353
        %2374 = vmatprep.subr.mxu0 0.0
        %2375 = vmatpush1.msra.mxu0 %v2354
        %2376 = vmatprep.subr.mxu0 0.0
        %2377 = vmatpush1.msra.mxu0 %v2355
        %2378 = vmatprep.subr.mxu0 0.0
        %2379 = vmatpush1.msra.mxu0 %v2356
        %2380 = vmatprep.subr.mxu0 0.0
        %2381 = vmatpush1.msra.mxu0 %v2357
        %2382 = vmatprep.subr.mxu0 0.0
        %2383 = vmatpush1.msra.mxu0 %v2358
        %2384 = vmatprep.subr.mxu0 0.0
        %2385 = vmatpush1.msra.mxu0 %v2359
        %2386 = vmatprep.subr.mxu0 0.0
        %2387 = vmatpush1.msra.mxu0 %v2360
        %2388 = vmatprep.subr.mxu0 0.0
        %2389 = vmatpush1.msra.mxu0 0.0
        %2390 = vmatprep.subr.mxu0 0.0
        %2391 = vmatpush1.msra.mxu0 0.0
        %2392 = vmatprep.subr.mxu0 0.0
        %2393 = vmatpush1.msra.mxu0 0.0
        %2394 = vmatprep.subr.mxu0 0.0
        %2395 = vmatpush1.msra.mxu0 0.0
        %2396 = vmatprep.subr.mxu0 0.0
        %2397 = vmatpush1.msra.mxu0 0.0
        %2398 = vmatprep.subr.mxu0 0.0
        %2399 = vmatpush1.msra.mxu0 0.0
        %2400 = vmatprep.subr.mxu0 0.0
        %2401 = vmatpush1.msra.mxu0 0.0
        %2402 = vmatprep.subr.mxu0 0.0
        %2403 = vmatpush1.msra.mxu0 0.0
        %2404 = vmatprep.subr.mxu0 0.0
        %2405 = vmatpush1.msra.mxu0 0.0
        %2406 = vmatprep.subr.mxu0 0.0
        %2407 = vmatpush1.msra.mxu0 0.0
        %2408 = vmatprep.subr.mxu0 0.0
        %2409 = vmatpush1.msra.mxu0 0.0
        %2410 = vmatprep.subr.mxu0 0.0
        %2411 = vmatpush1.msra.mxu0 0.0
        %2412 = vmatprep.subr.mxu0 0.0
        %2413 = vmatpush1.msra.mxu0 0.0
        %2414 = vmatprep.subr.mxu0 0.0
        %2415 = vmatpush1.msra.mxu0 0.0
        %2416 = vmatprep.subr.mxu0 0.0
        %2417 = vmatpush1.msra.mxu0 0.0
        %2418 = vmatprep.subr.mxu0 0.0
        %2419 = vmatpush1.msra.mxu0 0.0
        %2420 = vmatprep.subr.mxu0 0.0
        %2421 = vmatpush1.msra.mxu0 0.0
        %2422 = vmatprep.subr.mxu0 0.0
        %2423 = vmatpush1.msra.mxu0 0.0
        %2424 = vmatprep.subr.mxu0 0.0
        %2425 = vmatpush1.msra.mxu0 0.0
        %2426 = vmatprep.subr.mxu0 0.0
        %2427 = vmatpush1.msra.mxu0 0.0
        %2428 = vmatprep.subr.mxu0 0.0
        %2429 = vmatpush1.msra.mxu0 0.0
        %2430 = vmatprep.subr.mxu0 0.0
        %2431 = vmatpush1.msra.mxu0 0.0
        %2432 = vmatprep.subr.mxu0 0.0
        %2433 = vmatpush1.msra.mxu0 0.0
        %2434 = vmatprep.subr.mxu0 0.0
        %2435 = vmatpush1.msra.mxu0 0.0
        %2436 = vmatprep.mubr.f32.mxu0 0.0
        %2437 = vmatmul.mubr.f32.gmra.mrb[0].mxu0 %v2370
        %v2438 = vpop.f32.mrb[0].mxu0
        %v2439 = vadd.f32 %v2367, %v2438
        %v2440 = vpop.f32.mrb[0].mxu0
        %2441 = vdwg.mxu0
        %v2442 = vld [vmem:[%s1085] sm:$0xff]
        %v2443 = vld [vmem:[%s1085 + $0x8] sm:$0xff]
        %v2444 = vld [vmem:[%s17] sm:$0xff]
        %v2445 = vld [vmem:[%s17 + $0x8] sm:$0xff]
        %v2446 = vld [vmem:[%s17 + $0x10] sm:$0xff]
        %v2447 = vld [vmem:[%s17 + $0x18] sm:$0xff]
        %v2448 = vld [vmem:[%s17 + $0x20] sm:$0xff]
        %v2449 = vld [vmem:[%s17 + $0x28] sm:$0xff]
        %v2450 = vld [vmem:[%s17 + $0x30] sm:$0xff]
        %v2451 = vld [vmem:[%s17 + $0x38] sm:$0xff]
        %v2452 = vld [vmem:[%s17 + $0x40] sm:$0xff]
        %v2453 = vld [vmem:[%s17 + $0x48] sm:$0xff]
        %v2454 = vld [vmem:[%s17 + $0x50] sm:$0xff]
        %v2455 = vld [vmem:[%s17 + $0x58] sm:$0xff]
        %v2456 = vld [vmem:[%s17 + $0x60] sm:$0xff]
        %v2457 = vld [vmem:[%s17 + $0x68] sm:$0xff]
        %v2458 = vld [vmem:[%s17 + $0x70] sm:$0xff]
        %v2459 = vld [vmem:[%s17 + $0x78] sm:$0xff]
        %v2460 = vld [vmem:[%s17 + $0x80] sm:$0xff]
        %v2461 = vld [vmem:[%s17 + $0x88] sm:$0xff]
        %v2462 = vld [vmem:[%s17 + $0x90] sm:$0xff]
        %v2463 = vld [vmem:[%s17 + $0x98] sm:$0xff]
        %v2464 = vld [vmem:[%s17 + $0xa0] sm:$0xff]
        %v2465 = vld [vmem:[%s17 + $0xa8] sm:$0xff]
        %v2466 = vld [vmem:[%s17 + $0xb0] sm:$0xff]
        %v2467 = vld [vmem:[%s17 + $0xb8] sm:$0xff]
        %v2468 = vld [vmem:[%s19] sm:$0x1]
        %v2470 = vlaneseq
        %v2471 = vshrl.u32 %v2470, 7
        %v2472 = vsub.s32 0, %v2471
        %v2473 = vrot.slane %v2468, %v2472
        %v2476 = vsel %vm1348, %v2443, 0
        %2478 = vmatprep.subr.mxu0 0.0
        %2479 = vmatpush1.msra.mxu0 %v2444
        %2480 = vmatprep.subr.mxu0 0.0
        %2481 = vmatpush1.msra.mxu0 %v2445
        %2482 = vmatprep.subr.mxu0 0.0
        %2483 = vmatpush1.msra.mxu0 %v2446
        %2484 = vmatprep.subr.mxu0 0.0
        %2485 = vmatpush1.msra.mxu0 %v2447
        %2486 = vmatprep.subr.mxu0 0.0
        %2487 = vmatpush1.msra.mxu0 %v2448
        %2488 = vmatprep.subr.mxu0 0.0
        %2489 = vmatpush1.msra.mxu0 %v2449
        %2490 = vmatprep.subr.mxu0 0.0
        %2491 = vmatpush1.msra.mxu0 %v2450
        %2492 = vmatprep.subr.mxu0 0.0
        %2493 = vmatpush1.msra.mxu0 %v2451
        %2494 = vmatprep.subr.mxu0 0.0
        %2495 = vmatpush1.msra.mxu0 %v2452
        %2496 = vmatprep.subr.mxu0 0.0
        %2497 = vmatpush1.msra.mxu0 %v2453
        %2498 = vmatprep.subr.mxu0 0.0
        %2499 = vmatpush1.msra.mxu0 %v2454
        %2500 = vmatprep.subr.mxu0 0.0
        %2501 = vmatpush1.msra.mxu0 %v2455
        %2502 = vmatprep.subr.mxu0 0.0
        %2503 = vmatpush1.msra.mxu0 %v2456
        %2504 = vmatprep.subr.mxu0 0.0
        %2505 = vmatpush1.msra.mxu0 %v2457
        %2506 = vmatprep.subr.mxu0 0.0
        %2507 = vmatpush1.msra.mxu0 %v2458
        %2508 = vmatprep.subr.mxu0 0.0
        %2509 = vmatpush1.msra.mxu0 %v2459
        %2510 = vmatprep.subr.mxu0 0.0
        %2511 = vmatpush1.msra.mxu0 %v2460
        %2512 = vmatprep.subr.mxu0 0.0
        %2513 = vmatpush1.msra.mxu0 %v2461
        %2514 = vmatprep.subr.mxu0 0.0
        %2515 = vmatpush1.msra.mxu0 %v2462
        %2516 = vmatprep.subr.mxu0 0.0
        %2517 = vmatpush1.msra.mxu0 %v2463
        %2518 = vmatprep.subr.mxu0 0.0
        %2519 = vmatpush1.msra.mxu0 %v2464
        %2520 = vmatprep.subr.mxu0 0.0
        %2521 = vmatpush1.msra.mxu0 %v2465
        %2522 = vmatprep.subr.mxu0 0.0
        %2523 = vmatpush1.msra.mxu0 %v2466
        %2524 = vmatprep.subr.mxu0 0.0
        %2525 = vmatpush1.msra.mxu0 %v2467
        %2526 = vmatprep.subr.mxu0 0.0
        %2527 = vmatpush1.msra.mxu0 0.0
        %2528 = vmatprep.subr.mxu0 0.0
        %2529 = vmatpush1.msra.mxu0 0.0
        %2530 = vmatprep.subr.mxu0 0.0
        %2531 = vmatpush1.msra.mxu0 0.0
        %2532 = vmatprep.subr.mxu0 0.0
        %2533 = vmatpush1.msra.mxu0 0.0
        %2534 = vmatprep.subr.mxu0 0.0
        %2535 = vmatpush1.msra.mxu0 0.0
        %2536 = vmatprep.subr.mxu0 0.0
        %2537 = vmatpush1.msra.mxu0 0.0
        %2538 = vmatprep.subr.mxu0 0.0
        %2539 = vmatpush1.msra.mxu0 0.0
        %2540 = vmatprep.subr.mxu0 0.0
        %2541 = vmatpush1.msra.mxu0 0.0
        %2542 = vmatprep.mubr.f32.mxu0 %v2476
        %2543 = vmatmul.mubr.f32.gmra.mrb[0].mxu0 %v2442
        %v2544 = vpop.f32.mrb[0].mxu0
        %v2545 = vadd.f32 %v2473, %v2544
        %v2546 = vpop.f32.mrb[0].mxu0
        %2547 = vdwg.mxu0
        %v2548 = vmax.f32 %v2545, 0.0
        %v2549 = vld [vmem:[%s21] sm:$0xff]
        %v2550 = vld [vmem:[%s21 + $0x8] sm:$0xff]
        %v2551 = vld [vmem:[%s21 + $0x10] sm:$0xff]
        %v2552 = vld [vmem:[%s21 + $0x18] sm:$0xff]
        %v2553 = vld [vmem:[%s23] sm:$0x1]
        %v2555 = vlaneseq
        %v2556 = vshrl.u32 %v2555, 7
        %v2557 = vsub.s32 0, %v2556
        %v2558 = vrot.slane %v2553, %v2557
        %v2561 = vsel %vm1179, %v2548, 0
        %2563 = vmatprep.subr.mxu0 0.0
        %2564 = vmatpush1.msra.mxu0 %v2549
        %2565 = vmatprep.subr.mxu0 0.0
        %2566 = vmatpush1.msra.mxu0 %v2550
        %2567 = vmatprep.subr.mxu0 0.0
        %2568 = vmatpush1.msra.mxu0 %v2551
        %2569 = vmatprep.subr.mxu0 0.0
        %2570 = vmatpush1.msra.mxu0 %v2552
        %2571 = vmatprep.subr.mxu0 0.0
        %2572 = vmatpush1.msra.mxu0 0.0
        %2573 = vmatprep.subr.mxu0 0.0
        %2574 = vmatpush1.msra.mxu0 0.0
        %2575 = vmatprep.subr.mxu0 0.0
        %2576 = vmatpush1.msra.mxu0 0.0
        %2577 = vmatprep.subr.mxu0 0.0
        %2578 = vmatpush1.msra.mxu0 0.0
        %2579 = vmatprep.subr.mxu0 0.0
        %2580 = vmatpush1.msra.mxu0 0.0
        %2581 = vmatprep.subr.mxu0 0.0
        %2582 = vmatpush1.msra.mxu0 0.0
        %2583 = vmatprep.subr.mxu0 0.0
        %2584 = vmatpush1.msra.mxu0 0.0
        %2585 = vmatprep.subr.mxu0 0.0
        %2586 = vmatpush1.msra.mxu0 0.0
        %2587 = vmatprep.subr.mxu0 0.0
        %2588 = vmatpush1.msra.mxu0 0.0
        %2589 = vmatprep.subr.mxu0 0.0
        %2590 = vmatpush1.msra.mxu0 0.0
        %2591 = vmatprep.subr.mxu0 0.0
        %2592 = vmatpush1.msra.mxu0 0.0
        %2593 = vmatprep.subr.mxu0 0.0
        %2594 = vmatpush1.msra.mxu0 0.0
        %2595 = vmatprep.subr.mxu0 0.0
        %2596 = vmatpush1.msra.mxu0 0.0
        %2597 = vmatprep.subr.mxu0 0.0
        %2598 = vmatpush1.msra.mxu0 0.0
        %2599 = vmatprep.subr.mxu0 0.0
        %2600 = vmatpush1.msra.mxu0 0.0
        %2601 = vmatprep.subr.mxu0 0.0
        %2602 = vmatpush1.msra.mxu0 0.0
        %2603 = vmatprep.subr.mxu0 0.0
        %2604 = vmatpush1.msra.mxu0 0.0
        %2605 = vmatprep.subr.mxu0 0.0
        %2606 = vmatpush1.msra.mxu0 0.0
        %2607 = vmatprep.subr.mxu0 0.0
        %2608 = vmatpush1.msra.mxu0 0.0
        %2609 = vmatprep.subr.mxu0 0.0
        %2610 = vmatpush1.msra.mxu0 0.0
        %2611 = vmatprep.subr.mxu0 0.0
        %2612 = vmatpush1.msra.mxu0 0.0
        %2613 = vmatprep.subr.mxu0 0.0
        %2614 = vmatpush1.msra.mxu0 0.0
        %2615 = vmatprep.subr.mxu0 0.0
        %2616 = vmatpush1.msra.mxu0 0.0
        %2617 = vmatprep.subr.mxu0 0.0
        %2618 = vmatpush1.msra.mxu0 0.0
        %2619 = vmatprep.subr.mxu0 0.0
        %2620 = vmatpush1.msra.mxu0 0.0
        %2621 = vmatprep.subr.mxu0 0.0
        %2622 = vmatpush1.msra.mxu0 0.0
        %2623 = vmatprep.subr.mxu0 0.0
        %2624 = vmatpush1.msra.mxu0 0.0
        %2625 = vmatprep.subr.mxu0 0.0
        %2626 = vmatpush1.msra.mxu0 0.0
        %2627 = vmatprep.mubr.f32.mxu0 0.0
        %2628 = vmatmul.mubr.f32.gmra.mrb[0].mxu0 %v2561
        %v2629 = vpop.f32.mrb[0].mxu0
        %v2630 = vadd.f32 %v2558, %v2629
        %v2631 = vpop.f32.mrb[0].mxu0
        %2632 = vdwg.mxu0
        %v2633 = vmax.f32 %v2630, 0.0
        %v2634 = vld [vmem:[%s25] sm:$0xff]
        %v2635 = vld [vmem:[%s25 + $0x8] sm:$0xff]
        %v2636 = vld [vmem:[%s25 + $0x10] sm:$0xff]
        %v2637 = vld [vmem:[%s25 + $0x18] sm:$0xff]
        %v2638 = vld [vmem:[%s27] sm:$0x1]
        %v2640 = vlaneseq
        %v2641 = vshrl.u32 %v2640, 7
        %v2642 = vsub.s32 0, %v2641
        %v2643 = vrot.slane %v2638, %v2642
        %v2646 = vsel %vm1179, %v2633, 0
        %2648 = vmatprep.subr.mxu0 0.0
        %2649 = vmatpush1.msra.mxu0 %v2634
        %2650 = vmatprep.subr.mxu0 0.0
        %2651 = vmatpush1.msra.mxu0 %v2635
        %2652 = vmatprep.subr.mxu0 0.0
        %2653 = vmatpush1.msra.mxu0 %v2636
        %2654 = vmatprep.subr.mxu0 0.0
        %2655 = vmatpush1.msra.mxu0 %v2637
        %2656 = vmatprep.subr.mxu0 0.0
        %2657 = vmatpush1.msra.mxu0 0.0
        %2658 = vmatprep.subr.mxu0 0.0
        %2659 = vmatpush1.msra.mxu0 0.0
        %2660 = vmatprep.subr.mxu0 0.0
        %2661 = vmatpush1.msra.mxu0 0.0
        %2662 = vmatprep.subr.mxu0 0.0
        %2663 = vmatpush1.msra.mxu0 0.0
        %2664 = vmatprep.subr.mxu0 0.0
        %2665 = vmatpush1.msra.mxu0 0.0
        %2666 = vmatprep.subr.mxu0 0.0
        %2667 = vmatpush1.msra.mxu0 0.0
        %2668 = vmatprep.subr.mxu0 0.0
        %2669 = vmatpush1.msra.mxu0 0.0
        %2670 = vmatprep.subr.mxu0 0.0
        %2671 = vmatpush1.msra.mxu0 0.0
        %2672 = vmatprep.subr.mxu0 0.0
        %2673 = vmatpush1.msra.mxu0 0.0
        %2674 = vmatprep.subr.mxu0 0.0
        %2675 = vmatpush1.msra.mxu0 0.0
        %2676 = vmatprep.subr.mxu0 0.0
        %2677 = vmatpush1.msra.mxu0 0.0
        %2678 = vmatprep.subr.mxu0 0.0
        %2679 = vmatpush1.msra.mxu0 0.0
        %2680 = vmatprep.subr.mxu0 0.0
        %2681 = vmatpush1.msra.mxu0 0.0
        %2682 = vmatprep.subr.mxu0 0.0
        %2683 = vmatpush1.msra.mxu0 0.0
        %2684 = vmatprep.subr.mxu0 0.0
        %2685 = vmatpush1.msra.mxu0 0.0
        %2686 = vmatprep.subr.mxu0 0.0
        %2687 = vmatpush1.msra.mxu0 0.0
        %2688 = vmatprep.subr.mxu0 0.0
        %2689 = vmatpush1.msra.mxu0 0.0
        %2690 = vmatprep.subr.mxu0 0.0
        %2691 = vmatpush1.msra.mxu0 0.0
        %2692 = vmatprep.subr.mxu0 0.0
        %2693 = vmatpush1.msra.mxu0 0.0
        %2694 = vmatprep.subr.mxu0 0.0
        %2695 = vmatpush1.msra.mxu0 0.0
        %2696 = vmatprep.subr.mxu0 0.0
        %2697 = vmatpush1.msra.mxu0 0.0
        %2698 = vmatprep.subr.mxu0 0.0
        %2699 = vmatpush1.msra.mxu0 0.0
        %2700 = vmatprep.subr.mxu0 0.0
        %2701 = vmatpush1.msra.mxu0 0.0
        %2702 = vmatprep.subr.mxu0 0.0
        %2703 = vmatpush1.msra.mxu0 0.0
        %2704 = vmatprep.subr.mxu0 0.0
        %2705 = vmatpush1.msra.mxu0 0.0
        %2706 = vmatprep.subr.mxu0 0.0
        %2707 = vmatpush1.msra.mxu0 0.0
        %2708 = vmatprep.subr.mxu0 0.0
        %2709 = vmatpush1.msra.mxu0 0.0
        %2710 = vmatprep.subr.mxu0 0.0
        %2711 = vmatpush1.msra.mxu0 0.0
        %2712 = vmatprep.mubr.f32.mxu0 0.0
        %2713 = vmatmul.mubr.f32.gmra.mrb[0].mxu0 %v2646
        %v2714 = vpop.f32.mrb[0].mxu0
        %v2715 = vadd.f32 %v2643, %v2714
        %v2716 = vpop.f32.mrb[0].mxu0
        %2717 = vdwg.mxu0
        %v2718 = vld [vmem:[%s29] sm:$0xff]
        %v2719 = vld [vmem:[%s29 + $0x8] sm:$0xff]
        %v2720 = vld [vmem:[%s29 + $0x10] sm:$0xff]
        %v2721 = vld [vmem:[%s29 + $0x18] sm:$0xff]
        %v2722 = vld [vmem:[%s31] sm:$0x1]
        %v2724 = vlaneseq
        %v2725 = vshrl.u32 %v2724, 7
        %v2726 = vsub.s32 0, %v2725
        %v2727 = vrot.slane %v2722, %v2726
        %v2730 = vsel %vm1179, %v2439, 0
        %2732 = vmatprep.subr.mxu0 0.0
        %2733 = vmatpush1.msra.mxu0 %v2718
        %2734 = vmatprep.subr.mxu0 0.0
        %2735 = vmatpush1.msra.mxu0 %v2719
        %2736 = vmatprep.subr.mxu0 0.0
        %2737 = vmatpush1.msra.mxu0 %v2720
        %2738 = vmatprep.subr.mxu0 0.0
        %2739 = vmatpush1.msra.mxu0 %v2721
        %2740 = vmatprep.subr.mxu0 0.0
        %2741 = vmatpush1.msra.mxu0 0.0
        %2742 = vmatprep.subr.mxu0 0.0
        %2743 = vmatpush1.msra.mxu0 0.0
        %2744 = vmatprep.subr.mxu0 0.0
        %2745 = vmatpush1.msra.mxu0 0.0
        %2746 = vmatprep.subr.mxu0 0.0
        %2747 = vmatpush1.msra.mxu0 0.0
        %2748 = vmatprep.subr.mxu0 0.0
        %2749 = vmatpush1.msra.mxu0 0.0
        %2750 = vmatprep.subr.mxu0 0.0
        %2751 = vmatpush1.msra.mxu0 0.0
        %2752 = vmatprep.subr.mxu0 0.0
        %2753 = vmatpush1.msra.mxu0 0.0
        %2754 = vmatprep.subr.mxu0 0.0
        %2755 = vmatpush1.msra.mxu0 0.0
        %2756 = vmatprep.subr.mxu0 0.0
        %2757 = vmatpush1.msra.mxu0 0.0
        %2758 = vmatprep.subr.mxu0 0.0
        %2759 = vmatpush1.msra.mxu0 0.0
        %2760 = vmatprep.subr.mxu0 0.0
        %2761 = vmatpush1.msra.mxu0 0.0
        %2762 = vmatprep.subr.mxu0 0.0
        %2763 = vmatpush1.msra.mxu0 0.0
        %2764 = vmatprep.subr.mxu0 0.0
        %2765 = vmatpush1.msra.mxu0 0.0
        %2766 = vmatprep.subr.mxu0 0.0
        %2767 = vmatpush1.msra.mxu0 0.0
        %2768 = vmatprep.subr.mxu0 0.0
        %2769 = vmatpush1.msra.mxu0 0.0
        %2770 = vmatprep.subr.mxu0 0.0
        %2771 = vmatpush1.msra.mxu0 0.0
        %2772 = vmatprep.subr.mxu0 0.0
        %2773 = vmatpush1.msra.mxu0 0.0
        %2774 = vmatprep.subr.mxu0 0.0
        %2775 = vmatpush1.msra.mxu0 0.0
        %2776 = vmatprep.subr.mxu0 0.0
        %2777 = vmatpush1.msra.mxu0 0.0
        %2778 = vmatprep.subr.mxu0 0.0
        %2779 = vmatpush1.msra.mxu0 0.0
        %2780 = vmatprep.subr.mxu0 0.0
        %2781 = vmatpush1.msra.mxu0 0.0
        %2782 = vmatprep.subr.mxu0 0.0
        %2783 = vmatpush1.msra.mxu0 0.0
        %2784 = vmatprep.subr.mxu0 0.0
        %2785 = vmatpush1.msra.mxu0 0.0
        %2786 = vmatprep.subr.mxu0 0.0
        %2787 = vmatpush1.msra.mxu0 0.0
        %2788 = vmatprep.subr.mxu0 0.0
        %2789 = vmatpush1.msra.mxu0 0.0
        %2790 = vmatprep.subr.mxu0 0.0
        %2791 = vmatpush1.msra.mxu0 0.0
        %2792 = vmatprep.subr.mxu0 0.0
        %2793 = vmatpush1.msra.mxu0 0.0
        %2794 = vmatprep.subr.mxu0 0.0
        %2795 = vmatpush1.msra.mxu0 0.0
        %2796 = vmatprep.mubr.f32.mxu0 0.0
        %2797 = vmatmul.mubr.f32.gmra.mrb[0].mxu0 %v2730
        %v2798 = vpop.f32.mrb[0].mxu0
        %v2799 = vadd.f32 %v2727, %v2798
        %v2800 = vpop.f32.mrb[0].mxu0
        %2801 = vdwg.mxu0
        %2803 = vrot.lane.b32.xlu0 %v2799, 96
        %v2804 = vpop.permute.xlu0 %2803
        %v2805 = vsel %vm1088, %v2799, 0
        %v2807 = vsel %vm1088, %v2804, 0
        %2809 = vmatprep.subr.mxu0 0.0
        %2810 = vmatpush1.xpose.msra.mxu0 %v2807
        %2811 = vmatprep.subr.mxu0 0.0
        %2812 = vmatpush1.xpose.msra.mxu0 0.0
        %2813 = vmatprep.subr.mxu0 0.0
        %2814 = vmatpush1.xpose.msra.mxu0 0.0
        %2815 = vmatprep.subr.mxu0 0.0
        %2816 = vmatpush1.xpose.msra.mxu0 0.0
        %2817 = vmatprep.subr.mxu0 0.0
        %2818 = vmatpush1.xpose.msra.mxu0 0.0
        %2819 = vmatprep.subr.mxu0 0.0
        %2820 = vmatpush1.xpose.msra.mxu0 0.0
        %2821 = vmatprep.subr.mxu0 0.0
        %2822 = vmatpush1.xpose.msra.mxu0 0.0
        %2823 = vmatprep.subr.mxu0 0.0
        %2824 = vmatpush1.xpose.msra.mxu0 0.0
        %2825 = vmatprep.subr.mxu0 0.0
        %2826 = vmatpush1.xpose.msra.mxu0 0.0
        %2827 = vmatprep.subr.mxu0 0.0
        %2828 = vmatpush1.xpose.msra.mxu0 0.0
        %2829 = vmatprep.subr.mxu0 0.0
        %2830 = vmatpush1.xpose.msra.mxu0 0.0
        %2831 = vmatprep.subr.mxu0 0.0
        %2832 = vmatpush1.xpose.msra.mxu0 0.0
        %2833 = vmatprep.subr.mxu0 0.0
        %2834 = vmatpush1.xpose.msra.mxu0 0.0
        %2835 = vmatprep.subr.mxu0 0.0
        %2836 = vmatpush1.xpose.msra.mxu0 0.0
        %2837 = vmatprep.subr.mxu0 0.0
        %2838 = vmatpush1.xpose.msra.mxu0 0.0
        %2839 = vmatprep.subr.mxu0 0.0
        %2840 = vmatpush1.xpose.msra.mxu0 0.0
        %2841 = vmatprep.subr.mxu0 0.0
        %2842 = vmatpush1.xpose.msra.mxu0 0.0
        %2843 = vmatprep.subr.mxu0 0.0
        %2844 = vmatpush1.xpose.msra.mxu0 0.0
        %2845 = vmatprep.subr.mxu0 0.0
        %2846 = vmatpush1.xpose.msra.mxu0 0.0
        %2847 = vmatprep.subr.mxu0 0.0
        %2848 = vmatpush1.xpose.msra.mxu0 0.0
        %2849 = vmatprep.subr.mxu0 0.0
        %2850 = vmatpush1.xpose.msra.mxu0 0.0
        %2851 = vmatprep.subr.mxu0 0.0
        %2852 = vmatpush1.xpose.msra.mxu0 0.0
        %2853 = vmatprep.subr.mxu0 0.0
        %2854 = vmatpush1.xpose.msra.mxu0 0.0
        %2855 = vmatprep.subr.mxu0 0.0
        %2856 = vmatpush1.xpose.msra.mxu0 0.0
        %2857 = vmatprep.subr.mxu0 0.0
        %2858 = vmatpush1.xpose.msra.mxu0 0.0
        %2859 = vmatprep.subr.mxu0 0.0
        %2860 = vmatpush1.xpose.msra.mxu0 0.0
        %2861 = vmatprep.subr.mxu0 0.0
        %2862 = vmatpush1.xpose.msra.mxu0 0.0
        %2863 = vmatprep.subr.mxu0 0.0
        %2864 = vmatpush1.xpose.msra.mxu0 0.0
        %2865 = vmatprep.subr.mxu0 0.0
        %2866 = vmatpush1.xpose.msra.mxu0 0.0
        %2867 = vmatprep.subr.mxu0 0.0
        %2868 = vmatpush1.xpose.msra.mxu0 0.0
        %2869 = vmatprep.subr.mxu0 0.0
        %2870 = vmatpush1.xpose.msra.mxu0 0.0
        %2871 = vmatprep.subr.mxu0 0.0
        %2872 = vmatpush1.xpose.msra.mxu0 0.0
        %2873 = vmatprep.mubr.f32.mxu0 0.0
        %2874 = vmatmul.mubr.f32.gmra.mrb[0].mxu0 %v2805
        %v2875 = vpop.f32.mrb[0].mxu0
        %v2876 = vadd.f32 0.0, %v2875
        %v2877 = vpop.f32.mrb[0].mxu0
        %2878 = vdwg.mxu0
        %v2879 = vmul.f32 %v2876, 0.35355338
        %v2880 = vsel %vm1088, %v2879, -inf
        %2881 = vmax.xlane.f32.xlu0 %v2880
        %v2882 = vpop.xlane.xlu0 %2881
        %v2883 = vsub.f32 %v2879, %v2882
        %v2884 = vmul.f32 %v2883, 1.442695
        %v2885 = vpow.pop %v2884
        %v2886 = vsel %vm1088, %v2885, 0.0
        %2887 = vadd.xlane.f32.xlu0 %v2886
        %v2888 = vpop.xlane.xlu0 %2887
        %v2889 = vrcp.pop %v2888
        %v2890 = vmul.f32 %v2885, %v2889
        %2891 = vrot.lane.b32.xlu0 %v2799, 64
        %v2892 = vpop.permute.xlu0 %2891
        %v2895 = vsel %vm1088, %v2890, 0
        %2897 = vmatprep.subr.mxu0 0.0
        %2898 = vmatpush1.msra.mxu0 %v2892
        %2899 = vmatprep.subr.mxu0 0.0
        %2900 = vmatpush1.msra.mxu0 0.0
        %2901 = vmatprep.subr.mxu0 0.0
        %2902 = vmatpush1.msra.mxu0 0.0
        %2903 = vmatprep.subr.mxu0 0.0
        %2904 = vmatpush1.msra.mxu0 0.0
        %2905 = vmatprep.subr.mxu0 0.0
        %2906 = vmatpush1.msra.mxu0 0.0
        %2907 = vmatprep.subr.mxu0 0.0
        %2908 = vmatpush1.msra.mxu0 0.0
        %2909 = vmatprep.subr.mxu0 0.0
        %2910 = vmatpush1.msra.mxu0 0.0
        %2911 = vmatprep.subr.mxu0 0.0
        %2912 = vmatpush1.msra.mxu0 0.0
        %2913 = vmatprep.subr.mxu0 0.0
        %2914 = vmatpush1.msra.mxu0 0.0
        %2915 = vmatprep.subr.mxu0 0.0
        %2916 = vmatpush1.msra.mxu0 0.0
        %2917 = vmatprep.subr.mxu0 0.0
        %2918 = vmatpush1.msra.mxu0 0.0
        %2919 = vmatprep.subr.mxu0 0.0
        %2920 = vmatpush1.msra.mxu0 0.0
        %2921 = vmatprep.subr.mxu0 0.0
        %2922 = vmatpush1.msra.mxu0 0.0
        %2923 = vmatprep.subr.mxu0 0.0
        %2924 = vmatpush1.msra.mxu0 0.0
        %2925 = vmatprep.subr.mxu0 0.0
        %2926 = vmatpush1.msra.mxu0 0.0
        %2927 = vmatprep.subr.mxu0 0.0
        %2928 = vmatpush1.msra.mxu0 0.0
        %2929 = vmatprep.subr.mxu0 0.0
        %2930 = vmatpush1.msra.mxu0 0.0
        %2931 = vmatprep.subr.mxu0 0.0
        %2932 = vmatpush1.msra.mxu0 0.0
        %2933 = vmatprep.subr.mxu0 0.0
        %2934 = vmatpush1.msra.mxu0 0.0
        %2935 = vmatprep.subr.mxu0 0.0
        %2936 = vmatpush1.msra.mxu0 0.0
        %2937 = vmatprep.subr.mxu0 0.0
        %2938 = vmatpush1.msra.mxu0 0.0
        %2939 = vmatprep.subr.mxu0 0.0
        %2940 = vmatpush1.msra.mxu0 0.0
        %2941 = vmatprep.subr.mxu0 0.0
        %2942 = vmatpush1.msra.mxu0 0.0
        %2943 = vmatprep.subr.mxu0 0.0
        %2944 = vmatpush1.msra.mxu0 0.0
        %2945 = vmatprep.subr.mxu0 0.0
        %2946 = vmatpush1.msra.mxu0 0.0
        %2947 = vmatprep.subr.mxu0 0.0
        %2948 = vmatpush1.msra.mxu0 0.0
        %2949 = vmatprep.subr.mxu0 0.0
        %2950 = vmatpush1.msra.mxu0 0.0
        %2951 = vmatprep.subr.mxu0 0.0
        %2952 = vmatpush1.msra.mxu0 0.0
        %2953 = vmatprep.subr.mxu0 0.0
        %2954 = vmatpush1.msra.mxu0 0.0
        %2955 = vmatprep.subr.mxu0 0.0
        %2956 = vmatpush1.msra.mxu0 0.0
        %2957 = vmatprep.subr.mxu0 0.0
        %2958 = vmatpush1.msra.mxu0 0.0
        %2959 = vmatprep.subr.mxu0 0.0
        %2960 = vmatpush1.msra.mxu0 0.0
        %2961 = vmatprep.mubr.f32.mxu0 0.0
        %2962 = vmatmul.mubr.f32.gmra.mrb[0].mxu0 %v2895
        %v2963 = vpop.f32.mrb[0].mxu0
        %v2964 = vadd.f32 0.0, %v2963
        %v2965 = vpop.f32.mrb[0].mxu0
        %2966 = vdwg.mxu0
        %2967 = vrot.lane.b32.xlu0 %v2799, 120
        %v2968 = vpop.permute.xlu0 %2967
        %2969 = vrot.lane.b32.xlu0 %v2799, 88
        %v2970 = vpop.permute.xlu0 %2969
        %v2971 = vsel %vm1088, %v2968, 0
        %v2973 = vsel %vm1088, %v2970, 0
        %2975 = vmatprep.subr.mxu0 0.0
        %2976 = vmatpush1.xpose.msra.mxu0 %v2973
        %2977 = vmatprep.subr.mxu0 0.0
        %2978 = vmatpush1.xpose.msra.mxu0 0.0
        %2979 = vmatprep.subr.mxu0 0.0
        %2980 = vmatpush1.xpose.msra.mxu0 0.0
        %2981 = vmatprep.subr.mxu0 0.0
        %2982 = vmatpush1.xpose.msra.mxu0 0.0
        %2983 = vmatprep.subr.mxu0 0.0
        %2984 = vmatpush1.xpose.msra.mxu0 0.0
        %2985 = vmatprep.subr.mxu0 0.0
        %2986 = vmatpush1.xpose.msra.mxu0 0.0
        %2987 = vmatprep.subr.mxu0 0.0
        %2988 = vmatpush1.xpose.msra.mxu0 0.0
        %2989 = vmatprep.subr.mxu0 0.0
        %2990 = vmatpush1.xpose.msra.mxu0 0.0
        %2991 = vmatprep.subr.mxu0 0.0
        %2992 = vmatpush1.xpose.msra.mxu0 0.0
        %2993 = vmatprep.subr.mxu0 0.0
        %2994 = vmatpush1.xpose.msra.mxu0 0.0
        %2995 = vmatprep.subr.mxu0 0.0
        %2996 = vmatpush1.xpose.msra.mxu0 0.0
        %2997 = vmatprep.subr.mxu0 0.0
        %2998 = vmatpush1.xpose.msra.mxu0 0.0
        %2999 = vmatprep.subr.mxu0 0.0
        %3000 = vmatpush1.xpose.msra.mxu0 0.0
        %3001 = vmatprep.subr.mxu0 0.0
        %3002 = vmatpush1.xpose.msra.mxu0 0.0
        %3003 = vmatprep.subr.mxu0 0.0
        %3004 = vmatpush1.xpose.msra.mxu0 0.0
        %3005 = vmatprep.subr.mxu0 0.0
        %3006 = vmatpush1.xpose.msra.mxu0 0.0
        %3007 = vmatprep.subr.mxu0 0.0
        %3008 = vmatpush1.xpose.msra.mxu0 0.0
        %3009 = vmatprep.subr.mxu0 0.0
        %3010 = vmatpush1.xpose.msra.mxu0 0.0
        %3011 = vmatprep.subr.mxu0 0.0
        %3012 = vmatpush1.xpose.msra.mxu0 0.0
        %3013 = vmatprep.subr.mxu0 0.0
        %3014 = vmatpush1.xpose.msra.mxu0 0.0
        %3015 = vmatprep.subr.mxu0 0.0
        %3016 = vmatpush1.xpose.msra.mxu0 0.0
        %3017 = vmatprep.subr.mxu0 0.0
        %3018 = vmatpush1.xpose.msra.mxu0 0.0
        %3019 = vmatprep.subr.mxu0 0.0
        %3020 = vmatpush1.xpose.msra.mxu0 0.0
        %3021 = vmatprep.subr.mxu0 0.0
        %3022 = vmatpush1.xpose.msra.mxu0 0.0
        %3023 = vmatprep.subr.mxu0 0.0
        %3024 = vmatpush1.xpose.msra.mxu0 0.0
        %3025 = vmatprep.subr.mxu0 0.0
        %3026 = vmatpush1.xpose.msra.mxu0 0.0
        %3027 = vmatprep.subr.mxu0 0.0
        %3028 = vmatpush1.xpose.msra.mxu0 0.0
        %3029 = vmatprep.subr.mxu0 0.0
        %3030 = vmatpush1.xpose.msra.mxu0 0.0
        %3031 = vmatprep.subr.mxu0 0.0
        %3032 = vmatpush1.xpose.msra.mxu0 0.0
        %3033 = vmatprep.subr.mxu0 0.0
        %3034 = vmatpush1.xpose.msra.mxu0 0.0
        %3035 = vmatprep.subr.mxu0 0.0
        %3036 = vmatpush1.xpose.msra.mxu0 0.0
        %3037 = vmatprep.subr.mxu0 0.0
        %3038 = vmatpush1.xpose.msra.mxu0 0.0
        %3039 = vmatprep.mubr.f32.mxu0 0.0
        %3040 = vmatmul.mubr.f32.gmra.mrb[0].mxu0 %v2971
        %v3041 = vpop.f32.mrb[0].mxu0
        %v3042 = vadd.f32 0.0, %v3041
        %v3043 = vpop.f32.mrb[0].mxu0
        %3044 = vdwg.mxu0
        %v3045 = vmul.f32 %v3042, 0.35355338
        %v3046 = vsel %vm1088, %v3045, -inf
        %3047 = vmax.xlane.f32.xlu0 %v3046
        %v3048 = vpop.xlane.xlu0 %3047
        %v3049 = vsub.f32 %v3045, %v3048
        %v3050 = vmul.f32 %v3049, 1.442695
        %v3051 = vpow.pop %v3050
        %v3052 = vsel %vm1088, %v3051, 0.0
        %3053 = vadd.xlane.f32.xlu0 %v3052
        %v3054 = vpop.xlane.xlu0 %3053
        %v3055 = vrcp.pop %v3054
        %v3056 = vmul.f32 %v3051, %v3055
        %3057 = vrot.lane.b32.xlu0 %v2799, 56
        %v3058 = vpop.permute.xlu0 %3057
        %v3061 = vsel %vm1088, %v3056, 0
        %3063 = vmatprep.subr.mxu0 0.0
        %3064 = vmatpush1.msra.mxu0 %v3058
        %3065 = vmatprep.subr.mxu0 0.0
        %3066 = vmatpush1.msra.mxu0 0.0
        %3067 = vmatprep.subr.mxu0 0.0
        %3068 = vmatpush1.msra.mxu0 0.0
        %3069 = vmatprep.subr.mxu0 0.0
        %3070 = vmatpush1.msra.mxu0 0.0
        %3071 = vmatprep.subr.mxu0 0.0
        %3072 = vmatpush1.msra.mxu0 0.0
        %3073 = vmatprep.subr.mxu0 0.0
        %3074 = vmatpush1.msra.mxu0 0.0
        %3075 = vmatprep.subr.mxu0 0.0
        %3076 = vmatpush1.msra.mxu0 0.0
        %3077 = vmatprep.subr.mxu0 0.0
        %3078 = vmatpush1.msra.mxu0 0.0
        %3079 = vmatprep.subr.mxu0 0.0
        %3080 = vmatpush1.msra.mxu0 0.0
        %3081 = vmatprep.subr.mxu0 0.0
        %3082 = vmatpush1.msra.mxu0 0.0
        %3083 = vmatprep.subr.mxu0 0.0
        %3084 = vmatpush1.msra.mxu0 0.0
        %3085 = vmatprep.subr.mxu0 0.0
        %3086 = vmatpush1.msra.mxu0 0.0
        %3087 = vmatprep.subr.mxu0 0.0
        %3088 = vmatpush1.msra.mxu0 0.0
        %3089 = vmatprep.subr.mxu0 0.0
        %3090 = vmatpush1.msra.mxu0 0.0
        %3091 = vmatprep.subr.mxu0 0.0
        %3092 = vmatpush1.msra.mxu0 0.0
        %3093 = vmatprep.subr.mxu0 0.0
        %3094 = vmatpush1.msra.mxu0 0.0
        %3095 = vmatprep.subr.mxu0 0.0
        %3096 = vmatpush1.msra.mxu0 0.0
        %3097 = vmatprep.subr.mxu0 0.0
        %3098 = vmatpush1.msra.mxu0 0.0
        %3099 = vmatprep.subr.mxu0 0.0
        %3100 = vmatpush1.msra.mxu0 0.0
        %3101 = vmatprep.subr.mxu0 0.0
        %3102 = vmatpush1.msra.mxu0 0.0
        %3103 = vmatprep.subr.mxu0 0.0
        %3104 = vmatpush1.msra.mxu0 0.0
        %3105 = vmatprep.subr.mxu0 0.0
        %3106 = vmatpush1.msra.mxu0 0.0
        %3107 = vmatprep.subr.mxu0 0.0
        %3108 = vmatpush1.msra.mxu0 0.0
        %3109 = vmatprep.subr.mxu0 0.0
        %3110 = vmatpush1.msra.mxu0 0.0
        %3111 = vmatprep.subr.mxu0 0.0
        %3112 = vmatpush1.msra.mxu0 0.0
        %3113 = vmatprep.subr.mxu0 0.0
        %3114 = vmatpush1.msra.mxu0 0.0
        %3115 = vmatprep.subr.mxu0 0.0
        %3116 = vmatpush1.msra.mxu0 0.0
        %3117 = vmatprep.subr.mxu0 0.0
        %3118 = vmatpush1.msra.mxu0 0.0
        %3119 = vmatprep.subr.mxu0 0.0
        %3120 = vmatpush1.msra.mxu0 0.0
        %3121 = vmatprep.subr.mxu0 0.0
        %3122 = vmatpush1.msra.mxu0 0.0
        %3123 = vmatprep.subr.mxu0 0.0
        %3124 = vmatpush1.msra.mxu0 0.0
        %3125 = vmatprep.subr.mxu0 0.0
        %3126 = vmatpush1.msra.mxu0 0.0
        %3127 = vmatprep.mubr.f32.mxu0 0.0
        %3128 = vmatmul.mubr.f32.gmra.mrb[0].mxu0 %v3061
        %v3129 = vpop.f32.mrb[0].mxu0
        %v3130 = vadd.f32 0.0, %v3129
        %v3131 = vpop.f32.mrb[0].mxu0
        %3132 = vdwg.mxu0
        %3133 = vrot.lane.b32.xlu0 %v2799, 112
        %v3134 = vpop.permute.xlu0 %3133
        %3135 = vrot.lane.b32.xlu0 %v2799, 80
        %v3136 = vpop.permute.xlu0 %3135
        %v3137 = vsel %vm1088, %v3134, 0
        %v3139 = vsel %vm1088, %v3136, 0
        %3141 = vmatprep.subr.mxu0 0.0
        %3142 = vmatpush1.xpose.msra.mxu0 %v3139
        %3143 = vmatprep.subr.mxu0 0.0
        %3144 = vmatpush1.xpose.msra.mxu0 0.0
        %3145 = vmatprep.subr.mxu0 0.0
        %3146 = vmatpush1.xpose.msra.mxu0 0.0
        %3147 = vmatprep.subr.mxu0 0.0
        %3148 = vmatpush1.xpose.msra.mxu0 0.0
        %3149 = vmatprep.subr.mxu0 0.0
        %3150 = vmatpush1.xpose.msra.mxu0 0.0
        %3151 = vmatprep.subr.mxu0 0.0
        %3152 = vmatpush1.xpose.msra.mxu0 0.0
        %3153 = vmatprep.subr.mxu0 0.0
        %3154 = vmatpush1.xpose.msra.mxu0 0.0
        %3155 = vmatprep.subr.mxu0 0.0
        %3156 = vmatpush1.xpose.msra.mxu0 0.0
        %3157 = vmatprep.subr.mxu0 0.0
        %3158 = vmatpush1.xpose.msra.mxu0 0.0
        %3159 = vmatprep.subr.mxu0 0.0
        %3160 = vmatpush1.xpose.msra.mxu0 0.0
        %3161 = vmatprep.subr.mxu0 0.0
        %3162 = vmatpush1.xpose.msra.mxu0 0.0
        %3163 = vmatprep.subr.mxu0 0.0
        %3164 = vmatpush1.xpose.msra.mxu0 0.0
        %3165 = vmatprep.subr.mxu0 0.0
        %3166 = vmatpush1.xpose.msra.mxu0 0.0
        %3167 = vmatprep.subr.mxu0 0.0
        %3168 = vmatpush1.xpose.msra.mxu0 0.0
        %3169 = vmatprep.subr.mxu0 0.0
        %3170 = vmatpush1.xpose.msra.mxu0 0.0
        %3171 = vmatprep.subr.mxu0 0.0
        %3172 = vmatpush1.xpose.msra.mxu0 0.0
        %3173 = vmatprep.subr.mxu0 0.0
        %3174 = vmatpush1.xpose.msra.mxu0 0.0
        %3175 = vmatprep.subr.mxu0 0.0
        %3176 = vmatpush1.xpose.msra.mxu0 0.0
        %3177 = vmatprep.subr.mxu0 0.0
        %3178 = vmatpush1.xpose.msra.mxu0 0.0
        %3179 = vmatprep.subr.mxu0 0.0
        %3180 = vmatpush1.xpose.msra.mxu0 0.0
        %3181 = vmatprep.subr.mxu0 0.0
        %3182 = vmatpush1.xpose.msra.mxu0 0.0
        %3183 = vmatprep.subr.mxu0 0.0
        %3184 = vmatpush1.xpose.msra.mxu0 0.0
        %3185 = vmatprep.subr.mxu0 0.0
        %3186 = vmatpush1.xpose.msra.mxu0 0.0
        %3187 = vmatprep.subr.mxu0 0.0
        %3188 = vmatpush1.xpose.msra.mxu0 0.0
        %3189 = vmatprep.subr.mxu0 0.0
        %3190 = vmatpush1.xpose.msra.mxu0 0.0
        %3191 = vmatprep.subr.mxu0 0.0
        %3192 = vmatpush1.xpose.msra.mxu0 0.0
        %3193 = vmatprep.subr.mxu0 0.0
        %3194 = vmatpush1.xpose.msra.mxu0 0.0
        %3195 = vmatprep.subr.mxu0 0.0
        %3196 = vmatpush1.xpose.msra.mxu0 0.0
        %3197 = vmatprep.subr.mxu0 0.0
        %3198 = vmatpush1.xpose.msra.mxu0 0.0
        %3199 = vmatprep.subr.mxu0 0.0
        %3200 = vmatpush1.xpose.msra.mxu0 0.0
        %3201 = vmatprep.subr.mxu0 0.0
        %3202 = vmatpush1.xpose.msra.mxu0 0.0
        %3203 = vmatprep.subr.mxu0 0.0
        %3204 = vmatpush1.xpose.msra.mxu0 0.0
        %3205 = vmatprep.mubr.f32.mxu0 0.0
        %3206 = vmatmul.mubr.f32.gmra.mrb[0].mxu0 %v3137
        %v3207 = vpop.f32.mrb[0].mxu0
        %v3208 = vadd.f32 0.0, %v3207
        %v3209 = vpop.f32.mrb[0].mxu0
        %3210 = vdwg.mxu0
        %v3211 = vmul.f32 %v3208, 0.35355338
        %v3212 = vsel %vm1088, %v3211, -inf
        %3213 = vmax.xlane.f32.xlu0 %v3212
        %v3214 = vpop.xlane.xlu0 %3213
        %v3215 = vsub.f32 %v3211, %v3214
        %v3216 = vmul.f32 %v3215, 1.442695
        %v3217 = vpow.pop %v3216
        %v3218 = vsel %vm1088, %v3217, 0.0
        %3219 = vadd.xlane.f32.xlu0 %v3218
        %v3220 = vpop.xlane.xlu0 %3219
        %v3221 = vrcp.pop %v3220
        %v3222 = vmul.f32 %v3217, %v3221
        %3223 = vrot.lane.b32.xlu0 %v2799, 48
        %v3224 = vpop.permute.xlu0 %3223
        %v3227 = vsel %vm1088, %v3222, 0
        %3229 = vmatprep.subr.mxu0 0.0
        %3230 = vmatpush1.msra.mxu0 %v3224
        %3231 = vmatprep.subr.mxu0 0.0
        %3232 = vmatpush1.msra.mxu0 0.0
        %3233 = vmatprep.subr.mxu0 0.0
        %3234 = vmatpush1.msra.mxu0 0.0
        %3235 = vmatprep.subr.mxu0 0.0
        %3236 = vmatpush1.msra.mxu0 0.0
        %3237 = vmatprep.subr.mxu0 0.0
        %3238 = vmatpush1.msra.mxu0 0.0
        %3239 = vmatprep.subr.mxu0 0.0
        %3240 = vmatpush1.msra.mxu0 0.0
        %3241 = vmatprep.subr.mxu0 0.0
        %3242 = vmatpush1.msra.mxu0 0.0
        %3243 = vmatprep.subr.mxu0 0.0
        %3244 = vmatpush1.msra.mxu0 0.0
        %3245 = vmatprep.subr.mxu0 0.0
        %3246 = vmatpush1.msra.mxu0 0.0
        %3247 = vmatprep.subr.mxu0 0.0
        %3248 = vmatpush1.msra.mxu0 0.0
        %3249 = vmatprep.subr.mxu0 0.0
        %3250 = vmatpush1.msra.mxu0 0.0
        %3251 = vmatprep.subr.mxu0 0.0
        %3252 = vmatpush1.msra.mxu0 0.0
        %3253 = vmatprep.subr.mxu0 0.0
        %3254 = vmatpush1.msra.mxu0 0.0
        %3255 = vmatprep.subr.mxu0 0.0
        %3256 = vmatpush1.msra.mxu0 0.0
        %3257 = vmatprep.subr.mxu0 0.0
        %3258 = vmatpush1.msra.mxu0 0.0
        %3259 = vmatprep.subr.mxu0 0.0
        %3260 = vmatpush1.msra.mxu0 0.0
        %3261 = vmatprep.subr.mxu0 0.0
        %3262 = vmatpush1.msra.mxu0 0.0
        %3263 = vmatprep.subr.mxu0 0.0
        %3264 = vmatpush1.msra.mxu0 0.0
        %3265 = vmatprep.subr.mxu0 0.0
        %3266 = vmatpush1.msra.mxu0 0.0
        %3267 = vmatprep.subr.mxu0 0.0
        %3268 = vmatpush1.msra.mxu0 0.0
        %3269 = vmatprep.subr.mxu0 0.0
        %3270 = vmatpush1.msra.mxu0 0.0
        %3271 = vmatprep.subr.mxu0 0.0
        %3272 = vmatpush1.msra.mxu0 0.0
        %3273 = vmatprep.subr.mxu0 0.0
        %3274 = vmatpush1.msra.mxu0 0.0
        %3275 = vmatprep.subr.mxu0 0.0
        %3276 = vmatpush1.msra.mxu0 0.0
        %3277 = vmatprep.subr.mxu0 0.0
        %3278 = vmatpush1.msra.mxu0 0.0
        %3279 = vmatprep.subr.mxu0 0.0
        %3280 = vmatpush1.msra.mxu0 0.0
        %3281 = vmatprep.subr.mxu0 0.0
        %3282 = vmatpush1.msra.mxu0 0.0
        %3283 = vmatprep.subr.mxu0 0.0
        %3284 = vmatpush1.msra.mxu0 0.0
        %3285 = vmatprep.subr.mxu0 0.0
        %3286 = vmatpush1.msra.mxu0 0.0
        %3287 = vmatprep.subr.mxu0 0.0
        %3288 = vmatpush1.msra.mxu0 0.0
        %3289 = vmatprep.subr.mxu0 0.0
        %3290 = vmatpush1.msra.mxu0 0.0
        %3291 = vmatprep.subr.mxu0 0.0
        %3292 = vmatpush1.msra.mxu0 0.0
        %3293 = vmatprep.mubr.f32.mxu0 0.0
        %3294 = vmatmul.mubr.f32.gmra.mrb[0].mxu0 %v3227
        %v3295 = vpop.f32.mrb[0].mxu0
        %v3296 = vadd.f32 0.0, %v3295
        %v3297 = vpop.f32.mrb[0].mxu0
        %3298 = vdwg.mxu0
        %3299 = vrot.lane.b32.xlu0 %v2799, 104
        %v3300 = vpop.permute.xlu0 %3299
        %3301 = vrot.lane.b32.xlu0 %v2799, 72
        %v3302 = vpop.permute.xlu0 %3301
        %v3303 = vsel %vm1088, %v3300, 0
        %v3305 = vsel %vm1088, %v3302, 0
        %3307 = vmatprep.subr.mxu0 0.0
        %3308 = vmatpush1.xpose.msra.mxu0 %v3305
        %3309 = vmatprep.subr.mxu0 0.0
        %3310 = vmatpush1.xpose.msra.mxu0 0.0
        %3311 = vmatprep.subr.mxu0 0.0
        %3312 = vmatpush1.xpose.msra.mxu0 0.0
        %3313 = vmatprep.subr.mxu0 0.0
        %3314 = vmatpush1.xpose.msra.mxu0 0.0
        %3315 = vmatprep.subr.mxu0 0.0
        %3316 = vmatpush1.xpose.msra.mxu0 0.0
        %3317 = vmatprep.subr.mxu0 0.0
        %3318 = vmatpush1.xpose.msra.mxu0 0.0
        %3319 = vmatprep.subr.mxu0 0.0
        %3320 = vmatpush1.xpose.msra.mxu0 0.0
        %3321 = vmatprep.subr.mxu0 0.0
        %3322 = vmatpush1.xpose.msra.mxu0 0.0
        %3323 = vmatprep.subr.mxu0 0.0
        %3324 = vmatpush1.xpose.msra.mxu0 0.0
        %3325 = vmatprep.subr.mxu0 0.0
        %3326 = vmatpush1.xpose.msra.mxu0 0.0
        %3327 = vmatprep.subr.mxu0 0.0
        %3328 = vmatpush1.xpose.msra.mxu0 0.0
        %3329 = vmatprep.subr.mxu0 0.0
        %3330 = vmatpush1.xpose.msra.mxu0 0.0
        %3331 = vmatprep.subr.mxu0 0.0
        %3332 = vmatpush1.xpose.msra.mxu0 0.0
        %3333 = vmatprep.subr.mxu0 0.0
        %3334 = vmatpush1.xpose.msra.mxu0 0.0
        %3335 = vmatprep.subr.mxu0 0.0
        %3336 = vmatpush1.xpose.msra.mxu0 0.0
        %3337 = vmatprep.subr.mxu0 0.0
        %3338 = vmatpush1.xpose.msra.mxu0 0.0
        %3339 = vmatprep.subr.mxu0 0.0
        %3340 = vmatpush1.xpose.msra.mxu0 0.0
        %3341 = vmatprep.subr.mxu0 0.0
        %3342 = vmatpush1.xpose.msra.mxu0 0.0
        %3343 = vmatprep.subr.mxu0 0.0
        %3344 = vmatpush1.xpose.msra.mxu0 0.0
        %3345 = vmatprep.subr.mxu0 0.0
        %3346 = vmatpush1.xpose.msra.mxu0 0.0
        %3347 = vmatprep.subr.mxu0 0.0
        %3348 = vmatpush1.xpose.msra.mxu0 0.0
        %3349 = vmatprep.subr.mxu0 0.0
        %3350 = vmatpush1.xpose.msra.mxu0 0.0
        %3351 = vmatprep.subr.mxu0 0.0
        %3352 = vmatpush1.xpose.msra.mxu0 0.0
        %3353 = vmatprep.subr.mxu0 0.0
        %3354 = vmatpush1.xpose.msra.mxu0 0.0
        %3355 = vmatprep.subr.mxu0 0.0
        %3356 = vmatpush1.xpose.msra.mxu0 0.0
        %3357 = vmatprep.subr.mxu0 0.0
        %3358 = vmatpush1.xpose.msra.mxu0 0.0
        %3359 = vmatprep.subr.mxu0 0.0
        %3360 = vmatpush1.xpose.msra.mxu0 0.0
        %3361 = vmatprep.subr.mxu0 0.0
        %3362 = vmatpush1.xpose.msra.mxu0 0.0
        %3363 = vmatprep.subr.mxu0 0.0
        %3364 = vmatpush1.xpose.msra.mxu0 0.0
        %3365 = vmatprep.subr.mxu0 0.0
        %3366 = vmatpush1.xpose.msra.mxu0 0.0
        %3367 = vmatprep.subr.mxu0 0.0
        %3368 = vmatpush1.xpose.msra.mxu0 0.0
        %3369 = vmatprep.subr.mxu0 0.0
        %3370 = vmatpush1.xpose.msra.mxu0 0.0
        %3371 = vmatprep.mubr.f32.mxu0 0.0
        %3372 = vmatmul.mubr.f32.gmra.mrb[0].mxu0 %v3303
        %v3373 = vpop.f32.mrb[0].mxu0
        %v3374 = vadd.f32 0.0, %v3373
        %v3375 = vpop.f32.mrb[0].mxu0
        %3376 = vdwg.mxu0
        %v3377 = vmul.f32 %v3374, 0.35355338
        %v3378 = vsel %vm1088, %v3377, -inf
        %3379 = vmax.xlane.f32.xlu0 %v3378
        %v3380 = vpop.xlane.xlu0 %3379
        %v3381 = vsub.f32 %v3377, %v3380
        %v3382 = vmul.f32 %v3381, 1.442695
        %v3383 = vpow.pop %v3382
        %v3384 = vsel %vm1088, %v3383, 0.0
        %3385 = vadd.xlane.f32.xlu0 %v3384
        %v3386 = vpop.xlane.xlu0 %3385
        %v3387 = vrcp.pop %v3386
        %v3388 = vmul.f32 %v3383, %v3387
        %3389 = vrot.lane.b32.xlu0 %v2799, 40
        %v3390 = vpop.permute.xlu0 %3389
        %v3393 = vsel %vm1088, %v3388, 0
        %3395 = vmatprep.subr.mxu0 0.0
        %3396 = vmatpush1.msra.mxu0 %v3390
        %3397 = vmatprep.subr.mxu0 0.0
        %3398 = vmatpush1.msra.mxu0 0.0
        %3399 = vmatprep.subr.mxu0 0.0
        %3400 = vmatpush1.msra.mxu0 0.0
        %3401 = vmatprep.subr.mxu0 0.0
        %3402 = vmatpush1.msra.mxu0 0.0
        %3403 = vmatprep.subr.mxu0 0.0
        %3404 = vmatpush1.msra.mxu0 0.0
        %3405 = vmatprep.subr.mxu0 0.0
        %3406 = vmatpush1.msra.mxu0 0.0
        %3407 = vmatprep.subr.mxu0 0.0
        %3408 = vmatpush1.msra.mxu0 0.0
        %3409 = vmatprep.subr.mxu0 0.0
        %3410 = vmatpush1.msra.mxu0 0.0
        %3411 = vmatprep.subr.mxu0 0.0
        %3412 = vmatpush1.msra.mxu0 0.0
        %3413 = vmatprep.subr.mxu0 0.0
        %3414 = vmatpush1.msra.mxu0 0.0
        %3415 = vmatprep.subr.mxu0 0.0
        %3416 = vmatpush1.msra.mxu0 0.0
        %3417 = vmatprep.subr.mxu0 0.0
        %3418 = vmatpush1.msra.mxu0 0.0
        %3419 = vmatprep.subr.mxu0 0.0
        %3420 = vmatpush1.msra.mxu0 0.0
        %3421 = vmatprep.subr.mxu0 0.0
        %3422 = vmatpush1.msra.mxu0 0.0
        %3423 = vmatprep.subr.mxu0 0.0
        %3424 = vmatpush1.msra.mxu0 0.0
        %3425 = vmatprep.subr.mxu0 0.0
        %3426 = vmatpush1.msra.mxu0 0.0
        %3427 = vmatprep.subr.mxu0 0.0
        %3428 = vmatpush1.msra.mxu0 0.0
        %3429 = vmatprep.subr.mxu0 0.0
        %3430 = vmatpush1.msra.mxu0 0.0
        %3431 = vmatprep.subr.mxu0 0.0
        %3432 = vmatpush1.msra.mxu0 0.0
        %3433 = vmatprep.subr.mxu0 0.0
        %3434 = vmatpush1.msra.mxu0 0.0
        %3435 = vmatprep.subr.mxu0 0.0
        %3436 = vmatpush1.msra.mxu0 0.0
        %3437 = vmatprep.subr.mxu0 0.0
        %3438 = vmatpush1.msra.mxu0 0.0
        %3439 = vmatprep.subr.mxu0 0.0
        %3440 = vmatpush1.msra.mxu0 0.0
        %3441 = vmatprep.subr.mxu0 0.0
        %3442 = vmatpush1.msra.mxu0 0.0
        %3443 = vmatprep.subr.mxu0 0.0
        %3444 = vmatpush1.msra.mxu0 0.0
        %3445 = vmatprep.subr.mxu0 0.0
        %3446 = vmatpush1.msra.mxu0 0.0
        %3447 = vmatprep.subr.mxu0 0.0
        %3448 = vmatpush1.msra.mxu0 0.0
        %3449 = vmatprep.subr.mxu0 0.0
        %3450 = vmatpush1.msra.mxu0 0.0
        %3451 = vmatprep.subr.mxu0 0.0
        %3452 = vmatpush1.msra.mxu0 0.0
        %3453 = vmatprep.subr.mxu0 0.0
        %3454 = vmatpush1.msra.mxu0 0.0
        %3455 = vmatprep.subr.mxu0 0.0
        %3456 = vmatpush1.msra.mxu0 0.0
        %3457 = vmatprep.subr.mxu0 0.0
        %3458 = vmatpush1.msra.mxu0 0.0
        %3459 = vmatprep.mubr.f32.mxu0 0.0
        %3460 = vmatmul.mubr.f32.gmra.mrb[0].mxu0 %v3393
        %v3461 = vpop.f32.mrb[0].mxu0
        %v3462 = vadd.f32 0.0, %v3461
        %v3463 = vpop.f32.mrb[0].mxu0
        %3464 = vdwg.mxu0
        %3466 = vrot.lane.b32.xlu0 %v3130, 8
        %v3467 = vpop.permute.xlu0 %3466
        %3470 = vrot.lane.b32.xlu0 %v3296, 16
        %v3471 = vpop.permute.xlu0 %3470
        %3474 = vrot.lane.b32.xlu0 %v3462, 24
        %v3475 = vpop.permute.xlu0 %3474
        %v3477 = vsel %vm1088, %v2964, %v3467
        %v3478 = vsel %vm1166, %v3477, %v3471
        %vm3479 = vcmask 195584
        %v3480 = vsel %vm3479, %v3478, %v3475
        %v3481 = vld [vmem:[%s33] sm:$0xff]
        %v3482 = vld [vmem:[%s33 + $0x8] sm:$0xff]
        %v3483 = vld [vmem:[%s33 + $0x10] sm:$0xff]
        %v3484 = vld [vmem:[%s33 + $0x18] sm:$0xff]
        %v3485 = vld [vmem:[%s35] sm:$0x1]
        %v3487 = vlaneseq
        %v3488 = vshrl.u32 %v3487, 7
        %v3489 = vsub.s32 0, %v3488
        %v3490 = vrot.slane %v3485, %v3489
        %v3493 = vsel %vm1179, %v3480, 0
        %3495 = vmatprep.subr.mxu0 0.0
        %3496 = vmatpush1.msra.mxu0 %v3481
        %3497 = vmatprep.subr.mxu0 0.0
        %3498 = vmatpush1.msra.mxu0 %v3482
        %3499 = vmatprep.subr.mxu0 0.0
        %3500 = vmatpush1.msra.mxu0 %v3483
        %3501 = vmatprep.subr.mxu0 0.0
        %3502 = vmatpush1.msra.mxu0 %v3484
        %3503 = vmatprep.subr.mxu0 0.0
        %3504 = vmatpush1.msra.mxu0 0.0
        %3505 = vmatprep.subr.mxu0 0.0
        %3506 = vmatpush1.msra.mxu0 0.0
        %3507 = vmatprep.subr.mxu0 0.0
        %3508 = vmatpush1.msra.mxu0 0.0
        %3509 = vmatprep.subr.mxu0 0.0
        %3510 = vmatpush1.msra.mxu0 0.0
        %3511 = vmatprep.subr.mxu0 0.0
        %3512 = vmatpush1.msra.mxu0 0.0
        %3513 = vmatprep.subr.mxu0 0.0
        %3514 = vmatpush1.msra.mxu0 0.0
        %3515 = vmatprep.subr.mxu0 0.0
        %3516 = vmatpush1.msra.mxu0 0.0
        %3517 = vmatprep.subr.mxu0 0.0
        %3518 = vmatpush1.msra.mxu0 0.0
        %3519 = vmatprep.subr.mxu0 0.0
        %3520 = vmatpush1.msra.mxu0 0.0
        %3521 = vmatprep.subr.mxu0 0.0
        %3522 = vmatpush1.msra.mxu0 0.0
        %3523 = vmatprep.subr.mxu0 0.0
        %3524 = vmatpush1.msra.mxu0 0.0
        %3525 = vmatprep.subr.mxu0 0.0
        %3526 = vmatpush1.msra.mxu0 0.0
        %3527 = vmatprep.subr.mxu0 0.0
        %3528 = vmatpush1.msra.mxu0 0.0
        %3529 = vmatprep.subr.mxu0 0.0
        %3530 = vmatpush1.msra.mxu0 0.0
        %3531 = vmatprep.subr.mxu0 0.0
        %3532 = vmatpush1.msra.mxu0 0.0
        %3533 = vmatprep.subr.mxu0 0.0
        %3534 = vmatpush1.msra.mxu0 0.0
        %3535 = vmatprep.subr.mxu0 0.0
        %3536 = vmatpush1.msra.mxu0 0.0
        %3537 = vmatprep.subr.mxu0 0.0
        %3538 = vmatpush1.msra.mxu0 0.0
        %3539 = vmatprep.subr.mxu0 0.0
        %3540 = vmatpush1.msra.mxu0 0.0
        %3541 = vmatprep.subr.mxu0 0.0
        %3542 = vmatpush1.msra.mxu0 0.0
        %3543 = vmatprep.subr.mxu0 0.0
        %3544 = vmatpush1.msra.mxu0 0.0
        %3545 = vmatprep.subr.mxu0 0.0
        %3546 = vmatpush1.msra.mxu0 0.0
        %3547 = vmatprep.subr.mxu0 0.0
        %3548 = vmatpush1.msra.mxu0 0.0
        %3549 = vmatprep.subr.mxu0 0.0
        %3550 = vmatpush1.msra.mxu0 0.0
        %3551 = vmatprep.subr.mxu0 0.0
        %3552 = vmatpush1.msra.mxu0 0.0
        %3553 = vmatprep.subr.mxu0 0.0
        %3554 = vmatpush1.msra.mxu0 0.0
        %3555 = vmatprep.subr.mxu0 0.0
        %3556 = vmatpush1.msra.mxu0 0.0
        %3557 = vmatprep.subr.mxu0 0.0
        %3558 = vmatpush1.msra.mxu0 0.0
        %3559 = vmatprep.mubr.f32.mxu0 0.0
        %3560 = vmatmul.mubr.f32.gmra.mrb[0].mxu0 %v3493
        %v3561 = vpop.f32.mrb[0].mxu0
        %v3562 = vadd.f32 %v3490, %v3561
        %v3563 = vpop.f32.mrb[0].mxu0
        %3564 = vdwg.mxu0
        %v3565 = vadd.f32 %v2439, %v3562
        %v3566 = vld [vmem:[%s45] sm:$0x1]
        %v3567 = vld [vmem:[%s47] sm:$0x1]
        %v3568 = vsel %vm1179, %v3565, 0.0
        %3569 = vadd.xlane.f32.xlu0 %v3568
        %v3570 = vpop.xlane.xlu0 %3569
        %v3571 = vrcp.pop 32.0
        %v3572 = vmul.f32 %v3570, %v3571
        %v3573 = vsub.f32 %v3565, %v3572
        %v3574 = vmul.f32 %v3573, %v3573
        %v3575 = vsel %vm1179, %v3574, 0.0
        %3576 = vadd.xlane.f32.xlu0 %v3575
        %v3577 = vpop.xlane.xlu0 %3576
        %v3578 = vmul.f32 %v3577, %v3571
        %v3579 = vadd.f32 %v3578, 1e-05
        %v3580 = vrsqrt.pop %v3579
        %v3581 = vmul.f32 %v3573, %v3580
        %v3583 = vlaneseq
        %v3584 = vshrl.u32 %v3583, 7
        %v3585 = vsub.s32 0, %v3584
        %v3586 = vrot.slane %v3566, %v3585
        %v3588 = vmul.f32 %v3581, %v3586
        %v3590 = vlaneseq
        %v3591 = vshrl.u32 %v3590, 7
        %v3592 = vsub.s32 0, %v3591
        %v3593 = vrot.slane %v3567, %v3592
        %v3595 = vadd.f32 %v3588, %v3593
        %v3596 = vld [vmem:[%s37] sm:$0xff]
        %v3597 = vld [vmem:[%s37 + $0x8] sm:$0xff]
        %v3598 = vld [vmem:[%s37 + $0x10] sm:$0xff]
        %v3599 = vld [vmem:[%s37 + $0x18] sm:$0xff]
        %v3600 = vld [vmem:[%s39] sm:$0x1]
        %v3602 = vlaneseq
        %v3603 = vshrl.u32 %v3602, 7
        %v3604 = vsub.s32 0, %v3603
        %v3605 = vrot.slane %v3600, %v3604
        %v3608 = vsel %vm1179, %v3595, 0
        %3610 = vmatprep.subr.mxu0 0.0
        %3611 = vmatpush1.msra.mxu0 %v3596
        %3612 = vmatprep.subr.mxu0 0.0
        %3613 = vmatpush1.msra.mxu0 %v3597
        %3614 = vmatprep.subr.mxu0 0.0
        %3615 = vmatpush1.msra.mxu0 %v3598
        %3616 = vmatprep.subr.mxu0 0.0
        %3617 = vmatpush1.msra.mxu0 %v3599
        %3618 = vmatprep.subr.mxu0 0.0
        %3619 = vmatpush1.msra.mxu0 0.0
        %3620 = vmatprep.subr.mxu0 0.0
        %3621 = vmatpush1.msra.mxu0 0.0
        %3622 = vmatprep.subr.mxu0 0.0
        %3623 = vmatpush1.msra.mxu0 0.0
        %3624 = vmatprep.subr.mxu0 0.0
        %3625 = vmatpush1.msra.mxu0 0.0
        %3626 = vmatprep.subr.mxu0 0.0
        %3627 = vmatpush1.msra.mxu0 0.0
        %3628 = vmatprep.subr.mxu0 0.0
        %3629 = vmatpush1.msra.mxu0 0.0
        %3630 = vmatprep.subr.mxu0 0.0
        %3631 = vmatpush1.msra.mxu0 0.0
        %3632 = vmatprep.subr.mxu0 0.0
        %3633 = vmatpush1.msra.mxu0 0.0
        %3634 = vmatprep.subr.mxu0 0.0
        %3635 = vmatpush1.msra.mxu0 0.0
        %3636 = vmatprep.subr.mxu0 0.0
        %3637 = vmatpush1.msra.mxu0 0.0
        %3638 = vmatprep.subr.mxu0 0.0
        %3639 = vmatpush1.msra.mxu0 0.0
        %3640 = vmatprep.subr.mxu0 0.0
        %3641 = vmatpush1.msra.mxu0 0.0
        %3642 = vmatprep.subr.mxu0 0.0
        %3643 = vmatpush1.msra.mxu0 0.0
        %3644 = vmatprep.subr.mxu0 0.0
        %3645 = vmatpush1.msra.mxu0 0.0
        %3646 = vmatprep.subr.mxu0 0.0
        %3647 = vmatpush1.msra.mxu0 0.0
        %3648 = vmatprep.subr.mxu0 0.0
        %3649 = vmatpush1.msra.mxu0 0.0
        %3650 = vmatprep.subr.mxu0 0.0
        %3651 = vmatpush1.msra.mxu0 0.0
        %3652 = vmatprep.subr.mxu0 0.0
        %3653 = vmatpush1.msra.mxu0 0.0
        %3654 = vmatprep.subr.mxu0 0.0
        %3655 = vmatpush1.msra.mxu0 0.0
        %3656 = vmatprep.subr.mxu0 0.0
        %3657 = vmatpush1.msra.mxu0 0.0
        %3658 = vmatprep.subr.mxu0 0.0
        %3659 = vmatpush1.msra.mxu0 0.0
        %3660 = vmatprep.subr.mxu0 0.0
        %3661 = vmatpush1.msra.mxu0 0.0
        %3662 = vmatprep.subr.mxu0 0.0
        %3663 = vmatpush1.msra.mxu0 0.0
        %3664 = vmatprep.subr.mxu0 0.0
        %3665 = vmatpush1.msra.mxu0 0.0
        %3666 = vmatprep.subr.mxu0 0.0
        %3667 = vmatpush1.msra.mxu0 0.0
        %3668 = vmatprep.subr.mxu0 0.0
        %3669 = vmatpush1.msra.mxu0 0.0
        %3670 = vmatprep.subr.mxu0 0.0
        %3671 = vmatpush1.msra.mxu0 0.0
        %3672 = vmatprep.subr.mxu0 0.0
        %3673 = vmatpush1.msra.mxu0 0.0
        %3674 = vmatprep.mubr.f32.mxu0 0.0
        %3675 = vmatmul.mubr.f32.gmra.mrb[0].mxu0 %v3608
        %v3676 = vpop.f32.mrb[0].mxu0
        %v3677 = vadd.f32 %v3605, %v3676
        %v3678 = vpop.f32.mrb[0].mxu0
        %3679 = vdwg.mxu0
        %v3680 = vmax.f32 %v3677, 0.0
        %v3681 = vld [vmem:[%s41] sm:$0xff]
        %v3682 = vld [vmem:[%s41 + $0x8] sm:$0xff]
        %v3683 = vld [vmem:[%s41 + $0x10] sm:$0xff]
        %v3684 = vld [vmem:[%s41 + $0x18] sm:$0xff]
        %v3685 = vld [vmem:[%s41 + $0x20] sm:$0xff]
        %v3686 = vld [vmem:[%s41 + $0x28] sm:$0xff]
        %v3687 = vld [vmem:[%s41 + $0x30] sm:$0xff]
        %v3688 = vld [vmem:[%s41 + $0x38] sm:$0xff]
        %v3689 = vld [vmem:[%s41 + $0x40] sm:$0xff]
        %v3690 = vld [vmem:[%s41 + $0x48] sm:$0xff]
        %v3691 = vld [vmem:[%s41 + $0x50] sm:$0xff]
        %v3692 = vld [vmem:[%s41 + $0x58] sm:$0xff]
        %v3693 = vld [vmem:[%s41 + $0x60] sm:$0xff]
        %v3694 = vld [vmem:[%s41 + $0x68] sm:$0xff]
        %v3695 = vld [vmem:[%s41 + $0x70] sm:$0xff]
        %v3696 = vld [vmem:[%s41 + $0x78] sm:$0xff]
        %v3697 = vld [vmem:[%s43] sm:$0x1]
        %v3699 = vlaneseq
        %v3700 = vshrl.u32 %v3699, 7
        %v3701 = vsub.s32 0, %v3700
        %v3702 = vrot.slane %v3697, %v3701
        %3704 = vmatprep.subr.mxu0 0.0
        %3705 = vmatpush1.msra.mxu0 %v3681
        %3706 = vmatprep.subr.mxu0 0.0
        %3707 = vmatpush1.msra.mxu0 %v3682
        %3708 = vmatprep.subr.mxu0 0.0
        %3709 = vmatpush1.msra.mxu0 %v3683
        %3710 = vmatprep.subr.mxu0 0.0
        %3711 = vmatpush1.msra.mxu0 %v3684
        %3712 = vmatprep.subr.mxu0 0.0
        %3713 = vmatpush1.msra.mxu0 %v3685
        %3714 = vmatprep.subr.mxu0 0.0
        %3715 = vmatpush1.msra.mxu0 %v3686
        %3716 = vmatprep.subr.mxu0 0.0
        %3717 = vmatpush1.msra.mxu0 %v3687
        %3718 = vmatprep.subr.mxu0 0.0
        %3719 = vmatpush1.msra.mxu0 %v3688
        %3720 = vmatprep.subr.mxu0 0.0
        %3721 = vmatpush1.msra.mxu0 %v3689
        %3722 = vmatprep.subr.mxu0 0.0
        %3723 = vmatpush1.msra.mxu0 %v3690
        %3724 = vmatprep.subr.mxu0 0.0
        %3725 = vmatpush1.msra.mxu0 %v3691
        %3726 = vmatprep.subr.mxu0 0.0
        %3727 = vmatpush1.msra.mxu0 %v3692
        %3728 = vmatprep.subr.mxu0 0.0
        %3729 = vmatpush1.msra.mxu0 %v3693
        %3730 = vmatprep.subr.mxu0 0.0
        %3731 = vmatpush1.msra.mxu0 %v3694
        %3732 = vmatprep.subr.mxu0 0.0
        %3733 = vmatpush1.msra.mxu0 %v3695
        %3734 = vmatprep.subr.mxu0 0.0
        %3735 = vmatpush1.msra.mxu0 %v3696
        %3736 = vmatprep.subr.mxu0 0.0
        %3737 = vmatpush1.msra.mxu0 0.0
        %3738 = vmatprep.subr.mxu0 0.0
        %3739 = vmatpush1.msra.mxu0 0.0
        %3740 = vmatprep.subr.mxu0 0.0
        %3741 = vmatpush1.msra.mxu0 0.0
        %3742 = vmatprep.subr.mxu0 0.0
        %3743 = vmatpush1.msra.mxu0 0.0
        %3744 = vmatprep.subr.mxu0 0.0
        %3745 = vmatpush1.msra.mxu0 0.0
        %3746 = vmatprep.subr.mxu0 0.0
        %3747 = vmatpush1.msra.mxu0 0.0
        %3748 = vmatprep.subr.mxu0 0.0
        %3749 = vmatpush1.msra.mxu0 0.0
        %3750 = vmatprep.subr.mxu0 0.0
        %3751 = vmatpush1.msra.mxu0 0.0
        %3752 = vmatprep.subr.mxu0 0.0
        %3753 = vmatpush1.msra.mxu0 0.0
        %3754 = vmatprep.subr.mxu0 0.0
        %3755 = vmatpush1.msra.mxu0 0.0
        %3756 = vmatprep.subr.mxu0 0.0
        %3757 = vmatpush1.msra.mxu0 0.0
        %3758 = vmatprep.subr.mxu0 0.0
        %3759 = vmatpush1.msra.mxu0 0.0
        %3760 = vmatprep.subr.mxu0 0.0
        %3761 = vmatpush1.msra.mxu0 0.0
        %3762 = vmatprep.subr.mxu0 0.0
        %3763 = vmatpush1.msra.mxu0 0.0
        %3764 = vmatprep.subr.mxu0 0.0
        %3765 = vmatpush1.msra.mxu0 0.0
        %3766 = vmatprep.subr.mxu0 0.0
        %3767 = vmatpush1.msra.mxu0 0.0
        %3768 = vmatprep.mubr.f32.mxu0 0.0
        %3769 = vmatmul.mubr.f32.gmra.mrb[0].mxu0 %v3680
        %v3770 = vpop.f32.mrb[0].mxu0
        %v3771 = vadd.f32 %v3702, %v3770
        %v3772 = vpop.f32.mrb[0].mxu0
        %3773 = vdwg.mxu0
        %v3774 = vadd.f32 %v3595, %v3771
        %v3775 = vld [vmem:[%s49] sm:$0x1]
        %v3776 = vld [vmem:[%s51] sm:$0x1]
        %v3777 = vsel %vm1179, %v3774, 0.0
        %3778 = vadd.xlane.f32.xlu0 %v3777
        %v3779 = vpop.xlane.xlu0 %3778
        %v3780 = vmul.f32 %v3779, %v3571
        %v3781 = vsub.f32 %v3774, %v3780
        %v3782 = vmul.f32 %v3781, %v3781
        %v3783 = vsel %vm1179, %v3782, 0.0
        %3784 = vadd.xlane.f32.xlu0 %v3783
        %v3785 = vpop.xlane.xlu0 %3784
        %v3786 = vmul.f32 %v3785, %v3571
        %v3787 = vadd.f32 %v3786, 1e-05
        %v3788 = vrsqrt.pop %v3787
        %v3789 = vmul.f32 %v3781, %v3788
        %v3791 = vlaneseq
        %v3792 = vshrl.u32 %v3791, 7
        %v3793 = vsub.s32 0, %v3792
        %v3794 = vrot.slane %v3775, %v3793
        %v3796 = vmul.f32 %v3789, %v3794
        %v3798 = vlaneseq
        %v3799 = vshrl.u32 %v3798, 7
        %v3800 = vsub.s32 0, %v3799
        %v3801 = vrot.slane %v3776, %v3800
        %v3803 = vadd.f32 %v3796, %v3801
        %s3804 = scalar_lea.vmem %s29, 32
        %v3805 = vld [vmem:[%s3804] sm:$0xff]
        %v3806 = vld [vmem:[%s3804 + $0x8] sm:$0xff]
        %v3807 = vld [vmem:[%s3804 + $0x10] sm:$0xff]
        %v3808 = vld [vmem:[%s3804 + $0x18] sm:$0xff]
        %s3809 = scalar_lea.vmem %s31, 1
        %v3810 = vld [vmem:[%s3809] sm:$0x1]
        %v3812 = vlaneseq
        %v3813 = vshrl.u32 %v3812, 7
        %v3814 = vsub.s32 0, %v3813
        %v3815 = vrot.slane %v3810, %v3814
        %v3818 = vsel %vm1179, %v3803, 0
        %3820 = vmatprep.subr.mxu0 0.0
        %3821 = vmatpush1.msra.mxu0 %v3805
        %3822 = vmatprep.subr.mxu0 0.0
        %3823 = vmatpush1.msra.mxu0 %v3806
        %3824 = vmatprep.subr.mxu0 0.0
        %3825 = vmatpush1.msra.mxu0 %v3807
        %3826 = vmatprep.subr.mxu0 0.0
        %3827 = vmatpush1.msra.mxu0 %v3808
        %3828 = vmatprep.subr.mxu0 0.0
        %3829 = vmatpush1.msra.mxu0 0.0
        %3830 = vmatprep.subr.mxu0 0.0
        %3831 = vmatpush1.msra.mxu0 0.0
        %3832 = vmatprep.subr.mxu0 0.0
        %3833 = vmatpush1.msra.mxu0 0.0
        %3834 = vmatprep.subr.mxu0 0.0
        %3835 = vmatpush1.msra.mxu0 0.0
        %3836 = vmatprep.subr.mxu0 0.0
        %3837 = vmatpush1.msra.mxu0 0.0
        %3838 = vmatprep.subr.mxu0 0.0
        %3839 = vmatpush1.msra.mxu0 0.0
        %3840 = vmatprep.subr.mxu0 0.0
        %3841 = vmatpush1.msra.mxu0 0.0
        %3842 = vmatprep.subr.mxu0 0.0
        %3843 = vmatpush1.msra.mxu0 0.0
        %3844 = vmatprep.subr.mxu0 0.0
        %3845 = vmatpush1.msra.mxu0 0.0
        %3846 = vmatprep.subr.mxu0 0.0
        %3847 = vmatpush1.msra.mxu0 0.0
        %3848 = vmatprep.subr.mxu0 0.0
        %3849 = vmatpush1.msra.mxu0 0.0
        %3850 = vmatprep.subr.mxu0 0.0
        %3851 = vmatpush1.msra.mxu0 0.0
        %3852 = vmatprep.subr.mxu0 0.0
        %3853 = vmatpush1.msra.mxu0 0.0
        %3854 = vmatprep.subr.mxu0 0.0
        %3855 = vmatpush1.msra.mxu0 0.0
        %3856 = vmatprep.subr.mxu0 0.0
        %3857 = vmatpush1.msra.mxu0 0.0
        %3858 = vmatprep.subr.mxu0 0.0
        %3859 = vmatpush1.msra.mxu0 0.0
        %3860 = vmatprep.subr.mxu0 0.0
        %3861 = vmatpush1.msra.mxu0 0.0
        %3862 = vmatprep.subr.mxu0 0.0
        %3863 = vmatpush1.msra.mxu0 0.0
        %3864 = vmatprep.subr.mxu0 0.0
        %3865 = vmatpush1.msra.mxu0 0.0
        %3866 = vmatprep.subr.mxu0 0.0
        %3867 = vmatpush1.msra.mxu0 0.0
        %3868 = vmatprep.subr.mxu0 0.0
        %3869 = vmatpush1.msra.mxu0 0.0
        %3870 = vmatprep.subr.mxu0 0.0
        %3871 = vmatpush1.msra.mxu0 0.0
        %3872 = vmatprep.subr.mxu0 0.0
        %3873 = vmatpush1.msra.mxu0 0.0
        %3874 = vmatprep.subr.mxu0 0.0
        %3875 = vmatpush1.msra.mxu0 0.0
        %3876 = vmatprep.subr.mxu0 0.0
        %3877 = vmatpush1.msra.mxu0 0.0
        %3878 = vmatprep.subr.mxu0 0.0
        %3879 = vmatpush1.msra.mxu0 0.0
        %3880 = vmatprep.subr.mxu0 0.0
        %3881 = vmatpush1.msra.mxu0 0.0
        %3882 = vmatprep.subr.mxu0 0.0
        %3883 = vmatpush1.msra.mxu0 0.0
        %3884 = vmatprep.mubr.f32.mxu0 0.0
        %3885 = vmatmul.mubr.f32.gmra.mrb[0].mxu0 %v3818
        %v3886 = vpop.f32.mrb[0].mxu0
        %v3887 = vadd.f32 %v3815, %v3886
        %v3888 = vpop.f32.mrb[0].mxu0
        %3889 = vdwg.mxu0
        %3891 = vrot.lane.b32.xlu0 %v3887, 96
        %v3892 = vpop.permute.xlu0 %3891
        %v3893 = vsel %vm1088, %v3887, 0
        %v3895 = vsel %vm1088, %v3892, 0
        %3897 = vmatprep.subr.mxu0 0.0
        %3898 = vmatpush1.xpose.msra.mxu0 %v3895
        %3899 = vmatprep.subr.mxu0 0.0
        %3900 = vmatpush1.xpose.msra.mxu0 0.0
        %3901 = vmatprep.subr.mxu0 0.0
        %3902 = vmatpush1.xpose.msra.mxu0 0.0
        %3903 = vmatprep.subr.mxu0 0.0
        %3904 = vmatpush1.xpose.msra.mxu0 0.0
        %3905 = vmatprep.subr.mxu0 0.0
        %3906 = vmatpush1.xpose.msra.mxu0 0.0
        %3907 = vmatprep.subr.mxu0 0.0
        %3908 = vmatpush1.xpose.msra.mxu0 0.0
        %3909 = vmatprep.subr.mxu0 0.0
        %3910 = vmatpush1.xpose.msra.mxu0 0.0
        %3911 = vmatprep.subr.mxu0 0.0
        %3912 = vmatpush1.xpose.msra.mxu0 0.0
        %3913 = vmatprep.subr.mxu0 0.0
        %3914 = vmatpush1.xpose.msra.mxu0 0.0
        %3915 = vmatprep.subr.mxu0 0.0
        %3916 = vmatpush1.xpose.msra.mxu0 0.0
        %3917 = vmatprep.subr.mxu0 0.0
        %3918 = vmatpush1.xpose.msra.mxu0 0.0
        %3919 = vmatprep.subr.mxu0 0.0
        %3920 = vmatpush1.xpose.msra.mxu0 0.0
        %3921 = vmatprep.subr.mxu0 0.0
        %3922 = vmatpush1.xpose.msra.mxu0 0.0
        %3923 = vmatprep.subr.mxu0 0.0
        %3924 = vmatpush1.xpose.msra.mxu0 0.0
        %3925 = vmatprep.subr.mxu0 0.0
        %3926 = vmatpush1.xpose.msra.mxu0 0.0
        %3927 = vmatprep.subr.mxu0 0.0
        %3928 = vmatpush1.xpose.msra.mxu0 0.0
        %3929 = vmatprep.subr.mxu0 0.0
        %3930 = vmatpush1.xpose.msra.mxu0 0.0
        %3931 = vmatprep.subr.mxu0 0.0
        %3932 = vmatpush1.xpose.msra.mxu0 0.0
        %3933 = vmatprep.subr.mxu0 0.0
        %3934 = vmatpush1.xpose.msra.mxu0 0.0
        %3935 = vmatprep.subr.mxu0 0.0
        %3936 = vmatpush1.xpose.msra.mxu0 0.0
        %3937 = vmatprep.subr.mxu0 0.0
        %3938 = vmatpush1.xpose.msra.mxu0 0.0
        %3939 = vmatprep.subr.mxu0 0.0
        %3940 = vmatpush1.xpose.msra.mxu0 0.0
        %3941 = vmatprep.subr.mxu0 0.0
        %3942 = vmatpush1.xpose.msra.mxu0 0.0
        %3943 = vmatprep.subr.mxu0 0.0
        %3944 = vmatpush1.xpose.msra.mxu0 0.0
        %3945 = vmatprep.subr.mxu0 0.0
        %3946 = vmatpush1.xpose.msra.mxu0 0.0
        %3947 = vmatprep.subr.mxu0 0.0
        %3948 = vmatpush1.xpose.msra.mxu0 0.0
        %3949 = vmatprep.subr.mxu0 0.0
        %3950 = vmatpush1.xpose.msra.mxu0 0.0
        %3951 = vmatprep.subr.mxu0 0.0
        %3952 = vmatpush1.xpose.msra.mxu0 0.0
        %3953 = vmatprep.subr.mxu0 0.0
        %3954 = vmatpush1.xpose.msra.mxu0 0.0
        %3955 = vmatprep.subr.mxu0 0.0
        %3956 = vmatpush1.xpose.msra.mxu0 0.0
        %3957 = vmatprep.subr.mxu0 0.0
        %3958 = vmatpush1.xpose.msra.mxu0 0.0
        %3959 = vmatprep.subr.mxu0 0.0
        %3960 = vmatpush1.xpose.msra.mxu0 0.0
        %3961 = vmatprep.mubr.f32.mxu0 0.0
        %3962 = vmatmul.mubr.f32.gmra.mrb[0].mxu0 %v3893
        %v3963 = vpop.f32.mrb[0].mxu0
        %v3964 = vadd.f32 0.0, %v3963
        %v3965 = vpop.f32.mrb[0].mxu0
        %3966 = vdwg.mxu0
        %v3967 = vmul.f32 %v3964, 0.35355338
        %v3968 = vsel %vm1088, %v3967, -inf
        %3969 = vmax.xlane.f32.xlu0 %v3968
        %v3970 = vpop.xlane.xlu0 %3969
        %v3971 = vsub.f32 %v3967, %v3970
        %v3972 = vmul.f32 %v3971, 1.442695
        %v3973 = vpow.pop %v3972
        %v3974 = vsel %vm1088, %v3973, 0.0
        %3975 = vadd.xlane.f32.xlu0 %v3974
        %v3976 = vpop.xlane.xlu0 %3975
        %v3977 = vrcp.pop %v3976
        %v3978 = vmul.f32 %v3973, %v3977
        %3979 = vrot.lane.b32.xlu0 %v3887, 64
        %v3980 = vpop.permute.xlu0 %3979
        %v3983 = vsel %vm1088, %v3978, 0
        %3985 = vmatprep.subr.mxu0 0.0
        %3986 = vmatpush1.msra.mxu0 %v3980
        %3987 = vmatprep.subr.mxu0 0.0
        %3988 = vmatpush1.msra.mxu0 0.0
        %3989 = vmatprep.subr.mxu0 0.0
        %3990 = vmatpush1.msra.mxu0 0.0
        %3991 = vmatprep.subr.mxu0 0.0
        %3992 = vmatpush1.msra.mxu0 0.0
        %3993 = vmatprep.subr.mxu0 0.0
        %3994 = vmatpush1.msra.mxu0 0.0
        %3995 = vmatprep.subr.mxu0 0.0
        %3996 = vmatpush1.msra.mxu0 0.0
        %3997 = vmatprep.subr.mxu0 0.0
        %3998 = vmatpush1.msra.mxu0 0.0
        %3999 = vmatprep.subr.mxu0 0.0
        %4000 = vmatpush1.msra.mxu0 0.0
        %4001 = vmatprep.subr.mxu0 0.0
        %4002 = vmatpush1.msra.mxu0 0.0
        %4003 = vmatprep.subr.mxu0 0.0
        %4004 = vmatpush1.msra.mxu0 0.0
        %4005 = vmatprep.subr.mxu0 0.0
        %4006 = vmatpush1.msra.mxu0 0.0
        %4007 = vmatprep.subr.mxu0 0.0
        %4008 = vmatpush1.msra.mxu0 0.0
        %4009 = vmatprep.subr.mxu0 0.0
        %4010 = vmatpush1.msra.mxu0 0.0
        %4011 = vmatprep.subr.mxu0 0.0
        %4012 = vmatpush1.msra.mxu0 0.0
        %4013 = vmatprep.subr.mxu0 0.0
        %4014 = vmatpush1.msra.mxu0 0.0
        %4015 = vmatprep.subr.mxu0 0.0
        %4016 = vmatpush1.msra.mxu0 0.0
        %4017 = vmatprep.subr.mxu0 0.0
        %4018 = vmatpush1.msra.mxu0 0.0
        %4019 = vmatprep.subr.mxu0 0.0
        %4020 = vmatpush1.msra.mxu0 0.0
        %4021 = vmatprep.subr.mxu0 0.0
        %4022 = vmatpush1.msra.mxu0 0.0
        %4023 = vmatprep.subr.mxu0 0.0
        %4024 = vmatpush1.msra.mxu0 0.0
        %4025 = vmatprep.subr.mxu0 0.0
        %4026 = vmatpush1.msra.mxu0 0.0
        %4027 = vmatprep.subr.mxu0 0.0
        %4028 = vmatpush1.msra.mxu0 0.0
        %4029 = vmatprep.subr.mxu0 0.0
        %4030 = vmatpush1.msra.mxu0 0.0
        %4031 = vmatprep.subr.mxu0 0.0
        %4032 = vmatpush1.msra.mxu0 0.0
        %4033 = vmatprep.subr.mxu0 0.0
        %4034 = vmatpush1.msra.mxu0 0.0
        %4035 = vmatprep.subr.mxu0 0.0
        %4036 = vmatpush1.msra.mxu0 0.0
        %4037 = vmatprep.subr.mxu0 0.0
        %4038 = vmatpush1.msra.mxu0 0.0
        %4039 = vmatprep.subr.mxu0 0.0
        %4040 = vmatpush1.msra.mxu0 0.0
        %4041 = vmatprep.subr.mxu0 0.0
        %4042 = vmatpush1.msra.mxu0 0.0
        %4043 = vmatprep.subr.mxu0 0.0
        %4044 = vmatpush1.msra.mxu0 0.0
        %4045 = vmatprep.subr.mxu0 0.0
        %4046 = vmatpush1.msra.mxu0 0.0
        %4047 = vmatprep.subr.mxu0 0.0
        %4048 = vmatpush1.msra.mxu0 0.0
        %4049 = vmatprep.mubr.f32.mxu0 0.0
        %4050 = vmatmul.mubr.f32.gmra.mrb[0].mxu0 %v3983
        %v4051 = vpop.f32.mrb[0].mxu0
        %v4052 = vadd.f32 0.0, %v4051
        %v4053 = vpop.f32.mrb[0].mxu0
        %4054 = vdwg.mxu0
        %4055 = vrot.lane.b32.xlu0 %v3887, 120
        %v4056 = vpop.permute.xlu0 %4055
        %4057 = vrot.lane.b32.xlu0 %v3887, 88
        %v4058 = vpop.permute.xlu0 %4057
        %v4059 = vsel %vm1088, %v4056, 0
        %v4061 = vsel %vm1088, %v4058, 0
        %4063 = vmatprep.subr.mxu0 0.0
        %4064 = vmatpush1.xpose.msra.mxu0 %v4061
        %4065 = vmatprep.subr.mxu0 0.0
        %4066 = vmatpush1.xpose.msra.mxu0 0.0
        %4067 = vmatprep.subr.mxu0 0.0
        %4068 = vmatpush1.xpose.msra.mxu0 0.0
        %4069 = vmatprep.subr.mxu0 0.0
        %4070 = vmatpush1.xpose.msra.mxu0 0.0
        %4071 = vmatprep.subr.mxu0 0.0
        %4072 = vmatpush1.xpose.msra.mxu0 0.0
        %4073 = vmatprep.subr.mxu0 0.0
        %4074 = vmatpush1.xpose.msra.mxu0 0.0
        %4075 = vmatprep.subr.mxu0 0.0
        %4076 = vmatpush1.xpose.msra.mxu0 0.0
        %4077 = vmatprep.subr.mxu0 0.0
        %4078 = vmatpush1.xpose.msra.mxu0 0.0
        %4079 = vmatprep.subr.mxu0 0.0
        %4080 = vmatpush1.xpose.msra.mxu0 0.0
        %4081 = vmatprep.subr.mxu0 0.0
        %4082 = vmatpush1.xpose.msra.mxu0 0.0
        %4083 = vmatprep.subr.mxu0 0.0
        %4084 = vmatpush1.xpose.msra.mxu0 0.0
        %4085 = vmatprep.subr.mxu0 0.0
        %4086 = vmatpush1.xpose.msra.mxu0 0.0
        %4087 = vmatprep.subr.mxu0 0.0
        %4088 = vmatpush1.xpose.msra.mxu0 0.0
        %4089 = vmatprep.subr.mxu0 0.0
        %4090 = vmatpush1.xpose.msra.mxu0 0.0
        %4091 = vmatprep.subr.mxu0 0.0
        %4092 = vmatpush1.xpose.msra.mxu0 0.0
        %4093 = vmatprep.subr.mxu0 0.0
        %4094 = vmatpush1.xpose.msra.mxu0 0.0
        %4095 = vmatprep.subr.mxu0 0.0
        %4096 = vmatpush1.xpose.msra.mxu0 0.0
        %4097 = vmatprep.subr.mxu0 0.0
        %4098 = vmatpush1.xpose.msra.mxu0 0.0
        %4099 = vmatprep.subr.mxu0 0.0
        %4100 = vmatpush1.xpose.msra.mxu0 0.0
        %4101 = vmatprep.subr.mxu0 0.0
        %4102 = vmatpush1.xpose.msra.mxu0 0.0
        %4103 = vmatprep.subr.mxu0 0.0
        %4104 = vmatpush1.xpose.msra.mxu0 0.0
        %4105 = vmatprep.subr.mxu0 0.0
        %4106 = vmatpush1.xpose.msra.mxu0 0.0
        %4107 = vmatprep.subr.mxu0 0.0
        %4108 = vmatpush1.xpose.msra.mxu0 0.0
        %4109 = vmatprep.subr.mxu0 0.0
        %4110 = vmatpush1.xpose.msra.mxu0 0.0
        %4111 = vmatprep.subr.mxu0 0.0
        %4112 = vmatpush1.xpose.msra.mxu0 0.0
        %4113 = vmatprep.subr.mxu0 0.0
        %4114 = vmatpush1.xpose.msra.mxu0 0.0
        %4115 = vmatprep.subr.mxu0 0.0
        %4116 = vmatpush1.xpose.msra.mxu0 0.0
        %4117 = vmatprep.subr.mxu0 0.0
        %4118 = vmatpush1.xpose.msra.mxu0 0.0
        %4119 = vmatprep.subr.mxu0 0.0
        %4120 = vmatpush1.xpose.msra.mxu0 0.0
        %4121 = vmatprep.subr.mxu0 0.0
        %4122 = vmatpush1.xpose.msra.mxu0 0.0
        %4123 = vmatprep.subr.mxu0 0.0
        %4124 = vmatpush1.xpose.msra.mxu0 0.0
        %4125 = vmatprep.subr.mxu0 0.0
        %4126 = vmatpush1.xpose.msra.mxu0 0.0
        %4127 = vmatprep.mubr.f32.mxu0 0.0
        %4128 = vmatmul.mubr.f32.gmra.mrb[0].mxu0 %v4059
        %v4129 = vpop.f32.mrb[0].mxu0
        %v4130 = vadd.f32 0.0, %v4129
        %v4131 = vpop.f32.mrb[0].mxu0
        %4132 = vdwg.mxu0
        %v4133 = vmul.f32 %v4130, 0.35355338
        %v4134 = vsel %vm1088, %v4133, -inf
        %4135 = vmax.xlane.f32.xlu0 %v4134
        %v4136 = vpop.xlane.xlu0 %4135
        %v4137 = vsub.f32 %v4133, %v4136
        %v4138 = vmul.f32 %v4137, 1.442695
        %v4139 = vpow.pop %v4138
        %v4140 = vsel %vm1088, %v4139, 0.0
        %4141 = vadd.xlane.f32.xlu0 %v4140
        %v4142 = vpop.xlane.xlu0 %4141
        %v4143 = vrcp.pop %v4142
        %v4144 = vmul.f32 %v4139, %v4143
        %4145 = vrot.lane.b32.xlu0 %v3887, 56
        %v4146 = vpop.permute.xlu0 %4145
        %v4149 = vsel %vm1088, %v4144, 0
        %4151 = vmatprep.subr.mxu0 0.0
        %4152 = vmatpush1.msra.mxu0 %v4146
        %4153 = vmatprep.subr.mxu0 0.0
        %4154 = vmatpush1.msra.mxu0 0.0
        %4155 = vmatprep.subr.mxu0 0.0
        %4156 = vmatpush1.msra.mxu0 0.0
        %4157 = vmatprep.subr.mxu0 0.0
        %4158 = vmatpush1.msra.mxu0 0.0
        %4159 = vmatprep.subr.mxu0 0.0
        %4160 = vmatpush1.msra.mxu0 0.0
        %4161 = vmatprep.subr.mxu0 0.0
        %4162 = vmatpush1.msra.mxu0 0.0
        %4163 = vmatprep.subr.mxu0 0.0
        %4164 = vmatpush1.msra.mxu0 0.0
        %4165 = vmatprep.subr.mxu0 0.0
        %4166 = vmatpush1.msra.mxu0 0.0
        %4167 = vmatprep.subr.mxu0 0.0
        %4168 = vmatpush1.msra.mxu0 0.0
        %4169 = vmatprep.subr.mxu0 0.0
        %4170 = vmatpush1.msra.mxu0 0.0
        %4171 = vmatprep.subr.mxu0 0.0
        %4172 = vmatpush1.msra.mxu0 0.0
        %4173 = vmatprep.subr.mxu0 0.0
        %4174 = vmatpush1.msra.mxu0 0.0
        %4175 = vmatprep.subr.mxu0 0.0
        %4176 = vmatpush1.msra.mxu0 0.0
        %4177 = vmatprep.subr.mxu0 0.0
        %4178 = vmatpush1.msra.mxu0 0.0
        %4179 = vmatprep.subr.mxu0 0.0
        %4180 = vmatpush1.msra.mxu0 0.0
        %4181 = vmatprep.subr.mxu0 0.0
        %4182 = vmatpush1.msra.mxu0 0.0
        %4183 = vmatprep.subr.mxu0 0.0
        %4184 = vmatpush1.msra.mxu0 0.0
        %4185 = vmatprep.subr.mxu0 0.0
        %4186 = vmatpush1.msra.mxu0 0.0
        %4187 = vmatprep.subr.mxu0 0.0
        %4188 = vmatpush1.msra.mxu0 0.0
        %4189 = vmatprep.subr.mxu0 0.0
        %4190 = vmatpush1.msra.mxu0 0.0
        %4191 = vmatprep.subr.mxu0 0.0
        %4192 = vmatpush1.msra.mxu0 0.0
        %4193 = vmatprep.subr.mxu0 0.0
        %4194 = vmatpush1.msra.mxu0 0.0
        %4195 = vmatprep.subr.mxu0 0.0
        %4196 = vmatpush1.msra.mxu0 0.0
        %4197 = vmatprep.subr.mxu0 0.0
        %4198 = vmatpush1.msra.mxu0 0.0
        %4199 = vmatprep.subr.mxu0 0.0
        %4200 = vmatpush1.msra.mxu0 0.0
        %4201 = vmatprep.subr.mxu0 0.0
        %4202 = vmatpush1.msra.mxu0 0.0
        %4203 = vmatprep.subr.mxu0 0.0
        %4204 = vmatpush1.msra.mxu0 0.0
        %4205 = vmatprep.subr.mxu0 0.0
        %4206 = vmatpush1.msra.mxu0 0.0
        %4207 = vmatprep.subr.mxu0 0.0
        %4208 = vmatpush1.msra.mxu0 0.0
        %4209 = vmatprep.subr.mxu0 0.0
        %4210 = vmatpush1.msra.mxu0 0.0
        %4211 = vmatprep.subr.mxu0 0.0
        %4212 = vmatpush1.msra.mxu0 0.0
        %4213 = vmatprep.subr.mxu0 0.0
        %4214 = vmatpush1.msra.mxu0 0.0
        %4215 = vmatprep.mubr.f32.mxu0 0.0
        %4216 = vmatmul.mubr.f32.gmra.mrb[0].mxu0 %v4149
        %v4217 = vpop.f32.mrb[0].mxu0
        %v4218 = vadd.f32 0.0, %v4217
        %v4219 = vpop.f32.mrb[0].mxu0
        %4220 = vdwg.mxu0
        %4221 = vrot.lane.b32.xlu0 %v3887, 112
        %v4222 = vpop.permute.xlu0 %4221
        %4223 = vrot.lane.b32.xlu0 %v3887, 80
        %v4224 = vpop.permute.xlu0 %4223
        %v4225 = vsel %vm1088, %v4222, 0
        %v4227 = vsel %vm1088, %v4224, 0
        %4229 = vmatprep.subr.mxu0 0.0
        %4230 = vmatpush1.xpose.msra.mxu0 %v4227
        %4231 = vmatprep.subr.mxu0 0.0
        %4232 = vmatpush1.xpose.msra.mxu0 0.0
        %4233 = vmatprep.subr.mxu0 0.0
        %4234 = vmatpush1.xpose.msra.mxu0 0.0
        %4235 = vmatprep.subr.mxu0 0.0
        %4236 = vmatpush1.xpose.msra.mxu0 0.0
        %4237 = vmatprep.subr.mxu0 0.0
        %4238 = vmatpush1.xpose.msra.mxu0 0.0
        %4239 = vmatprep.subr.mxu0 0.0
        %4240 = vmatpush1.xpose.msra.mxu0 0.0
        %4241 = vmatprep.subr.mxu0 0.0
        %4242 = vmatpush1.xpose.msra.mxu0 0.0
        %4243 = vmatprep.subr.mxu0 0.0
        %4244 = vmatpush1.xpose.msra.mxu0 0.0
        %4245 = vmatprep.subr.mxu0 0.0
        %4246 = vmatpush1.xpose.msra.mxu0 0.0
        %4247 = vmatprep.subr.mxu0 0.0
        %4248 = vmatpush1.xpose.msra.mxu0 0.0
        %4249 = vmatprep.subr.mxu0 0.0
        %4250 = vmatpush1.xpose.msra.mxu0 0.0
        %4251 = vmatprep.subr.mxu0 0.0
        %4252 = vmatpush1.xpose.msra.mxu0 0.0
        %4253 = vmatprep.subr.mxu0 0.0
        %4254 = vmatpush1.xpose.msra.mxu0 0.0
        %4255 = vmatprep.subr.mxu0 0.0
        %4256 = vmatpush1.xpose.msra.mxu0 0.0
        %4257 = vmatprep.subr.mxu0 0.0
        %4258 = vmatpush1.xpose.msra.mxu0 0.0
        %4259 = vmatprep.subr.mxu0 0.0
        %4260 = vmatpush1.xpose.msra.mxu0 0.0
        %4261 = vmatprep.subr.mxu0 0.0
        %4262 = vmatpush1.xpose.msra.mxu0 0.0
        %4263 = vmatprep.subr.mxu0 0.0
        %4264 = vmatpush1.xpose.msra.mxu0 0.0
        %4265 = vmatprep.subr.mxu0 0.0
        %4266 = vmatpush1.xpose.msra.mxu0 0.0
        %4267 = vmatprep.subr.mxu0 0.0
        %4268 = vmatpush1.xpose.msra.mxu0 0.0
        %4269 = vmatprep.subr.mxu0 0.0
        %4270 = vmatpush1.xpose.msra.mxu0 0.0
        %4271 = vmatprep.subr.mxu0 0.0
        %4272 = vmatpush1.xpose.msra.mxu0 0.0
        %4273 = vmatprep.subr.mxu0 0.0
        %4274 = vmatpush1.xpose.msra.mxu0 0.0
        %4275 = vmatprep.subr.mxu0 0.0
        %4276 = vmatpush1.xpose.msra.mxu0 0.0
        %4277 = vmatprep.subr.mxu0 0.0
        %4278 = vmatpush1.xpose.msra.mxu0 0.0
        %4279 = vmatprep.subr.mxu0 0.0
        %4280 = vmatpush1.xpose.msra.mxu0 0.0
        %4281 = vmatprep.subr.mxu0 0.0
        %4282 = vmatpush1.xpose.msra.mxu0 0.0
        %4283 = vmatprep.subr.mxu0 0.0
        %4284 = vmatpush1.xpose.msra.mxu0 0.0
        %4285 = vmatprep.subr.mxu0 0.0
        %4286 = vmatpush1.xpose.msra.mxu0 0.0
        %4287 = vmatprep.subr.mxu0 0.0
        %4288 = vmatpush1.xpose.msra.mxu0 0.0
        %4289 = vmatprep.subr.mxu0 0.0
        %4290 = vmatpush1.xpose.msra.mxu0 0.0
        %4291 = vmatprep.subr.mxu0 0.0
        %4292 = vmatpush1.xpose.msra.mxu0 0.0
        %4293 = vmatprep.mubr.f32.mxu0 0.0
        %4294 = vmatmul.mubr.f32.gmra.mrb[0].mxu0 %v4225
        %v4295 = vpop.f32.mrb[0].mxu0
        %v4296 = vadd.f32 0.0, %v4295
        %v4297 = vpop.f32.mrb[0].mxu0
        %4298 = vdwg.mxu0
        %v4299 = vmul.f32 %v4296, 0.35355338
        %v4300 = vsel %vm1088, %v4299, -inf
        %4301 = vmax.xlane.f32.xlu0 %v4300
        %v4302 = vpop.xlane.xlu0 %4301
        %v4303 = vsub.f32 %v4299, %v4302
        %v4304 = vmul.f32 %v4303, 1.442695
        %v4305 = vpow.pop %v4304
        %v4306 = vsel %vm1088, %v4305, 0.0
        %4307 = vadd.xlane.f32.xlu0 %v4306
        %v4308 = vpop.xlane.xlu0 %4307
        %v4309 = vrcp.pop %v4308
        %v4310 = vmul.f32 %v4305, %v4309
        %4311 = vrot.lane.b32.xlu0 %v3887, 48
        %v4312 = vpop.permute.xlu0 %4311
        %v4315 = vsel %vm1088, %v4310, 0
        %4317 = vmatprep.subr.mxu0 0.0
        %4318 = vmatpush1.msra.mxu0 %v4312
        %4319 = vmatprep.subr.mxu0 0.0
        %4320 = vmatpush1.msra.mxu0 0.0
        %4321 = vmatprep.subr.mxu0 0.0
        %4322 = vmatpush1.msra.mxu0 0.0
        %4323 = vmatprep.subr.mxu0 0.0
        %4324 = vmatpush1.msra.mxu0 0.0
        %4325 = vmatprep.subr.mxu0 0.0
        %4326 = vmatpush1.msra.mxu0 0.0
        %4327 = vmatprep.subr.mxu0 0.0
        %4328 = vmatpush1.msra.mxu0 0.0
        %4329 = vmatprep.subr.mxu0 0.0
        %4330 = vmatpush1.msra.mxu0 0.0
        %4331 = vmatprep.subr.mxu0 0.0
        %4332 = vmatpush1.msra.mxu0 0.0
        %4333 = vmatprep.subr.mxu0 0.0
        %4334 = vmatpush1.msra.mxu0 0.0
        %4335 = vmatprep.subr.mxu0 0.0
        %4336 = vmatpush1.msra.mxu0 0.0
        %4337 = vmatprep.subr.mxu0 0.0
        %4338 = vmatpush1.msra.mxu0 0.0
        %4339 = vmatprep.subr.mxu0 0.0
        %4340 = vmatpush1.msra.mxu0 0.0
        %4341 = vmatprep.subr.mxu0 0.0
        %4342 = vmatpush1.msra.mxu0 0.0
        %4343 = vmatprep.subr.mxu0 0.0
        %4344 = vmatpush1.msra.mxu0 0.0
        %4345 = vmatprep.subr.mxu0 0.0
        %4346 = vmatpush1.msra.mxu0 0.0
        %4347 = vmatprep.subr.mxu0 0.0
        %4348 = vmatpush1.msra.mxu0 0.0
        %4349 = vmatprep.subr.mxu0 0.0
        %4350 = vmatpush1.msra.mxu0 0.0
        %4351 = vmatprep.subr.mxu0 0.0
        %4352 = vmatpush1.msra.mxu0 0.0
        %4353 = vmatprep.subr.mxu0 0.0
        %4354 = vmatpush1.msra.mxu0 0.0
        %4355 = vmatprep.subr.mxu0 0.0
        %4356 = vmatpush1.msra.mxu0 0.0
        %4357 = vmatprep.subr.mxu0 0.0
        %4358 = vmatpush1.msra.mxu0 0.0
        %4359 = vmatprep.subr.mxu0 0.0
        %4360 = vmatpush1.msra.mxu0 0.0
        %4361 = vmatprep.subr.mxu0 0.0
        %4362 = vmatpush1.msra.mxu0 0.0
        %4363 = vmatprep.subr.mxu0 0.0
        %4364 = vmatpush1.msra.mxu0 0.0
        %4365 = vmatprep.subr.mxu0 0.0
        %4366 = vmatpush1.msra.mxu0 0.0
        %4367 = vmatprep.subr.mxu0 0.0
        %4368 = vmatpush1.msra.mxu0 0.0
        %4369 = vmatprep.subr.mxu0 0.0
        %4370 = vmatpush1.msra.mxu0 0.0
        %4371 = vmatprep.subr.mxu0 0.0
        %4372 = vmatpush1.msra.mxu0 0.0
        %4373 = vmatprep.subr.mxu0 0.0
        %4374 = vmatpush1.msra.mxu0 0.0
        %4375 = vmatprep.subr.mxu0 0.0
        %4376 = vmatpush1.msra.mxu0 0.0
        %4377 = vmatprep.subr.mxu0 0.0
        %4378 = vmatpush1.msra.mxu0 0.0
        %4379 = vmatprep.subr.mxu0 0.0
        %4380 = vmatpush1.msra.mxu0 0.0
        %4381 = vmatprep.mubr.f32.mxu0 0.0
        %4382 = vmatmul.mubr.f32.gmra.mrb[0].mxu0 %v4315
        %v4383 = vpop.f32.mrb[0].mxu0
        %v4384 = vadd.f32 0.0, %v4383
        %v4385 = vpop.f32.mrb[0].mxu0
        %4386 = vdwg.mxu0
        %4387 = vrot.lane.b32.xlu0 %v3887, 104
        %v4388 = vpop.permute.xlu0 %4387
        %4389 = vrot.lane.b32.xlu0 %v3887, 72
        %v4390 = vpop.permute.xlu0 %4389
        %v4391 = vsel %vm1088, %v4388, 0
        %v4393 = vsel %vm1088, %v4390, 0
        %4395 = vmatprep.subr.mxu0 0.0
        %4396 = vmatpush1.xpose.msra.mxu0 %v4393
        %4397 = vmatprep.subr.mxu0 0.0
        %4398 = vmatpush1.xpose.msra.mxu0 0.0
        %4399 = vmatprep.subr.mxu0 0.0
        %4400 = vmatpush1.xpose.msra.mxu0 0.0
        %4401 = vmatprep.subr.mxu0 0.0
        %4402 = vmatpush1.xpose.msra.mxu0 0.0
        %4403 = vmatprep.subr.mxu0 0.0
        %4404 = vmatpush1.xpose.msra.mxu0 0.0
        %4405 = vmatprep.subr.mxu0 0.0
        %4406 = vmatpush1.xpose.msra.mxu0 0.0
        %4407 = vmatprep.subr.mxu0 0.0
        %4408 = vmatpush1.xpose.msra.mxu0 0.0
        %4409 = vmatprep.subr.mxu0 0.0
        %4410 = vmatpush1.xpose.msra.mxu0 0.0
        %4411 = vmatprep.subr.mxu0 0.0
        %4412 = vmatpush1.xpose.msra.mxu0 0.0
        %4413 = vmatprep.subr.mxu0 0.0
        %4414 = vmatpush1.xpose.msra.mxu0 0.0
        %4415 = vmatprep.subr.mxu0 0.0
        %4416 = vmatpush1.xpose.msra.mxu0 0.0
        %4417 = vmatprep.subr.mxu0 0.0
        %4418 = vmatpush1.xpose.msra.mxu0 0.0
        %4419 = vmatprep.subr.mxu0 0.0
        %4420 = vmatpush1.xpose.msra.mxu0 0.0
        %4421 = vmatprep.subr.mxu0 0.0
        %4422 = vmatpush1.xpose.msra.mxu0 0.0
        %4423 = vmatprep.subr.mxu0 0.0
        %4424 = vmatpush1.xpose.msra.mxu0 0.0
        %4425 = vmatprep.subr.mxu0 0.0
        %4426 = vmatpush1.xpose.msra.mxu0 0.0
        %4427 = vmatprep.subr.mxu0 0.0
        %4428 = vmatpush1.xpose.msra.mxu0 0.0
        %4429 = vmatprep.subr.mxu0 0.0
        %4430 = vmatpush1.xpose.msra.mxu0 0.0
        %4431 = vmatprep.subr.mxu0 0.0
        %4432 = vmatpush1.xpose.msra.mxu0 0.0
        %4433 = vmatprep.subr.mxu0 0.0
        %4434 = vmatpush1.xpose.msra.mxu0 0.0
        %4435 = vmatprep.subr.mxu0 0.0
        %4436 = vmatpush1.xpose.msra.mxu0 0.0
        %4437 = vmatprep.subr.mxu0 0.0
        %4438 = vmatpush1.xpose.msra.mxu0 0.0
        %4439 = vmatprep.subr.mxu0 0.0
        %4440 = vmatpush1.xpose.msra.mxu0 0.0
        %4441 = vmatprep.subr.mxu0 0.0
        %4442 = vmatpush1.xpose.msra.mxu0 0.0
        %4443 = vmatprep.subr.mxu0 0.0
        %4444 = vmatpush1.xpose.msra.mxu0 0.0
        %4445 = vmatprep.subr.mxu0 0.0
        %4446 = vmatpush1.xpose.msra.mxu0 0.0
        %4447 = vmatprep.subr.mxu0 0.0
        %4448 = vmatpush1.xpose.msra.mxu0 0.0
        %4449 = vmatprep.subr.mxu0 0.0
        %4450 = vmatpush1.xpose.msra.mxu0 0.0
        %4451 = vmatprep.subr.mxu0 0.0
        %4452 = vmatpush1.xpose.msra.mxu0 0.0
        %4453 = vmatprep.subr.mxu0 0.0
        %4454 = vmatpush1.xpose.msra.mxu0 0.0
        %4455 = vmatprep.subr.mxu0 0.0
        %4456 = vmatpush1.xpose.msra.mxu0 0.0
        %4457 = vmatprep.subr.mxu0 0.0
        %4458 = vmatpush1.xpose.msra.mxu0 0.0
        %4459 = vmatprep.mubr.f32.mxu0 0.0
        %4460 = vmatmul.mubr.f32.gmra.mrb[0].mxu0 %v4391
        %v4461 = vpop.f32.mrb[0].mxu0
        %v4462 = vadd.f32 0.0, %v4461
        %v4463 = vpop.f32.mrb[0].mxu0
        %4464 = vdwg.mxu0
        %v4465 = vmul.f32 %v4462, 0.35355338
        %v4466 = vsel %vm1088, %v4465, -inf
        %4467 = vmax.xlane.f32.xlu0 %v4466
        %v4468 = vpop.xlane.xlu0 %4467
        %v4469 = vsub.f32 %v4465, %v4468
        %v4470 = vmul.f32 %v4469, 1.442695
        %v4471 = vpow.pop %v4470
        %v4472 = vsel %vm1088, %v4471, 0.0
        %4473 = vadd.xlane.f32.xlu0 %v4472
        %v4474 = vpop.xlane.xlu0 %4473
        %v4475 = vrcp.pop %v4474
        %v4476 = vmul.f32 %v4471, %v4475
        %4477 = vrot.lane.b32.xlu0 %v3887, 40
        %v4478 = vpop.permute.xlu0 %4477
        %v4481 = vsel %vm1088, %v4476, 0
        %4483 = vmatprep.subr.mxu0 0.0
        %4484 = vmatpush1.msra.mxu0 %v4478
        %4485 = vmatprep.subr.mxu0 0.0
        %4486 = vmatpush1.msra.mxu0 0.0
        %4487 = vmatprep.subr.mxu0 0.0
        %4488 = vmatpush1.msra.mxu0 0.0
        %4489 = vmatprep.subr.mxu0 0.0
        %4490 = vmatpush1.msra.mxu0 0.0
        %4491 = vmatprep.subr.mxu0 0.0
        %4492 = vmatpush1.msra.mxu0 0.0
        %4493 = vmatprep.subr.mxu0 0.0
        %4494 = vmatpush1.msra.mxu0 0.0
        %4495 = vmatprep.subr.mxu0 0.0
        %4496 = vmatpush1.msra.mxu0 0.0
        %4497 = vmatprep.subr.mxu0 0.0
        %4498 = vmatpush1.msra.mxu0 0.0
        %4499 = vmatprep.subr.mxu0 0.0
        %4500 = vmatpush1.msra.mxu0 0.0
        %4501 = vmatprep.subr.mxu0 0.0
        %4502 = vmatpush1.msra.mxu0 0.0
        %4503 = vmatprep.subr.mxu0 0.0
        %4504 = vmatpush1.msra.mxu0 0.0
        %4505 = vmatprep.subr.mxu0 0.0
        %4506 = vmatpush1.msra.mxu0 0.0
        %4507 = vmatprep.subr.mxu0 0.0
        %4508 = vmatpush1.msra.mxu0 0.0
        %4509 = vmatprep.subr.mxu0 0.0
        %4510 = vmatpush1.msra.mxu0 0.0
        %4511 = vmatprep.subr.mxu0 0.0
        %4512 = vmatpush1.msra.mxu0 0.0
        %4513 = vmatprep.subr.mxu0 0.0
        %4514 = vmatpush1.msra.mxu0 0.0
        %4515 = vmatprep.subr.mxu0 0.0
        %4516 = vmatpush1.msra.mxu0 0.0
        %4517 = vmatprep.subr.mxu0 0.0
        %4518 = vmatpush1.msra.mxu0 0.0
        %4519 = vmatprep.subr.mxu0 0.0
        %4520 = vmatpush1.msra.mxu0 0.0
        %4521 = vmatprep.subr.mxu0 0.0
        %4522 = vmatpush1.msra.mxu0 0.0
        %4523 = vmatprep.subr.mxu0 0.0
        %4524 = vmatpush1.msra.mxu0 0.0
        %4525 = vmatprep.subr.mxu0 0.0
        %4526 = vmatpush1.msra.mxu0 0.0
        %4527 = vmatprep.subr.mxu0 0.0
        %4528 = vmatpush1.msra.mxu0 0.0
        %4529 = vmatprep.subr.mxu0 0.0
        %4530 = vmatpush1.msra.mxu0 0.0
        %4531 = vmatprep.subr.mxu0 0.0
        %4532 = vmatpush1.msra.mxu0 0.0
        %4533 = vmatprep.subr.mxu0 0.0
        %4534 = vmatpush1.msra.mxu0 0.0
        %4535 = vmatprep.subr.mxu0 0.0
        %4536 = vmatpush1.msra.mxu0 0.0
        %4537 = vmatprep.subr.mxu0 0.0
        %4538 = vmatpush1.msra.mxu0 0.0
        %4539 = vmatprep.subr.mxu0 0.0
        %4540 = vmatpush1.msra.mxu0 0.0
        %4541 = vmatprep.subr.mxu0 0.0
        %4542 = vmatpush1.msra.mxu0 0.0
        %4543 = vmatprep.subr.mxu0 0.0
        %4544 = vmatpush1.msra.mxu0 0.0
        %4545 = vmatprep.subr.mxu0 0.0
        %4546 = vmatpush1.msra.mxu0 0.0
        %4547 = vmatprep.mubr.f32.mxu0 0.0
        %4548 = vmatmul.mubr.f32.gmra.mrb[0].mxu0 %v4481
        %v4549 = vpop.f32.mrb[0].mxu0
        %v4550 = vadd.f32 0.0, %v4549
        %v4551 = vpop.f32.mrb[0].mxu0
        %4552 = vdwg.mxu0
        %4554 = vrot.lane.b32.xlu0 %v4218, 8
        %v4555 = vpop.permute.xlu0 %4554
        %4558 = vrot.lane.b32.xlu0 %v4384, 16
        %v4559 = vpop.permute.xlu0 %4558
        %4562 = vrot.lane.b32.xlu0 %v4550, 24
        %v4563 = vpop.permute.xlu0 %4562
        %v4565 = vsel %vm1088, %v4052, %v4555
        %v4566 = vsel %vm1166, %v4565, %v4559
        %v4567 = vsel %vm3479, %v4566, %v4563
        %s4568 = scalar_lea.vmem %s33, 32
        %v4569 = vld [vmem:[%s4568] sm:$0xff]
        %v4570 = vld [vmem:[%s4568 + $0x8] sm:$0xff]
        %v4571 = vld [vmem:[%s4568 + $0x10] sm:$0xff]
        %v4572 = vld [vmem:[%s4568 + $0x18] sm:$0xff]
        %s4573 = scalar_lea.vmem %s35, 1
        %v4574 = vld [vmem:[%s4573] sm:$0x1]
        %v4576 = vlaneseq
        %v4577 = vshrl.u32 %v4576, 7
        %v4578 = vsub.s32 0, %v4577
        %v4579 = vrot.slane %v4574, %v4578
        %v4582 = vsel %vm1179, %v4567, 0
        %4584 = vmatprep.subr.mxu0 0.0
        %4585 = vmatpush1.msra.mxu0 %v4569
        %4586 = vmatprep.subr.mxu0 0.0
        %4587 = vmatpush1.msra.mxu0 %v4570
        %4588 = vmatprep.subr.mxu0 0.0
        %4589 = vmatpush1.msra.mxu0 %v4571
        %4590 = vmatprep.subr.mxu0 0.0
        %4591 = vmatpush1.msra.mxu0 %v4572
        %4592 = vmatprep.subr.mxu0 0.0
        %4593 = vmatpush1.msra.mxu0 0.0
        %4594 = vmatprep.subr.mxu0 0.0
        %4595 = vmatpush1.msra.mxu0 0.0
        %4596 = vmatprep.subr.mxu0 0.0
        %4597 = vmatpush1.msra.mxu0 0.0
        %4598 = vmatprep.subr.mxu0 0.0
        %4599 = vmatpush1.msra.mxu0 0.0
        %4600 = vmatprep.subr.mxu0 0.0
        %4601 = vmatpush1.msra.mxu0 0.0
        %4602 = vmatprep.subr.mxu0 0.0
        %4603 = vmatpush1.msra.mxu0 0.0
        %4604 = vmatprep.subr.mxu0 0.0
        %4605 = vmatpush1.msra.mxu0 0.0
        %4606 = vmatprep.subr.mxu0 0.0
        %4607 = vmatpush1.msra.mxu0 0.0
        %4608 = vmatprep.subr.mxu0 0.0
        %4609 = vmatpush1.msra.mxu0 0.0
        %4610 = vmatprep.subr.mxu0 0.0
        %4611 = vmatpush1.msra.mxu0 0.0
        %4612 = vmatprep.subr.mxu0 0.0
        %4613 = vmatpush1.msra.mxu0 0.0
        %4614 = vmatprep.subr.mxu0 0.0
        %4615 = vmatpush1.msra.mxu0 0.0
        %4616 = vmatprep.subr.mxu0 0.0
        %4617 = vmatpush1.msra.mxu0 0.0
        %4618 = vmatprep.subr.mxu0 0.0
        %4619 = vmatpush1.msra.mxu0 0.0
        %4620 = vmatprep.subr.mxu0 0.0
        %4621 = vmatpush1.msra.mxu0 0.0
        %4622 = vmatprep.subr.mxu0 0.0
        %4623 = vmatpush1.msra.mxu0 0.0
        %4624 = vmatprep.subr.mxu0 0.0
        %4625 = vmatpush1.msra.mxu0 0.0
        %4626 = vmatprep.subr.mxu0 0.0
        %4627 = vmatpush1.msra.mxu0 0.0
        %4628 = vmatprep.subr.mxu0 0.0
        %4629 = vmatpush1.msra.mxu0 0.0
        %4630 = vmatprep.subr.mxu0 0.0
        %4631 = vmatpush1.msra.mxu0 0.0
        %4632 = vmatprep.subr.mxu0 0.0
        %4633 = vmatpush1.msra.mxu0 0.0
        %4634 = vmatprep.subr.mxu0 0.0
        %4635 = vmatpush1.msra.mxu0 0.0
        %4636 = vmatprep.subr.mxu0 0.0
        %4637 = vmatpush1.msra.mxu0 0.0
        %4638 = vmatprep.subr.mxu0 0.0
        %4639 = vmatpush1.msra.mxu0 0.0
        %4640 = vmatprep.subr.mxu0 0.0
        %4641 = vmatpush1.msra.mxu0 0.0
        %4642 = vmatprep.subr.mxu0 0.0
        %4643 = vmatpush1.msra.mxu0 0.0
        %4644 = vmatprep.subr.mxu0 0.0
        %4645 = vmatpush1.msra.mxu0 0.0
        %4646 = vmatprep.subr.mxu0 0.0
        %4647 = vmatpush1.msra.mxu0 0.0
        %4648 = vmatprep.mubr.f32.mxu0 0.0
        %4649 = vmatmul.mubr.f32.gmra.mrb[0].mxu0 %v4582
        %v4650 = vpop.f32.mrb[0].mxu0
        %v4651 = vadd.f32 %v4579, %v4650
        %v4652 = vpop.f32.mrb[0].mxu0
        %4653 = vdwg.mxu0
        %v4654 = vadd.f32 %v3803, %v4651
        %s4655 = scalar_lea.vmem %s45, 1
        %v4656 = vld [vmem:[%s4655] sm:$0x1]
        %s4657 = scalar_lea.vmem %s47, 1
        %v4658 = vld [vmem:[%s4657] sm:$0x1]
        %v4659 = vsel %vm1179, %v4654, 0.0
        %4660 = vadd.xlane.f32.xlu0 %v4659
        %v4661 = vpop.xlane.xlu0 %4660
        %v4662 = vmul.f32 %v4661, %v3571
        %v4663 = vsub.f32 %v4654, %v4662
        %v4664 = vmul.f32 %v4663, %v4663
        %v4665 = vsel %vm1179, %v4664, 0.0
        %4666 = vadd.xlane.f32.xlu0 %v4665
        %v4667 = vpop.xlane.xlu0 %4666
        %v4668 = vmul.f32 %v4667, %v3571
        %v4669 = vadd.f32 %v4668, 1e-05
        %v4670 = vrsqrt.pop %v4669
        %v4671 = vmul.f32 %v4663, %v4670
        %v4673 = vlaneseq
        %v4674 = vshrl.u32 %v4673, 7
        %v4675 = vsub.s32 0, %v4674
        %v4676 = vrot.slane %v4656, %v4675
        %v4678 = vmul.f32 %v4671, %v4676
        %v4680 = vlaneseq
        %v4681 = vshrl.u32 %v4680, 7
        %v4682 = vsub.s32 0, %v4681
        %v4683 = vrot.slane %v4658, %v4682
        %v4685 = vadd.f32 %v4678, %v4683
        %s4686 = scalar_lea.vmem %s37, 32
        %v4687 = vld [vmem:[%s4686] sm:$0xff]
        %v4688 = vld [vmem:[%s4686 + $0x8] sm:$0xff]
        %v4689 = vld [vmem:[%s4686 + $0x10] sm:$0xff]
        %v4690 = vld [vmem:[%s4686 + $0x18] sm:$0xff]
        %s4691 = scalar_lea.vmem %s39, 1
        %v4692 = vld [vmem:[%s4691] sm:$0x1]
        %v4694 = vlaneseq
        %v4695 = vshrl.u32 %v4694, 7
        %v4696 = vsub.s32 0, %v4695
        %v4697 = vrot.slane %v4692, %v4696
        %v4700 = vsel %vm1179, %v4685, 0
        %4702 = vmatprep.subr.mxu0 0.0
        %4703 = vmatpush1.msra.mxu0 %v4687
        %4704 = vmatprep.subr.mxu0 0.0
        %4705 = vmatpush1.msra.mxu0 %v4688
        %4706 = vmatprep.subr.mxu0 0.0
        %4707 = vmatpush1.msra.mxu0 %v4689
        %4708 = vmatprep.subr.mxu0 0.0
        %4709 = vmatpush1.msra.mxu0 %v4690
        %4710 = vmatprep.subr.mxu0 0.0
        %4711 = vmatpush1.msra.mxu0 0.0
        %4712 = vmatprep.subr.mxu0 0.0
        %4713 = vmatpush1.msra.mxu0 0.0
        %4714 = vmatprep.subr.mxu0 0.0
        %4715 = vmatpush1.msra.mxu0 0.0
        %4716 = vmatprep.subr.mxu0 0.0
        %4717 = vmatpush1.msra.mxu0 0.0
        %4718 = vmatprep.subr.mxu0 0.0
        %4719 = vmatpush1.msra.mxu0 0.0
        %4720 = vmatprep.subr.mxu0 0.0
        %4721 = vmatpush1.msra.mxu0 0.0
        %4722 = vmatprep.subr.mxu0 0.0
        %4723 = vmatpush1.msra.mxu0 0.0
        %4724 = vmatprep.subr.mxu0 0.0
        %4725 = vmatpush1.msra.mxu0 0.0
        %4726 = vmatprep.subr.mxu0 0.0
        %4727 = vmatpush1.msra.mxu0 0.0
        %4728 = vmatprep.subr.mxu0 0.0
        %4729 = vmatpush1.msra.mxu0 0.0
        %4730 = vmatprep.subr.mxu0 0.0
        %4731 = vmatpush1.msra.mxu0 0.0
        %4732 = vmatprep.subr.mxu0 0.0
        %4733 = vmatpush1.msra.mxu0 0.0
        %4734 = vmatprep.subr.mxu0 0.0
        %4735 = vmatpush1.msra.mxu0 0.0
        %4736 = vmatprep.subr.mxu0 0.0
        %4737 = vmatpush1.msra.mxu0 0.0
        %4738 = vmatprep.subr.mxu0 0.0
        %4739 = vmatpush1.msra.mxu0 0.0
        %4740 = vmatprep.subr.mxu0 0.0
        %4741 = vmatpush1.msra.mxu0 0.0
        %4742 = vmatprep.subr.mxu0 0.0
        %4743 = vmatpush1.msra.mxu0 0.0
        %4744 = vmatprep.subr.mxu0 0.0
        %4745 = vmatpush1.msra.mxu0 0.0
        %4746 = vmatprep.subr.mxu0 0.0
        %4747 = vmatpush1.msra.mxu0 0.0
        %4748 = vmatprep.subr.mxu0 0.0
        %4749 = vmatpush1.msra.mxu0 0.0
        %4750 = vmatprep.subr.mxu0 0.0
        %4751 = vmatpush1.msra.mxu0 0.0
        %4752 = vmatprep.subr.mxu0 0.0
        %4753 = vmatpush1.msra.mxu0 0.0
        %4754 = vmatprep.subr.mxu0 0.0
        %4755 = vmatpush1.msra.mxu0 0.0
        %4756 = vmatprep.subr.mxu0 0.0
        %4757 = vmatpush1.msra.mxu0 0.0
        %4758 = vmatprep.subr.mxu0 0.0
        %4759 = vmatpush1.msra.mxu0 0.0
        %4760 = vmatprep.subr.mxu0 0.0
        %4761 = vmatpush1.msra.mxu0 0.0
        %4762 = vmatprep.subr.mxu0 0.0
        %4763 = vmatpush1.msra.mxu0 0.0
        %4764 = vmatprep.subr.mxu0 0.0
        %4765 = vmatpush1.msra.mxu0 0.0
        %4766 = vmatprep.mubr.f32.mxu0 0.0
        %4767 = vmatmul.mubr.f32.gmra.mrb[0].mxu0 %v4700
        %v4768 = vpop.f32.mrb[0].mxu0
        %v4769 = vadd.f32 %v4697, %v4768
        %v4770 = vpop.f32.mrb[0].mxu0
        %4771 = vdwg.mxu0
        %v4772 = vmax.f32 %v4769, 0.0
        %s4773 = scalar_lea.vmem %s41, 128
        %v4774 = vld [vmem:[%s4773] sm:$0xff]
        %v4775 = vld [vmem:[%s4773 + $0x8] sm:$0xff]
        %v4776 = vld [vmem:[%s4773 + $0x10] sm:$0xff]
        %v4777 = vld [vmem:[%s4773 + $0x18] sm:$0xff]
        %v4778 = vld [vmem:[%s4773 + $0x20] sm:$0xff]
        %v4779 = vld [vmem:[%s4773 + $0x28] sm:$0xff]
        %v4780 = vld [vmem:[%s4773 + $0x30] sm:$0xff]
        %v4781 = vld [vmem:[%s4773 + $0x38] sm:$0xff]
        %v4782 = vld [vmem:[%s4773 + $0x40] sm:$0xff]
        %v4783 = vld [vmem:[%s4773 + $0x48] sm:$0xff]
        %v4784 = vld [vmem:[%s4773 + $0x50] sm:$0xff]
        %v4785 = vld [vmem:[%s4773 + $0x58] sm:$0xff]
        %v4786 = vld [vmem:[%s4773 + $0x60] sm:$0xff]
        %v4787 = vld [vmem:[%s4773 + $0x68] sm:$0xff]
        %v4788 = vld [vmem:[%s4773 + $0x70] sm:$0xff]
        %v4789 = vld [vmem:[%s4773 + $0x78] sm:$0xff]
        %s4790 = scalar_lea.vmem %s43, 1
        %v4791 = vld [vmem:[%s4790] sm:$0x1]
        %v4793 = vlaneseq
        %v4794 = vshrl.u32 %v4793, 7
        %v4795 = vsub.s32 0, %v4794
        %v4796 = vrot.slane %v4791, %v4795
        %4798 = vmatprep.subr.mxu0 0.0
        %4799 = vmatpush1.msra.mxu0 %v4774
        %4800 = vmatprep.subr.mxu0 0.0
        %4801 = vmatpush1.msra.mxu0 %v4775
        %4802 = vmatprep.subr.mxu0 0.0
        %4803 = vmatpush1.msra.mxu0 %v4776
        %4804 = vmatprep.subr.mxu0 0.0
        %4805 = vmatpush1.msra.mxu0 %v4777
        %4806 = vmatprep.subr.mxu0 0.0
        %4807 = vmatpush1.msra.mxu0 %v4778
        %4808 = vmatprep.subr.mxu0 0.0
        %4809 = vmatpush1.msra.mxu0 %v4779
        %4810 = vmatprep.subr.mxu0 0.0
        %4811 = vmatpush1.msra.mxu0 %v4780
        %4812 = vmatprep.subr.mxu0 0.0
        %4813 = vmatpush1.msra.mxu0 %v4781
        %4814 = vmatprep.subr.mxu0 0.0
        %4815 = vmatpush1.msra.mxu0 %v4782
        %4816 = vmatprep.subr.mxu0 0.0
        %4817 = vmatpush1.msra.mxu0 %v4783
        %4818 = vmatprep.subr.mxu0 0.0
        %4819 = vmatpush1.msra.mxu0 %v4784
        %4820 = vmatprep.subr.mxu0 0.0
        %4821 = vmatpush1.msra.mxu0 %v4785
        %4822 = vmatprep.subr.mxu0 0.0
        %4823 = vmatpush1.msra.mxu0 %v4786
        %4824 = vmatprep.subr.mxu0 0.0
        %4825 = vmatpush1.msra.mxu0 %v4787
        %4826 = vmatprep.subr.mxu0 0.0
        %4827 = vmatpush1.msra.mxu0 %v4788
        %4828 = vmatprep.subr.mxu0 0.0
        %4829 = vmatpush1.msra.mxu0 %v4789
        %4830 = vmatprep.subr.mxu0 0.0
        %4831 = vmatpush1.msra.mxu0 0.0
        %4832 = vmatprep.subr.mxu0 0.0
        %4833 = vmatpush1.msra.mxu0 0.0
        %4834 = vmatprep.subr.mxu0 0.0
        %4835 = vmatpush1.msra.mxu0 0.0
        %4836 = vmatprep.subr.mxu0 0.0
        %4837 = vmatpush1.msra.mxu0 0.0
        %4838 = vmatprep.subr.mxu0 0.0
        %4839 = vmatpush1.msra.mxu0 0.0
        %4840 = vmatprep.subr.mxu0 0.0
        %4841 = vmatpush1.msra.mxu0 0.0
        %4842 = vmatprep.subr.mxu0 0.0
        %4843 = vmatpush1.msra.mxu0 0.0
        %4844 = vmatprep.subr.mxu0 0.0
        %4845 = vmatpush1.msra.mxu0 0.0
        %4846 = vmatprep.subr.mxu0 0.0
        %4847 = vmatpush1.msra.mxu0 0.0
        %4848 = vmatprep.subr.mxu0 0.0
        %4849 = vmatpush1.msra.mxu0 0.0
        %4850 = vmatprep.subr.mxu0 0.0
        %4851 = vmatpush1.msra.mxu0 0.0
        %4852 = vmatprep.subr.mxu0 0.0
        %4853 = vmatpush1.msra.mxu0 0.0
        %4854 = vmatprep.subr.mxu0 0.0
        %4855 = vmatpush1.msra.mxu0 0.0
        %4856 = vmatprep.subr.mxu0 0.0
        %4857 = vmatpush1.msra.mxu0 0.0
        %4858 = vmatprep.subr.mxu0 0.0
        %4859 = vmatpush1.msra.mxu0 0.0
        %4860 = vmatprep.subr.mxu0 0.0
        %4861 = vmatpush1.msra.mxu0 0.0
        %4862 = vmatprep.mubr.f32.mxu0 0.0
        %4863 = vmatmul.mubr.f32.gmra.mrb[0].mxu0 %v4772
        %v4864 = vpop.f32.mrb[0].mxu0
        %v4865 = vadd.f32 %v4796, %v4864
        %v4866 = vpop.f32.mrb[0].mxu0
        %4867 = vdwg.mxu0
        %v4868 = vadd.f32 %v4685, %v4865
        %s4869 = scalar_lea.vmem %s49, 1
        %v4870 = vld [vmem:[%s4869] sm:$0x1]
        %s4871 = scalar_lea.vmem %s51, 1
        %v4872 = vld [vmem:[%s4871] sm:$0x1]
        %v4873 = vsel %vm1179, %v4868, 0.0
        %4874 = vadd.xlane.f32.xlu0 %v4873
        %v4875 = vpop.xlane.xlu0 %4874
        %v4876 = vmul.f32 %v4875, %v3571
        %v4877 = vsub.f32 %v4868, %v4876
        %v4878 = vmul.f32 %v4877, %v4877
        %v4879 = vsel %vm1179, %v4878, 0.0
        %4880 = vadd.xlane.f32.xlu0 %v4879
        %v4881 = vpop.xlane.xlu0 %4880
        %v4882 = vmul.f32 %v4881, %v3571
        %v4883 = vadd.f32 %v4882, 1e-05
        %v4884 = vrsqrt.pop %v4883
        %v4885 = vmul.f32 %v4877, %v4884
        %v4887 = vlaneseq
        %v4888 = vshrl.u32 %v4887, 7
        %v4889 = vsub.s32 0, %v4888
        %v4890 = vrot.slane %v4870, %v4889
        %v4892 = vmul.f32 %v4885, %v4890
        %v4894 = vlaneseq
        %v4895 = vshrl.u32 %v4894, 7
        %v4896 = vsub.s32 0, %v4895
        %v4897 = vrot.slane %v4872, %v4896
        %v4899 = vadd.f32 %v4892, %v4897
        %s4900 = scalar_lea.vmem %s29, 64
        %v4901 = vld [vmem:[%s4900] sm:$0xff]
        %v4902 = vld [vmem:[%s4900 + $0x8] sm:$0xff]
        %v4903 = vld [vmem:[%s4900 + $0x10] sm:$0xff]
        %v4904 = vld [vmem:[%s4900 + $0x18] sm:$0xff]
        %s4905 = scalar_lea.vmem %s31, 2
        %v4906 = vld [vmem:[%s4905] sm:$0x1]
        %v4908 = vlaneseq
        %v4909 = vshrl.u32 %v4908, 7
        %v4910 = vsub.s32 0, %v4909
        %v4911 = vrot.slane %v4906, %v4910
        %v4914 = vsel %vm1179, %v4899, 0
        %4916 = vmatprep.subr.mxu0 0.0
        %4917 = vmatpush1.msra.mxu0 %v4901
        %4918 = vmatprep.subr.mxu0 0.0
        %4919 = vmatpush1.msra.mxu0 %v4902
        %4920 = vmatprep.subr.mxu0 0.0
        %4921 = vmatpush1.msra.mxu0 %v4903
        %4922 = vmatprep.subr.mxu0 0.0
        %4923 = vmatpush1.msra.mxu0 %v4904
        %4924 = vmatprep.subr.mxu0 0.0
        %4925 = vmatpush1.msra.mxu0 0.0
        %4926 = vmatprep.subr.mxu0 0.0
        %4927 = vmatpush1.msra.mxu0 0.0
        %4928 = vmatprep.subr.mxu0 0.0
        %4929 = vmatpush1.msra.mxu0 0.0
        %4930 = vmatprep.subr.mxu0 0.0
        %4931 = vmatpush1.msra.mxu0 0.0
        %4932 = vmatprep.subr.mxu0 0.0
        %4933 = vmatpush1.msra.mxu0 0.0
        %4934 = vmatprep.subr.mxu0 0.0
        %4935 = vmatpush1.msra.mxu0 0.0
        %4936 = vmatprep.subr.mxu0 0.0
        %4937 = vmatpush1.msra.mxu0 0.0
        %4938 = vmatprep.subr.mxu0 0.0
        %4939 = vmatpush1.msra.mxu0 0.0
        %4940 = vmatprep.subr.mxu0 0.0
        %4941 = vmatpush1.msra.mxu0 0.0
        %4942 = vmatprep.subr.mxu0 0.0
        %4943 = vmatpush1.msra.mxu0 0.0
        %4944 = vmatprep.subr.mxu0 0.0
        %4945 = vmatpush1.msra.mxu0 0.0
        %4946 = vmatprep.subr.mxu0 0.0
        %4947 = vmatpush1.msra.mxu0 0.0
        %4948 = vmatprep.subr.mxu0 0.0
        %4949 = vmatpush1.msra.mxu0 0.0
        %4950 = vmatprep.subr.mxu0 0.0
        %4951 = vmatpush1.msra.mxu0 0.0
        %4952 = vmatprep.subr.mxu0 0.0
        %4953 = vmatpush1.msra.mxu0 0.0
        %4954 = vmatprep.subr.mxu0 0.0
        %4955 = vmatpush1.msra.mxu0 0.0
        %4956 = vmatprep.subr.mxu0 0.0
        %4957 = vmatpush1.msra.mxu0 0.0
        %4958 = vmatprep.subr.mxu0 0.0
        %4959 = vmatpush1.msra.mxu0 0.0
        %4960 = vmatprep.subr.mxu0 0.0
        %4961 = vmatpush1.msra.mxu0 0.0
        %4962 = vmatprep.subr.mxu0 0.0
        %4963 = vmatpush1.msra.mxu0 0.0
        %4964 = vmatprep.subr.mxu0 0.0
        %4965 = vmatpush1.msra.mxu0 0.0
        %4966 = vmatprep.subr.mxu0 0.0
        %4967 = vmatpush1.msra.mxu0 0.0
        %4968 = vmatprep.subr.mxu0 0.0
        %4969 = vmatpush1.msra.mxu0 0.0
        %4970 = vmatprep.subr.mxu0 0.0
        %4971 = vmatpush1.msra.mxu0 0.0
        %4972 = vmatprep.subr.mxu0 0.0
        %4973 = vmatpush1.msra.mxu0 0.0
        %4974 = vmatprep.subr.mxu0 0.0
        %4975 = vmatpush1.msra.mxu0 0.0
        %4976 = vmatprep.subr.mxu0 0.0
        %4977 = vmatpush1.msra.mxu0 0.0
        %4978 = vmatprep.subr.mxu0 0.0
        %4979 = vmatpush1.msra.mxu0 0.0
        %4980 = vmatprep.mubr.f32.mxu0 0.0
        %4981 = vmatmul.mubr.f32.gmra.mrb[0].mxu0 %v4914
        %v4982 = vpop.f32.mrb[0].mxu0
        %v4983 = vadd.f32 %v4911, %v4982
        %v4984 = vpop.f32.mrb[0].mxu0
        %4985 = vdwg.mxu0
        %4987 = vrot.lane.b32.xlu0 %v4983, 96
        %v4988 = vpop.permute.xlu0 %4987
        %v4989 = vsel %vm1088, %v4983, 0
        %v4991 = vsel %vm1088, %v4988, 0
        %4993 = vmatprep.subr.mxu0 0.0
        %4994 = vmatpush1.xpose.msra.mxu0 %v4991
        %4995 = vmatprep.subr.mxu0 0.0
        %4996 = vmatpush1.xpose.msra.mxu0 0.0
        %4997 = vmatprep.subr.mxu0 0.0
        %4998 = vmatpush1.xpose.msra.mxu0 0.0
        %4999 = vmatprep.subr.mxu0 0.0
        %5000 = vmatpush1.xpose.msra.mxu0 0.0
        %5001 = vmatprep.subr.mxu0 0.0
        %5002 = vmatpush1.xpose.msra.mxu0 0.0
        %5003 = vmatprep.subr.mxu0 0.0
        %5004 = vmatpush1.xpose.msra.mxu0 0.0
        %5005 = vmatprep.subr.mxu0 0.0
        %5006 = vmatpush1.xpose.msra.mxu0 0.0
        %5007 = vmatprep.subr.mxu0 0.0
        %5008 = vmatpush1.xpose.msra.mxu0 0.0
        %5009 = vmatprep.subr.mxu0 0.0
        %5010 = vmatpush1.xpose.msra.mxu0 0.0
        %5011 = vmatprep.subr.mxu0 0.0
        %5012 = vmatpush1.xpose.msra.mxu0 0.0
        %5013 = vmatprep.subr.mxu0 0.0
        %5014 = vmatpush1.xpose.msra.mxu0 0.0
        %5015 = vmatprep.subr.mxu0 0.0
        %5016 = vmatpush1.xpose.msra.mxu0 0.0
        %5017 = vmatprep.subr.mxu0 0.0
        %5018 = vmatpush1.xpose.msra.mxu0 0.0
        %5019 = vmatprep.subr.mxu0 0.0
        %5020 = vmatpush1.xpose.msra.mxu0 0.0
        %5021 = vmatprep.subr.mxu0 0.0
        %5022 = vmatpush1.xpose.msra.mxu0 0.0
        %5023 = vmatprep.subr.mxu0 0.0
        %5024 = vmatpush1.xpose.msra.mxu0 0.0
        %5025 = vmatprep.subr.mxu0 0.0
        %5026 = vmatpush1.xpose.msra.mxu0 0.0
        %5027 = vmatprep.subr.mxu0 0.0
        %5028 = vmatpush1.xpose.msra.mxu0 0.0
        %5029 = vmatprep.subr.mxu0 0.0
        %5030 = vmatpush1.xpose.msra.mxu0 0.0
        %5031 = vmatprep.subr.mxu0 0.0
        %5032 = vmatpush1.xpose.msra.mxu0 0.0
        %5033 = vmatprep.subr.mxu0 0.0
        %5034 = vmatpush1.xpose.msra.mxu0 0.0
        %5035 = vmatprep.subr.mxu0 0.0
        %5036 = vmatpush1.xpose.msra.mxu0 0.0
        %5037 = vmatprep.subr.mxu0 0.0
        %5038 = vmatpush1.xpose.msra.mxu0 0.0
        %5039 = vmatprep.subr.mxu0 0.0
        %5040 = vmatpush1.xpose.msra.mxu0 0.0
        %5041 = vmatprep.subr.mxu0 0.0
        %5042 = vmatpush1.xpose.msra.mxu0 0.0
        %5043 = vmatprep.subr.mxu0 0.0
        %5044 = vmatpush1.xpose.msra.mxu0 0.0
        %5045 = vmatprep.subr.mxu0 0.0
        %5046 = vmatpush1.xpose.msra.mxu0 0.0
        %5047 = vmatprep.subr.mxu0 0.0
        %5048 = vmatpush1.xpose.msra.mxu0 0.0
        %5049 = vmatprep.subr.mxu0 0.0
        %5050 = vmatpush1.xpose.msra.mxu0 0.0
        %5051 = vmatprep.subr.mxu0 0.0
        %5052 = vmatpush1.xpose.msra.mxu0 0.0
        %5053 = vmatprep.subr.mxu0 0.0
        %5054 = vmatpush1.xpose.msra.mxu0 0.0
        %5055 = vmatprep.subr.mxu0 0.0
        %5056 = vmatpush1.xpose.msra.mxu0 0.0
        %5057 = vmatprep.mubr.f32.mxu0 0.0
        %5058 = vmatmul.mubr.f32.gmra.mrb[0].mxu0 %v4989
        %v5059 = vpop.f32.mrb[0].mxu0
        %v5060 = vadd.f32 0.0, %v5059
        %v5061 = vpop.f32.mrb[0].mxu0
        %5062 = vdwg.mxu0
        %v5063 = vmul.f32 %v5060, 0.35355338
        %v5064 = vsel %vm1088, %v5063, -inf
        %5065 = vmax.xlane.f32.xlu0 %v5064
        %v5066 = vpop.xlane.xlu0 %5065
        %v5067 = vsub.f32 %v5063, %v5066
        %v5068 = vmul.f32 %v5067, 1.442695
        %v5069 = vpow.pop %v5068
        %v5070 = vsel %vm1088, %v5069, 0.0
        %5071 = vadd.xlane.f32.xlu0 %v5070
        %v5072 = vpop.xlane.xlu0 %5071
        %v5073 = vrcp.pop %v5072
        %v5074 = vmul.f32 %v5069, %v5073
        %5075 = vrot.lane.b32.xlu0 %v4983, 64
        %v5076 = vpop.permute.xlu0 %5075
        %v5079 = vsel %vm1088, %v5074, 0
        %5081 = vmatprep.subr.mxu0 0.0
        %5082 = vmatpush1.msra.mxu0 %v5076
        %5083 = vmatprep.subr.mxu0 0.0
        %5084 = vmatpush1.msra.mxu0 0.0
        %5085 = vmatprep.subr.mxu0 0.0
        %5086 = vmatpush1.msra.mxu0 0.0
        %5087 = vmatprep.subr.mxu0 0.0
        %5088 = vmatpush1.msra.mxu0 0.0
        %5089 = vmatprep.subr.mxu0 0.0
        %5090 = vmatpush1.msra.mxu0 0.0
        %5091 = vmatprep.subr.mxu0 0.0
        %5092 = vmatpush1.msra.mxu0 0.0
        %5093 = vmatprep.subr.mxu0 0.0
        %5094 = vmatpush1.msra.mxu0 0.0
        %5095 = vmatprep.subr.mxu0 0.0
        %5096 = vmatpush1.msra.mxu0 0.0
        %5097 = vmatprep.subr.mxu0 0.0
        %5098 = vmatpush1.msra.mxu0 0.0
        %5099 = vmatprep.subr.mxu0 0.0
        %5100 = vmatpush1.msra.mxu0 0.0
        %5101 = vmatprep.subr.mxu0 0.0
        %5102 = vmatpush1.msra.mxu0 0.0
        %5103 = vmatprep.subr.mxu0 0.0
        %5104 = vmatpush1.msra.mxu0 0.0
        %5105 = vmatprep.subr.mxu0 0.0
        %5106 = vmatpush1.msra.mxu0 0.0
        %5107 = vmatprep.subr.mxu0 0.0
        %5108 = vmatpush1.msra.mxu0 0.0
        %5109 = vmatprep.subr.mxu0 0.0
        %5110 = vmatpush1.msra.mxu0 0.0
        %5111 = vmatprep.subr.mxu0 0.0
        %5112 = vmatpush1.msra.mxu0 0.0
        %5113 = vmatprep.subr.mxu0 0.0
        %5114 = vmatpush1.msra.mxu0 0.0
        %5115 = vmatprep.subr.mxu0 0.0
        %5116 = vmatpush1.msra.mxu0 0.0
        %5117 = vmatprep.subr.mxu0 0.0
        %5118 = vmatpush1.msra.mxu0 0.0
        %5119 = vmatprep.subr.mxu0 0.0
        %5120 = vmatpush1.msra.mxu0 0.0
        %5121 = vmatprep.subr.mxu0 0.0
        %5122 = vmatpush1.msra.mxu0 0.0
        %5123 = vmatprep.subr.mxu0 0.0
        %5124 = vmatpush1.msra.mxu0 0.0
        %5125 = vmatprep.subr.mxu0 0.0
        %5126 = vmatpush1.msra.mxu0 0.0
        %5127 = vmatprep.subr.mxu0 0.0
        %5128 = vmatpush1.msra.mxu0 0.0
        %5129 = vmatprep.subr.mxu0 0.0
        %5130 = vmatpush1.msra.mxu0 0.0
        %5131 = vmatprep.subr.mxu0 0.0
        %5132 = vmatpush1.msra.mxu0 0.0
        %5133 = vmatprep.subr.mxu0 0.0
        %5134 = vmatpush1.msra.mxu0 0.0
        %5135 = vmatprep.subr.mxu0 0.0
        %5136 = vmatpush1.msra.mxu0 0.0
        %5137 = vmatprep.subr.mxu0 0.0
        %5138 = vmatpush1.msra.mxu0 0.0
        %5139 = vmatprep.subr.mxu0 0.0
        %5140 = vmatpush1.msra.mxu0 0.0
        %5141 = vmatprep.subr.mxu0 0.0
        %5142 = vmatpush1.msra.mxu0 0.0
        %5143 = vmatprep.subr.mxu0 0.0
        %5144 = vmatpush1.msra.mxu0 0.0
        %5145 = vmatprep.mubr.f32.mxu0 0.0
        %5146 = vmatmul.mubr.f32.gmra.mrb[0].mxu0 %v5079
        %v5147 = vpop.f32.mrb[0].mxu0
        %v5148 = vadd.f32 0.0, %v5147
        %v5149 = vpop.f32.mrb[0].mxu0
        %5150 = vdwg.mxu0
        %5151 = vrot.lane.b32.xlu0 %v4983, 120
        %v5152 = vpop.permute.xlu0 %5151
        %5153 = vrot.lane.b32.xlu0 %v4983, 88
        %v5154 = vpop.permute.xlu0 %5153
        %v5155 = vsel %vm1088, %v5152, 0
        %v5157 = vsel %vm1088, %v5154, 0
        %5159 = vmatprep.subr.mxu0 0.0
        %5160 = vmatpush1.xpose.msra.mxu0 %v5157
        %5161 = vmatprep.subr.mxu0 0.0
        %5162 = vmatpush1.xpose.msra.mxu0 0.0
        %5163 = vmatprep.subr.mxu0 0.0
        %5164 = vmatpush1.xpose.msra.mxu0 0.0
        %5165 = vmatprep.subr.mxu0 0.0
        %5166 = vmatpush1.xpose.msra.mxu0 0.0
        %5167 = vmatprep.subr.mxu0 0.0
        %5168 = vmatpush1.xpose.msra.mxu0 0.0
        %5169 = vmatprep.subr.mxu0 0.0
        %5170 = vmatpush1.xpose.msra.mxu0 0.0
        %5171 = vmatprep.subr.mxu0 0.0
        %5172 = vmatpush1.xpose.msra.mxu0 0.0
        %5173 = vmatprep.subr.mxu0 0.0
        %5174 = vmatpush1.xpose.msra.mxu0 0.0
        %5175 = vmatprep.subr.mxu0 0.0
        %5176 = vmatpush1.xpose.msra.mxu0 0.0
        %5177 = vmatprep.subr.mxu0 0.0
        %5178 = vmatpush1.xpose.msra.mxu0 0.0
        %5179 = vmatprep.subr.mxu0 0.0
        %5180 = vmatpush1.xpose.msra.mxu0 0.0
        %5181 = vmatprep.subr.mxu0 0.0
        %5182 = vmatpush1.xpose.msra.mxu0 0.0
        %5183 = vmatprep.subr.mxu0 0.0
        %5184 = vmatpush1.xpose.msra.mxu0 0.0
        %5185 = vmatprep.subr.mxu0 0.0
        %5186 = vmatpush1.xpose.msra.mxu0 0.0
        %5187 = vmatprep.subr.mxu0 0.0
        %5188 = vmatpush1.xpose.msra.mxu0 0.0
        %5189 = vmatprep.subr.mxu0 0.0
        %5190 = vmatpush1.xpose.msra.mxu0 0.0
        %5191 = vmatprep.subr.mxu0 0.0
        %5192 = vmatpush1.xpose.msra.mxu0 0.0
        %5193 = vmatprep.subr.mxu0 0.0
        %5194 = vmatpush1.xpose.msra.mxu0 0.0
        %5195 = vmatprep.subr.mxu0 0.0
        %5196 = vmatpush1.xpose.msra.mxu0 0.0
        %5197 = vmatprep.subr.mxu0 0.0
        %5198 = vmatpush1.xpose.msra.mxu0 0.0
        %5199 = vmatprep.subr.mxu0 0.0
        %5200 = vmatpush1.xpose.msra.mxu0 0.0
        %5201 = vmatprep.subr.mxu0 0.0
        %5202 = vmatpush1.xpose.msra.mxu0 0.0
        %5203 = vmatprep.subr.mxu0 0.0
        %5204 = vmatpush1.xpose.msra.mxu0 0.0
        %5205 = vmatprep.subr.mxu0 0.0
        %5206 = vmatpush1.xpose.msra.mxu0 0.0
        %5207 = vmatprep.subr.mxu0 0.0
        %5208 = vmatpush1.xpose.msra.mxu0 0.0
        %5209 = vmatprep.subr.mxu0 0.0
        %5210 = vmatpush1.xpose.msra.mxu0 0.0
        %5211 = vmatprep.subr.mxu0 0.0
        %5212 = vmatpush1.xpose.msra.mxu0 0.0
        %5213 = vmatprep.subr.mxu0 0.0
        %5214 = vmatpush1.xpose.msra.mxu0 0.0
        %5215 = vmatprep.subr.mxu0 0.0
        %5216 = vmatpush1.xpose.msra.mxu0 0.0
        %5217 = vmatprep.subr.mxu0 0.0
        %5218 = vmatpush1.xpose.msra.mxu0 0.0
        %5219 = vmatprep.subr.mxu0 0.0
        %5220 = vmatpush1.xpose.msra.mxu0 0.0
        %5221 = vmatprep.subr.mxu0 0.0
        %5222 = vmatpush1.xpose.msra.mxu0 0.0
        %5223 = vmatprep.mubr.f32.mxu0 0.0
        %5224 = vmatmul.mubr.f32.gmra.mrb[0].mxu0 %v5155
        %v5225 = vpop.f32.mrb[0].mxu0
        %v5226 = vadd.f32 0.0, %v5225
        %v5227 = vpop.f32.mrb[0].mxu0
        %5228 = vdwg.mxu0
        %v5229 = vmul.f32 %v5226, 0.35355338
        %v5230 = vsel %vm1088, %v5229, -inf
        %5231 = vmax.xlane.f32.xlu0 %v5230
        %v5232 = vpop.xlane.xlu0 %5231
        %v5233 = vsub.f32 %v5229, %v5232
        %v5234 = vmul.f32 %v5233, 1.442695
        %v5235 = vpow.pop %v5234
        %v5236 = vsel %vm1088, %v5235, 0.0
        %5237 = vadd.xlane.f32.xlu0 %v5236
        %v5238 = vpop.xlane.xlu0 %5237
        %v5239 = vrcp.pop %v5238
        %v5240 = vmul.f32 %v5235, %v5239
        %5241 = vrot.lane.b32.xlu0 %v4983, 56
        %v5242 = vpop.permute.xlu0 %5241
        %v5245 = vsel %vm1088, %v5240, 0
        %5247 = vmatprep.subr.mxu0 0.0
        %5248 = vmatpush1.msra.mxu0 %v5242
        %5249 = vmatprep.subr.mxu0 0.0
        %5250 = vmatpush1.msra.mxu0 0.0
        %5251 = vmatprep.subr.mxu0 0.0
        %5252 = vmatpush1.msra.mxu0 0.0
        %5253 = vmatprep.subr.mxu0 0.0
        %5254 = vmatpush1.msra.mxu0 0.0
        %5255 = vmatprep.subr.mxu0 0.0
        %5256 = vmatpush1.msra.mxu0 0.0
        %5257 = vmatprep.subr.mxu0 0.0
        %5258 = vmatpush1.msra.mxu0 0.0
        %5259 = vmatprep.subr.mxu0 0.0
        %5260 = vmatpush1.msra.mxu0 0.0
        %5261 = vmatprep.subr.mxu0 0.0
        %5262 = vmatpush1.msra.mxu0 0.0
        %5263 = vmatprep.subr.mxu0 0.0
        %5264 = vmatpush1.msra.mxu0 0.0
        %5265 = vmatprep.subr.mxu0 0.0
        %5266 = vmatpush1.msra.mxu0 0.0
        %5267 = vmatprep.subr.mxu0 0.0
        %5268 = vmatpush1.msra.mxu0 0.0
        %5269 = vmatprep.subr.mxu0 0.0
        %5270 = vmatpush1.msra.mxu0 0.0
        %5271 = vmatprep.subr.mxu0 0.0
        %5272 = vmatpush1.msra.mxu0 0.0
        %5273 = vmatprep.subr.mxu0 0.0
        %5274 = vmatpush1.msra.mxu0 0.0
        %5275 = vmatprep.subr.mxu0 0.0
        %5276 = vmatpush1.msra.mxu0 0.0
        %5277 = vmatprep.subr.mxu0 0.0
        %5278 = vmatpush1.msra.mxu0 0.0
        %5279 = vmatprep.subr.mxu0 0.0
        %5280 = vmatpush1.msra.mxu0 0.0
        %5281 = vmatprep.subr.mxu0 0.0
        %5282 = vmatpush1.msra.mxu0 0.0
        %5283 = vmatprep.subr.mxu0 0.0
        %5284 = vmatpush1.msra.mxu0 0.0
        %5285 = vmatprep.subr.mxu0 0.0
        %5286 = vmatpush1.msra.mxu0 0.0
        %5287 = vmatprep.subr.mxu0 0.0
        %5288 = vmatpush1.msra.mxu0 0.0
        %5289 = vmatprep.subr.mxu0 0.0
        %5290 = vmatpush1.msra.mxu0 0.0
        %5291 = vmatprep.subr.mxu0 0.0
        %5292 = vmatpush1.msra.mxu0 0.0
        %5293 = vmatprep.subr.mxu0 0.0
        %5294 = vmatpush1.msra.mxu0 0.0
        %5295 = vmatprep.subr.mxu0 0.0
        %5296 = vmatpush1.msra.mxu0 0.0
        %5297 = vmatprep.subr.mxu0 0.0
        %5298 = vmatpush1.msra.mxu0 0.0
        %5299 = vmatprep.subr.mxu0 0.0
        %5300 = vmatpush1.msra.mxu0 0.0
        %5301 = vmatprep.subr.mxu0 0.0
        %5302 = vmatpush1.msra.mxu0 0.0
        %5303 = vmatprep.subr.mxu0 0.0
        %5304 = vmatpush1.msra.mxu0 0.0
        %5305 = vmatprep.subr.mxu0 0.0
        %5306 = vmatpush1.msra.mxu0 0.0
        %5307 = vmatprep.subr.mxu0 0.0
        %5308 = vmatpush1.msra.mxu0 0.0
        %5309 = vmatprep.subr.mxu0 0.0
        %5310 = vmatpush1.msra.mxu0 0.0
        %5311 = vmatprep.mubr.f32.mxu0 0.0
        %5312 = vmatmul.mubr.f32.gmra.mrb[0].mxu0 %v5245
        %v5313 = vpop.f32.mrb[0].mxu0
        %v5314 = vadd.f32 0.0, %v5313
        %v5315 = vpop.f32.mrb[0].mxu0
        %5316 = vdwg.mxu0
        %5317 = vrot.lane.b32.xlu0 %v4983, 112
        %v5318 = vpop.permute.xlu0 %5317
        %5319 = vrot.lane.b32.xlu0 %v4983, 80
        %v5320 = vpop.permute.xlu0 %5319
        %v5321 = vsel %vm1088, %v5318, 0
        %v5323 = vsel %vm1088, %v5320, 0
        %5325 = vmatprep.subr.mxu0 0.0
        %5326 = vmatpush1.xpose.msra.mxu0 %v5323
        %5327 = vmatprep.subr.mxu0 0.0
        %5328 = vmatpush1.xpose.msra.mxu0 0.0
        %5329 = vmatprep.subr.mxu0 0.0
        %5330 = vmatpush1.xpose.msra.mxu0 0.0
        %5331 = vmatprep.subr.mxu0 0.0
        %5332 = vmatpush1.xpose.msra.mxu0 0.0
        %5333 = vmatprep.subr.mxu0 0.0
        %5334 = vmatpush1.xpose.msra.mxu0 0.0
        %5335 = vmatprep.subr.mxu0 0.0
        %5336 = vmatpush1.xpose.msra.mxu0 0.0
        %5337 = vmatprep.subr.mxu0 0.0
        %5338 = vmatpush1.xpose.msra.mxu0 0.0
        %5339 = vmatprep.subr.mxu0 0.0
        %5340 = vmatpush1.xpose.msra.mxu0 0.0
        %5341 = vmatprep.subr.mxu0 0.0
        %5342 = vmatpush1.xpose.msra.mxu0 0.0
        %5343 = vmatprep.subr.mxu0 0.0
        %5344 = vmatpush1.xpose.msra.mxu0 0.0
        %5345 = vmatprep.subr.mxu0 0.0
        %5346 = vmatpush1.xpose.msra.mxu0 0.0
        %5347 = vmatprep.subr.mxu0 0.0
        %5348 = vmatpush1.xpose.msra.mxu0 0.0
        %5349 = vmatprep.subr.mxu0 0.0
        %5350 = vmatpush1.xpose.msra.mxu0 0.0
        %5351 = vmatprep.subr.mxu0 0.0
        %5352 = vmatpush1.xpose.msra.mxu0 0.0
        %5353 = vmatprep.subr.mxu0 0.0
        %5354 = vmatpush1.xpose.msra.mxu0 0.0
        %5355 = vmatprep.subr.mxu0 0.0
        %5356 = vmatpush1.xpose.msra.mxu0 0.0
        %5357 = vmatprep.subr.mxu0 0.0
        %5358 = vmatpush1.xpose.msra.mxu0 0.0
        %5359 = vmatprep.subr.mxu0 0.0
        %5360 = vmatpush1.xpose.msra.mxu0 0.0
        %5361 = vmatprep.subr.mxu0 0.0
        %5362 = vmatpush1.xpose.msra.mxu0 0.0
        %5363 = vmatprep.subr.mxu0 0.0
        %5364 = vmatpush1.xpose.msra.mxu0 0.0
        %5365 = vmatprep.subr.mxu0 0.0
        %5366 = vmatpush1.xpose.msra.mxu0 0.0
        %5367 = vmatprep.subr.mxu0 0.0
        %5368 = vmatpush1.xpose.msra.mxu0 0.0
        %5369 = vmatprep.subr.mxu0 0.0
        %5370 = vmatpush1.xpose.msra.mxu0 0.0
        %5371 = vmatprep.subr.mxu0 0.0
        %5372 = vmatpush1.xpose.msra.mxu0 0.0
        %5373 = vmatprep.subr.mxu0 0.0
        %5374 = vmatpush1.xpose.msra.mxu0 0.0
        %5375 = vmatprep.subr.mxu0 0.0
        %5376 = vmatpush1.xpose.msra.mxu0 0.0
        %5377 = vmatprep.subr.mxu0 0.0
        %5378 = vmatpush1.xpose.msra.mxu0 0.0
        %5379 = vmatprep.subr.mxu0 0.0
        %5380 = vmatpush1.xpose.msra.mxu0 0.0
        %5381 = vmatprep.subr.mxu0 0.0
        %5382 = vmatpush1.xpose.msra.mxu0 0.0
        %5383 = vmatprep.subr.mxu0 0.0
        %5384 = vmatpush1.xpose.msra.mxu0 0.0
        %5385 = vmatprep.subr.mxu0 0.0
        %5386 = vmatpush1.xpose.msra.mxu0 0.0
        %5387 = vmatprep.subr.mxu0 0.0
        %5388 = vmatpush1.xpose.msra.mxu0 0.0
        %5389 = vmatprep.mubr.f32.mxu0 0.0
        %5390 = vmatmul.mubr.f32.gmra.mrb[0].mxu0 %v5321
        %v5391 = vpop.f32.mrb[0].mxu0
        %v5392 = vadd.f32 0.0, %v5391
        %v5393 = vpop.f32.mrb[0].mxu0
        %5394 = vdwg.mxu0
        %v5395 = vmul.f32 %v5392, 0.35355338
        %v5396 = vsel %vm1088, %v5395, -inf
        %5397 = vmax.xlane.f32.xlu0 %v5396
        %v5398 = vpop.xlane.xlu0 %5397
        %v5399 = vsub.f32 %v5395, %v5398
        %v5400 = vmul.f32 %v5399, 1.442695
        %v5401 = vpow.pop %v5400
        %v5402 = vsel %vm1088, %v5401, 0.0
        %5403 = vadd.xlane.f32.xlu0 %v5402
        %v5404 = vpop.xlane.xlu0 %5403
        %v5405 = vrcp.pop %v5404
        %v5406 = vmul.f32 %v5401, %v5405
        %5407 = vrot.lane.b32.xlu0 %v4983, 48
        %v5408 = vpop.permute.xlu0 %5407
        %v5411 = vsel %vm1088, %v5406, 0
        %5413 = vmatprep.subr.mxu0 0.0
        %5414 = vmatpush1.msra.mxu0 %v5408
        %5415 = vmatprep.subr.mxu0 0.0
        %5416 = vmatpush1.msra.mxu0 0.0
        %5417 = vmatprep.subr.mxu0 0.0
        %5418 = vmatpush1.msra.mxu0 0.0
        %5419 = vmatprep.subr.mxu0 0.0
        %5420 = vmatpush1.msra.mxu0 0.0
        %5421 = vmatprep.subr.mxu0 0.0
        %5422 = vmatpush1.msra.mxu0 0.0
        %5423 = vmatprep.subr.mxu0 0.0
        %5424 = vmatpush1.msra.mxu0 0.0
        %5425 = vmatprep.subr.mxu0 0.0
        %5426 = vmatpush1.msra.mxu0 0.0
        %5427 = vmatprep.subr.mxu0 0.0
        %5428 = vmatpush1.msra.mxu0 0.0
        %5429 = vmatprep.subr.mxu0 0.0
        %5430 = vmatpush1.msra.mxu0 0.0
        %5431 = vmatprep.subr.mxu0 0.0
        %5432 = vmatpush1.msra.mxu0 0.0
        %5433 = vmatprep.subr.mxu0 0.0
        %5434 = vmatpush1.msra.mxu0 0.0
        %5435 = vmatprep.subr.mxu0 0.0
        %5436 = vmatpush1.msra.mxu0 0.0
        %5437 = vmatprep.subr.mxu0 0.0
        %5438 = vmatpush1.msra.mxu0 0.0
        %5439 = vmatprep.subr.mxu0 0.0
        %5440 = vmatpush1.msra.mxu0 0.0
        %5441 = vmatprep.subr.mxu0 0.0
        %5442 = vmatpush1.msra.mxu0 0.0
        %5443 = vmatprep.subr.mxu0 0.0
        %5444 = vmatpush1.msra.mxu0 0.0
        %5445 = vmatprep.subr.mxu0 0.0
        %5446 = vmatpush1.msra.mxu0 0.0
        %5447 = vmatprep.subr.mxu0 0.0
        %5448 = vmatpush1.msra.mxu0 0.0
        %5449 = vmatprep.subr.mxu0 0.0
        %5450 = vmatpush1.msra.mxu0 0.0
        %5451 = vmatprep.subr.mxu0 0.0
        %5452 = vmatpush1.msra.mxu0 0.0
        %5453 = vmatprep.subr.mxu0 0.0
        %5454 = vmatpush1.msra.mxu0 0.0
        %5455 = vmatprep.subr.mxu0 0.0
        %5456 = vmatpush1.msra.mxu0 0.0
        %5457 = vmatprep.subr.mxu0 0.0
        %5458 = vmatpush1.msra.mxu0 0.0
        %5459 = vmatprep.subr.mxu0 0.0
        %5460 = vmatpush1.msra.mxu0 0.0
        %5461 = vmatprep.subr.mxu0 0.0
        %5462 = vmatpush1.msra.mxu0 0.0
        %5463 = vmatprep.subr.mxu0 0.0
        %5464 = vmatpush1.msra.mxu0 0.0
        %5465 = vmatprep.subr.mxu0 0.0
        %5466 = vmatpush1.msra.mxu0 0.0
        %5467 = vmatprep.subr.mxu0 0.0
        %5468 = vmatpush1.msra.mxu0 0.0
        %5469 = vmatprep.subr.mxu0 0.0
        %5470 = vmatpush1.msra.mxu0 0.0
        %5471 = vmatprep.subr.mxu0 0.0
        %5472 = vmatpush1.msra.mxu0 0.0
        %5473 = vmatprep.subr.mxu0 0.0
        %5474 = vmatpush1.msra.mxu0 0.0
        %5475 = vmatprep.subr.mxu0 0.0
        %5476 = vmatpush1.msra.mxu0 0.0
        %5477 = vmatprep.mubr.f32.mxu0 0.0
        %5478 = vmatmul.mubr.f32.gmra.mrb[0].mxu0 %v5411
        %v5479 = vpop.f32.mrb[0].mxu0
        %v5480 = vadd.f32 0.0, %v5479
        %v5481 = vpop.f32.mrb[0].mxu0
        %5482 = vdwg.mxu0
        %5483 = vrot.lane.b32.xlu0 %v4983, 104
        %v5484 = vpop.permute.xlu0 %5483
        %5485 = vrot.lane.b32.xlu0 %v4983, 72
        %v5486 = vpop.permute.xlu0 %5485
        %v5487 = vsel %vm1088, %v5484, 0
        %v5489 = vsel %vm1088, %v5486, 0
        %5491 = vmatprep.subr.mxu0 0.0
        %5492 = vmatpush1.xpose.msra.mxu0 %v5489
        %5493 = vmatprep.subr.mxu0 0.0
        %5494 = vmatpush1.xpose.msra.mxu0 0.0
        %5495 = vmatprep.subr.mxu0 0.0
        %5496 = vmatpush1.xpose.msra.mxu0 0.0
        %5497 = vmatprep.subr.mxu0 0.0
        %5498 = vmatpush1.xpose.msra.mxu0 0.0
        %5499 = vmatprep.subr.mxu0 0.0
        %5500 = vmatpush1.xpose.msra.mxu0 0.0
        %5501 = vmatprep.subr.mxu0 0.0
        %5502 = vmatpush1.xpose.msra.mxu0 0.0
        %5503 = vmatprep.subr.mxu0 0.0
        %5504 = vmatpush1.xpose.msra.mxu0 0.0
        %5505 = vmatprep.subr.mxu0 0.0
        %5506 = vmatpush1.xpose.msra.mxu0 0.0
        %5507 = vmatprep.subr.mxu0 0.0
        %5508 = vmatpush1.xpose.msra.mxu0 0.0
        %5509 = vmatprep.subr.mxu0 0.0
        %5510 = vmatpush1.xpose.msra.mxu0 0.0
        %5511 = vmatprep.subr.mxu0 0.0
        %5512 = vmatpush1.xpose.msra.mxu0 0.0
        %5513 = vmatprep.subr.mxu0 0.0
        %5514 = vmatpush1.xpose.msra.mxu0 0.0
        %5515 = vmatprep.subr.mxu0 0.0
        %5516 = vmatpush1.xpose.msra.mxu0 0.0
        %5517 = vmatprep.subr.mxu0 0.0
        %5518 = vmatpush1.xpose.msra.mxu0 0.0
        %5519 = vmatprep.subr.mxu0 0.0
        %5520 = vmatpush1.xpose.msra.mxu0 0.0
        %5521 = vmatprep.subr.mxu0 0.0
        %5522 = vmatpush1.xpose.msra.mxu0 0.0
        %5523 = vmatprep.subr.mxu0 0.0
        %5524 = vmatpush1.xpose.msra.mxu0 0.0
        %5525 = vmatprep.subr.mxu0 0.0
        %5526 = vmatpush1.xpose.msra.mxu0 0.0
        %5527 = vmatprep.subr.mxu0 0.0
        %5528 = vmatpush1.xpose.msra.mxu0 0.0
        %5529 = vmatprep.subr.mxu0 0.0
        %5530 = vmatpush1.xpose.msra.mxu0 0.0
        %5531 = vmatprep.subr.mxu0 0.0
        %5532 = vmatpush1.xpose.msra.mxu0 0.0
        %5533 = vmatprep.subr.mxu0 0.0
        %5534 = vmatpush1.xpose.msra.mxu0 0.0
        %5535 = vmatprep.subr.mxu0 0.0
        %5536 = vmatpush1.xpose.msra.mxu0 0.0
        %5537 = vmatprep.subr.mxu0 0.0
        %5538 = vmatpush1.xpose.msra.mxu0 0.0
        %5539 = vmatprep.subr.mxu0 0.0
        %5540 = vmatpush1.xpose.msra.mxu0 0.0
        %5541 = vmatprep.subr.mxu0 0.0
        %5542 = vmatpush1.xpose.msra.mxu0 0.0
        %5543 = vmatprep.subr.mxu0 0.0
        %5544 = vmatpush1.xpose.msra.mxu0 0.0
        %5545 = vmatprep.subr.mxu0 0.0
        %5546 = vmatpush1.xpose.msra.mxu0 0.0
        %5547 = vmatprep.subr.mxu0 0.0
        %5548 = vmatpush1.xpose.msra.mxu0 0.0
        %5549 = vmatprep.subr.mxu0 0.0
        %5550 = vmatpush1.xpose.msra.mxu0 0.0
        %5551 = vmatprep.subr.mxu0 0.0
        %5552 = vmatpush1.xpose.msra.mxu0 0.0
        %5553 = vmatprep.subr.mxu0 0.0
        %5554 = vmatpush1.xpose.msra.mxu0 0.0
        %5555 = vmatprep.mubr.f32.mxu0 0.0
        %5556 = vmatmul.mubr.f32.gmra.mrb[0].mxu0 %v5487
        %v5557 = vpop.f32.mrb[0].mxu0
        %v5558 = vadd.f32 0.0, %v5557
        %v5559 = vpop.f32.mrb[0].mxu0
        %5560 = vdwg.mxu0
        %v5561 = vmul.f32 %v5558, 0.35355338
        %v5562 = vsel %vm1088, %v5561, -inf
        %5563 = vmax.xlane.f32.xlu0 %v5562
        %v5564 = vpop.xlane.xlu0 %5563
        %v5565 = vsub.f32 %v5561, %v5564
        %v5566 = vmul.f32 %v5565, 1.442695
        %v5567 = vpow.pop %v5566
        %v5568 = vsel %vm1088, %v5567, 0.0
        %5569 = vadd.xlane.f32.xlu0 %v5568
        %v5570 = vpop.xlane.xlu0 %5569
        %v5571 = vrcp.pop %v5570
        %v5572 = vmul.f32 %v5567, %v5571
        %5573 = vrot.lane.b32.xlu0 %v4983, 40
        %v5574 = vpop.permute.xlu0 %5573
        %v5577 = vsel %vm1088, %v5572, 0
        %5579 = vmatprep.subr.mxu0 0.0
        %5580 = vmatpush1.msra.mxu0 %v5574
        %5581 = vmatprep.subr.mxu0 0.0
        %5582 = vmatpush1.msra.mxu0 0.0
        %5583 = vmatprep.subr.mxu0 0.0
        %5584 = vmatpush1.msra.mxu0 0.0
        %5585 = vmatprep.subr.mxu0 0.0
        %5586 = vmatpush1.msra.mxu0 0.0
        %5587 = vmatprep.subr.mxu0 0.0
        %5588 = vmatpush1.msra.mxu0 0.0
        %5589 = vmatprep.subr.mxu0 0.0
        %5590 = vmatpush1.msra.mxu0 0.0
        %5591 = vmatprep.subr.mxu0 0.0
        %5592 = vmatpush1.msra.mxu0 0.0
        %5593 = vmatprep.subr.mxu0 0.0
        %5594 = vmatpush1.msra.mxu0 0.0
        %5595 = vmatprep.subr.mxu0 0.0
        %5596 = vmatpush1.msra.mxu0 0.0
        %5597 = vmatprep.subr.mxu0 0.0
        %5598 = vmatpush1.msra.mxu0 0.0
        %5599 = vmatprep.subr.mxu0 0.0
        %5600 = vmatpush1.msra.mxu0 0.0
        %5601 = vmatprep.subr.mxu0 0.0
        %5602 = vmatpush1.msra.mxu0 0.0
        %5603 = vmatprep.subr.mxu0 0.0
        %5604 = vmatpush1.msra.mxu0 0.0
        %5605 = vmatprep.subr.mxu0 0.0
        %5606 = vmatpush1.msra.mxu0 0.0
        %5607 = vmatprep.subr.mxu0 0.0
        %5608 = vmatpush1.msra.mxu0 0.0
        %5609 = vmatprep.subr.mxu0 0.0
        %5610 = vmatpush1.msra.mxu0 0.0
        %5611 = vmatprep.subr.mxu0 0.0
        %5612 = vmatpush1.msra.mxu0 0.0
        %5613 = vmatprep.subr.mxu0 0.0
        %5614 = vmatpush1.msra.mxu0 0.0
        %5615 = vmatprep.subr.mxu0 0.0
        %5616 = vmatpush1.msra.mxu0 0.0
        %5617 = vmatprep.subr.mxu0 0.0
        %5618 = vmatpush1.msra.mxu0 0.0
        %5619 = vmatprep.subr.mxu0 0.0
        %5620 = vmatpush1.msra.mxu0 0.0
        %5621 = vmatprep.subr.mxu0 0.0
        %5622 = vmatpush1.msra.mxu0 0.0
        %5623 = vmatprep.subr.mxu0 0.0
        %5624 = vmatpush1.msra.mxu0 0.0
        %5625 = vmatprep.subr.mxu0 0.0
        %5626 = vmatpush1.msra.mxu0 0.0
        %5627 = vmatprep.subr.mxu0 0.0
        %5628 = vmatpush1.msra.mxu0 0.0
        %5629 = vmatprep.subr.mxu0 0.0
        %5630 = vmatpush1.msra.mxu0 0.0
        %5631 = vmatprep.subr.mxu0 0.0
        %5632 = vmatpush1.msra.mxu0 0.0
        %5633 = vmatprep.subr.mxu0 0.0
        %5634 = vmatpush1.msra.mxu0 0.0
        %5635 = vmatprep.subr.mxu0 0.0
        %5636 = vmatpush1.msra.mxu0 0.0
        %5637 = vmatprep.subr.mxu0 0.0
        %5638 = vmatpush1.msra.mxu0 0.0
        %5639 = vmatprep.subr.mxu0 0.0
        %5640 = vmatpush1.msra.mxu0 0.0
        %5641 = vmatprep.subr.mxu0 0.0
        %5642 = vmatpush1.msra.mxu0 0.0
        %5643 = vmatprep.mubr.f32.mxu0 0.0
        %5644 = vmatmul.mubr.f32.gmra.mrb[0].mxu0 %v5577
        %v5645 = vpop.f32.mrb[0].mxu0
        %v5646 = vadd.f32 0.0, %v5645
        %v5647 = vpop.f32.mrb[0].mxu0
        %5648 = vdwg.mxu0
        %5650 = vrot.lane.b32.xlu0 %v5314, 8
        %v5651 = vpop.permute.xlu0 %5650
        %5654 = vrot.lane.b32.xlu0 %v5480, 16
        %v5655 = vpop.permute.xlu0 %5654
        %5658 = vrot.lane.b32.xlu0 %v5646, 24
        %v5659 = vpop.permute.xlu0 %5658
        %v5661 = vsel %vm1088, %v5148, %v5651
        %v5662 = vsel %vm1166, %v5661, %v5655
        %v5663 = vsel %vm3479, %v5662, %v5659
        %s5664 = scalar_lea.vmem %s33, 64
        %v5665 = vld [vmem:[%s5664] sm:$0xff]
        %v5666 = vld [vmem:[%s5664 + $0x8] sm:$0xff]
        %v5667 = vld [vmem:[%s5664 + $0x10] sm:$0xff]
        %v5668 = vld [vmem:[%s5664 + $0x18] sm:$0xff]
        %s5669 = scalar_lea.vmem %s35, 2
        %v5670 = vld [vmem:[%s5669] sm:$0x1]
        %v5672 = vlaneseq
        %v5673 = vshrl.u32 %v5672, 7
        %v5674 = vsub.s32 0, %v5673
        %v5675 = vrot.slane %v5670, %v5674
        %v5678 = vsel %vm1179, %v5663, 0
        %5680 = vmatprep.subr.mxu0 0.0
        %5681 = vmatpush1.msra.mxu0 %v5665
        %5682 = vmatprep.subr.mxu0 0.0
        %5683 = vmatpush1.msra.mxu0 %v5666
        %5684 = vmatprep.subr.mxu0 0.0
        %5685 = vmatpush1.msra.mxu0 %v5667
        %5686 = vmatprep.subr.mxu0 0.0
        %5687 = vmatpush1.msra.mxu0 %v5668
        %5688 = vmatprep.subr.mxu0 0.0
        %5689 = vmatpush1.msra.mxu0 0.0
        %5690 = vmatprep.subr.mxu0 0.0
        %5691 = vmatpush1.msra.mxu0 0.0
        %5692 = vmatprep.subr.mxu0 0.0
        %5693 = vmatpush1.msra.mxu0 0.0
        %5694 = vmatprep.subr.mxu0 0.0
        %5695 = vmatpush1.msra.mxu0 0.0
        %5696 = vmatprep.subr.mxu0 0.0
        %5697 = vmatpush1.msra.mxu0 0.0
        %5698 = vmatprep.subr.mxu0 0.0
        %5699 = vmatpush1.msra.mxu0 0.0
        %5700 = vmatprep.subr.mxu0 0.0
        %5701 = vmatpush1.msra.mxu0 0.0
        %5702 = vmatprep.subr.mxu0 0.0
        %5703 = vmatpush1.msra.mxu0 0.0
        %5704 = vmatprep.subr.mxu0 0.0
        %5705 = vmatpush1.msra.mxu0 0.0
        %5706 = vmatprep.subr.mxu0 0.0
        %5707 = vmatpush1.msra.mxu0 0.0
        %5708 = vmatprep.subr.mxu0 0.0
        %5709 = vmatpush1.msra.mxu0 0.0
        %5710 = vmatprep.subr.mxu0 0.0
        %5711 = vmatpush1.msra.mxu0 0.0
        %5712 = vmatprep.subr.mxu0 0.0
        %5713 = vmatpush1.msra.mxu0 0.0
        %5714 = vmatprep.subr.mxu0 0.0
        %5715 = vmatpush1.msra.mxu0 0.0
        %5716 = vmatprep.subr.mxu0 0.0
        %5717 = vmatpush1.msra.mxu0 0.0
        %5718 = vmatprep.subr.mxu0 0.0
        %5719 = vmatpush1.msra.mxu0 0.0
        %5720 = vmatprep.subr.mxu0 0.0
        %5721 = vmatpush1.msra.mxu0 0.0
        %5722 = vmatprep.subr.mxu0 0.0
        %5723 = vmatpush1.msra.mxu0 0.0
        %5724 = vmatprep.subr.mxu0 0.0
        %5725 = vmatpush1.msra.mxu0 0.0
        %5726 = vmatprep.subr.mxu0 0.0
        %5727 = vmatpush1.msra.mxu0 0.0
        %5728 = vmatprep.subr.mxu0 0.0
        %5729 = vmatpush1.msra.mxu0 0.0
        %5730 = vmatprep.subr.mxu0 0.0
        %5731 = vmatpush1.msra.mxu0 0.0
        %5732 = vmatprep.subr.mxu0 0.0
        %5733 = vmatpush1.msra.mxu0 0.0
        %5734 = vmatprep.subr.mxu0 0.0
        %5735 = vmatpush1.msra.mxu0 0.0
        %5736 = vmatprep.subr.mxu0 0.0
        %5737 = vmatpush1.msra.mxu0 0.0
        %5738 = vmatprep.subr.mxu0 0.0
        %5739 = vmatpush1.msra.mxu0 0.0
        %5740 = vmatprep.subr.mxu0 0.0
        %5741 = vmatpush1.msra.mxu0 0.0
        %5742 = vmatprep.subr.mxu0 0.0
        %5743 = vmatpush1.msra.mxu0 0.0
        %5744 = vmatprep.mubr.f32.mxu0 0.0
        %5745 = vmatmul.mubr.f32.gmra.mrb[0].mxu0 %v5678
        %v5746 = vpop.f32.mrb[0].mxu0
        %v5747 = vadd.f32 %v5675, %v5746
        %v5748 = vpop.f32.mrb[0].mxu0
        %5749 = vdwg.mxu0
        %v5750 = vadd.f32 %v4899, %v5747
        %s5751 = scalar_lea.vmem %s45, 2
        %v5752 = vld [vmem:[%s5751] sm:$0x1]
        %s5753 = scalar_lea.vmem %s47, 2
        %v5754 = vld [vmem:[%s5753] sm:$0x1]
        %v5755 = vsel %vm1179, %v5750, 0.0
        %5756 = vadd.xlane.f32.xlu0 %v5755
        %v5757 = vpop.xlane.xlu0 %5756
        %v5758 = vmul.f32 %v5757, %v3571
        %v5759 = vsub.f32 %v5750, %v5758
        %v5760 = vmul.f32 %v5759, %v5759
        %v5761 = vsel %vm1179, %v5760, 0.0
        %5762 = vadd.xlane.f32.xlu0 %v5761
        %v5763 = vpop.xlane.xlu0 %5762
        %v5764 = vmul.f32 %v5763, %v3571
        %v5765 = vadd.f32 %v5764, 1e-05
        %v5766 = vrsqrt.pop %v5765
        %v5767 = vmul.f32 %v5759, %v5766
        %v5769 = vlaneseq
        %v5770 = vshrl.u32 %v5769, 7
        %v5771 = vsub.s32 0, %v5770
        %v5772 = vrot.slane %v5752, %v5771
        %v5774 = vmul.f32 %v5767, %v5772
        %v5776 = vlaneseq
        %v5777 = vshrl.u32 %v5776, 7
        %v5778 = vsub.s32 0, %v5777
        %v5779 = vrot.slane %v5754, %v5778
        %v5781 = vadd.f32 %v5774, %v5779
        %s5782 = scalar_lea.vmem %s37, 64
        %v5783 = vld [vmem:[%s5782] sm:$0xff]
        %v5784 = vld [vmem:[%s5782 + $0x8] sm:$0xff]
        %v5785 = vld [vmem:[%s5782 + $0x10] sm:$0xff]
        %v5786 = vld [vmem:[%s5782 + $0x18] sm:$0xff]
        %s5787 = scalar_lea.vmem %s39, 2
        %v5788 = vld [vmem:[%s5787] sm:$0x1]
        %v5790 = vlaneseq
        %v5791 = vshrl.u32 %v5790, 7
        %v5792 = vsub.s32 0, %v5791
        %v5793 = vrot.slane %v5788, %v5792
        %v5796 = vsel %vm1179, %v5781, 0
        %5798 = vmatprep.subr.mxu0 0.0
        %5799 = vmatpush1.msra.mxu0 %v5783
        %5800 = vmatprep.subr.mxu0 0.0
        %5801 = vmatpush1.msra.mxu0 %v5784
        %5802 = vmatprep.subr.mxu0 0.0
        %5803 = vmatpush1.msra.mxu0 %v5785
        %5804 = vmatprep.subr.mxu0 0.0
        %5805 = vmatpush1.msra.mxu0 %v5786
        %5806 = vmatprep.subr.mxu0 0.0
        %5807 = vmatpush1.msra.mxu0 0.0
        %5808 = vmatprep.subr.mxu0 0.0
        %5809 = vmatpush1.msra.mxu0 0.0
        %5810 = vmatprep.subr.mxu0 0.0
        %5811 = vmatpush1.msra.mxu0 0.0
        %5812 = vmatprep.subr.mxu0 0.0
        %5813 = vmatpush1.msra.mxu0 0.0
        %5814 = vmatprep.subr.mxu0 0.0
        %5815 = vmatpush1.msra.mxu0 0.0
        %5816 = vmatprep.subr.mxu0 0.0
        %5817 = vmatpush1.msra.mxu0 0.0
        %5818 = vmatprep.subr.mxu0 0.0
        %5819 = vmatpush1.msra.mxu0 0.0
        %5820 = vmatprep.subr.mxu0 0.0
        %5821 = vmatpush1.msra.mxu0 0.0
        %5822 = vmatprep.subr.mxu0 0.0
        %5823 = vmatpush1.msra.mxu0 0.0
        %5824 = vmatprep.subr.mxu0 0.0
        %5825 = vmatpush1.msra.mxu0 0.0
        %5826 = vmatprep.subr.mxu0 0.0
        %5827 = vmatpush1.msra.mxu0 0.0
        %5828 = vmatprep.subr.mxu0 0.0
        %5829 = vmatpush1.msra.mxu0 0.0
        %5830 = vmatprep.subr.mxu0 0.0
        %5831 = vmatpush1.msra.mxu0 0.0
        %5832 = vmatprep.subr.mxu0 0.0
        %5833 = vmatpush1.msra.mxu0 0.0
        %5834 = vmatprep.subr.mxu0 0.0
        %5835 = vmatpush1.msra.mxu0 0.0
        %5836 = vmatprep.subr.mxu0 0.0
        %5837 = vmatpush1.msra.mxu0 0.0
        %5838 = vmatprep.subr.mxu0 0.0
        %5839 = vmatpush1.msra.mxu0 0.0
        %5840 = vmatprep.subr.mxu0 0.0
        %5841 = vmatpush1.msra.mxu0 0.0
        %5842 = vmatprep.subr.mxu0 0.0
        %5843 = vmatpush1.msra.mxu0 0.0
        %5844 = vmatprep.subr.mxu0 0.0
        %5845 = vmatpush1.msra.mxu0 0.0
        %5846 = vmatprep.subr.mxu0 0.0
        %5847 = vmatpush1.msra.mxu0 0.0
        %5848 = vmatprep.subr.mxu0 0.0
        %5849 = vmatpush1.msra.mxu0 0.0
        %5850 = vmatprep.subr.mxu0 0.0
        %5851 = vmatpush1.msra.mxu0 0.0
        %5852 = vmatprep.subr.mxu0 0.0
        %5853 = vmatpush1.msra.mxu0 0.0
        %5854 = vmatprep.subr.mxu0 0.0
        %5855 = vmatpush1.msra.mxu0 0.0
        %5856 = vmatprep.subr.mxu0 0.0
        %5857 = vmatpush1.msra.mxu0 0.0
        %5858 = vmatprep.subr.mxu0 0.0
        %5859 = vmatpush1.msra.mxu0 0.0
        %5860 = vmatprep.subr.mxu0 0.0
        %5861 = vmatpush1.msra.mxu0 0.0
        %5862 = vmatprep.mubr.f32.mxu0 0.0
        %5863 = vmatmul.mubr.f32.gmra.mrb[0].mxu0 %v5796
        %v5864 = vpop.f32.mrb[0].mxu0
        %v5865 = vadd.f32 %v5793, %v5864
        %v5866 = vpop.f32.mrb[0].mxu0
        %5867 = vdwg.mxu0
        %v5868 = vmax.f32 %v5865, 0.0
        %s5869 = scalar_lea.vmem %s41, 256
        %v5870 = vld [vmem:[%s5869] sm:$0xff]
        %v5871 = vld [vmem:[%s5869 + $0x8] sm:$0xff]
        %v5872 = vld [vmem:[%s5869 + $0x10] sm:$0xff]
        %v5873 = vld [vmem:[%s5869 + $0x18] sm:$0xff]
        %v5874 = vld [vmem:[%s5869 + $0x20] sm:$0xff]
        %v5875 = vld [vmem:[%s5869 + $0x28] sm:$0xff]
        %v5876 = vld [vmem:[%s5869 + $0x30] sm:$0xff]
        %v5877 = vld [vmem:[%s5869 + $0x38] sm:$0xff]
        %v5878 = vld [vmem:[%s5869 + $0x40] sm:$0xff]
        %v5879 = vld [vmem:[%s5869 + $0x48] sm:$0xff]
        %v5880 = vld [vmem:[%s5869 + $0x50] sm:$0xff]
        %v5881 = vld [vmem:[%s5869 + $0x58] sm:$0xff]
        %v5882 = vld [vmem:[%s5869 + $0x60] sm:$0xff]
        %v5883 = vld [vmem:[%s5869 + $0x68] sm:$0xff]
        %v5884 = vld [vmem:[%s5869 + $0x70] sm:$0xff]
        %v5885 = vld [vmem:[%s5869 + $0x78] sm:$0xff]
        %s5886 = scalar_lea.vmem %s43, 2
        %v5887 = vld [vmem:[%s5886] sm:$0x1]
        %v5889 = vlaneseq
        %v5890 = vshrl.u32 %v5889, 7
        %v5891 = vsub.s32 0, %v5890
        %v5892 = vrot.slane %v5887, %v5891
        %5894 = vmatprep.subr.mxu0 0.0
        %5895 = vmatpush1.msra.mxu0 %v5870
        %5896 = vmatprep.subr.mxu0 0.0
        %5897 = vmatpush1.msra.mxu0 %v5871
        %5898 = vmatprep.subr.mxu0 0.0
        %5899 = vmatpush1.msra.mxu0 %v5872
        %5900 = vmatprep.subr.mxu0 0.0
        %5901 = vmatpush1.msra.mxu0 %v5873
        %5902 = vmatprep.subr.mxu0 0.0
        %5903 = vmatpush1.msra.mxu0 %v5874
        %5904 = vmatprep.subr.mxu0 0.0
        %5905 = vmatpush1.msra.mxu0 %v5875
        %5906 = vmatprep.subr.mxu0 0.0
        %5907 = vmatpush1.msra.mxu0 %v5876
        %5908 = vmatprep.subr.mxu0 0.0
        %5909 = vmatpush1.msra.mxu0 %v5877
        %5910 = vmatprep.subr.mxu0 0.0
        %5911 = vmatpush1.msra.mxu0 %v5878
        %5912 = vmatprep.subr.mxu0 0.0
        %5913 = vmatpush1.msra.mxu0 %v5879
        %5914 = vmatprep.subr.mxu0 0.0
        %5915 = vmatpush1.msra.mxu0 %v5880
        %5916 = vmatprep.subr.mxu0 0.0
        %5917 = vmatpush1.msra.mxu0 %v5881
        %5918 = vmatprep.subr.mxu0 0.0
        %5919 = vmatpush1.msra.mxu0 %v5882
        %5920 = vmatprep.subr.mxu0 0.0
        %5921 = vmatpush1.msra.mxu0 %v5883
        %5922 = vmatprep.subr.mxu0 0.0
        %5923 = vmatpush1.msra.mxu0 %v5884
        %5924 = vmatprep.subr.mxu0 0.0
        %5925 = vmatpush1.msra.mxu0 %v5885
        %5926 = vmatprep.subr.mxu0 0.0
        %5927 = vmatpush1.msra.mxu0 0.0
        %5928 = vmatprep.subr.mxu0 0.0
        %5929 = vmatpush1.msra.mxu0 0.0
        %5930 = vmatprep.subr.mxu0 0.0
        %5931 = vmatpush1.msra.mxu0 0.0
        %5932 = vmatprep.subr.mxu0 0.0
        %5933 = vmatpush1.msra.mxu0 0.0
        %5934 = vmatprep.subr.mxu0 0.0
        %5935 = vmatpush1.msra.mxu0 0.0
        %5936 = vmatprep.subr.mxu0 0.0
        %5937 = vmatpush1.msra.mxu0 0.0
        %5938 = vmatprep.subr.mxu0 0.0
        %5939 = vmatpush1.msra.mxu0 0.0
        %5940 = vmatprep.subr.mxu0 0.0
        %5941 = vmatpush1.msra.mxu0 0.0
        %5942 = vmatprep.subr.mxu0 0.0
        %5943 = vmatpush1.msra.mxu0 0.0
        %5944 = vmatprep.subr.mxu0 0.0
        %5945 = vmatpush1.msra.mxu0 0.0
        %5946 = vmatprep.subr.mxu0 0.0
        %5947 = vmatpush1.msra.mxu0 0.0
        %5948 = vmatprep.subr.mxu0 0.0
        %5949 = vmatpush1.msra.mxu0 0.0
        %5950 = vmatprep.subr.mxu0 0.0
        %5951 = vmatpush1.msra.mxu0 0.0
        %5952 = vmatprep.subr.mxu0 0.0
        %5953 = vmatpush1.msra.mxu0 0.0
        %5954 = vmatprep.subr.mxu0 0.0
        %5955 = vmatpush1.msra.mxu0 0.0
        %5956 = vmatprep.subr.mxu0 0.0
        %5957 = vmatpush1.msra.mxu0 0.0
        %5958 = vmatprep.mubr.f32.mxu0 0.0
        %5959 = vmatmul.mubr.f32.gmra.mrb[0].mxu0 %v5868
        %v5960 = vpop.f32.mrb[0].mxu0
        %v5961 = vadd.f32 %v5892, %v5960
        %v5962 = vpop.f32.mrb[0].mxu0
        %5963 = vdwg.mxu0
        %v5964 = vadd.f32 %v5781, %v5961
        %s5965 = scalar_lea.vmem %s49, 2
        %v5966 = vld [vmem:[%s5965] sm:$0x1]
        %s5967 = scalar_lea.vmem %s51, 2
        %v5968 = vld [vmem:[%s5967] sm:$0x1]
        %v5969 = vsel %vm1179, %v5964, 0.0
        %5970 = vadd.xlane.f32.xlu0 %v5969
        %v5971 = vpop.xlane.xlu0 %5970
        %v5972 = vmul.f32 %v5971, %v3571
        %v5973 = vsub.f32 %v5964, %v5972
        %v5974 = vmul.f32 %v5973, %v5973
        %v5975 = vsel %vm1179, %v5974, 0.0
        %5976 = vadd.xlane.f32.xlu0 %v5975
        %v5977 = vpop.xlane.xlu0 %5976
        %v5978 = vmul.f32 %v5977, %v3571
        %v5979 = vadd.f32 %v5978, 1e-05
        %v5980 = vrsqrt.pop %v5979
        %v5981 = vmul.f32 %v5973, %v5980
        %v5983 = vlaneseq
        %v5984 = vshrl.u32 %v5983, 7
        %v5985 = vsub.s32 0, %v5984
        %v5986 = vrot.slane %v5966, %v5985
        %v5988 = vmul.f32 %v5981, %v5986
        %v5990 = vlaneseq
        %v5991 = vshrl.u32 %v5990, 7
        %v5992 = vsub.s32 0, %v5991
        %v5993 = vrot.slane %v5968, %v5992
        %v5995 = vadd.f32 %v5988, %v5993
        %s5996 = scalar_lea.vmem %s29, 96
        %v5997 = vld [vmem:[%s5996] sm:$0xff]
        %v5998 = vld [vmem:[%s5996 + $0x8] sm:$0xff]
        %v5999 = vld [vmem:[%s5996 + $0x10] sm:$0xff]
        %v6000 = vld [vmem:[%s5996 + $0x18] sm:$0xff]
        %s6001 = scalar_lea.vmem %s31, 3
        %v6002 = vld [vmem:[%s6001] sm:$0x1]
        %v6004 = vlaneseq
        %v6005 = vshrl.u32 %v6004, 7
        %v6006 = vsub.s32 0, %v6005
        %v6007 = vrot.slane %v6002, %v6006
        %v6010 = vsel %vm1179, %v5995, 0
        %6012 = vmatprep.subr.mxu0 0.0
        %6013 = vmatpush1.msra.mxu0 %v5997
        %6014 = vmatprep.subr.mxu0 0.0
        %6015 = vmatpush1.msra.mxu0 %v5998
        %6016 = vmatprep.subr.mxu0 0.0
        %6017 = vmatpush1.msra.mxu0 %v5999
        %6018 = vmatprep.subr.mxu0 0.0
        %6019 = vmatpush1.msra.mxu0 %v6000
        %6020 = vmatprep.subr.mxu0 0.0
        %6021 = vmatpush1.msra.mxu0 0.0
        %6022 = vmatprep.subr.mxu0 0.0
        %6023 = vmatpush1.msra.mxu0 0.0
        %6024 = vmatprep.subr.mxu0 0.0
        %6025 = vmatpush1.msra.mxu0 0.0
        %6026 = vmatprep.subr.mxu0 0.0
        %6027 = vmatpush1.msra.mxu0 0.0
        %6028 = vmatprep.subr.mxu0 0.0
        %6029 = vmatpush1.msra.mxu0 0.0
        %6030 = vmatprep.subr.mxu0 0.0
        %6031 = vmatpush1.msra.mxu0 0.0
        %6032 = vmatprep.subr.mxu0 0.0
        %6033 = vmatpush1.msra.mxu0 0.0
        %6034 = vmatprep.subr.mxu0 0.0
        %6035 = vmatpush1.msra.mxu0 0.0
        %6036 = vmatprep.subr.mxu0 0.0
        %6037 = vmatpush1.msra.mxu0 0.0
        %6038 = vmatprep.subr.mxu0 0.0
        %6039 = vmatpush1.msra.mxu0 0.0
        %6040 = vmatprep.subr.mxu0 0.0
        %6041 = vmatpush1.msra.mxu0 0.0
        %6042 = vmatprep.subr.mxu0 0.0
        %6043 = vmatpush1.msra.mxu0 0.0
        %6044 = vmatprep.subr.mxu0 0.0
        %6045 = vmatpush1.msra.mxu0 0.0
        %6046 = vmatprep.subr.mxu0 0.0
        %6047 = vmatpush1.msra.mxu0 0.0
        %6048 = vmatprep.subr.mxu0 0.0
        %6049 = vmatpush1.msra.mxu0 0.0
        %6050 = vmatprep.subr.mxu0 0.0
        %6051 = vmatpush1.msra.mxu0 0.0
        %6052 = vmatprep.subr.mxu0 0.0
        %6053 = vmatpush1.msra.mxu0 0.0
        %6054 = vmatprep.subr.mxu0 0.0
        %6055 = vmatpush1.msra.mxu0 0.0
        %6056 = vmatprep.subr.mxu0 0.0
        %6057 = vmatpush1.msra.mxu0 0.0
        %6058 = vmatprep.subr.mxu0 0.0
        %6059 = vmatpush1.msra.mxu0 0.0
        %6060 = vmatprep.subr.mxu0 0.0
        %6061 = vmatpush1.msra.mxu0 0.0
        %6062 = vmatprep.subr.mxu0 0.0
        %6063 = vmatpush1.msra.mxu0 0.0
        %6064 = vmatprep.subr.mxu0 0.0
        %6065 = vmatpush1.msra.mxu0 0.0
        %6066 = vmatprep.subr.mxu0 0.0
        %6067 = vmatpush1.msra.mxu0 0.0
        %6068 = vmatprep.subr.mxu0 0.0
        %6069 = vmatpush1.msra.mxu0 0.0
        %6070 = vmatprep.subr.mxu0 0.0
        %6071 = vmatpush1.msra.mxu0 0.0
        %6072 = vmatprep.subr.mxu0 0.0
        %6073 = vmatpush1.msra.mxu0 0.0
        %6074 = vmatprep.subr.mxu0 0.0
        %6075 = vmatpush1.msra.mxu0 0.0
        %6076 = vmatprep.mubr.f32.mxu0 0.0
        %6077 = vmatmul.mubr.f32.gmra.mrb[0].mxu0 %v6010
        %v6078 = vpop.f32.mrb[0].mxu0
        %v6079 = vadd.f32 %v6007, %v6078
        %v6080 = vpop.f32.mrb[0].mxu0
        %6081 = vdwg.mxu0
        %6083 = vrot.lane.b32.xlu0 %v6079, 96
        %v6084 = vpop.permute.xlu0 %6083
        %v6085 = vsel %vm1088, %v6079, 0
        %v6087 = vsel %vm1088, %v6084, 0
        %6089 = vmatprep.subr.mxu0 0.0
        %6090 = vmatpush1.xpose.msra.mxu0 %v6087
        %6091 = vmatprep.subr.mxu0 0.0
        %6092 = vmatpush1.xpose.msra.mxu0 0.0
        %6093 = vmatprep.subr.mxu0 0.0
        %6094 = vmatpush1.xpose.msra.mxu0 0.0
        %6095 = vmatprep.subr.mxu0 0.0
        %6096 = vmatpush1.xpose.msra.mxu0 0.0
        %6097 = vmatprep.subr.mxu0 0.0
        %6098 = vmatpush1.xpose.msra.mxu0 0.0
        %6099 = vmatprep.subr.mxu0 0.0
        %6100 = vmatpush1.xpose.msra.mxu0 0.0
        %6101 = vmatprep.subr.mxu0 0.0
        %6102 = vmatpush1.xpose.msra.mxu0 0.0
        %6103 = vmatprep.subr.mxu0 0.0
        %6104 = vmatpush1.xpose.msra.mxu0 0.0
        %6105 = vmatprep.subr.mxu0 0.0
        %6106 = vmatpush1.xpose.msra.mxu0 0.0
        %6107 = vmatprep.subr.mxu0 0.0
        %6108 = vmatpush1.xpose.msra.mxu0 0.0
        %6109 = vmatprep.subr.mxu0 0.0
        %6110 = vmatpush1.xpose.msra.mxu0 0.0
        %6111 = vmatprep.subr.mxu0 0.0
        %6112 = vmatpush1.xpose.msra.mxu0 0.0
        %6113 = vmatprep.subr.mxu0 0.0
        %6114 = vmatpush1.xpose.msra.mxu0 0.0
        %6115 = vmatprep.subr.mxu0 0.0
        %6116 = vmatpush1.xpose.msra.mxu0 0.0
        %6117 = vmatprep.subr.mxu0 0.0
        %6118 = vmatpush1.xpose.msra.mxu0 0.0
        %6119 = vmatprep.subr.mxu0 0.0
        %6120 = vmatpush1.xpose.msra.mxu0 0.0
        %6121 = vmatprep.subr.mxu0 0.0
        %6122 = vmatpush1.xpose.msra.mxu0 0.0
        %6123 = vmatprep.subr.mxu0 0.0
        %6124 = vmatpush1.xpose.msra.mxu0 0.0
        %6125 = vmatprep.subr.mxu0 0.0
        %6126 = vmatpush1.xpose.msra.mxu0 0.0
        %6127 = vmatprep.subr.mxu0 0.0
        %6128 = vmatpush1.xpose.msra.mxu0 0.0
        %6129 = vmatprep.subr.mxu0 0.0
        %6130 = vmatpush1.xpose.msra.mxu0 0.0
        %6131 = vmatprep.subr.mxu0 0.0
        %6132 = vmatpush1.xpose.msra.mxu0 0.0
        %6133 = vmatprep.subr.mxu0 0.0
        %6134 = vmatpush1.xpose.msra.mxu0 0.0
        %6135 = vmatprep.subr.mxu0 0.0
        %6136 = vmatpush1.xpose.msra.mxu0 0.0
        %6137 = vmatprep.subr.mxu0 0.0
        %6138 = vmatpush1.xpose.msra.mxu0 0.0
        %6139 = vmatprep.subr.mxu0 0.0
        %6140 = vmatpush1.xpose.msra.mxu0 0.0
        %6141 = vmatprep.subr.mxu0 0.0
        %6142 = vmatpush1.xpose.msra.mxu0 0.0
        %6143 = vmatprep.subr.mxu0 0.0
        %6144 = vmatpush1.xpose.msra.mxu0 0.0
        %6145 = vmatprep.subr.mxu0 0.0
        %6146 = vmatpush1.xpose.msra.mxu0 0.0
        %6147 = vmatprep.subr.mxu0 0.0
        %6148 = vmatpush1.xpose.msra.mxu0 0.0
        %6149 = vmatprep.subr.mxu0 0.0
        %6150 = vmatpush1.xpose.msra.mxu0 0.0
        %6151 = vmatprep.subr.mxu0 0.0
        %6152 = vmatpush1.xpose.msra.mxu0 0.0
        %6153 = vmatprep.mubr.f32.mxu0 0.0
        %6154 = vmatmul.mubr.f32.gmra.mrb[0].mxu0 %v6085
        %v6155 = vpop.f32.mrb[0].mxu0
        %v6156 = vadd.f32 0.0, %v6155
        %v6157 = vpop.f32.mrb[0].mxu0
        %6158 = vdwg.mxu0
        %v6159 = vmul.f32 %v6156, 0.35355338
        %v6160 = vsel %vm1088, %v6159, -inf
        %6161 = vmax.xlane.f32.xlu0 %v6160
        %v6162 = vpop.xlane.xlu0 %6161
        %v6163 = vsub.f32 %v6159, %v6162
        %v6164 = vmul.f32 %v6163, 1.442695
        %v6165 = vpow.pop %v6164
        %v6166 = vsel %vm1088, %v6165, 0.0
        %6167 = vadd.xlane.f32.xlu0 %v6166
        %v6168 = vpop.xlane.xlu0 %6167
        %v6169 = vrcp.pop %v6168
        %v6170 = vmul.f32 %v6165, %v6169
        %6171 = vrot.lane.b32.xlu0 %v6079, 64
        %v6172 = vpop.permute.xlu0 %6171
        %v6175 = vsel %vm1088, %v6170, 0
        %6177 = vmatprep.subr.mxu0 0.0
        %6178 = vmatpush1.msra.mxu0 %v6172
        %6179 = vmatprep.subr.mxu0 0.0
        %6180 = vmatpush1.msra.mxu0 0.0
        %6181 = vmatprep.subr.mxu0 0.0
        %6182 = vmatpush1.msra.mxu0 0.0
        %6183 = vmatprep.subr.mxu0 0.0
        %6184 = vmatpush1.msra.mxu0 0.0
        %6185 = vmatprep.subr.mxu0 0.0
        %6186 = vmatpush1.msra.mxu0 0.0
        %6187 = vmatprep.subr.mxu0 0.0
        %6188 = vmatpush1.msra.mxu0 0.0
        %6189 = vmatprep.subr.mxu0 0.0
        %6190 = vmatpush1.msra.mxu0 0.0
        %6191 = vmatprep.subr.mxu0 0.0
        %6192 = vmatpush1.msra.mxu0 0.0
        %6193 = vmatprep.subr.mxu0 0.0
        %6194 = vmatpush1.msra.mxu0 0.0
        %6195 = vmatprep.subr.mxu0 0.0
        %6196 = vmatpush1.msra.mxu0 0.0
        %6197 = vmatprep.subr.mxu0 0.0
        %6198 = vmatpush1.msra.mxu0 0.0
        %6199 = vmatprep.subr.mxu0 0.0
        %6200 = vmatpush1.msra.mxu0 0.0
        %6201 = vmatprep.subr.mxu0 0.0
        %6202 = vmatpush1.msra.mxu0 0.0
        %6203 = vmatprep.subr.mxu0 0.0
        %6204 = vmatpush1.msra.mxu0 0.0
        %6205 = vmatprep.subr.mxu0 0.0
        %6206 = vmatpush1.msra.mxu0 0.0
        %6207 = vmatprep.subr.mxu0 0.0
        %6208 = vmatpush1.msra.mxu0 0.0
        %6209 = vmatprep.subr.mxu0 0.0
        %6210 = vmatpush1.msra.mxu0 0.0
        %6211 = vmatprep.subr.mxu0 0.0
        %6212 = vmatpush1.msra.mxu0 0.0
        %6213 = vmatprep.subr.mxu0 0.0
        %6214 = vmatpush1.msra.mxu0 0.0
        %6215 = vmatprep.subr.mxu0 0.0
        %6216 = vmatpush1.msra.mxu0 0.0
        %6217 = vmatprep.subr.mxu0 0.0
        %6218 = vmatpush1.msra.mxu0 0.0
        %6219 = vmatprep.subr.mxu0 0.0
        %6220 = vmatpush1.msra.mxu0 0.0
        %6221 = vmatprep.subr.mxu0 0.0
        %6222 = vmatpush1.msra.mxu0 0.0
        %6223 = vmatprep.subr.mxu0 0.0
        %6224 = vmatpush1.msra.mxu0 0.0
        %6225 = vmatprep.subr.mxu0 0.0
        %6226 = vmatpush1.msra.mxu0 0.0
        %6227 = vmatprep.subr.mxu0 0.0
        %6228 = vmatpush1.msra.mxu0 0.0
        %6229 = vmatprep.subr.mxu0 0.0
        %6230 = vmatpush1.msra.mxu0 0.0
        %6231 = vmatprep.subr.mxu0 0.0
        %6232 = vmatpush1.msra.mxu0 0.0
        %6233 = vmatprep.subr.mxu0 0.0
        %6234 = vmatpush1.msra.mxu0 0.0
        %6235 = vmatprep.subr.mxu0 0.0
        %6236 = vmatpush1.msra.mxu0 0.0
        %6237 = vmatprep.subr.mxu0 0.0
        %6238 = vmatpush1.msra.mxu0 0.0
        %6239 = vmatprep.subr.mxu0 0.0
        %6240 = vmatpush1.msra.mxu0 0.0
        %6241 = vmatprep.mubr.f32.mxu0 0.0
        %6242 = vmatmul.mubr.f32.gmra.mrb[0].mxu0 %v6175
        %v6243 = vpop.f32.mrb[0].mxu0
        %v6244 = vadd.f32 0.0, %v6243
        %v6245 = vpop.f32.mrb[0].mxu0
        %6246 = vdwg.mxu0
        %6247 = vrot.lane.b32.xlu0 %v6079, 120
        %v6248 = vpop.permute.xlu0 %6247
        %6249 = vrot.lane.b32.xlu0 %v6079, 88
        %v6250 = vpop.permute.xlu0 %6249
        %v6251 = vsel %vm1088, %v6248, 0
        %v6253 = vsel %vm1088, %v6250, 0
        %6255 = vmatprep.subr.mxu0 0.0
        %6256 = vmatpush1.xpose.msra.mxu0 %v6253
        %6257 = vmatprep.subr.mxu0 0.0
        %6258 = vmatpush1.xpose.msra.mxu0 0.0
        %6259 = vmatprep.subr.mxu0 0.0
        %6260 = vmatpush1.xpose.msra.mxu0 0.0
        %6261 = vmatprep.subr.mxu0 0.0
        %6262 = vmatpush1.xpose.msra.mxu0 0.0
        %6263 = vmatprep.subr.mxu0 0.0
        %6264 = vmatpush1.xpose.msra.mxu0 0.0
        %6265 = vmatprep.subr.mxu0 0.0
        %6266 = vmatpush1.xpose.msra.mxu0 0.0
        %6267 = vmatprep.subr.mxu0 0.0
        %6268 = vmatpush1.xpose.msra.mxu0 0.0
        %6269 = vmatprep.subr.mxu0 0.0
        %6270 = vmatpush1.xpose.msra.mxu0 0.0
        %6271 = vmatprep.subr.mxu0 0.0
        %6272 = vmatpush1.xpose.msra.mxu0 0.0
        %6273 = vmatprep.subr.mxu0 0.0
        %6274 = vmatpush1.xpose.msra.mxu0 0.0
        %6275 = vmatprep.subr.mxu0 0.0
        %6276 = vmatpush1.xpose.msra.mxu0 0.0
        %6277 = vmatprep.subr.mxu0 0.0
        %6278 = vmatpush1.xpose.msra.mxu0 0.0
        %6279 = vmatprep.subr.mxu0 0.0
        %6280 = vmatpush1.xpose.msra.mxu0 0.0
        %6281 = vmatprep.subr.mxu0 0.0
        %6282 = vmatpush1.xpose.msra.mxu0 0.0
        %6283 = vmatprep.subr.mxu0 0.0
        %6284 = vmatpush1.xpose.msra.mxu0 0.0
        %6285 = vmatprep.subr.mxu0 0.0
        %6286 = vmatpush1.xpose.msra.mxu0 0.0
        %6287 = vmatprep.subr.mxu0 0.0
        %6288 = vmatpush1.xpose.msra.mxu0 0.0
        %6289 = vmatprep.subr.mxu0 0.0
        %6290 = vmatpush1.xpose.msra.mxu0 0.0
        %6291 = vmatprep.subr.mxu0 0.0
        %6292 = vmatpush1.xpose.msra.mxu0 0.0
        %6293 = vmatprep.subr.mxu0 0.0
        %6294 = vmatpush1.xpose.msra.mxu0 0.0
        %6295 = vmatprep.subr.mxu0 0.0
        %6296 = vmatpush1.xpose.msra.mxu0 0.0
        %6297 = vmatprep.subr.mxu0 0.0
        %6298 = vmatpush1.xpose.msra.mxu0 0.0
        %6299 = vmatprep.subr.mxu0 0.0
        %6300 = vmatpush1.xpose.msra.mxu0 0.0
        %6301 = vmatprep.subr.mxu0 0.0
        %6302 = vmatpush1.xpose.msra.mxu0 0.0
        %6303 = vmatprep.subr.mxu0 0.0
        %6304 = vmatpush1.xpose.msra.mxu0 0.0
        %6305 = vmatprep.subr.mxu0 0.0
        %6306 = vmatpush1.xpose.msra.mxu0 0.0
        %6307 = vmatprep.subr.mxu0 0.0
        %6308 = vmatpush1.xpose.msra.mxu0 0.0
        %6309 = vmatprep.subr.mxu0 0.0
        %6310 = vmatpush1.xpose.msra.mxu0 0.0
        %6311 = vmatprep.subr.mxu0 0.0
        %6312 = vmatpush1.xpose.msra.mxu0 0.0
        %6313 = vmatprep.subr.mxu0 0.0
        %6314 = vmatpush1.xpose.msra.mxu0 0.0
        %6315 = vmatprep.subr.mxu0 0.0
        %6316 = vmatpush1.xpose.msra.mxu0 0.0
        %6317 = vmatprep.subr.mxu0 0.0
        %6318 = vmatpush1.xpose.msra.mxu0 0.0
        %6319 = vmatprep.mubr.f32.mxu0 0.0
        %6320 = vmatmul.mubr.f32.gmra.mrb[0].mxu0 %v6251
        %v6321 = vpop.f32.mrb[0].mxu0
        %v6322 = vadd.f32 0.0, %v6321
        %v6323 = vpop.f32.mrb[0].mxu0
        %6324 = vdwg.mxu0
        %v6325 = vmul.f32 %v6322, 0.35355338
        %v6326 = vsel %vm1088, %v6325, -inf
        %6327 = vmax.xlane.f32.xlu0 %v6326
        %v6328 = vpop.xlane.xlu0 %6327
        %v6329 = vsub.f32 %v6325, %v6328
        %v6330 = vmul.f32 %v6329, 1.442695
        %v6331 = vpow.pop %v6330
        %v6332 = vsel %vm1088, %v6331, 0.0
        %6333 = vadd.xlane.f32.xlu0 %v6332
        %v6334 = vpop.xlane.xlu0 %6333
        %v6335 = vrcp.pop %v6334
        %v6336 = vmul.f32 %v6331, %v6335
        %6337 = vrot.lane.b32.xlu0 %v6079, 56
        %v6338 = vpop.permute.xlu0 %6337
        %v6341 = vsel %vm1088, %v6336, 0
        %6343 = vmatprep.subr.mxu0 0.0
        %6344 = vmatpush1.msra.mxu0 %v6338
        %6345 = vmatprep.subr.mxu0 0.0
        %6346 = vmatpush1.msra.mxu0 0.0
        %6347 = vmatprep.subr.mxu0 0.0
        %6348 = vmatpush1.msra.mxu0 0.0
        %6349 = vmatprep.subr.mxu0 0.0
        %6350 = vmatpush1.msra.mxu0 0.0
        %6351 = vmatprep.subr.mxu0 0.0
        %6352 = vmatpush1.msra.mxu0 0.0
        %6353 = vmatprep.subr.mxu0 0.0
        %6354 = vmatpush1.msra.mxu0 0.0
        %6355 = vmatprep.subr.mxu0 0.0
        %6356 = vmatpush1.msra.mxu0 0.0
        %6357 = vmatprep.subr.mxu0 0.0
        %6358 = vmatpush1.msra.mxu0 0.0
        %6359 = vmatprep.subr.mxu0 0.0
        %6360 = vmatpush1.msra.mxu0 0.0
        %6361 = vmatprep.subr.mxu0 0.0
        %6362 = vmatpush1.msra.mxu0 0.0
        %6363 = vmatprep.subr.mxu0 0.0
        %6364 = vmatpush1.msra.mxu0 0.0
        %6365 = vmatprep.subr.mxu0 0.0
        %6366 = vmatpush1.msra.mxu0 0.0
        %6367 = vmatprep.subr.mxu0 0.0
        %6368 = vmatpush1.msra.mxu0 0.0
        %6369 = vmatprep.subr.mxu0 0.0
        %6370 = vmatpush1.msra.mxu0 0.0
        %6371 = vmatprep.subr.mxu0 0.0
        %6372 = vmatpush1.msra.mxu0 0.0
        %6373 = vmatprep.subr.mxu0 0.0
        %6374 = vmatpush1.msra.mxu0 0.0
        %6375 = vmatprep.subr.mxu0 0.0
        %6376 = vmatpush1.msra.mxu0 0.0
        %6377 = vmatprep.subr.mxu0 0.0
        %6378 = vmatpush1.msra.mxu0 0.0
        %6379 = vmatprep.subr.mxu0 0.0
        %6380 = vmatpush1.msra.mxu0 0.0
        %6381 = vmatprep.subr.mxu0 0.0
        %6382 = vmatpush1.msra.mxu0 0.0
        %6383 = vmatprep.subr.mxu0 0.0
        %6384 = vmatpush1.msra.mxu0 0.0
        %6385 = vmatprep.subr.mxu0 0.0
        %6386 = vmatpush1.msra.mxu0 0.0
        %6387 = vmatprep.subr.mxu0 0.0
        %6388 = vmatpush1.msra.mxu0 0.0
        %6389 = vmatprep.subr.mxu0 0.0
        %6390 = vmatpush1.msra.mxu0 0.0
        %6391 = vmatprep.subr.mxu0 0.0
        %6392 = vmatpush1.msra.mxu0 0.0
        %6393 = vmatprep.subr.mxu0 0.0
        %6394 = vmatpush1.msra.mxu0 0.0
        %6395 = vmatprep.subr.mxu0 0.0
        %6396 = vmatpush1.msra.mxu0 0.0
        %6397 = vmatprep.subr.mxu0 0.0
        %6398 = vmatpush1.msra.mxu0 0.0
        %6399 = vmatprep.subr.mxu0 0.0
        %6400 = vmatpush1.msra.mxu0 0.0
        %6401 = vmatprep.subr.mxu0 0.0
        %6402 = vmatpush1.msra.mxu0 0.0
        %6403 = vmatprep.subr.mxu0 0.0
        %6404 = vmatpush1.msra.mxu0 0.0
        %6405 = vmatprep.subr.mxu0 0.0
        %6406 = vmatpush1.msra.mxu0 0.0
        %6407 = vmatprep.mubr.f32.mxu0 0.0
        %6408 = vmatmul.mubr.f32.gmra.mrb[0].mxu0 %v6341
        %v6409 = vpop.f32.mrb[0].mxu0
        %v6410 = vadd.f32 0.0, %v6409
        %v6411 = vpop.f32.mrb[0].mxu0
        %6412 = vdwg.mxu0
        %6413 = vrot.lane.b32.xlu0 %v6079, 112
        %v6414 = vpop.permute.xlu0 %6413
        %6415 = vrot.lane.b32.xlu0 %v6079, 80
        %v6416 = vpop.permute.xlu0 %6415
        %v6417 = vsel %vm1088, %v6414, 0
        %v6419 = vsel %vm1088, %v6416, 0
        %6421 = vmatprep.subr.mxu0 0.0
        %6422 = vmatpush1.xpose.msra.mxu0 %v6419
        %6423 = vmatprep.subr.mxu0 0.0
        %6424 = vmatpush1.xpose.msra.mxu0 0.0
        %6425 = vmatprep.subr.mxu0 0.0
        %6426 = vmatpush1.xpose.msra.mxu0 0.0
        %6427 = vmatprep.subr.mxu0 0.0
        %6428 = vmatpush1.xpose.msra.mxu0 0.0
        %6429 = vmatprep.subr.mxu0 0.0
        %6430 = vmatpush1.xpose.msra.mxu0 0.0
        %6431 = vmatprep.subr.mxu0 0.0
        %6432 = vmatpush1.xpose.msra.mxu0 0.0
        %6433 = vmatprep.subr.mxu0 0.0
        %6434 = vmatpush1.xpose.msra.mxu0 0.0
        %6435 = vmatprep.subr.mxu0 0.0
        %6436 = vmatpush1.xpose.msra.mxu0 0.0
        %6437 = vmatprep.subr.mxu0 0.0
        %6438 = vmatpush1.xpose.msra.mxu0 0.0
        %6439 = vmatprep.subr.mxu0 0.0
        %6440 = vmatpush1.xpose.msra.mxu0 0.0
        %6441 = vmatprep.subr.mxu0 0.0
        %6442 = vmatpush1.xpose.msra.mxu0 0.0
        %6443 = vmatprep.subr.mxu0 0.0
        %6444 = vmatpush1.xpose.msra.mxu0 0.0
        %6445 = vmatprep.subr.mxu0 0.0
        %6446 = vmatpush1.xpose.msra.mxu0 0.0
        %6447 = vmatprep.subr.mxu0 0.0
        %6448 = vmatpush1.xpose.msra.mxu0 0.0
        %6449 = vmatprep.subr.mxu0 0.0
        %6450 = vmatpush1.xpose.msra.mxu0 0.0
        %6451 = vmatprep.subr.mxu0 0.0
        %6452 = vmatpush1.xpose.msra.mxu0 0.0
        %6453 = vmatprep.subr.mxu0 0.0
        %6454 = vmatpush1.xpose.msra.mxu0 0.0
        %6455 = vmatprep.subr.mxu0 0.0
        %6456 = vmatpush1.xpose.msra.mxu0 0.0
        %6457 = vmatprep.subr.mxu0 0.0
        %6458 = vmatpush1.xpose.msra.mxu0 0.0
        %6459 = vmatprep.subr.mxu0 0.0
        %6460 = vmatpush1.xpose.msra.mxu0 0.0
        %6461 = vmatprep.subr.mxu0 0.0
        %6462 = vmatpush1.xpose.msra.mxu0 0.0
        %6463 = vmatprep.subr.mxu0 0.0
        %6464 = vmatpush1.xpose.msra.mxu0 0.0
        %6465 = vmatprep.subr.mxu0 0.0
        %6466 = vmatpush1.xpose.msra.mxu0 0.0
        %6467 = vmatprep.subr.mxu0 0.0
        %6468 = vmatpush1.xpose.msra.mxu0 0.0
        %6469 = vmatprep.subr.mxu0 0.0
        %6470 = vmatpush1.xpose.msra.mxu0 0.0
        %6471 = vmatprep.subr.mxu0 0.0
        %6472 = vmatpush1.xpose.msra.mxu0 0.0
        %6473 = vmatprep.subr.mxu0 0.0
        %6474 = vmatpush1.xpose.msra.mxu0 0.0
        %6475 = vmatprep.subr.mxu0 0.0
        %6476 = vmatpush1.xpose.msra.mxu0 0.0
        %6477 = vmatprep.subr.mxu0 0.0
        %6478 = vmatpush1.xpose.msra.mxu0 0.0
        %6479 = vmatprep.subr.mxu0 0.0
        %6480 = vmatpush1.xpose.msra.mxu0 0.0
        %6481 = vmatprep.subr.mxu0 0.0
        %6482 = vmatpush1.xpose.msra.mxu0 0.0
        %6483 = vmatprep.subr.mxu0 0.0
        %6484 = vmatpush1.xpose.msra.mxu0 0.0
        %6485 = vmatprep.mubr.f32.mxu0 0.0
        %6486 = vmatmul.mubr.f32.gmra.mrb[0].mxu0 %v6417
        %v6487 = vpop.f32.mrb[0].mxu0
        %v6488 = vadd.f32 0.0, %v6487
        %v6489 = vpop.f32.mrb[0].mxu0
        %6490 = vdwg.mxu0
        %v6491 = vmul.f32 %v6488, 0.35355338
        %v6492 = vsel %vm1088, %v6491, -inf
        %6493 = vmax.xlane.f32.xlu0 %v6492
        %v6494 = vpop.xlane.xlu0 %6493
        %v6495 = vsub.f32 %v6491, %v6494
        %v6496 = vmul.f32 %v6495, 1.442695
        %v6497 = vpow.pop %v6496
        %v6498 = vsel %vm1088, %v6497, 0.0
        %6499 = vadd.xlane.f32.xlu0 %v6498
        %v6500 = vpop.xlane.xlu0 %6499
        %v6501 = vrcp.pop %v6500
        %v6502 = vmul.f32 %v6497, %v6501
        %6503 = vrot.lane.b32.xlu0 %v6079, 48
        %v6504 = vpop.permute.xlu0 %6503
        %v6507 = vsel %vm1088, %v6502, 0
        %6509 = vmatprep.subr.mxu0 0.0
        %6510 = vmatpush1.msra.mxu0 %v6504
        %6511 = vmatprep.subr.mxu0 0.0
        %6512 = vmatpush1.msra.mxu0 0.0
        %6513 = vmatprep.subr.mxu0 0.0
        %6514 = vmatpush1.msra.mxu0 0.0
        %6515 = vmatprep.subr.mxu0 0.0
        %6516 = vmatpush1.msra.mxu0 0.0
        %6517 = vmatprep.subr.mxu0 0.0
        %6518 = vmatpush1.msra.mxu0 0.0
        %6519 = vmatprep.subr.mxu0 0.0
        %6520 = vmatpush1.msra.mxu0 0.0
        %6521 = vmatprep.subr.mxu0 0.0
        %6522 = vmatpush1.msra.mxu0 0.0
        %6523 = vmatprep.subr.mxu0 0.0
        %6524 = vmatpush1.msra.mxu0 0.0
        %6525 = vmatprep.subr.mxu0 0.0
        %6526 = vmatpush1.msra.mxu0 0.0
        %6527 = vmatprep.subr.mxu0 0.0
        %6528 = vmatpush1.msra.mxu0 0.0
        %6529 = vmatprep.subr.mxu0 0.0
        %6530 = vmatpush1.msra.mxu0 0.0
        %6531 = vmatprep.subr.mxu0 0.0
        %6532 = vmatpush1.msra.mxu0 0.0
        %6533 = vmatprep.subr.mxu0 0.0
        %6534 = vmatpush1.msra.mxu0 0.0
        %6535 = vmatprep.subr.mxu0 0.0
        %6536 = vmatpush1.msra.mxu0 0.0
        %6537 = vmatprep.subr.mxu0 0.0
        %6538 = vmatpush1.msra.mxu0 0.0
        %6539 = vmatprep.subr.mxu0 0.0
        %6540 = vmatpush1.msra.mxu0 0.0
        %6541 = vmatprep.subr.mxu0 0.0
        %6542 = vmatpush1.msra.mxu0 0.0
        %6543 = vmatprep.subr.mxu0 0.0
        %6544 = vmatpush1.msra.mxu0 0.0
        %6545 = vmatprep.subr.mxu0 0.0
        %6546 = vmatpush1.msra.mxu0 0.0
        %6547 = vmatprep.subr.mxu0 0.0
        %6548 = vmatpush1.msra.mxu0 0.0
        %6549 = vmatprep.subr.mxu0 0.0
        %6550 = vmatpush1.msra.mxu0 0.0
        %6551 = vmatprep.subr.mxu0 0.0
        %6552 = vmatpush1.msra.mxu0 0.0
        %6553 = vmatprep.subr.mxu0 0.0
        %6554 = vmatpush1.msra.mxu0 0.0
        %6555 = vmatprep.subr.mxu0 0.0
        %6556 = vmatpush1.msra.mxu0 0.0
        %6557 = vmatprep.subr.mxu0 0.0
        %6558 = vmatpush1.msra.mxu0 0.0
        %6559 = vmatprep.subr.mxu0 0.0
        %6560 = vmatpush1.msra.mxu0 0.0
        %6561 = vmatprep.subr.mxu0 0.0
        %6562 = vmatpush1.msra.mxu0 0.0
        %6563 = vmatprep.subr.mxu0 0.0
        %6564 = vmatpush1.msra.mxu0 0.0
        %6565 = vmatprep.subr.mxu0 0.0
        %6566 = vmatpush1.msra.mxu0 0.0
        %6567 = vmatprep.subr.mxu0 0.0
        %6568 = vmatpush1.msra.mxu0 0.0
        %6569 = vmatprep.subr.mxu0 0.0
        %6570 = vmatpush1.msra.mxu0 0.0
        %6571 = vmatprep.subr.mxu0 0.0
        %6572 = vmatpush1.msra.mxu0 0.0
        %6573 = vmatprep.mubr.f32.mxu0 0.0
        %6574 = vmatmul.mubr.f32.gmra.mrb[0].mxu0 %v6507
        %v6575 = vpop.f32.mrb[0].mxu0
        %v6576 = vadd.f32 0.0, %v6575
        %v6577 = vpop.f32.mrb[0].mxu0
        %6578 = vdwg.mxu0
        %6579 = vrot.lane.b32.xlu0 %v6079, 104
        %v6580 = vpop.permute.xlu0 %6579
        %6581 = vrot.lane.b32.xlu0 %v6079, 72
        %v6582 = vpop.permute.xlu0 %6581
        %v6583 = vsel %vm1088, %v6580, 0
        %v6585 = vsel %vm1088, %v6582, 0
        %6587 = vmatprep.subr.mxu0 0.0
        %6588 = vmatpush1.xpose.msra.mxu0 %v6585
        %6589 = vmatprep.subr.mxu0 0.0
        %6590 = vmatpush1.xpose.msra.mxu0 0.0
        %6591 = vmatprep.subr.mxu0 0.0
        %6592 = vmatpush1.xpose.msra.mxu0 0.0
        %6593 = vmatprep.subr.mxu0 0.0
        %6594 = vmatpush1.xpose.msra.mxu0 0.0
        %6595 = vmatprep.subr.mxu0 0.0
        %6596 = vmatpush1.xpose.msra.mxu0 0.0
        %6597 = vmatprep.subr.mxu0 0.0
        %6598 = vmatpush1.xpose.msra.mxu0 0.0
        %6599 = vmatprep.subr.mxu0 0.0
        %6600 = vmatpush1.xpose.msra.mxu0 0.0
        %6601 = vmatprep.subr.mxu0 0.0
        %6602 = vmatpush1.xpose.msra.mxu0 0.0
        %6603 = vmatprep.subr.mxu0 0.0
        %6604 = vmatpush1.xpose.msra.mxu0 0.0
        %6605 = vmatprep.subr.mxu0 0.0
        %6606 = vmatpush1.xpose.msra.mxu0 0.0
        %6607 = vmatprep.subr.mxu0 0.0
        %6608 = vmatpush1.xpose.msra.mxu0 0.0
        %6609 = vmatprep.subr.mxu0 0.0
        %6610 = vmatpush1.xpose.msra.mxu0 0.0
        %6611 = vmatprep.subr.mxu0 0.0
        %6612 = vmatpush1.xpose.msra.mxu0 0.0
        %6613 = vmatprep.subr.mxu0 0.0
        %6614 = vmatpush1.xpose.msra.mxu0 0.0
        %6615 = vmatprep.subr.mxu0 0.0
        %6616 = vmatpush1.xpose.msra.mxu0 0.0
        %6617 = vmatprep.subr.mxu0 0.0
        %6618 = vmatpush1.xpose.msra.mxu0 0.0
        %6619 = vmatprep.subr.mxu0 0.0
        %6620 = vmatpush1.xpose.msra.mxu0 0.0
        %6621 = vmatprep.subr.mxu0 0.0
        %6622 = vmatpush1.xpose.msra.mxu0 0.0
        %6623 = vmatprep.subr.mxu0 0.0
        %6624 = vmatpush1.xpose.msra.mxu0 0.0
        %6625 = vmatprep.subr.mxu0 0.0
        %6626 = vmatpush1.xpose.msra.mxu0 0.0
        %6627 = vmatprep.subr.mxu0 0.0
        %6628 = vmatpush1.xpose.msra.mxu0 0.0
        %6629 = vmatprep.subr.mxu0 0.0
        %6630 = vmatpush1.xpose.msra.mxu0 0.0
        %6631 = vmatprep.subr.mxu0 0.0
        %6632 = vmatpush1.xpose.msra.mxu0 0.0
        %6633 = vmatprep.subr.mxu0 0.0
        %6634 = vmatpush1.xpose.msra.mxu0 0.0
        %6635 = vmatprep.subr.mxu0 0.0
        %6636 = vmatpush1.xpose.msra.mxu0 0.0
        %6637 = vmatprep.subr.mxu0 0.0
        %6638 = vmatpush1.xpose.msra.mxu0 0.0
        %6639 = vmatprep.subr.mxu0 0.0
        %6640 = vmatpush1.xpose.msra.mxu0 0.0
        %6641 = vmatprep.subr.mxu0 0.0
        %6642 = vmatpush1.xpose.msra.mxu0 0.0
        %6643 = vmatprep.subr.mxu0 0.0
        %6644 = vmatpush1.xpose.msra.mxu0 0.0
        %6645 = vmatprep.subr.mxu0 0.0
        %6646 = vmatpush1.xpose.msra.mxu0 0.0
        %6647 = vmatprep.subr.mxu0 0.0
        %6648 = vmatpush1.xpose.msra.mxu0 0.0
        %6649 = vmatprep.subr.mxu0 0.0
        %6650 = vmatpush1.xpose.msra.mxu0 0.0
        %6651 = vmatprep.mubr.f32.mxu0 0.0
        %6652 = vmatmul.mubr.f32.gmra.mrb[0].mxu0 %v6583
        %v6653 = vpop.f32.mrb[0].mxu0
        %v6654 = vadd.f32 0.0, %v6653
        %v6655 = vpop.f32.mrb[0].mxu0
        %6656 = vdwg.mxu0
        %v6657 = vmul.f32 %v6654, 0.35355338
        %v6658 = vsel %vm1088, %v6657, -inf
        %6659 = vmax.xlane.f32.xlu0 %v6658
        %v6660 = vpop.xlane.xlu0 %6659
        %v6661 = vsub.f32 %v6657, %v6660
        %v6662 = vmul.f32 %v6661, 1.442695
        %v6663 = vpow.pop %v6662
        %v6664 = vsel %vm1088, %v6663, 0.0
        %6665 = vadd.xlane.f32.xlu0 %v6664
        %v6666 = vpop.xlane.xlu0 %6665
        %v6667 = vrcp.pop %v6666
        %v6668 = vmul.f32 %v6663, %v6667
        %6669 = vrot.lane.b32.xlu0 %v6079, 40
        %v6670 = vpop.permute.xlu0 %6669
        %v6673 = vsel %vm1088, %v6668, 0
        %6675 = vmatprep.subr.mxu0 0.0
        %6676 = vmatpush1.msra.mxu0 %v6670
        %6677 = vmatprep.subr.mxu0 0.0
        %6678 = vmatpush1.msra.mxu0 0.0
        %6679 = vmatprep.subr.mxu0 0.0
        %6680 = vmatpush1.msra.mxu0 0.0
        %6681 = vmatprep.subr.mxu0 0.0
        %6682 = vmatpush1.msra.mxu0 0.0
        %6683 = vmatprep.subr.mxu0 0.0
        %6684 = vmatpush1.msra.mxu0 0.0
        %6685 = vmatprep.subr.mxu0 0.0
        %6686 = vmatpush1.msra.mxu0 0.0
        %6687 = vmatprep.subr.mxu0 0.0
        %6688 = vmatpush1.msra.mxu0 0.0
        %6689 = vmatprep.subr.mxu0 0.0
        %6690 = vmatpush1.msra.mxu0 0.0
        %6691 = vmatprep.subr.mxu0 0.0
        %6692 = vmatpush1.msra.mxu0 0.0
        %6693 = vmatprep.subr.mxu0 0.0
        %6694 = vmatpush1.msra.mxu0 0.0
        %6695 = vmatprep.subr.mxu0 0.0
        %6696 = vmatpush1.msra.mxu0 0.0
        %6697 = vmatprep.subr.mxu0 0.0
        %6698 = vmatpush1.msra.mxu0 0.0
        %6699 = vmatprep.subr.mxu0 0.0
        %6700 = vmatpush1.msra.mxu0 0.0
        %6701 = vmatprep.subr.mxu0 0.0
        %6702 = vmatpush1.msra.mxu0 0.0
        %6703 = vmatprep.subr.mxu0 0.0
        %6704 = vmatpush1.msra.mxu0 0.0
        %6705 = vmatprep.subr.mxu0 0.0
        %6706 = vmatpush1.msra.mxu0 0.0
        %6707 = vmatprep.subr.mxu0 0.0
        %6708 = vmatpush1.msra.mxu0 0.0
        %6709 = vmatprep.subr.mxu0 0.0
        %6710 = vmatpush1.msra.mxu0 0.0
        %6711 = vmatprep.subr.mxu0 0.0
        %6712 = vmatpush1.msra.mxu0 0.0
        %6713 = vmatprep.subr.mxu0 0.0
        %6714 = vmatpush1.msra.mxu0 0.0
        %6715 = vmatprep.subr.mxu0 0.0
        %6716 = vmatpush1.msra.mxu0 0.0
        %6717 = vmatprep.subr.mxu0 0.0
        %6718 = vmatpush1.msra.mxu0 0.0
        %6719 = vmatprep.subr.mxu0 0.0
        %6720 = vmatpush1.msra.mxu0 0.0
        %6721 = vmatprep.subr.mxu0 0.0
        %6722 = vmatpush1.msra.mxu0 0.0
        %6723 = vmatprep.subr.mxu0 0.0
        %6724 = vmatpush1.msra.mxu0 0.0
        %6725 = vmatprep.subr.mxu0 0.0
        %6726 = vmatpush1.msra.mxu0 0.0
        %6727 = vmatprep.subr.mxu0 0.0
        %6728 = vmatpush1.msra.mxu0 0.0
        %6729 = vmatprep.subr.mxu0 0.0
        %6730 = vmatpush1.msra.mxu0 0.0
        %6731 = vmatprep.subr.mxu0 0.0
        %6732 = vmatpush1.msra.mxu0 0.0
        %6733 = vmatprep.subr.mxu0 0.0
        %6734 = vmatpush1.msra.mxu0 0.0
        %6735 = vmatprep.subr.mxu0 0.0
        %6736 = vmatpush1.msra.mxu0 0.0
        %6737 = vmatprep.subr.mxu0 0.0
        %6738 = vmatpush1.msra.mxu0 0.0
        %6739 = vmatprep.mubr.f32.mxu0 0.0
        %6740 = vmatmul.mubr.f32.gmra.mrb[0].mxu0 %v6673
        %v6741 = vpop.f32.mrb[0].mxu0
        %v6742 = vadd.f32 0.0, %v6741
        %v6743 = vpop.f32.mrb[0].mxu0
        %6744 = vdwg.mxu0
        %6746 = vrot.lane.b32.xlu0 %v6410, 8
        %v6747 = vpop.permute.xlu0 %6746
        %6750 = vrot.lane.b32.xlu0 %v6576, 16
        %v6751 = vpop.permute.xlu0 %6750
        %6754 = vrot.lane.b32.xlu0 %v6742, 24
        %v6755 = vpop.permute.xlu0 %6754
        %v6757 = vsel %vm1088, %v6244, %v6747
        %v6758 = vsel %vm1166, %v6757, %v6751
        %v6759 = vsel %vm3479, %v6758, %v6755
        %s6760 = scalar_lea.vmem %s33, 96
        %v6761 = vld [vmem:[%s6760] sm:$0xff]
        %v6762 = vld [vmem:[%s6760 + $0x8] sm:$0xff]
        %v6763 = vld [vmem:[%s6760 + $0x10] sm:$0xff]
        %v6764 = vld [vmem:[%s6760 + $0x18] sm:$0xff]
        %s6765 = scalar_lea.vmem %s35, 3
        %v6766 = vld [vmem:[%s6765] sm:$0x1]
        %v6768 = vlaneseq
        %v6769 = vshrl.u32 %v6768, 7
        %v6770 = vsub.s32 0, %v6769
        %v6771 = vrot.slane %v6766, %v6770
        %v6774 = vsel %vm1179, %v6759, 0
        %6776 = vmatprep.subr.mxu0 0.0
        %6777 = vmatpush1.msra.mxu0 %v6761
        %6778 = vmatprep.subr.mxu0 0.0
        %6779 = vmatpush1.msra.mxu0 %v6762
        %6780 = vmatprep.subr.mxu0 0.0
        %6781 = vmatpush1.msra.mxu0 %v6763
        %6782 = vmatprep.subr.mxu0 0.0
        %6783 = vmatpush1.msra.mxu0 %v6764
        %6784 = vmatprep.subr.mxu0 0.0
        %6785 = vmatpush1.msra.mxu0 0.0
        %6786 = vmatprep.subr.mxu0 0.0
        %6787 = vmatpush1.msra.mxu0 0.0
        %6788 = vmatprep.subr.mxu0 0.0
        %6789 = vmatpush1.msra.mxu0 0.0
        %6790 = vmatprep.subr.mxu0 0.0
        %6791 = vmatpush1.msra.mxu0 0.0
        %6792 = vmatprep.subr.mxu0 0.0
        %6793 = vmatpush1.msra.mxu0 0.0
        %6794 = vmatprep.subr.mxu0 0.0
        %6795 = vmatpush1.msra.mxu0 0.0
        %6796 = vmatprep.subr.mxu0 0.0
        %6797 = vmatpush1.msra.mxu0 0.0
        %6798 = vmatprep.subr.mxu0 0.0
        %6799 = vmatpush1.msra.mxu0 0.0
        %6800 = vmatprep.subr.mxu0 0.0
        %6801 = vmatpush1.msra.mxu0 0.0
        %6802 = vmatprep.subr.mxu0 0.0
        %6803 = vmatpush1.msra.mxu0 0.0
        %6804 = vmatprep.subr.mxu0 0.0
        %6805 = vmatpush1.msra.mxu0 0.0
        %6806 = vmatprep.subr.mxu0 0.0
        %6807 = vmatpush1.msra.mxu0 0.0
        %6808 = vmatprep.subr.mxu0 0.0
        %6809 = vmatpush1.msra.mxu0 0.0
        %6810 = vmatprep.subr.mxu0 0.0
        %6811 = vmatpush1.msra.mxu0 0.0
        %6812 = vmatprep.subr.mxu0 0.0
        %6813 = vmatpush1.msra.mxu0 0.0
        %6814 = vmatprep.subr.mxu0 0.0
        %6815 = vmatpush1.msra.mxu0 0.0
        %6816 = vmatprep.subr.mxu0 0.0
        %6817 = vmatpush1.msra.mxu0 0.0
        %6818 = vmatprep.subr.mxu0 0.0
        %6819 = vmatpush1.msra.mxu0 0.0
        %6820 = vmatprep.subr.mxu0 0.0
        %6821 = vmatpush1.msra.mxu0 0.0
        %6822 = vmatprep.subr.mxu0 0.0
        %6823 = vmatpush1.msra.mxu0 0.0
        %6824 = vmatprep.subr.mxu0 0.0
        %6825 = vmatpush1.msra.mxu0 0.0
        %6826 = vmatprep.subr.mxu0 0.0
        %6827 = vmatpush1.msra.mxu0 0.0
        %6828 = vmatprep.subr.mxu0 0.0
        %6829 = vmatpush1.msra.mxu0 0.0
        %6830 = vmatprep.subr.mxu0 0.0
        %6831 = vmatpush1.msra.mxu0 0.0
        %6832 = vmatprep.subr.mxu0 0.0
        %6833 = vmatpush1.msra.mxu0 0.0
        %6834 = vmatprep.subr.mxu0 0.0
        %6835 = vmatpush1.msra.mxu0 0.0
        %6836 = vmatprep.subr.mxu0 0.0
        %6837 = vmatpush1.msra.mxu0 0.0
        %6838 = vmatprep.subr.mxu0 0.0
        %6839 = vmatpush1.msra.mxu0 0.0
        %6840 = vmatprep.mubr.f32.mxu0 0.0
        %6841 = vmatmul.mubr.f32.gmra.mrb[0].mxu0 %v6774
        %v6842 = vpop.f32.mrb[0].mxu0
        %v6843 = vadd.f32 %v6771, %v6842
        %v6844 = vpop.f32.mrb[0].mxu0
        %6845 = vdwg.mxu0
        %v6846 = vadd.f32 %v5995, %v6843
        %s6847 = scalar_lea.vmem %s45, 3
        %v6848 = vld [vmem:[%s6847] sm:$0x1]
        %s6849 = scalar_lea.vmem %s47, 3
        %v6850 = vld [vmem:[%s6849] sm:$0x1]
        %v6851 = vsel %vm1179, %v6846, 0.0
        %6852 = vadd.xlane.f32.xlu0 %v6851
        %v6853 = vpop.xlane.xlu0 %6852
        %v6854 = vmul.f32 %v6853, %v3571
        %v6855 = vsub.f32 %v6846, %v6854
        %v6856 = vmul.f32 %v6855, %v6855
        %v6857 = vsel %vm1179, %v6856, 0.0
        %6858 = vadd.xlane.f32.xlu0 %v6857
        %v6859 = vpop.xlane.xlu0 %6858
        %v6860 = vmul.f32 %v6859, %v3571
        %v6861 = vadd.f32 %v6860, 1e-05
        %v6862 = vrsqrt.pop %v6861
        %v6863 = vmul.f32 %v6855, %v6862
        %v6865 = vlaneseq
        %v6866 = vshrl.u32 %v6865, 7
        %v6867 = vsub.s32 0, %v6866
        %v6868 = vrot.slane %v6848, %v6867
        %v6870 = vmul.f32 %v6863, %v6868
        %v6872 = vlaneseq
        %v6873 = vshrl.u32 %v6872, 7
        %v6874 = vsub.s32 0, %v6873
        %v6875 = vrot.slane %v6850, %v6874
        %v6877 = vadd.f32 %v6870, %v6875
        %s6878 = scalar_lea.vmem %s37, 96
        %v6879 = vld [vmem:[%s6878] sm:$0xff]
        %v6880 = vld [vmem:[%s6878 + $0x8] sm:$0xff]
        %v6881 = vld [vmem:[%s6878 + $0x10] sm:$0xff]
        %v6882 = vld [vmem:[%s6878 + $0x18] sm:$0xff]
        %s6883 = scalar_lea.vmem %s39, 3
        %v6884 = vld [vmem:[%s6883] sm:$0x1]
        %v6886 = vlaneseq
        %v6887 = vshrl.u32 %v6886, 7
        %v6888 = vsub.s32 0, %v6887
        %v6889 = vrot.slane %v6884, %v6888
        %v6892 = vsel %vm1179, %v6877, 0
        %6894 = vmatprep.subr.mxu0 0.0
        %6895 = vmatpush1.msra.mxu0 %v6879
        %6896 = vmatprep.subr.mxu0 0.0
        %6897 = vmatpush1.msra.mxu0 %v6880
        %6898 = vmatprep.subr.mxu0 0.0
        %6899 = vmatpush1.msra.mxu0 %v6881
        %6900 = vmatprep.subr.mxu0 0.0
        %6901 = vmatpush1.msra.mxu0 %v6882
        %6902 = vmatprep.subr.mxu0 0.0
        %6903 = vmatpush1.msra.mxu0 0.0
        %6904 = vmatprep.subr.mxu0 0.0
        %6905 = vmatpush1.msra.mxu0 0.0
        %6906 = vmatprep.subr.mxu0 0.0
        %6907 = vmatpush1.msra.mxu0 0.0
        %6908 = vmatprep.subr.mxu0 0.0
        %6909 = vmatpush1.msra.mxu0 0.0
        %6910 = vmatprep.subr.mxu0 0.0
        %6911 = vmatpush1.msra.mxu0 0.0
        %6912 = vmatprep.subr.mxu0 0.0
        %6913 = vmatpush1.msra.mxu0 0.0
        %6914 = vmatprep.subr.mxu0 0.0
        %6915 = vmatpush1.msra.mxu0 0.0
        %6916 = vmatprep.subr.mxu0 0.0
        %6917 = vmatpush1.msra.mxu0 0.0
        %6918 = vmatprep.subr.mxu0 0.0
        %6919 = vmatpush1.msra.mxu0 0.0
        %6920 = vmatprep.subr.mxu0 0.0
        %6921 = vmatpush1.msra.mxu0 0.0
        %6922 = vmatprep.subr.mxu0 0.0
        %6923 = vmatpush1.msra.mxu0 0.0
        %6924 = vmatprep.subr.mxu0 0.0
        %6925 = vmatpush1.msra.mxu0 0.0
        %6926 = vmatprep.subr.mxu0 0.0
        %6927 = vmatpush1.msra.mxu0 0.0
        %6928 = vmatprep.subr.mxu0 0.0
        %6929 = vmatpush1.msra.mxu0 0.0
        %6930 = vmatprep.subr.mxu0 0.0
        %6931 = vmatpush1.msra.mxu0 0.0
        %6932 = vmatprep.subr.mxu0 0.0
        %6933 = vmatpush1.msra.mxu0 0.0
        %6934 = vmatprep.subr.mxu0 0.0
        %6935 = vmatpush1.msra.mxu0 0.0
        %6936 = vmatprep.subr.mxu0 0.0
        %6937 = vmatpush1.msra.mxu0 0.0
        %6938 = vmatprep.subr.mxu0 0.0
        %6939 = vmatpush1.msra.mxu0 0.0
        %6940 = vmatprep.subr.mxu0 0.0
        %6941 = vmatpush1.msra.mxu0 0.0
        %6942 = vmatprep.subr.mxu0 0.0
        %6943 = vmatpush1.msra.mxu0 0.0
        %6944 = vmatprep.subr.mxu0 0.0
        %6945 = vmatpush1.msra.mxu0 0.0
        %6946 = vmatprep.subr.mxu0 0.0
        %6947 = vmatpush1.msra.mxu0 0.0
        %6948 = vmatprep.subr.mxu0 0.0
        %6949 = vmatpush1.msra.mxu0 0.0
        %6950 = vmatprep.subr.mxu0 0.0
        %6951 = vmatpush1.msra.mxu0 0.0
        %6952 = vmatprep.subr.mxu0 0.0
        %6953 = vmatpush1.msra.mxu0 0.0
        %6954 = vmatprep.subr.mxu0 0.0
        %6955 = vmatpush1.msra.mxu0 0.0
        %6956 = vmatprep.subr.mxu0 0.0
        %6957 = vmatpush1.msra.mxu0 0.0
        %6958 = vmatprep.mubr.f32.mxu0 0.0
        %6959 = vmatmul.mubr.f32.gmra.mrb[0].mxu0 %v6892
        %v6960 = vpop.f32.mrb[0].mxu0
        %v6961 = vadd.f32 %v6889, %v6960
        %v6962 = vpop.f32.mrb[0].mxu0
        %6963 = vdwg.mxu0
        %v6964 = vmax.f32 %v6961, 0.0
        %s6965 = scalar_lea.vmem %s41, 384
        %v6966 = vld [vmem:[%s6965] sm:$0xff]
        %v6967 = vld [vmem:[%s6965 + $0x8] sm:$0xff]
        %v6968 = vld [vmem:[%s6965 + $0x10] sm:$0xff]
        %v6969 = vld [vmem:[%s6965 + $0x18] sm:$0xff]
        %v6970 = vld [vmem:[%s6965 + $0x20] sm:$0xff]
        %v6971 = vld [vmem:[%s6965 + $0x28] sm:$0xff]
        %v6972 = vld [vmem:[%s6965 + $0x30] sm:$0xff]
        %v6973 = vld [vmem:[%s6965 + $0x38] sm:$0xff]
        %v6974 = vld [vmem:[%s6965 + $0x40] sm:$0xff]
        %v6975 = vld [vmem:[%s6965 + $0x48] sm:$0xff]
        %v6976 = vld [vmem:[%s6965 + $0x50] sm:$0xff]
        %v6977 = vld [vmem:[%s6965 + $0x58] sm:$0xff]
        %v6978 = vld [vmem:[%s6965 + $0x60] sm:$0xff]
        %v6979 = vld [vmem:[%s6965 + $0x68] sm:$0xff]
        %v6980 = vld [vmem:[%s6965 + $0x70] sm:$0xff]
        %v6981 = vld [vmem:[%s6965 + $0x78] sm:$0xff]
        %s6982 = scalar_lea.vmem %s43, 3
        %v6983 = vld [vmem:[%s6982] sm:$0x1]
        %v6985 = vlaneseq
        %v6986 = vshrl.u32 %v6985, 7
        %v6987 = vsub.s32 0, %v6986
        %v6988 = vrot.slane %v6983, %v6987
        %6990 = vmatprep.subr.mxu0 0.0
        %6991 = vmatpush1.msra.mxu0 %v6966
        %6992 = vmatprep.subr.mxu0 0.0
        %6993 = vmatpush1.msra.mxu0 %v6967
        %6994 = vmatprep.subr.mxu0 0.0
        %6995 = vmatpush1.msra.mxu0 %v6968
        %6996 = vmatprep.subr.mxu0 0.0
        %6997 = vmatpush1.msra.mxu0 %v6969
        %6998 = vmatprep.subr.mxu0 0.0
        %6999 = vmatpush1.msra.mxu0 %v6970
        %7000 = vmatprep.subr.mxu0 0.0
        %7001 = vmatpush1.msra.mxu0 %v6971
        %7002 = vmatprep.subr.mxu0 0.0
        %7003 = vmatpush1.msra.mxu0 %v6972
        %7004 = vmatprep.subr.mxu0 0.0
        %7005 = vmatpush1.msra.mxu0 %v6973
        %7006 = vmatprep.subr.mxu0 0.0
        %7007 = vmatpush1.msra.mxu0 %v6974
        %7008 = vmatprep.subr.mxu0 0.0
        %7009 = vmatpush1.msra.mxu0 %v6975
        %7010 = vmatprep.subr.mxu0 0.0
        %7011 = vmatpush1.msra.mxu0 %v6976
        %7012 = vmatprep.subr.mxu0 0.0
        %7013 = vmatpush1.msra.mxu0 %v6977
        %7014 = vmatprep.subr.mxu0 0.0
        %7015 = vmatpush1.msra.mxu0 %v6978
        %7016 = vmatprep.subr.mxu0 0.0
        %7017 = vmatpush1.msra.mxu0 %v6979
        %7018 = vmatprep.subr.mxu0 0.0
        %7019 = vmatpush1.msra.mxu0 %v6980
        %7020 = vmatprep.subr.mxu0 0.0
        %7021 = vmatpush1.msra.mxu0 %v6981
        %7022 = vmatprep.subr.mxu0 0.0
        %7023 = vmatpush1.msra.mxu0 0.0
        %7024 = vmatprep.subr.mxu0 0.0
        %7025 = vmatpush1.msra.mxu0 0.0
        %7026 = vmatprep.subr.mxu0 0.0
        %7027 = vmatpush1.msra.mxu0 0.0
        %7028 = vmatprep.subr.mxu0 0.0
        %7029 = vmatpush1.msra.mxu0 0.0
        %7030 = vmatprep.subr.mxu0 0.0
        %7031 = vmatpush1.msra.mxu0 0.0
        %7032 = vmatprep.subr.mxu0 0.0
        %7033 = vmatpush1.msra.mxu0 0.0
        %7034 = vmatprep.subr.mxu0 0.0
        %7035 = vmatpush1.msra.mxu0 0.0
        %7036 = vmatprep.subr.mxu0 0.0
        %7037 = vmatpush1.msra.mxu0 0.0
        %7038 = vmatprep.subr.mxu0 0.0
        %7039 = vmatpush1.msra.mxu0 0.0
        %7040 = vmatprep.subr.mxu0 0.0
        %7041 = vmatpush1.msra.mxu0 0.0
        %7042 = vmatprep.subr.mxu0 0.0
        %7043 = vmatpush1.msra.mxu0 0.0
        %7044 = vmatprep.subr.mxu0 0.0
        %7045 = vmatpush1.msra.mxu0 0.0
        %7046 = vmatprep.subr.mxu0 0.0
        %7047 = vmatpush1.msra.mxu0 0.0
        %7048 = vmatprep.subr.mxu0 0.0
        %7049 = vmatpush1.msra.mxu0 0.0
        %7050 = vmatprep.subr.mxu0 0.0
        %7051 = vmatpush1.msra.mxu0 0.0
        %7052 = vmatprep.subr.mxu0 0.0
        %7053 = vmatpush1.msra.mxu0 0.0
        %7054 = vmatprep.mubr.f32.mxu0 0.0
        %7055 = vmatmul.mubr.f32.gmra.mrb[0].mxu0 %v6964
        %v7056 = vpop.f32.mrb[0].mxu0
        %v7057 = vadd.f32 %v6988, %v7056
        %v7058 = vpop.f32.mrb[0].mxu0
        %7059 = vdwg.mxu0
        %v7060 = vadd.f32 %v6877, %v7057
        %s7061 = scalar_lea.vmem %s49, 3
        %v7062 = vld [vmem:[%s7061] sm:$0x1]
        %s7063 = scalar_lea.vmem %s51, 3
        %v7064 = vld [vmem:[%s7063] sm:$0x1]
        %v7065 = vsel %vm1179, %v7060, 0.0
        %7066 = vadd.xlane.f32.xlu0 %v7065
        %v7067 = vpop.xlane.xlu0 %7066
        %v7068 = vmul.f32 %v7067, %v3571
        %v7069 = vsub.f32 %v7060, %v7068
        %v7070 = vmul.f32 %v7069, %v7069
        %v7071 = vsel %vm1179, %v7070, 0.0
        %7072 = vadd.xlane.f32.xlu0 %v7071
        %v7073 = vpop.xlane.xlu0 %7072
        %v7074 = vmul.f32 %v7073, %v3571
        %v7075 = vadd.f32 %v7074, 1e-05
        %v7076 = vrsqrt.pop %v7075
        %v7077 = vmul.f32 %v7069, %v7076
        %v7079 = vlaneseq
        %v7080 = vshrl.u32 %v7079, 7
        %v7081 = vsub.s32 0, %v7080
        %v7082 = vrot.slane %v7062, %v7081
        %v7084 = vmul.f32 %v7077, %v7082
        %v7086 = vlaneseq
        %v7087 = vshrl.u32 %v7086, 7
        %v7088 = vsub.s32 0, %v7087
        %v7089 = vrot.slane %v7064, %v7088
        %v7091 = vadd.f32 %v7084, %v7089
        %7092 = vxpose.xlu0.b32.start [1/16] %v2715, 128
        %7093 = vxpose.xlu0.b32.cont [2/16] 0.0, 128
        %7094 = vxpose.xlu0.b32.cont [3/16] 0.0, 128
        %7095 = vxpose.xlu0.b32.cont [4/16] 0.0, 128
        %7096 = vxpose.xlu0.b32.cont [5/16] 0.0, 128
        %7097 = vxpose.xlu0.b32.cont [6/16] 0.0, 128
        %7098 = vxpose.xlu0.b32.cont [7/16] 0.0, 128
        %7099 = vxpose.xlu0.b32.cont [8/16] 0.0, 128
        %7100 = vxpose.xlu0.b32.cont [9/16] 0.0, 128
        %7101 = vxpose.xlu0.b32.cont [10/16] 0.0, 128
        %7102 = vxpose.xlu0.b32.cont [11/16] 0.0, 128
        %7103 = vxpose.xlu0.b32.cont [12/16] 0.0, 128
        %7104 = vxpose.xlu0.b32.cont [13/16] 0.0, 128
        %7105 = vxpose.xlu0.b32.cont [14/16] 0.0, 128
        %7106 = vxpose.xlu0.b32.cont [15/16] 0.0, 128
        %7107 = vxpose.xlu0.b32.end [16/16] 0.0, 128
        %v7108 = vpop.trf.xlu0
        %v7109 = vpop.trf.xlu0
        %v7110 = vpop.trf.xlu0
        %v7111 = vpop.trf.xlu0
        %v7112 = vpop.trf.xlu0
        %v7113 = vpop.trf.xlu0
        %v7114 = vpop.trf.xlu0
        %v7115 = vpop.trf.xlu0
        %v7116 = vpop.trf.xlu0
        %v7117 = vpop.trf.xlu0
        %v7118 = vpop.trf.xlu0
        %v7119 = vpop.trf.xlu0
        %v7120 = vpop.trf.xlu0
        %v7121 = vpop.trf.xlu0
        %v7122 = vpop.trf.xlu0
        %v7123 = vpop.trf.xlu0
        %v7124 = vld [vmem:[%s57] sm:$0xff]
        %v7126 = vsel %vm1088, %v7108, 0
        %v7129 = vsel %vm1088, %v7109, 0
        %v7132 = vsel %vm1088, %v7110, 0
        %v7135 = vsel %vm1088, %v7111, 0
        %7137 = vmatprep.subr.mxu0 0.0
        %7138 = vmatpush1.msra.mxu0 %v7124
        %7139 = vmatprep.subr.mxu0 0.0
        %7140 = vmatpush1.msra.mxu0 0.0
        %7141 = vmatprep.subr.mxu0 0.0
        %7142 = vmatpush1.msra.mxu0 0.0
        %7143 = vmatprep.subr.mxu0 0.0
        %7144 = vmatpush1.msra.mxu0 0.0
        %7145 = vmatprep.subr.mxu0 0.0
        %7146 = vmatpush1.msra.mxu0 0.0
        %7147 = vmatprep.subr.mxu0 0.0
        %7148 = vmatpush1.msra.mxu0 0.0
        %7149 = vmatprep.subr.mxu0 0.0
        %7150 = vmatpush1.msra.mxu0 0.0
        %7151 = vmatprep.subr.mxu0 0.0
        %7152 = vmatpush1.msra.mxu0 0.0
        %7153 = vmatprep.subr.mxu0 0.0
        %7154 = vmatpush1.msra.mxu0 0.0
        %7155 = vmatprep.subr.mxu0 0.0
        %7156 = vmatpush1.msra.mxu0 0.0
        %7157 = vmatprep.subr.mxu0 0.0
        %7158 = vmatpush1.msra.mxu0 0.0
        %7159 = vmatprep.subr.mxu0 0.0
        %7160 = vmatpush1.msra.mxu0 0.0
        %7161 = vmatprep.subr.mxu0 0.0
        %7162 = vmatpush1.msra.mxu0 0.0
        %7163 = vmatprep.subr.mxu0 0.0
        %7164 = vmatpush1.msra.mxu0 0.0
        %7165 = vmatprep.subr.mxu0 0.0
        %7166 = vmatpush1.msra.mxu0 0.0
        %7167 = vmatprep.subr.mxu0 0.0
        %7168 = vmatpush1.msra.mxu0 0.0
        %7169 = vmatprep.subr.mxu0 0.0
        %7170 = vmatpush1.msra.mxu0 0.0
        %7171 = vmatprep.subr.mxu0 0.0
        %7172 = vmatpush1.msra.mxu0 0.0
        %7173 = vmatprep.subr.mxu0 0.0
        %7174 = vmatpush1.msra.mxu0 0.0
        %7175 = vmatprep.subr.mxu0 0.0
        %7176 = vmatpush1.msra.mxu0 0.0
        %7177 = vmatprep.subr.mxu0 0.0
        %7178 = vmatpush1.msra.mxu0 0.0
        %7179 = vmatprep.subr.mxu0 0.0
        %7180 = vmatpush1.msra.mxu0 0.0
        %7181 = vmatprep.subr.mxu0 0.0
        %7182 = vmatpush1.msra.mxu0 0.0
        %7183 = vmatprep.subr.mxu0 0.0
        %7184 = vmatpush1.msra.mxu0 0.0
        %7185 = vmatprep.subr.mxu0 0.0
        %7186 = vmatpush1.msra.mxu0 0.0
        %7187 = vmatprep.subr.mxu0 0.0
        %7188 = vmatpush1.msra.mxu0 0.0
        %7189 = vmatprep.subr.mxu0 0.0
        %7190 = vmatpush1.msra.mxu0 0.0
        %7191 = vmatprep.subr.mxu0 0.0
        %7192 = vmatpush1.msra.mxu0 0.0
        %7193 = vmatprep.subr.mxu0 0.0
        %7194 = vmatpush1.msra.mxu0 0.0
        %7195 = vmatprep.subr.mxu0 0.0
        %7196 = vmatpush1.msra.mxu0 0.0
        %7197 = vmatprep.subr.mxu0 0.0
        %7198 = vmatpush1.msra.mxu0 0.0
        %7199 = vmatprep.subr.mxu0 0.0
        %7200 = vmatpush1.msra.mxu0 0.0
        %7201 = vmatprep.mubr.f32.mxu0 0.0
        %7202 = vmatmul.mubr.f32.gmra.mrb[0].mxu0 %v7126
        %v7203 = vpop.f32.mrb[0].mxu0
        %v7204 = vadd.f32 0.0, %v7203
        %v7205 = vpop.f32.mrb[0].mxu0
        %7206 = vmatprep.mubr.f32.mxu0 0.0
        %7207 = vmatmul.mubr.f32.gmra.mrb[0].mxu0 %v7129
        %v7208 = vpop.f32.mrb[0].mxu0
        %v7209 = vadd.f32 0.0, %v7208
        %v7210 = vpop.f32.mrb[0].mxu0
        %7211 = vmatprep.mubr.f32.mxu0 0.0
        %7212 = vmatmul.mubr.f32.gmra.mrb[0].mxu0 %v7132
        %v7213 = vpop.f32.mrb[0].mxu0
        %v7214 = vadd.f32 0.0, %v7213
        %v7215 = vpop.f32.mrb[0].mxu0
        %7216 = vmatprep.mubr.f32.mxu0 0.0
        %7217 = vmatmul.mubr.f32.gmra.mrb[0].mxu0 %v7135
        %v7218 = vpop.f32.mrb[0].mxu0
        %v7219 = vadd.f32 0.0, %v7218
        %v7220 = vpop.f32.mrb[0].mxu0
        %7221 = vdwg.mxu0
        %v7222 = vld [vmem:[%s59] sm:$0xff]
        %v7223 = vld [vmem:[%s59 + $0x8] sm:$0xff]
        %v7224 = vld [vmem:[%s59 + $0x10] sm:$0xff]
        %v7225 = vld [vmem:[%s59 + $0x18] sm:$0xff]
        %v7227 = vsel %vm1179, %v7091, 0
        %7229 = vmatprep.subr.mxu0 0.0
        %7230 = vmatpush1.msra.mxu0 %v7222
        %7231 = vmatprep.subr.mxu0 0.0
        %7232 = vmatpush1.msra.mxu0 %v7223
        %7233 = vmatprep.subr.mxu0 0.0
        %7234 = vmatpush1.msra.mxu0 %v7224
        %7235 = vmatprep.subr.mxu0 0.0
        %7236 = vmatpush1.msra.mxu0 %v7225
        %7237 = vmatprep.subr.mxu0 0.0
        %7238 = vmatpush1.msra.mxu0 0.0
        %7239 = vmatprep.subr.mxu0 0.0
        %7240 = vmatpush1.msra.mxu0 0.0
        %7241 = vmatprep.subr.mxu0 0.0
        %7242 = vmatpush1.msra.mxu0 0.0
        %7243 = vmatprep.subr.mxu0 0.0
        %7244 = vmatpush1.msra.mxu0 0.0
        %7245 = vmatprep.subr.mxu0 0.0
        %7246 = vmatpush1.msra.mxu0 0.0
        %7247 = vmatprep.subr.mxu0 0.0
        %7248 = vmatpush1.msra.mxu0 0.0
        %7249 = vmatprep.subr.mxu0 0.0
        %7250 = vmatpush1.msra.mxu0 0.0
        %7251 = vmatprep.subr.mxu0 0.0
        %7252 = vmatpush1.msra.mxu0 0.0
        %7253 = vmatprep.subr.mxu0 0.0
        %7254 = vmatpush1.msra.mxu0 0.0
        %7255 = vmatprep.subr.mxu0 0.0
        %7256 = vmatpush1.msra.mxu0 0.0
        %7257 = vmatprep.subr.mxu0 0.0
        %7258 = vmatpush1.msra.mxu0 0.0
        %7259 = vmatprep.subr.mxu0 0.0
        %7260 = vmatpush1.msra.mxu0 0.0
        %7261 = vmatprep.subr.mxu0 0.0
        %7262 = vmatpush1.msra.mxu0 0.0
        %7263 = vmatprep.subr.mxu0 0.0
        %7264 = vmatpush1.msra.mxu0 0.0
        %7265 = vmatprep.subr.mxu0 0.0
        %7266 = vmatpush1.msra.mxu0 0.0
        %7267 = vmatprep.subr.mxu0 0.0
        %7268 = vmatpush1.msra.mxu0 0.0
        %7269 = vmatprep.subr.mxu0 0.0
        %7270 = vmatpush1.msra.mxu0 0.0
        %7271 = vmatprep.subr.mxu0 0.0
        %7272 = vmatpush1.msra.mxu0 0.0
        %7273 = vmatprep.subr.mxu0 0.0
        %7274 = vmatpush1.msra.mxu0 0.0
        %7275 = vmatprep.subr.mxu0 0.0
        %7276 = vmatpush1.msra.mxu0 0.0
        %7277 = vmatprep.subr.mxu0 0.0
        %7278 = vmatpush1.msra.mxu0 0.0
        %7279 = vmatprep.subr.mxu0 0.0
        %7280 = vmatpush1.msra.mxu0 0.0
        %7281 = vmatprep.subr.mxu0 0.0
        %7282 = vmatpush1.msra.mxu0 0.0
        %7283 = vmatprep.subr.mxu0 0.0
        %7284 = vmatpush1.msra.mxu0 0.0
        %7285 = vmatprep.subr.mxu0 0.0
        %7286 = vmatpush1.msra.mxu0 0.0
        %7287 = vmatprep.subr.mxu0 0.0
        %7288 = vmatpush1.msra.mxu0 0.0
        %7289 = vmatprep.subr.mxu0 0.0
        %7290 = vmatpush1.msra.mxu0 0.0
        %7291 = vmatprep.subr.mxu0 0.0
        %7292 = vmatpush1.msra.mxu0 0.0
        %7293 = vmatprep.mubr.f32.mxu0 0.0
        %7294 = vmatmul.mubr.f32.gmra.mrb[0].mxu0 %v7227
        %v7295 = vpop.f32.mrb[0].mxu0
        %v7296 = vadd.f32 0.0, %v7295
        %v7297 = vpop.f32.mrb[0].mxu0
        %7298 = vdwg.mxu0
        %7299 = vmatprep.subr.mxu0 0.0
        %7300 = vmatpush1.msra.mxu0 %v7204
        %7301 = vmatprep.subr.mxu0 0.0
        %7302 = vmatpush1.msra.mxu0 %v7209
        %7303 = vmatprep.subr.mxu0 0.0
        %7304 = vmatpush1.msra.mxu0 %v7214
        %7305 = vmatprep.subr.mxu0 0.0
        %7306 = vmatpush1.msra.mxu0 %v7219
        %7307 = vmatprep.subr.mxu0 0.0
        %7308 = vmatpush1.msra.mxu0 0.0
        %7309 = vmatprep.subr.mxu0 0.0
        %7310 = vmatpush1.msra.mxu0 0.0
        %7311 = vmatprep.subr.mxu0 0.0
        %7312 = vmatpush1.msra.mxu0 0.0
        %7313 = vmatprep.subr.mxu0 0.0
        %7314 = vmatpush1.msra.mxu0 0.0
        %7315 = vmatprep.subr.mxu0 0.0
        %7316 = vmatpush1.msra.mxu0 0.0
        %7317 = vmatprep.subr.mxu0 0.0
        %7318 = vmatpush1.msra.mxu0 0.0
        %7319 = vmatprep.subr.mxu0 0.0
        %7320 = vmatpush1.msra.mxu0 0.0
        %7321 = vmatprep.subr.mxu0 0.0
        %7322 = vmatpush1.msra.mxu0 0.0
        %7323 = vmatprep.subr.mxu0 0.0
        %7324 = vmatpush1.msra.mxu0 0.0
        %7325 = vmatprep.subr.mxu0 0.0
        %7326 = vmatpush1.msra.mxu0 0.0
        %7327 = vmatprep.subr.mxu0 0.0
        %7328 = vmatpush1.msra.mxu0 0.0
        %7329 = vmatprep.subr.mxu0 0.0
        %7330 = vmatpush1.msra.mxu0 0.0
        %7331 = vmatprep.subr.mxu0 0.0
        %7332 = vmatpush1.msra.mxu0 0.0
        %7333 = vmatprep.subr.mxu0 0.0
        %7334 = vmatpush1.msra.mxu0 0.0
        %7335 = vmatprep.subr.mxu0 0.0
        %7336 = vmatpush1.msra.mxu0 0.0
        %7337 = vmatprep.subr.mxu0 0.0
        %7338 = vmatpush1.msra.mxu0 0.0
        %7339 = vmatprep.subr.mxu0 0.0
        %7340 = vmatpush1.msra.mxu0 0.0
        %7341 = vmatprep.subr.mxu0 0.0
        %7342 = vmatpush1.msra.mxu0 0.0
        %7343 = vmatprep.subr.mxu0 0.0
        %7344 = vmatpush1.msra.mxu0 0.0
        %7345 = vmatprep.subr.mxu0 0.0
        %7346 = vmatpush1.msra.mxu0 0.0
        %7347 = vmatprep.subr.mxu0 0.0
        %7348 = vmatpush1.msra.mxu0 0.0
        %7349 = vmatprep.subr.mxu0 0.0
        %7350 = vmatpush1.msra.mxu0 0.0
        %7351 = vmatprep.subr.mxu0 0.0
        %7352 = vmatpush1.msra.mxu0 0.0
        %7353 = vmatprep.subr.mxu0 0.0
        %7354 = vmatpush1.msra.mxu0 0.0
        %7355 = vmatprep.subr.mxu0 0.0
        %7356 = vmatpush1.msra.mxu0 0.0
        %7357 = vmatprep.subr.mxu0 0.0
        %7358 = vmatpush1.msra.mxu0 0.0
        %7359 = vmatprep.subr.mxu0 0.0
        %7360 = vmatpush1.msra.mxu0 0.0
        %7361 = vmatprep.subr.mxu0 0.0
        %7362 = vmatpush1.msra.mxu0 0.0
        %7363 = vmatprep.mubr.f32.mxu0 0.0
        %7364 = vmatmul.mubr.f32.gmra.mrb[0].mxu0 %v2730
        %v7365 = vpop.f32.mrb[0].mxu0
        %v7366 = vadd.f32 %v7296, %v7365
        %v7367 = vpop.f32.mrb[0].mxu0
        %7368 = vdwg.mxu0
        %v7369 = vld [vmem:[%s61] sm:$0x1]
        %v7371 = vlaneseq
        %v7372 = vshrl.u32 %v7371, 7
        %v7373 = vsub.s32 0, %v7372
        %v7374 = vrot.slane %v7369, %v7373
        %v7376 = vadd.f32 %v7366, %v7374
        %v7377 = vld [vmem:[%s7] sm:$0xff]
        %v7379 = vsel %vm1088, %v7377, 0
        %7381 = vmatprep.subr.mxu0 0.0
        %7382 = vmatpush1.msra.mxu0 %v7376
        %7383 = vmatprep.subr.mxu0 0.0
        %7384 = vmatpush1.msra.mxu0 0.0
        %7385 = vmatprep.subr.mxu0 0.0
        %7386 = vmatpush1.msra.mxu0 0.0
        %7387 = vmatprep.subr.mxu0 0.0
        %7388 = vmatpush1.msra.mxu0 0.0
        %7389 = vmatprep.subr.mxu0 0.0
        %7390 = vmatpush1.msra.mxu0 0.0
        %7391 = vmatprep.subr.mxu0 0.0
        %7392 = vmatpush1.msra.mxu0 0.0
        %7393 = vmatprep.subr.mxu0 0.0
        %7394 = vmatpush1.msra.mxu0 0.0
        %7395 = vmatprep.subr.mxu0 0.0
        %7396 = vmatpush1.msra.mxu0 0.0
        %7397 = vmatprep.subr.mxu0 0.0
        %7398 = vmatpush1.msra.mxu0 0.0
        %7399 = vmatprep.subr.mxu0 0.0
        %7400 = vmatpush1.msra.mxu0 0.0
        %7401 = vmatprep.subr.mxu0 0.0
        %7402 = vmatpush1.msra.mxu0 0.0
        %7403 = vmatprep.subr.mxu0 0.0
        %7404 = vmatpush1.msra.mxu0 0.0
        %7405 = vmatprep.subr.mxu0 0.0
        %7406 = vmatpush1.msra.mxu0 0.0
        %7407 = vmatprep.subr.mxu0 0.0
        %7408 = vmatpush1.msra.mxu0 0.0
        %7409 = vmatprep.subr.mxu0 0.0
        %7410 = vmatpush1.msra.mxu0 0.0
        %7411 = vmatprep.subr.mxu0 0.0
        %7412 = vmatpush1.msra.mxu0 0.0
        %7413 = vmatprep.subr.mxu0 0.0
        %7414 = vmatpush1.msra.mxu0 0.0
        %7415 = vmatprep.subr.mxu0 0.0
        %7416 = vmatpush1.msra.mxu0 0.0
        %7417 = vmatprep.subr.mxu0 0.0
        %7418 = vmatpush1.msra.mxu0 0.0
        %7419 = vmatprep.subr.mxu0 0.0
        %7420 = vmatpush1.msra.mxu0 0.0
        %7421 = vmatprep.subr.mxu0 0.0
        %7422 = vmatpush1.msra.mxu0 0.0
        %7423 = vmatprep.subr.mxu0 0.0
        %7424 = vmatpush1.msra.mxu0 0.0
        %7425 = vmatprep.subr.mxu0 0.0
        %7426 = vmatpush1.msra.mxu0 0.0
        %7427 = vmatprep.subr.mxu0 0.0
        %7428 = vmatpush1.msra.mxu0 0.0
        %7429 = vmatprep.subr.mxu0 0.0
        %7430 = vmatpush1.msra.mxu0 0.0
        %7431 = vmatprep.subr.mxu0 0.0
        %7432 = vmatpush1.msra.mxu0 0.0
        %7433 = vmatprep.subr.mxu0 0.0
        %7434 = vmatpush1.msra.mxu0 0.0
        %7435 = vmatprep.subr.mxu0 0.0
        %7436 = vmatpush1.msra.mxu0 0.0
        %7437 = vmatprep.subr.mxu0 0.0
        %7438 = vmatpush1.msra.mxu0 0.0
        %7439 = vmatprep.subr.mxu0 0.0
        %7440 = vmatpush1.msra.mxu0 0.0
        %7441 = vmatprep.subr.mxu0 0.0
        %7442 = vmatpush1.msra.mxu0 0.0
        %7443 = vmatprep.subr.mxu0 0.0
        %7444 = vmatpush1.msra.mxu0 0.0
        %7445 = vmatprep.mubr.f32.mxu0 0.0
        %7446 = vmatmul.mubr.f32.gmra.mrb[0].mxu0 %v7379
        %v7447 = vpop.f32.mrb[0].mxu0
        %v7448 = vadd.f32 0.0, %v7447
        %v7449 = vpop.f32.mrb[0].mxu0
        %7450 = vdwg.mxu0
        %7452 = vrot.lane.b32.xlu0 %v7448, 32
        %v7453 = vpop.permute.xlu0 %7452
        %v7455 = vsel %vm1179, %v7376, %v7453
        %v7456 = vld [vmem:[%s53] sm:$0xff]
        %v7457 = vld [vmem:[%s53 + $0x8] sm:$0xff]
        %v7458 = vld [vmem:[%s53 + $0x10] sm:$0xff]
        %v7459 = vld [vmem:[%s53 + $0x18] sm:$0xff]
        %v7460 = vld [vmem:[%s53 + $0x20] sm:$0xff]
        %v7461 = vld [vmem:[%s53 + $0x28] sm:$0xff]
        %v7462 = vld [vmem:[%s53 + $0x30] sm:$0xff]
        %v7463 = vld [vmem:[%s53 + $0x38] sm:$0xff]
        %v7464 = vld [vmem:[%s55] sm:$0x1]
        %v7466 = vlaneseq
        %v7467 = vshrl.u32 %v7466, 7
        %v7468 = vsub.s32 0, %v7467
        %v7469 = vrot.slane %v7464, %v7468
        %v7472 = vsel %vm1348, %v7455, 0
        %7474 = vmatprep.subr.mxu0 0.0
        %7475 = vmatpush1.msra.mxu0 %v7456
        %7476 = vmatprep.subr.mxu0 0.0
        %7477 = vmatpush1.msra.mxu0 %v7457
        %7478 = vmatprep.subr.mxu0 0.0
        %7479 = vmatpush1.msra.mxu0 %v7458
        %7480 = vmatprep.subr.mxu0 0.0
        %7481 = vmatpush1.msra.mxu0 %v7459
        %7482 = vmatprep.subr.mxu0 0.0
        %7483 = vmatpush1.msra.mxu0 %v7460
        %7484 = vmatprep.subr.mxu0 0.0
        %7485 = vmatpush1.msra.mxu0 %v7461
        %7486 = vmatprep.subr.mxu0 0.0
        %7487 = vmatpush1.msra.mxu0 %v7462
        %7488 = vmatprep.subr.mxu0 0.0
        %7489 = vmatpush1.msra.mxu0 %v7463
        %7490 = vmatprep.subr.mxu0 0.0
        %7491 = vmatpush1.msra.mxu0 0.0
        %7492 = vmatprep.subr.mxu0 0.0
        %7493 = vmatpush1.msra.mxu0 0.0
        %7494 = vmatprep.subr.mxu0 0.0
        %7495 = vmatpush1.msra.mxu0 0.0
        %7496 = vmatprep.subr.mxu0 0.0
        %7497 = vmatpush1.msra.mxu0 0.0
        %7498 = vmatprep.subr.mxu0 0.0
        %7499 = vmatpush1.msra.mxu0 0.0
        %7500 = vmatprep.subr.mxu0 0.0
        %7501 = vmatpush1.msra.mxu0 0.0
        %7502 = vmatprep.subr.mxu0 0.0
        %7503 = vmatpush1.msra.mxu0 0.0
        %7504 = vmatprep.subr.mxu0 0.0
        %7505 = vmatpush1.msra.mxu0 0.0
        %7506 = vmatprep.subr.mxu0 0.0
        %7507 = vmatpush1.msra.mxu0 0.0
        %7508 = vmatprep.subr.mxu0 0.0
        %7509 = vmatpush1.msra.mxu0 0.0
        %7510 = vmatprep.subr.mxu0 0.0
        %7511 = vmatpush1.msra.mxu0 0.0
        %7512 = vmatprep.subr.mxu0 0.0
        %7513 = vmatpush1.msra.mxu0 0.0
        %7514 = vmatprep.subr.mxu0 0.0
        %7515 = vmatpush1.msra.mxu0 0.0
        %7516 = vmatprep.subr.mxu0 0.0
        %7517 = vmatpush1.msra.mxu0 0.0
        %7518 = vmatprep.subr.mxu0 0.0
        %7519 = vmatpush1.msra.mxu0 0.0
        %7520 = vmatprep.subr.mxu0 0.0
        %7521 = vmatpush1.msra.mxu0 0.0
        %7522 = vmatprep.subr.mxu0 0.0
        %7523 = vmatpush1.msra.mxu0 0.0
        %7524 = vmatprep.subr.mxu0 0.0
        %7525 = vmatpush1.msra.mxu0 0.0
        %7526 = vmatprep.subr.mxu0 0.0
        %7527 = vmatpush1.msra.mxu0 0.0
        %7528 = vmatprep.subr.mxu0 0.0
        %7529 = vmatpush1.msra.mxu0 0.0
        %7530 = vmatprep.subr.mxu0 0.0
        %7531 = vmatpush1.msra.mxu0 0.0
        %7532 = vmatprep.subr.mxu0 0.0
        %7533 = vmatpush1.msra.mxu0 0.0
        %7534 = vmatprep.subr.mxu0 0.0
        %7535 = vmatpush1.msra.mxu0 0.0
        %7536 = vmatprep.subr.mxu0 0.0
        %7537 = vmatpush1.msra.mxu0 0.0
        %7538 = vmatprep.mubr.f32.mxu0 0.0
        %7539 = vmatmul.mubr.f32.gmra.mrb[0].mxu0 %v7472
        %v7540 = vpop.f32.mrb[0].mxu0
        %v7541 = vadd.f32 %v7469, %v7540
        %v7542 = vpop.f32.mrb[0].mxu0
        %7543 = vdwg.mxu0
        %s7544 = scalar_lea.vmem %s7, 8
        %v7545 = vld [vmem:[%s7544] sm:$0xff]
        %v7547 = vsel %vm1088, %v7545, 0
        %7549 = vmatprep.subr.mxu0 0.0
        %7550 = vmatpush1.msra.mxu0 %v7541
        %7551 = vmatprep.subr.mxu0 0.0
        %7552 = vmatpush1.msra.mxu0 0.0
        %7553 = vmatprep.subr.mxu0 0.0
        %7554 = vmatpush1.msra.mxu0 0.0
        %7555 = vmatprep.subr.mxu0 0.0
        %7556 = vmatpush1.msra.mxu0 0.0
        %7557 = vmatprep.subr.mxu0 0.0
        %7558 = vmatpush1.msra.mxu0 0.0
        %7559 = vmatprep.subr.mxu0 0.0
        %7560 = vmatpush1.msra.mxu0 0.0
        %7561 = vmatprep.subr.mxu0 0.0
        %7562 = vmatpush1.msra.mxu0 0.0
        %7563 = vmatprep.subr.mxu0 0.0
        %7564 = vmatpush1.msra.mxu0 0.0
        %7565 = vmatprep.subr.mxu0 0.0
        %7566 = vmatpush1.msra.mxu0 0.0
        %7567 = vmatprep.subr.mxu0 0.0
        %7568 = vmatpush1.msra.mxu0 0.0
        %7569 = vmatprep.subr.mxu0 0.0
        %7570 = vmatpush1.msra.mxu0 0.0
        %7571 = vmatprep.subr.mxu0 0.0
        %7572 = vmatpush1.msra.mxu0 0.0
        %7573 = vmatprep.subr.mxu0 0.0
        %7574 = vmatpush1.msra.mxu0 0.0
        %7575 = vmatprep.subr.mxu0 0.0
        %7576 = vmatpush1.msra.mxu0 0.0
        %7577 = vmatprep.subr.mxu0 0.0
        %7578 = vmatpush1.msra.mxu0 0.0
        %7579 = vmatprep.subr.mxu0 0.0
        %7580 = vmatpush1.msra.mxu0 0.0
        %7581 = vmatprep.subr.mxu0 0.0
        %7582 = vmatpush1.msra.mxu0 0.0
        %7583 = vmatprep.subr.mxu0 0.0
        %7584 = vmatpush1.msra.mxu0 0.0
        %7585 = vmatprep.subr.mxu0 0.0
        %7586 = vmatpush1.msra.mxu0 0.0
        %7587 = vmatprep.subr.mxu0 0.0
        %7588 = vmatpush1.msra.mxu0 0.0
        %7589 = vmatprep.subr.mxu0 0.0
        %7590 = vmatpush1.msra.mxu0 0.0
        %7591 = vmatprep.subr.mxu0 0.0
        %7592 = vmatpush1.msra.mxu0 0.0
        %7593 = vmatprep.subr.mxu0 0.0
        %7594 = vmatpush1.msra.mxu0 0.0
        %7595 = vmatprep.subr.mxu0 0.0
        %7596 = vmatpush1.msra.mxu0 0.0
        %7597 = vmatprep.subr.mxu0 0.0
        %7598 = vmatpush1.msra.mxu0 0.0
        %7599 = vmatprep.subr.mxu0 0.0
        %7600 = vmatpush1.msra.mxu0 0.0
        %7601 = vmatprep.subr.mxu0 0.0
        %7602 = vmatpush1.msra.mxu0 0.0
        %7603 = vmatprep.subr.mxu0 0.0
        %7604 = vmatpush1.msra.mxu0 0.0
        %7605 = vmatprep.subr.mxu0 0.0
        %7606 = vmatpush1.msra.mxu0 0.0
        %7607 = vmatprep.subr.mxu0 0.0
        %7608 = vmatpush1.msra.mxu0 0.0
        %7609 = vmatprep.subr.mxu0 0.0
        %7610 = vmatpush1.msra.mxu0 0.0
        %7611 = vmatprep.subr.mxu0 0.0
        %7612 = vmatpush1.msra.mxu0 0.0
        %7613 = vmatprep.mubr.f32.mxu0 0.0
        %7614 = vmatmul.mubr.f32.gmra.mrb[0].mxu0 %v7547
        %v7615 = vpop.f32.mrb[0].mxu0
        %v7616 = vadd.f32 0.0, %v7615
        %v7617 = vpop.f32.mrb[0].mxu0
        %7618 = vdwg.mxu0
        %7620 = vrot.lane.b32.xlu0 %v7616, 32
        %v7621 = vpop.permute.xlu0 %7620
        %v7623 = vsel %vm1179, %v7541, %v7621
        %s7624 = scalar_lea.vmem %s53, 64
        %v7625 = vld [vmem:[%s7624] sm:$0xff]
        %v7626 = vld [vmem:[%s7624 + $0x8] sm:$0xff]
        %v7627 = vld [vmem:[%s7624 + $0x10] sm:$0xff]
        %v7628 = vld [vmem:[%s7624 + $0x18] sm:$0xff]
        %v7629 = vld [vmem:[%s7624 + $0x20] sm:$0xff]
        %v7630 = vld [vmem:[%s7624 + $0x28] sm:$0xff]
        %v7631 = vld [vmem:[%s7624 + $0x30] sm:$0xff]
        %v7632 = vld [vmem:[%s7624 + $0x38] sm:$0xff]
        %s7633 = scalar_lea.vmem %s55, 1
        %v7634 = vld [vmem:[%s7633] sm:$0x1]
        %v7636 = vlaneseq
        %v7637 = vshrl.u32 %v7636, 7
        %v7638 = vsub.s32 0, %v7637
        %v7639 = vrot.slane %v7634, %v7638
        %v7642 = vsel %vm1348, %v7623, 0
        %7644 = vmatprep.subr.mxu0 0.0
        %7645 = vmatpush1.msra.mxu0 %v7625
        %7646 = vmatprep.subr.mxu0 0.0
        %7647 = vmatpush1.msra.mxu0 %v7626
        %7648 = vmatprep.subr.mxu0 0.0
        %7649 = vmatpush1.msra.mxu0 %v7627
        %7650 = vmatprep.subr.mxu0 0.0
        %7651 = vmatpush1.msra.mxu0 %v7628
        %7652 = vmatprep.subr.mxu0 0.0
        %7653 = vmatpush1.msra.mxu0 %v7629
        %7654 = vmatprep.subr.mxu0 0.0
        %7655 = vmatpush1.msra.mxu0 %v7630
        %7656 = vmatprep.subr.mxu0 0.0
        %7657 = vmatpush1.msra.mxu0 %v7631
        %7658 = vmatprep.subr.mxu0 0.0
        %7659 = vmatpush1.msra.mxu0 %v7632
        %7660 = vmatprep.subr.mxu0 0.0
        %7661 = vmatpush1.msra.mxu0 0.0
        %7662 = vmatprep.subr.mxu0 0.0
        %7663 = vmatpush1.msra.mxu0 0.0
        %7664 = vmatprep.subr.mxu0 0.0
        %7665 = vmatpush1.msra.mxu0 0.0
        %7666 = vmatprep.subr.mxu0 0.0
        %7667 = vmatpush1.msra.mxu0 0.0
        %7668 = vmatprep.subr.mxu0 0.0
        %7669 = vmatpush1.msra.mxu0 0.0
        %7670 = vmatprep.subr.mxu0 0.0
        %7671 = vmatpush1.msra.mxu0 0.0
        %7672 = vmatprep.subr.mxu0 0.0
        %7673 = vmatpush1.msra.mxu0 0.0
        %7674 = vmatprep.subr.mxu0 0.0
        %7675 = vmatpush1.msra.mxu0 0.0
        %7676 = vmatprep.subr.mxu0 0.0
        %7677 = vmatpush1.msra.mxu0 0.0
        %7678 = vmatprep.subr.mxu0 0.0
        %7679 = vmatpush1.msra.mxu0 0.0
        %7680 = vmatprep.subr.mxu0 0.0
        %7681 = vmatpush1.msra.mxu0 0.0
        %7682 = vmatprep.subr.mxu0 0.0
        %7683 = vmatpush1.msra.mxu0 0.0
        %7684 = vmatprep.subr.mxu0 0.0
        %7685 = vmatpush1.msra.mxu0 0.0
        %7686 = vmatprep.subr.mxu0 0.0
        %7687 = vmatpush1.msra.mxu0 0.0
        %7688 = vmatprep.subr.mxu0 0.0
        %7689 = vmatpush1.msra.mxu0 0.0
        %7690 = vmatprep.subr.mxu0 0.0
        %7691 = vmatpush1.msra.mxu0 0.0
        %7692 = vmatprep.subr.mxu0 0.0
        %7693 = vmatpush1.msra.mxu0 0.0
        %7694 = vmatprep.subr.mxu0 0.0
        %7695 = vmatpush1.msra.mxu0 0.0
        %7696 = vmatprep.subr.mxu0 0.0
        %7697 = vmatpush1.msra.mxu0 0.0
        %7698 = vmatprep.subr.mxu0 0.0
        %7699 = vmatpush1.msra.mxu0 0.0
        %7700 = vmatprep.subr.mxu0 0.0
        %7701 = vmatpush1.msra.mxu0 0.0
        %7702 = vmatprep.subr.mxu0 0.0
        %7703 = vmatpush1.msra.mxu0 0.0
        %7704 = vmatprep.subr.mxu0 0.0
        %7705 = vmatpush1.msra.mxu0 0.0
        %7706 = vmatprep.subr.mxu0 0.0
        %7707 = vmatpush1.msra.mxu0 0.0
        %7708 = vmatprep.mubr.f32.mxu0 0.0
        %7709 = vmatmul.mubr.f32.gmra.mrb[0].mxu0 %v7642
        %v7710 = vpop.f32.mrb[0].mxu0
        %v7711 = vadd.f32 %v7639, %v7710
        %v7712 = vpop.f32.mrb[0].mxu0
        %7713 = vdwg.mxu0
        %s7714 = scalar_lea.vmem %s7, 16
        %v7715 = vld [vmem:[%s7714] sm:$0xff]
        %v7717 = vsel %vm1088, %v7715, 0
        %7719 = vmatprep.subr.mxu0 0.0
        %7720 = vmatpush1.msra.mxu0 %v7711
        %7721 = vmatprep.subr.mxu0 0.0
        %7722 = vmatpush1.msra.mxu0 0.0
        %7723 = vmatprep.subr.mxu0 0.0
        %7724 = vmatpush1.msra.mxu0 0.0
        %7725 = vmatprep.subr.mxu0 0.0
        %7726 = vmatpush1.msra.mxu0 0.0
        %7727 = vmatprep.subr.mxu0 0.0
        %7728 = vmatpush1.msra.mxu0 0.0
        %7729 = vmatprep.subr.mxu0 0.0
        %7730 = vmatpush1.msra.mxu0 0.0
        %7731 = vmatprep.subr.mxu0 0.0
        %7732 = vmatpush1.msra.mxu0 0.0
        %7733 = vmatprep.subr.mxu0 0.0
        %7734 = vmatpush1.msra.mxu0 0.0
        %7735 = vmatprep.subr.mxu0 0.0
        %7736 = vmatpush1.msra.mxu0 0.0
        %7737 = vmatprep.subr.mxu0 0.0
        %7738 = vmatpush1.msra.mxu0 0.0
        %7739 = vmatprep.subr.mxu0 0.0
        %7740 = vmatpush1.msra.mxu0 0.0
        %7741 = vmatprep.subr.mxu0 0.0
        %7742 = vmatpush1.msra.mxu0 0.0
        %7743 = vmatprep.subr.mxu0 0.0
        %7744 = vmatpush1.msra.mxu0 0.0
        %7745 = vmatprep.subr.mxu0 0.0
        %7746 = vmatpush1.msra.mxu0 0.0
        %7747 = vmatprep.subr.mxu0 0.0
        %7748 = vmatpush1.msra.mxu0 0.0
        %7749 = vmatprep.subr.mxu0 0.0
        %7750 = vmatpush1.msra.mxu0 0.0
        %7751 = vmatprep.subr.mxu0 0.0
        %7752 = vmatpush1.msra.mxu0 0.0
        %7753 = vmatprep.subr.mxu0 0.0
        %7754 = vmatpush1.msra.mxu0 0.0
        %7755 = vmatprep.subr.mxu0 0.0
        %7756 = vmatpush1.msra.mxu0 0.0
        %7757 = vmatprep.subr.mxu0 0.0
        %7758 = vmatpush1.msra.mxu0 0.0
        %7759 = vmatprep.subr.mxu0 0.0
        %7760 = vmatpush1.msra.mxu0 0.0
        %7761 = vmatprep.subr.mxu0 0.0
        %7762 = vmatpush1.msra.mxu0 0.0
        %7763 = vmatprep.subr.mxu0 0.0
        %7764 = vmatpush1.msra.mxu0 0.0
        %7765 = vmatprep.subr.mxu0 0.0
        %7766 = vmatpush1.msra.mxu0 0.0
        %7767 = vmatprep.subr.mxu0 0.0
        %7768 = vmatpush1.msra.mxu0 0.0
        %7769 = vmatprep.subr.mxu0 0.0
        %7770 = vmatpush1.msra.mxu0 0.0
        %7771 = vmatprep.subr.mxu0 0.0
        %7772 = vmatpush1.msra.mxu0 0.0
        %7773 = vmatprep.subr.mxu0 0.0
        %7774 = vmatpush1.msra.mxu0 0.0
        %7775 = vmatprep.subr.mxu0 0.0
        %7776 = vmatpush1.msra.mxu0 0.0
        %7777 = vmatprep.subr.mxu0 0.0
        %7778 = vmatpush1.msra.mxu0 0.0
        %7779 = vmatprep.subr.mxu0 0.0
        %7780 = vmatpush1.msra.mxu0 0.0
        %7781 = vmatprep.subr.mxu0 0.0
        %7782 = vmatpush1.msra.mxu0 0.0
        %7783 = vmatprep.mubr.f32.mxu0 0.0
        %7784 = vmatmul.mubr.f32.gmra.mrb[0].mxu0 %v7717
        %v7785 = vpop.f32.mrb[0].mxu0
        %v7786 = vadd.f32 0.0, %v7785
        %v7787 = vpop.f32.mrb[0].mxu0
        %7788 = vdwg.mxu0
        %7790 = vrot.lane.b32.xlu0 %v7786, 32
        %v7791 = vpop.permute.xlu0 %7790
        %v7793 = vsel %vm1179, %v7711, %v7791
        %s7794 = scalar_lea.vmem %s53, 128
        %v7795 = vld [vmem:[%s7794] sm:$0xff]
        %v7796 = vld [vmem:[%s7794 + $0x8] sm:$0xff]
        %v7797 = vld [vmem:[%s7794 + $0x10] sm:$0xff]
        %v7798 = vld [vmem:[%s7794 + $0x18] sm:$0xff]
        %v7799 = vld [vmem:[%s7794 + $0x20] sm:$0xff]
        %v7800 = vld [vmem:[%s7794 + $0x28] sm:$0xff]
        %v7801 = vld [vmem:[%s7794 + $0x30] sm:$0xff]
        %v7802 = vld [vmem:[%s7794 + $0x38] sm:$0xff]
        %s7803 = scalar_lea.vmem %s55, 2
        %v7804 = vld [vmem:[%s7803] sm:$0x1]
        %v7806 = vlaneseq
        %v7807 = vshrl.u32 %v7806, 7
        %v7808 = vsub.s32 0, %v7807
        %v7809 = vrot.slane %v7804, %v7808
        %v7812 = vsel %vm1348, %v7793, 0
        %7814 = vmatprep.subr.mxu0 0.0
        %7815 = vmatpush1.msra.mxu0 %v7795
        %7816 = vmatprep.subr.mxu0 0.0
        %7817 = vmatpush1.msra.mxu0 %v7796
        %7818 = vmatprep.subr.mxu0 0.0
        %7819 = vmatpush1.msra.mxu0 %v7797
        %7820 = vmatprep.subr.mxu0 0.0
        %7821 = vmatpush1.msra.mxu0 %v7798
        %7822 = vmatprep.subr.mxu0 0.0
        %7823 = vmatpush1.msra.mxu0 %v7799
        %7824 = vmatprep.subr.mxu0 0.0
        %7825 = vmatpush1.msra.mxu0 %v7800
        %7826 = vmatprep.subr.mxu0 0.0
        %7827 = vmatpush1.msra.mxu0 %v7801
        %7828 = vmatprep.subr.mxu0 0.0
        %7829 = vmatpush1.msra.mxu0 %v7802
        %7830 = vmatprep.subr.mxu0 0.0
        %7831 = vmatpush1.msra.mxu0 0.0
        %7832 = vmatprep.subr.mxu0 0.0
        %7833 = vmatpush1.msra.mxu0 0.0
        %7834 = vmatprep.subr.mxu0 0.0
        %7835 = vmatpush1.msra.mxu0 0.0
        %7836 = vmatprep.subr.mxu0 0.0
        %7837 = vmatpush1.msra.mxu0 0.0
        %7838 = vmatprep.subr.mxu0 0.0
        %7839 = vmatpush1.msra.mxu0 0.0
        %7840 = vmatprep.subr.mxu0 0.0
        %7841 = vmatpush1.msra.mxu0 0.0
        %7842 = vmatprep.subr.mxu0 0.0
        %7843 = vmatpush1.msra.mxu0 0.0
        %7844 = vmatprep.subr.mxu0 0.0
        %7845 = vmatpush1.msra.mxu0 0.0
        %7846 = vmatprep.subr.mxu0 0.0
        %7847 = vmatpush1.msra.mxu0 0.0
        %7848 = vmatprep.subr.mxu0 0.0
        %7849 = vmatpush1.msra.mxu0 0.0
        %7850 = vmatprep.subr.mxu0 0.0
        %7851 = vmatpush1.msra.mxu0 0.0
        %7852 = vmatprep.subr.mxu0 0.0
        %7853 = vmatpush1.msra.mxu0 0.0
        %7854 = vmatprep.subr.mxu0 0.0
        %7855 = vmatpush1.msra.mxu0 0.0
        %7856 = vmatprep.subr.mxu0 0.0
        %7857 = vmatpush1.msra.mxu0 0.0
        %7858 = vmatprep.subr.mxu0 0.0
        %7859 = vmatpush1.msra.mxu0 0.0
        %7860 = vmatprep.subr.mxu0 0.0
        %7861 = vmatpush1.msra.mxu0 0.0
        %7862 = vmatprep.subr.mxu0 0.0
        %7863 = vmatpush1.msra.mxu0 0.0
        %7864 = vmatprep.subr.mxu0 0.0
        %7865 = vmatpush1.msra.mxu0 0.0
        %7866 = vmatprep.subr.mxu0 0.0
        %7867 = vmatpush1.msra.mxu0 0.0
        %7868 = vmatprep.subr.mxu0 0.0
        %7869 = vmatpush1.msra.mxu0 0.0
        %7870 = vmatprep.subr.mxu0 0.0
        %7871 = vmatpush1.msra.mxu0 0.0
        %7872 = vmatprep.subr.mxu0 0.0
        %7873 = vmatpush1.msra.mxu0 0.0
        %7874 = vmatprep.subr.mxu0 0.0
        %7875 = vmatpush1.msra.mxu0 0.0
        %7876 = vmatprep.subr.mxu0 0.0
        %7877 = vmatpush1.msra.mxu0 0.0
        %7878 = vmatprep.mubr.f32.mxu0 0.0
        %7879 = vmatmul.mubr.f32.gmra.mrb[0].mxu0 %v7812
        %v7880 = vpop.f32.mrb[0].mxu0
        %v7881 = vadd.f32 %v7809, %v7880
        %v7882 = vpop.f32.mrb[0].mxu0
        %7883 = vdwg.mxu0
        %s7884 = scalar_lea.vmem %s7, 24
        %v7885 = vld [vmem:[%s7884] sm:$0xff]
        %v7887 = vsel %vm1088, %v7885, 0
        %7889 = vmatprep.subr.mxu0 0.0
        %7890 = vmatpush1.msra.mxu0 %v7881
        %7891 = vmatprep.subr.mxu0 0.0
        %7892 = vmatpush1.msra.mxu0 0.0
        %7893 = vmatprep.subr.mxu0 0.0
        %7894 = vmatpush1.msra.mxu0 0.0
        %7895 = vmatprep.subr.mxu0 0.0
        %7896 = vmatpush1.msra.mxu0 0.0
        %7897 = vmatprep.subr.mxu0 0.0
        %7898 = vmatpush1.msra.mxu0 0.0
        %7899 = vmatprep.subr.mxu0 0.0
        %7900 = vmatpush1.msra.mxu0 0.0
        %7901 = vmatprep.subr.mxu0 0.0
        %7902 = vmatpush1.msra.mxu0 0.0
        %7903 = vmatprep.subr.mxu0 0.0
        %7904 = vmatpush1.msra.mxu0 0.0
        %7905 = vmatprep.subr.mxu0 0.0
        %7906 = vmatpush1.msra.mxu0 0.0
        %7907 = vmatprep.subr.mxu0 0.0
        %7908 = vmatpush1.msra.mxu0 0.0
        %7909 = vmatprep.subr.mxu0 0.0
        %7910 = vmatpush1.msra.mxu0 0.0
        %7911 = vmatprep.subr.mxu0 0.0
        %7912 = vmatpush1.msra.mxu0 0.0
        %7913 = vmatprep.subr.mxu0 0.0
        %7914 = vmatpush1.msra.mxu0 0.0
        %7915 = vmatprep.subr.mxu0 0.0
        %7916 = vmatpush1.msra.mxu0 0.0
        %7917 = vmatprep.subr.mxu0 0.0
        %7918 = vmatpush1.msra.mxu0 0.0
        %7919 = vmatprep.subr.mxu0 0.0
        %7920 = vmatpush1.msra.mxu0 0.0
        %7921 = vmatprep.subr.mxu0 0.0
        %7922 = vmatpush1.msra.mxu0 0.0
        %7923 = vmatprep.subr.mxu0 0.0
        %7924 = vmatpush1.msra.mxu0 0.0
        %7925 = vmatprep.subr.mxu0 0.0
        %7926 = vmatpush1.msra.mxu0 0.0
        %7927 = vmatprep.subr.mxu0 0.0
        %7928 = vmatpush1.msra.mxu0 0.0
        %7929 = vmatprep.subr.mxu0 0.0
        %7930 = vmatpush1.msra.mxu0 0.0
        %7931 = vmatprep.subr.mxu0 0.0
        %7932 = vmatpush1.msra.mxu0 0.0
        %7933 = vmatprep.subr.mxu0 0.0
        %7934 = vmatpush1.msra.mxu0 0.0
        %7935 = vmatprep.subr.mxu0 0.0
        %7936 = vmatpush1.msra.mxu0 0.0
        %7937 = vmatprep.subr.mxu0 0.0
        %7938 = vmatpush1.msra.mxu0 0.0
        %7939 = vmatprep.subr.mxu0 0.0
        %7940 = vmatpush1.msra.mxu0 0.0
        %7941 = vmatprep.subr.mxu0 0.0
        %7942 = vmatpush1.msra.mxu0 0.0
        %7943 = vmatprep.subr.mxu0 0.0
        %7944 = vmatpush1.msra.mxu0 0.0
        %7945 = vmatprep.subr.mxu0 0.0
        %7946 = vmatpush1.msra.mxu0 0.0
        %7947 = vmatprep.subr.mxu0 0.0
        %7948 = vmatpush1.msra.mxu0 0.0
        %7949 = vmatprep.subr.mxu0 0.0
        %7950 = vmatpush1.msra.mxu0 0.0
        %7951 = vmatprep.subr.mxu0 0.0
        %7952 = vmatpush1.msra.mxu0 0.0
        %7953 = vmatprep.mubr.f32.mxu0 0.0
        %7954 = vmatmul.mubr.f32.gmra.mrb[0].mxu0 %v7887
        %v7955 = vpop.f32.mrb[0].mxu0
        %v7956 = vadd.f32 0.0, %v7955
        %v7957 = vpop.f32.mrb[0].mxu0
        %7958 = vdwg.mxu0
        %7960 = vrot.lane.b32.xlu0 %v7956, 32
        %v7961 = vpop.permute.xlu0 %7960
        %v7963 = vsel %vm1179, %v7881, %v7961
        %s7964 = scalar_lea.vmem %s53, 192
        %v7965 = vld [vmem:[%s7964] sm:$0xff]
        %v7966 = vld [vmem:[%s7964 + $0x8] sm:$0xff]
        %v7967 = vld [vmem:[%s7964 + $0x10] sm:$0xff]
        %v7968 = vld [vmem:[%s7964 + $0x18] sm:$0xff]
        %v7969 = vld [vmem:[%s7964 + $0x20] sm:$0xff]
        %v7970 = vld [vmem:[%s7964 + $0x28] sm:$0xff]
        %v7971 = vld [vmem:[%s7964 + $0x30] sm:$0xff]
        %v7972 = vld [vmem:[%s7964 + $0x38] sm:$0xff]
        %s7973 = scalar_lea.vmem %s55, 3
        %v7974 = vld [vmem:[%s7973] sm:$0x1]
        %v7976 = vlaneseq
        %v7977 = vshrl.u32 %v7976, 7
        %v7978 = vsub.s32 0, %v7977
        %v7979 = vrot.slane %v7974, %v7978
        %v7982 = vsel %vm1348, %v7963, 0
        %7984 = vmatprep.subr.mxu0 0.0
        %7985 = vmatpush1.msra.mxu0 %v7965
        %7986 = vmatprep.subr.mxu0 0.0
        %7987 = vmatpush1.msra.mxu0 %v7966
        %7988 = vmatprep.subr.mxu0 0.0
        %7989 = vmatpush1.msra.mxu0 %v7967
        %7990 = vmatprep.subr.mxu0 0.0
        %7991 = vmatpush1.msra.mxu0 %v7968
        %7992 = vmatprep.subr.mxu0 0.0
        %7993 = vmatpush1.msra.mxu0 %v7969
        %7994 = vmatprep.subr.mxu0 0.0
        %7995 = vmatpush1.msra.mxu0 %v7970
        %7996 = vmatprep.subr.mxu0 0.0
        %7997 = vmatpush1.msra.mxu0 %v7971
        %7998 = vmatprep.subr.mxu0 0.0
        %7999 = vmatpush1.msra.mxu0 %v7972
        %8000 = vmatprep.subr.mxu0 0.0
        %8001 = vmatpush1.msra.mxu0 0.0
        %8002 = vmatprep.subr.mxu0 0.0
        %8003 = vmatpush1.msra.mxu0 0.0
        %8004 = vmatprep.subr.mxu0 0.0
        %8005 = vmatpush1.msra.mxu0 0.0
        %8006 = vmatprep.subr.mxu0 0.0
        %8007 = vmatpush1.msra.mxu0 0.0
        %8008 = vmatprep.subr.mxu0 0.0
        %8009 = vmatpush1.msra.mxu0 0.0
        %8010 = vmatprep.subr.mxu0 0.0
        %8011 = vmatpush1.msra.mxu0 0.0
        %8012 = vmatprep.subr.mxu0 0.0
        %8013 = vmatpush1.msra.mxu0 0.0
        %8014 = vmatprep.subr.mxu0 0.0
        %8015 = vmatpush1.msra.mxu0 0.0
        %8016 = vmatprep.subr.mxu0 0.0
        %8017 = vmatpush1.msra.mxu0 0.0
        %8018 = vmatprep.subr.mxu0 0.0
        %8019 = vmatpush1.msra.mxu0 0.0
        %8020 = vmatprep.subr.mxu0 0.0
        %8021 = vmatpush1.msra.mxu0 0.0
        %8022 = vmatprep.subr.mxu0 0.0
        %8023 = vmatpush1.msra.mxu0 0.0
        %8024 = vmatprep.subr.mxu0 0.0
        %8025 = vmatpush1.msra.mxu0 0.0
        %8026 = vmatprep.subr.mxu0 0.0
        %8027 = vmatpush1.msra.mxu0 0.0
        %8028 = vmatprep.subr.mxu0 0.0
        %8029 = vmatpush1.msra.mxu0 0.0
        %8030 = vmatprep.subr.mxu0 0.0
        %8031 = vmatpush1.msra.mxu0 0.0
        %8032 = vmatprep.subr.mxu0 0.0
        %8033 = vmatpush1.msra.mxu0 0.0
        %8034 = vmatprep.subr.mxu0 0.0
        %8035 = vmatpush1.msra.mxu0 0.0
        %8036 = vmatprep.subr.mxu0 0.0
        %8037 = vmatpush1.msra.mxu0 0.0
        %8038 = vmatprep.subr.mxu0 0.0
        %8039 = vmatpush1.msra.mxu0 0.0
        %8040 = vmatprep.subr.mxu0 0.0
        %8041 = vmatpush1.msra.mxu0 0.0
        %8042 = vmatprep.subr.mxu0 0.0
        %8043 = vmatpush1.msra.mxu0 0.0
        %8044 = vmatprep.subr.mxu0 0.0
        %8045 = vmatpush1.msra.mxu0 0.0
        %8046 = vmatprep.subr.mxu0 0.0
        %8047 = vmatpush1.msra.mxu0 0.0
        %8048 = vmatprep.mubr.f32.mxu0 0.0
        %8049 = vmatmul.mubr.f32.gmra.mrb[0].mxu0 %v7982
        %v8050 = vpop.f32.mrb[0].mxu0
        %v8051 = vadd.f32 %v7979, %v8050
        %v8052 = vpop.f32.mrb[0].mxu0
        %8053 = vdwg.mxu0
        %s8054 = scalar_lea.vmem %s7, 32
        %v8055 = vld [vmem:[%s8054] sm:$0xff]
        %v8057 = vsel %vm1088, %v8055, 0
        %8059 = vmatprep.subr.mxu0 0.0
        %8060 = vmatpush1.msra.mxu0 %v8051
        %8061 = vmatprep.subr.mxu0 0.0
        %8062 = vmatpush1.msra.mxu0 0.0
        %8063 = vmatprep.subr.mxu0 0.0
        %8064 = vmatpush1.msra.mxu0 0.0
        %8065 = vmatprep.subr.mxu0 0.0
        %8066 = vmatpush1.msra.mxu0 0.0
        %8067 = vmatprep.subr.mxu0 0.0
        %8068 = vmatpush1.msra.mxu0 0.0
        %8069 = vmatprep.subr.mxu0 0.0
        %8070 = vmatpush1.msra.mxu0 0.0
        %8071 = vmatprep.subr.mxu0 0.0
        %8072 = vmatpush1.msra.mxu0 0.0
        %8073 = vmatprep.subr.mxu0 0.0
        %8074 = vmatpush1.msra.mxu0 0.0
        %8075 = vmatprep.subr.mxu0 0.0
        %8076 = vmatpush1.msra.mxu0 0.0
        %8077 = vmatprep.subr.mxu0 0.0
        %8078 = vmatpush1.msra.mxu0 0.0
        %8079 = vmatprep.subr.mxu0 0.0
        %8080 = vmatpush1.msra.mxu0 0.0
        %8081 = vmatprep.subr.mxu0 0.0
        %8082 = vmatpush1.msra.mxu0 0.0
        %8083 = vmatprep.subr.mxu0 0.0
        %8084 = vmatpush1.msra.mxu0 0.0
        %8085 = vmatprep.subr.mxu0 0.0
        %8086 = vmatpush1.msra.mxu0 0.0
        %8087 = vmatprep.subr.mxu0 0.0
        %8088 = vmatpush1.msra.mxu0 0.0
        %8089 = vmatprep.subr.mxu0 0.0
        %8090 = vmatpush1.msra.mxu0 0.0
        %8091 = vmatprep.subr.mxu0 0.0
        %8092 = vmatpush1.msra.mxu0 0.0
        %8093 = vmatprep.subr.mxu0 0.0
        %8094 = vmatpush1.msra.mxu0 0.0
        %8095 = vmatprep.subr.mxu0 0.0
        %8096 = vmatpush1.msra.mxu0 0.0
        %8097 = vmatprep.subr.mxu0 0.0
        %8098 = vmatpush1.msra.mxu0 0.0
        %8099 = vmatprep.subr.mxu0 0.0
        %8100 = vmatpush1.msra.mxu0 0.0
        %8101 = vmatprep.subr.mxu0 0.0
        %8102 = vmatpush1.msra.mxu0 0.0
        %8103 = vmatprep.subr.mxu0 0.0
        %8104 = vmatpush1.msra.mxu0 0.0
        %8105 = vmatprep.subr.mxu0 0.0
        %8106 = vmatpush1.msra.mxu0 0.0
        %8107 = vmatprep.subr.mxu0 0.0
        %8108 = vmatpush1.msra.mxu0 0.0
        %8109 = vmatprep.subr.mxu0 0.0
        %8110 = vmatpush1.msra.mxu0 0.0
        %8111 = vmatprep.subr.mxu0 0.0
        %8112 = vmatpush1.msra.mxu0 0.0
        %8113 = vmatprep.subr.mxu0 0.0
        %8114 = vmatpush1.msra.mxu0 0.0
        %8115 = vmatprep.subr.mxu0 0.0
        %8116 = vmatpush1.msra.mxu0 0.0
        %8117 = vmatprep.subr.mxu0 0.0
        %8118 = vmatpush1.msra.mxu0 0.0
        %8119 = vmatprep.subr.mxu0 0.0
        %8120 = vmatpush1.msra.mxu0 0.0
        %8121 = vmatprep.subr.mxu0 0.0
        %8122 = vmatpush1.msra.mxu0 0.0
        %8123 = vmatprep.mubr.f32.mxu0 0.0
        %8124 = vmatmul.mubr.f32.gmra.mrb[0].mxu0 %v8057
        %v8125 = vpop.f32.mrb[0].mxu0
        %v8126 = vadd.f32 0.0, %v8125
        %v8127 = vpop.f32.mrb[0].mxu0
        %8128 = vdwg.mxu0
        %8130 = vrot.lane.b32.xlu0 %v8126, 32
        %v8131 = vpop.permute.xlu0 %8130
        %v8133 = vsel %vm1179, %v8051, %v8131
        %s8134 = scalar_lea.vmem %s53, 256
        %v8135 = vld [vmem:[%s8134] sm:$0xff]
        %v8136 = vld [vmem:[%s8134 + $0x8] sm:$0xff]
        %v8137 = vld [vmem:[%s8134 + $0x10] sm:$0xff]
        %v8138 = vld [vmem:[%s8134 + $0x18] sm:$0xff]
        %v8139 = vld [vmem:[%s8134 + $0x20] sm:$0xff]
        %v8140 = vld [vmem:[%s8134 + $0x28] sm:$0xff]
        %v8141 = vld [vmem:[%s8134 + $0x30] sm:$0xff]
        %v8142 = vld [vmem:[%s8134 + $0x38] sm:$0xff]
        %s8143 = scalar_lea.vmem %s55, 4
        %v8144 = vld [vmem:[%s8143] sm:$0x1]
        %v8146 = vlaneseq
        %v8147 = vshrl.u32 %v8146, 7
        %v8148 = vsub.s32 0, %v8147
        %v8149 = vrot.slane %v8144, %v8148
        %v8152 = vsel %vm1348, %v8133, 0
        %8154 = vmatprep.subr.mxu0 0.0
        %8155 = vmatpush1.msra.mxu0 %v8135
        %8156 = vmatprep.subr.mxu0 0.0
        %8157 = vmatpush1.msra.mxu0 %v8136
        %8158 = vmatprep.subr.mxu0 0.0
        %8159 = vmatpush1.msra.mxu0 %v8137
        %8160 = vmatprep.subr.mxu0 0.0
        %8161 = vmatpush1.msra.mxu0 %v8138
        %8162 = vmatprep.subr.mxu0 0.0
        %8163 = vmatpush1.msra.mxu0 %v8139
        %8164 = vmatprep.subr.mxu0 0.0
        %8165 = vmatpush1.msra.mxu0 %v8140
        %8166 = vmatprep.subr.mxu0 0.0
        %8167 = vmatpush1.msra.mxu0 %v8141
        %8168 = vmatprep.subr.mxu0 0.0
        %8169 = vmatpush1.msra.mxu0 %v8142
        %8170 = vmatprep.subr.mxu0 0.0
        %8171 = vmatpush1.msra.mxu0 0.0
        %8172 = vmatprep.subr.mxu0 0.0
        %8173 = vmatpush1.msra.mxu0 0.0
        %8174 = vmatprep.subr.mxu0 0.0
        %8175 = vmatpush1.msra.mxu0 0.0
        %8176 = vmatprep.subr.mxu0 0.0
        %8177 = vmatpush1.msra.mxu0 0.0
        %8178 = vmatprep.subr.mxu0 0.0
        %8179 = vmatpush1.msra.mxu0 0.0
        %8180 = vmatprep.subr.mxu0 0.0
        %8181 = vmatpush1.msra.mxu0 0.0
        %8182 = vmatprep.subr.mxu0 0.0
        %8183 = vmatpush1.msra.mxu0 0.0
        %8184 = vmatprep.subr.mxu0 0.0
        %8185 = vmatpush1.msra.mxu0 0.0
        %8186 = vmatprep.subr.mxu0 0.0
        %8187 = vmatpush1.msra.mxu0 0.0
        %8188 = vmatprep.subr.mxu0 0.0
        %8189 = vmatpush1.msra.mxu0 0.0
        %8190 = vmatprep.subr.mxu0 0.0
        %8191 = vmatpush1.msra.mxu0 0.0
        %8192 = vmatprep.subr.mxu0 0.0
        %8193 = vmatpush1.msra.mxu0 0.0
        %8194 = vmatprep.subr.mxu0 0.0
        %8195 = vmatpush1.msra.mxu0 0.0
        %8196 = vmatprep.subr.mxu0 0.0
        %8197 = vmatpush1.msra.mxu0 0.0
        %8198 = vmatprep.subr.mxu0 0.0
        %8199 = vmatpush1.msra.mxu0 0.0
        %8200 = vmatprep.subr.mxu0 0.0
        %8201 = vmatpush1.msra.mxu0 0.0
        %8202 = vmatprep.subr.mxu0 0.0
        %8203 = vmatpush1.msra.mxu0 0.0
        %8204 = vmatprep.subr.mxu0 0.0
        %8205 = vmatpush1.msra.mxu0 0.0
        %8206 = vmatprep.subr.mxu0 0.0
        %8207 = vmatpush1.msra.mxu0 0.0
        %8208 = vmatprep.subr.mxu0 0.0
        %8209 = vmatpush1.msra.mxu0 0.0
        %8210 = vmatprep.subr.mxu0 0.0
        %8211 = vmatpush1.msra.mxu0 0.0
        %8212 = vmatprep.subr.mxu0 0.0
        %8213 = vmatpush1.msra.mxu0 0.0
        %8214 = vmatprep.subr.mxu0 0.0
        %8215 = vmatpush1.msra.mxu0 0.0
        %8216 = vmatprep.subr.mxu0 0.0
        %8217 = vmatpush1.msra.mxu0 0.0
        %8218 = vmatprep.mubr.f32.mxu0 0.0
        %8219 = vmatmul.mubr.f32.gmra.mrb[0].mxu0 %v8152
        %v8220 = vpop.f32.mrb[0].mxu0
        %v8221 = vadd.f32 %v8149, %v8220
        %v8222 = vpop.f32.mrb[0].mxu0
        %8223 = vdwg.mxu0
        %s8224 = scalar_lea.vmem %s7, 40
        %v8225 = vld [vmem:[%s8224] sm:$0xff]
        %v8227 = vsel %vm1088, %v8225, 0
        %8229 = vmatprep.subr.mxu0 0.0
        %8230 = vmatpush1.msra.mxu0 %v8221
        %8231 = vmatprep.subr.mxu0 0.0
        %8232 = vmatpush1.msra.mxu0 0.0
        %8233 = vmatprep.subr.mxu0 0.0
        %8234 = vmatpush1.msra.mxu0 0.0
        %8235 = vmatprep.subr.mxu0 0.0
        %8236 = vmatpush1.msra.mxu0 0.0
        %8237 = vmatprep.subr.mxu0 0.0
        %8238 = vmatpush1.msra.mxu0 0.0
        %8239 = vmatprep.subr.mxu0 0.0
        %8240 = vmatpush1.msra.mxu0 0.0
        %8241 = vmatprep.subr.mxu0 0.0
        %8242 = vmatpush1.msra.mxu0 0.0
        %8243 = vmatprep.subr.mxu0 0.0
        %8244 = vmatpush1.msra.mxu0 0.0
        %8245 = vmatprep.subr.mxu0 0.0
        %8246 = vmatpush1.msra.mxu0 0.0
        %8247 = vmatprep.subr.mxu0 0.0
        %8248 = vmatpush1.msra.mxu0 0.0
        %8249 = vmatprep.subr.mxu0 0.0
        %8250 = vmatpush1.msra.mxu0 0.0
        %8251 = vmatprep.subr.mxu0 0.0
        %8252 = vmatpush1.msra.mxu0 0.0
        %8253 = vmatprep.subr.mxu0 0.0
        %8254 = vmatpush1.msra.mxu0 0.0
        %8255 = vmatprep.subr.mxu0 0.0
        %8256 = vmatpush1.msra.mxu0 0.0
        %8257 = vmatprep.subr.mxu0 0.0
        %8258 = vmatpush1.msra.mxu0 0.0
        %8259 = vmatprep.subr.mxu0 0.0
        %8260 = vmatpush1.msra.mxu0 0.0
        %8261 = vmatprep.subr.mxu0 0.0
        %8262 = vmatpush1.msra.mxu0 0.0
        %8263 = vmatprep.subr.mxu0 0.0
        %8264 = vmatpush1.msra.mxu0 0.0
        %8265 = vmatprep.subr.mxu0 0.0
        %8266 = vmatpush1.msra.mxu0 0.0
        %8267 = vmatprep.subr.mxu0 0.0
        %8268 = vmatpush1.msra.mxu0 0.0
        %8269 = vmatprep.subr.mxu0 0.0
        %8270 = vmatpush1.msra.mxu0 0.0
        %8271 = vmatprep.subr.mxu0 0.0
        %8272 = vmatpush1.msra.mxu0 0.0
        %8273 = vmatprep.subr.mxu0 0.0
        %8274 = vmatpush1.msra.mxu0 0.0
        %8275 = vmatprep.subr.mxu0 0.0
        %8276 = vmatpush1.msra.mxu0 0.0
        %8277 = vmatprep.subr.mxu0 0.0
        %8278 = vmatpush1.msra.mxu0 0.0
        %8279 = vmatprep.subr.mxu0 0.0
        %8280 = vmatpush1.msra.mxu0 0.0
        %8281 = vmatprep.subr.mxu0 0.0
        %8282 = vmatpush1.msra.mxu0 0.0
        %8283 = vmatprep.subr.mxu0 0.0
        %8284 = vmatpush1.msra.mxu0 0.0
        %8285 = vmatprep.subr.mxu0 0.0
        %8286 = vmatpush1.msra.mxu0 0.0
        %8287 = vmatprep.subr.mxu0 0.0
        %8288 = vmatpush1.msra.mxu0 0.0
        %8289 = vmatprep.subr.mxu0 0.0
        %8290 = vmatpush1.msra.mxu0 0.0
        %8291 = vmatprep.subr.mxu0 0.0
        %8292 = vmatpush1.msra.mxu0 0.0
        %8293 = vmatprep.mubr.f32.mxu0 0.0
        %8294 = vmatmul.mubr.f32.gmra.mrb[0].mxu0 %v8227
        %v8295 = vpop.f32.mrb[0].mxu0
        %v8296 = vadd.f32 0.0, %v8295
        %v8297 = vpop.f32.mrb[0].mxu0
        %8298 = vdwg.mxu0
        %8300 = vrot.lane.b32.xlu0 %v8296, 32
        %v8301 = vpop.permute.xlu0 %8300
        %v8303 = vsel %vm1179, %v8221, %v8301
        %s8304 = scalar_lea.vmem %s53, 320
        %v8305 = vld [vmem:[%s8304] sm:$0xff]
        %v8306 = vld [vmem:[%s8304 + $0x8] sm:$0xff]
        %v8307 = vld [vmem:[%s8304 + $0x10] sm:$0xff]
        %v8308 = vld [vmem:[%s8304 + $0x18] sm:$0xff]
        %v8309 = vld [vmem:[%s8304 + $0x20] sm:$0xff]
        %v8310 = vld [vmem:[%s8304 + $0x28] sm:$0xff]
        %v8311 = vld [vmem:[%s8304 + $0x30] sm:$0xff]
        %v8312 = vld [vmem:[%s8304 + $0x38] sm:$0xff]
        %s8313 = scalar_lea.vmem %s55, 5
        %v8314 = vld [vmem:[%s8313] sm:$0x1]
        %v8316 = vlaneseq
        %v8317 = vshrl.u32 %v8316, 7
        %v8318 = vsub.s32 0, %v8317
        %v8319 = vrot.slane %v8314, %v8318
        %v8322 = vsel %vm1348, %v8303, 0
        %8324 = vmatprep.subr.mxu0 0.0
        %8325 = vmatpush1.msra.mxu0 %v8305
        %8326 = vmatprep.subr.mxu0 0.0
        %8327 = vmatpush1.msra.mxu0 %v8306
        %8328 = vmatprep.subr.mxu0 0.0
        %8329 = vmatpush1.msra.mxu0 %v8307
        %8330 = vmatprep.subr.mxu0 0.0
        %8331 = vmatpush1.msra.mxu0 %v8308
        %8332 = vmatprep.subr.mxu0 0.0
        %8333 = vmatpush1.msra.mxu0 %v8309
        %8334 = vmatprep.subr.mxu0 0.0
        %8335 = vmatpush1.msra.mxu0 %v8310
        %8336 = vmatprep.subr.mxu0 0.0
        %8337 = vmatpush1.msra.mxu0 %v8311
        %8338 = vmatprep.subr.mxu0 0.0
        %8339 = vmatpush1.msra.mxu0 %v8312
        %8340 = vmatprep.subr.mxu0 0.0
        %8341 = vmatpush1.msra.mxu0 0.0
        %8342 = vmatprep.subr.mxu0 0.0
        %8343 = vmatpush1.msra.mxu0 0.0
        %8344 = vmatprep.subr.mxu0 0.0
        %8345 = vmatpush1.msra.mxu0 0.0
        %8346 = vmatprep.subr.mxu0 0.0
        %8347 = vmatpush1.msra.mxu0 0.0
        %8348 = vmatprep.subr.mxu0 0.0
        %8349 = vmatpush1.msra.mxu0 0.0
        %8350 = vmatprep.subr.mxu0 0.0
        %8351 = vmatpush1.msra.mxu0 0.0
        %8352 = vmatprep.subr.mxu0 0.0
        %8353 = vmatpush1.msra.mxu0 0.0
        %8354 = vmatprep.subr.mxu0 0.0
        %8355 = vmatpush1.msra.mxu0 0.0
        %8356 = vmatprep.subr.mxu0 0.0
        %8357 = vmatpush1.msra.mxu0 0.0
        %8358 = vmatprep.subr.mxu0 0.0
        %8359 = vmatpush1.msra.mxu0 0.0
        %8360 = vmatprep.subr.mxu0 0.0
        %8361 = vmatpush1.msra.mxu0 0.0
        %8362 = vmatprep.subr.mxu0 0.0
        %8363 = vmatpush1.msra.mxu0 0.0
        %8364 = vmatprep.subr.mxu0 0.0
        %8365 = vmatpush1.msra.mxu0 0.0
        %8366 = vmatprep.subr.mxu0 0.0
        %8367 = vmatpush1.msra.mxu0 0.0
        %8368 = vmatprep.subr.mxu0 0.0
        %8369 = vmatpush1.msra.mxu0 0.0
        %8370 = vmatprep.subr.mxu0 0.0
        %8371 = vmatpush1.msra.mxu0 0.0
        %8372 = vmatprep.subr.mxu0 0.0
        %8373 = vmatpush1.msra.mxu0 0.0
        %8374 = vmatprep.subr.mxu0 0.0
        %8375 = vmatpush1.msra.mxu0 0.0
        %8376 = vmatprep.subr.mxu0 0.0
        %8377 = vmatpush1.msra.mxu0 0.0
        %8378 = vmatprep.subr.mxu0 0.0
        %8379 = vmatpush1.msra.mxu0 0.0
        %8380 = vmatprep.subr.mxu0 0.0
        %8381 = vmatpush1.msra.mxu0 0.0
        %8382 = vmatprep.subr.mxu0 0.0
        %8383 = vmatpush1.msra.mxu0 0.0
        %8384 = vmatprep.subr.mxu0 0.0
        %8385 = vmatpush1.msra.mxu0 0.0
        %8386 = vmatprep.subr.mxu0 0.0
        %8387 = vmatpush1.msra.mxu0 0.0
        %8388 = vmatprep.mubr.f32.mxu0 0.0
        %8389 = vmatmul.mubr.f32.gmra.mrb[0].mxu0 %v8322
        %v8390 = vpop.f32.mrb[0].mxu0
        %v8391 = vadd.f32 %v8319, %v8390
        %v8392 = vpop.f32.mrb[0].mxu0
        %8393 = vdwg.mxu0
        %v8394 = vld [vmem:[%s63] sm:$0xff]
        %v8395 = vld [vmem:[%s63 + $0x8] sm:$0xff]
        %v8396 = vld [vmem:[%s63 + $0x10] sm:$0xff]
        %v8397 = vld [vmem:[%s63 + $0x18] sm:$0xff]
        %v8398 = vld [vmem:[%s65] sm:$0x1]
        %v8400 = vlaneseq
        %v8401 = vshrl.u32 %v8400, 7
        %v8402 = vsub.s32 0, %v8401
        %v8403 = vrot.slane %v8398, %v8402
        %v8406 = vsel %vm1179, %v8391, 0
        %8408 = vmatprep.subr.mxu0 0.0
        %8409 = vmatpush1.msra.mxu0 %v8394
        %8410 = vmatprep.subr.mxu0 0.0
        %8411 = vmatpush1.msra.mxu0 %v8395
        %8412 = vmatprep.subr.mxu0 0.0
        %8413 = vmatpush1.msra.mxu0 %v8396
        %8414 = vmatprep.subr.mxu0 0.0
        %8415 = vmatpush1.msra.mxu0 %v8397
        %8416 = vmatprep.subr.mxu0 0.0
        %8417 = vmatpush1.msra.mxu0 0.0
        %8418 = vmatprep.subr.mxu0 0.0
        %8419 = vmatpush1.msra.mxu0 0.0
        %8420 = vmatprep.subr.mxu0 0.0
        %8421 = vmatpush1.msra.mxu0 0.0
        %8422 = vmatprep.subr.mxu0 0.0
        %8423 = vmatpush1.msra.mxu0 0.0
        %8424 = vmatprep.subr.mxu0 0.0
        %8425 = vmatpush1.msra.mxu0 0.0
        %8426 = vmatprep.subr.mxu0 0.0
        %8427 = vmatpush1.msra.mxu0 0.0
        %8428 = vmatprep.subr.mxu0 0.0
        %8429 = vmatpush1.msra.mxu0 0.0
        %8430 = vmatprep.subr.mxu0 0.0
        %8431 = vmatpush1.msra.mxu0 0.0
        %8432 = vmatprep.subr.mxu0 0.0
        %8433 = vmatpush1.msra.mxu0 0.0
        %8434 = vmatprep.subr.mxu0 0.0
        %8435 = vmatpush1.msra.mxu0 0.0
        %8436 = vmatprep.subr.mxu0 0.0
        %8437 = vmatpush1.msra.mxu0 0.0
        %8438 = vmatprep.subr.mxu0 0.0
        %8439 = vmatpush1.msra.mxu0 0.0
        %8440 = vmatprep.subr.mxu0 0.0
        %8441 = vmatpush1.msra.mxu0 0.0
        %8442 = vmatprep.subr.mxu0 0.0
        %8443 = vmatpush1.msra.mxu0 0.0
        %8444 = vmatprep.subr.mxu0 0.0
        %8445 = vmatpush1.msra.mxu0 0.0
        %8446 = vmatprep.subr.mxu0 0.0
        %8447 = vmatpush1.msra.mxu0 0.0
        %8448 = vmatprep.subr.mxu0 0.0
        %8449 = vmatpush1.msra.mxu0 0.0
        %8450 = vmatprep.subr.mxu0 0.0
        %8451 = vmatpush1.msra.mxu0 0.0
        %8452 = vmatprep.subr.mxu0 0.0
        %8453 = vmatpush1.msra.mxu0 0.0
        %8454 = vmatprep.subr.mxu0 0.0
        %8455 = vmatpush1.msra.mxu0 0.0
        %8456 = vmatprep.subr.mxu0 0.0
        %8457 = vmatpush1.msra.mxu0 0.0
        %8458 = vmatprep.subr.mxu0 0.0
        %8459 = vmatpush1.msra.mxu0 0.0
        %8460 = vmatprep.subr.mxu0 0.0
        %8461 = vmatpush1.msra.mxu0 0.0
        %8462 = vmatprep.subr.mxu0 0.0
        %8463 = vmatpush1.msra.mxu0 0.0
        %8464 = vmatprep.subr.mxu0 0.0
        %8465 = vmatpush1.msra.mxu0 0.0
        %8466 = vmatprep.subr.mxu0 0.0
        %8467 = vmatpush1.msra.mxu0 0.0
        %8468 = vmatprep.subr.mxu0 0.0
        %8469 = vmatpush1.msra.mxu0 0.0
        %8470 = vmatprep.subr.mxu0 0.0
        %8471 = vmatpush1.msra.mxu0 0.0
        %8472 = vmatprep.mubr.f32.mxu0 0.0
        %8473 = vmatmul.mubr.f32.gmra.mrb[0].mxu0 %v8406
        %v8474 = vpop.f32.mrb[0].mxu0
        %v8475 = vadd.f32 %v8403, %v8474
        %v8476 = vpop.f32.mrb[0].mxu0
        %8477 = vdwg.mxu0
        %v8478 = vmax.f32 %v8475, 0.0
        %v8479 = vld [vmem:[%s67] sm:$0xff]
        %v8480 = vld [vmem:[%s67 + $0x8] sm:$0xff]
        %v8481 = vld [vmem:[%s67 + $0x10] sm:$0xff]
        %v8482 = vld [vmem:[%s67 + $0x18] sm:$0xff]
        %v8483 = vld [vmem:[%s69] sm:$0x1]
        %v8485 = vlaneseq
        %v8486 = vshrl.u32 %v8485, 7
        %v8487 = vsub.s32 0, %v8486
        %v8488 = vrot.slane %v8483, %v8487
        %v8491 = vsel %vm1179, %v8478, 0
        %8493 = vmatprep.subr.mxu0 0.0
        %8494 = vmatpush1.msra.mxu0 %v8479
        %8495 = vmatprep.subr.mxu0 0.0
        %8496 = vmatpush1.msra.mxu0 %v8480
        %8497 = vmatprep.subr.mxu0 0.0
        %8498 = vmatpush1.msra.mxu0 %v8481
        %8499 = vmatprep.subr.mxu0 0.0
        %8500 = vmatpush1.msra.mxu0 %v8482
        %8501 = vmatprep.subr.mxu0 0.0
        %8502 = vmatpush1.msra.mxu0 0.0
        %8503 = vmatprep.subr.mxu0 0.0
        %8504 = vmatpush1.msra.mxu0 0.0
        %8505 = vmatprep.subr.mxu0 0.0
        %8506 = vmatpush1.msra.mxu0 0.0
        %8507 = vmatprep.subr.mxu0 0.0
        %8508 = vmatpush1.msra.mxu0 0.0
        %8509 = vmatprep.subr.mxu0 0.0
        %8510 = vmatpush1.msra.mxu0 0.0
        %8511 = vmatprep.subr.mxu0 0.0
        %8512 = vmatpush1.msra.mxu0 0.0
        %8513 = vmatprep.subr.mxu0 0.0
        %8514 = vmatpush1.msra.mxu0 0.0
        %8515 = vmatprep.subr.mxu0 0.0
        %8516 = vmatpush1.msra.mxu0 0.0
        %8517 = vmatprep.subr.mxu0 0.0
        %8518 = vmatpush1.msra.mxu0 0.0
        %8519 = vmatprep.subr.mxu0 0.0
        %8520 = vmatpush1.msra.mxu0 0.0
        %8521 = vmatprep.subr.mxu0 0.0
        %8522 = vmatpush1.msra.mxu0 0.0
        %8523 = vmatprep.subr.mxu0 0.0
        %8524 = vmatpush1.msra.mxu0 0.0
        %8525 = vmatprep.subr.mxu0 0.0
        %8526 = vmatpush1.msra.mxu0 0.0
        %8527 = vmatprep.subr.mxu0 0.0
        %8528 = vmatpush1.msra.mxu0 0.0
        %8529 = vmatprep.subr.mxu0 0.0
        %8530 = vmatpush1.msra.mxu0 0.0
        %8531 = vmatprep.subr.mxu0 0.0
        %8532 = vmatpush1.msra.mxu0 0.0
        %8533 = vmatprep.subr.mxu0 0.0
        %8534 = vmatpush1.msra.mxu0 0.0
        %8535 = vmatprep.subr.mxu0 0.0
        %8536 = vmatpush1.msra.mxu0 0.0
        %8537 = vmatprep.subr.mxu0 0.0
        %8538 = vmatpush1.msra.mxu0 0.0
        %8539 = vmatprep.subr.mxu0 0.0
        %8540 = vmatpush1.msra.mxu0 0.0
        %8541 = vmatprep.subr.mxu0 0.0
        %8542 = vmatpush1.msra.mxu0 0.0
        %8543 = vmatprep.subr.mxu0 0.0
        %8544 = vmatpush1.msra.mxu0 0.0
        %8545 = vmatprep.subr.mxu0 0.0
        %8546 = vmatpush1.msra.mxu0 0.0
        %8547 = vmatprep.subr.mxu0 0.0
        %8548 = vmatpush1.msra.mxu0 0.0
        %8549 = vmatprep.subr.mxu0 0.0
        %8550 = vmatpush1.msra.mxu0 0.0
        %8551 = vmatprep.subr.mxu0 0.0
        %8552 = vmatpush1.msra.mxu0 0.0
        %8553 = vmatprep.subr.mxu0 0.0
        %8554 = vmatpush1.msra.mxu0 0.0
        %8555 = vmatprep.subr.mxu0 0.0
        %8556 = vmatpush1.msra.mxu0 0.0
        %8557 = vmatprep.mubr.f32.mxu0 0.0
        %8558 = vmatmul.mubr.f32.gmra.mrb[0].mxu0 %v8491
        %v8559 = vpop.f32.mrb[0].mxu0
        %v8560 = vadd.f32 %v8488, %v8559
        %v8561 = vpop.f32.mrb[0].mxu0
        %8562 = vdwg.mxu0
        %8563 = vst [vmem:[%s1076] sm:$0xff] %v8560
        %s8564 = sand.u32 %s838, 1
        %s8565 = scalar_lea.sflag [#allocation3], %s8564
        %s8566 = sand.u32 %s838, 1
        %s8567 = smul.addr %s8566, 8
        %s8568 = scalar_lea.vmem [#allocation2], %s8567
        // Predicated region
        $region161: #{tpu_custom_call.1} parent=159 // pred_check
          %p8569 = pneg %p848
        $region162: #{tpu_custom_call.1} parent=159 // pred_check_branch
          %8571 = sbr.rel (%p8569) target = $region164
        $region163: #{tpu_custom_call.1} parent=159 // pred_region
          %s8573 = ssub.s32 128, 128
          %8574 = vsyncadd %s8565, %s8573
          %s8575 = smul.addr %s85, 128
          %s8576 = scalar_lea.hbm %s71, %s8575
          %s8578 = sshll.u32 %s8568, 4
          %s8579 = int_to_ptr.vmem [resolvable:$true] %s8578
          %8581 = dma.vmem_to_hbm [thread:$0]  %s8579, 128, %s8576, %s8565
        $region164: #{tpu_custom_call.1} parent=159 // pred_fallthru
          _
      $region160: #{tpu_custom_call.1} parent=5 // pred_fallthru
        _
      %p8582 = scmp.le.s32.totalorder 2, %s80
      // Predicated region
      $region165: #{tpu_custom_call.1} parent=5 // pred_check
        %p8583 = pneg %p8582
      $region166: #{tpu_custom_call.1} parent=5 // pred_check_branch
        %8585 = sbr.rel (%p8583) target = $region168
      $region167: #{tpu_custom_call.1} parent=5 // pred_region
        %s8586 = ssub.s32 %s80, 2
        // Predicated region
        $region169: #{tpu_custom_call.1} parent=167 // pred_check
          %p8587 = pneg %p854
        $region170: #{tpu_custom_call.1} parent=167 // pred_check_branch
          %8589 = sbr.rel (%p8587) target = $region172
        $region171: #{tpu_custom_call.1} parent=167 // pred_region
          %s8590 = sand.u32 %s839, 1
          %s8591 = scalar_lea.sflag [#allocation3], %s8590
          %s8592 = sand.u32 %s839, 1
          %s8593 = smul.addr %s8592, 8
          %s8594 = scalar_lea.vmem [#allocation2], %s8593
          %8595 = dma.done %s8591, 128
        $region172: #{tpu_custom_call.1} parent=167 // pred_fallthru
          _
      $region168: #{tpu_custom_call.1} parent=5 // pred_fallthru
        _
    $region6: #{tpu_custom_call.1} parent=1 // loop_footer
      %s84 = sadd.s32 1, %s80
    $region7: #{tpu_custom_call.1} parent=1 // loop_footer_branch
      %79 = sbr.rel target = $region3
    $region8: #{tpu_custom_call.1} parent=1 // loop_exit
      _
    %8596 = vsyncpa [#allocation3], 1
    %s8597 = scalar_lea.sflag [#allocation3], 1
    %8598 = vsyncpa %s8597, 1

</llo_original>
